<compile_context>
chip_gen: v5e
topology: v5e:2x2
jax: 0.10.0
libtpu: 0.0.40
codegen_flags: <defaults>
</compile_context>

<pallas_src>
import functools

import jax
import jax.numpy as jnp
import numpy as np
from jax.experimental import pallas as pl
from jax.experimental.pallas import tpu as pltpu

_SUPER = 1024                      # samples per in-kernel superchunk (= 8 x 128, one f32 vreg)
_SUB = _SUPER // 128               # 8 sublanes
_NT = (((1,), (1,)), ((), ()))     # dot_general dims: contract minor axes (A @ B^T)


def _tri_pairs(c):
    return [(k, l) for k in range(c) for l in range(k, c)]


def _superchunk_solve(Yz, Okf, wT, Lm, vy, c, precision):
    """PPCA E-step for one 1024-sample superchunk, batched over (8,128) vregs.

    Yz  : (1024, d) masked & sanitized observations (zero where unobserved)
    Okf : (1024, d) 0/1 observation mask (float32)
    wT  : (c, d)
    Lm  : (tri + c, d); rows 0..tri-1 = w[:,k]*w[:,l] (k<=l), rows tri.. = w[:,k]*m
    Returns packed (tri + c, 8, 128): Sigma upper-tri rows, then xbar rows.
    """
    tri = (c * (c + 1)) // 2

    # MXU: one pass per superchunk (samples on lanes, K = d).
    G = jax.lax.dot_general(Lm, Okf, _NT, precision=precision,
                            preferred_element_type=jnp.float32)    # (tri+c, 1024)
    T0 = jax.lax.dot_general(wT, Yz, _NT, precision=precision,
                             preferred_element_type=jnp.float32)   # (c, 1024)

    # Relayout each result row into a dense (8,128) vreg (sample axis fills
    # sublanes AND lanes) so the per-sample algebra uses full vregs.
    Gr = G.reshape(tri + c, _SUB, 128)
    Tr = T0.reshape(c, _SUB, 128)

    # A = vy*I_c + Oww as a c x c grid of (8,128) arrays.  Symmetric entries
    # alias the same upper-triangular MXU row (GJ reassigns them functionally).
    A = [[None] * c for _ in range(c)]
    for r, (k, l) in enumerate(_tri_pairs(c)):
        v = Gr[r]
        if k == l:
            v = v + vy
        A[k][l] = v
        if l != k:
            A[l][k] = v

    # t[k] = sum_i w[i,k]*Yz[n,i] - sum_i O[n,i]*w[i,k]*m[i]  (mean folded into MXU).
    t = [Tr[k] - Gr[tri + k] for k in range(c)]

    ones = jnp.ones((_SUB, 128), jnp.float32)
    zeros = jnp.zeros((_SUB, 128), jnp.float32)
    M = [[ones if k == l else zeros for l in range(c)] for k in range(c)]

    # Vreg-batched Gauss-Jordan.  A is SPD with diagonal >= vy > 0, so no
    # pivoting is required; pivot reciprocal kept exact (only c per superchunk).
    # Column updates are trimmed to the structurally non-trivial entries.
    for k in range(c):
        ip = 1.0 / A[k][k]
        for j in range(k + 1, c):
            A[k][j] = A[k][j] * ip
        for j in range(k + 1):
            M[k][j] = M[k][j] * ip
        for i in range(c):
            if i == k:
                continue
            f = A[i][k]
            for j in range(k + 1, c):
                A[i][j] = A[i][j] - f * A[k][j]
            for j in range(k + 1):
                M[i][j] = M[i][j] - f * M[k][j]

    # Packed rows: Sigma upper triangle (vy * inv(A)), then xbar = inv(A) @ t.
    out_rows = [vy * M[k][l] for (k, l) in _tri_pairs(c)]
    for l in range(c):
        acc = M[l][0] * t[0]
        for k in range(1, c):
            acc = acc + M[l][k] * t[k]
        out_rows.append(acc)
    return jnp.concatenate([r[None] for r in out_rows], axis=0)     # (tri+c, 8, 128)


def _ppca_kernel_auto_mask(y_ref, wT_ref, lm_ref, vy_ref, out_ref, *, c, precision):
    # y_ref  : (tile, d) natural-layout Y tile (may contain NaN/Inf)
    # out_ref: (tile/1024, tri+c, 8, 128) packed Sigma/xbar superchunks
    vy = vy_ref[0]
    wT = wT_ref[...]                    # (c, d)
    Lm = lm_ref[...]                    # (tri + c, d)
    n_super = y_ref.shape[0] // _SUPER

    def body(j, carry):
        off = pl.multiple_of(j * _SUPER, _SUPER)
        Yk = y_ref[pl.ds(off, _SUPER), :]                 # (1024, d)
        # NOTE: the elementwise masking runs on the lane-padded (1024, d<128)
        # layout; moving it behind an in-kernel (d,1024) XLU transpose is the
        # next candidate optimization (review item 5, option a).
        fin = jnp.isfinite(Yk)
        Okf = fin.astype(jnp.float32)
        # For O = isfinite(Y): masked, sanitized Y is simply where(finite, Y, 0).
        Yz = jnp.where(fin, Yk, jnp.float32(0.0))
        out_ref[j] = _superchunk_solve(Yz, Okf, wT, Lm, vy, c, precision)
        return carry

    jax.lax.fori_loop(0, n_super, body, 0)


def _ppca_kernel_with_mask(y_ref, o_ref, wT_ref, lm_ref, vy_ref, out_ref, *, c, precision):
    # Explicit-O path (API parity with the PyTorch module).  O streamed as bf16.
    vy = vy_ref[0]
    wT = wT_ref[...]
    Lm = lm_ref[...]
    n_super = y_ref.shape[0] // _SUPER
    fmax = jnp.float32(jnp.finfo(jnp.float32).max)

    def body(j, carry):
        off = pl.multiple_of(j * _SUPER, _SUPER)
        Yk = y_ref[pl.ds(off, _SUPER), :]
        Okf = o_ref[pl.ds(off, _SUPER), :].astype(jnp.float32)
        # torch.nan_to_num semantics: nan -> 0, +/-inf -> +/-finfo.max
        Yk = jnp.where(jnp.isnan(Yk), jnp.float32(0.0), Yk)
        Yk = jnp.clip(Yk, -fmax, fmax)
        Yz = Yk * Okf
        out_ref[j] = _superchunk_solve(Yz, Okf, wT, Lm, vy, c, precision)
        return carry

    jax.lax.fori_loop(0, n_super, body, 0)


def _choose_tile(n, requested):
    """Samples per grid step: a multiple of the 1024-sample superchunk, big
    enough to amortize per-grid-step overhead, capped so the grid keeps >= 2
    steps when possible (v7x megacore) and never over-pads."""
    q = pl.cdiv(n, _SUPER)                               # number of superchunks
    req = max(1, min(int(requested), 65536) // _SUPER)
    if q >= 2:
        req = min(req, pl.cdiv(q, 2))                    # keep at least 2 grid steps
    return min(req, q) * _SUPER


def ppca_forward(Y, w, m, vy, O=None, tile_n=8192,
                 precision=jax.lax.Precision.HIGHEST):
    """Pallas implementation of PPCA.forward.  Returns (xbarn, Sigma_xn)."""
    n, d = Y.shape
    c = w.shape[1]
    tri = (c * (c + 1)) // 2
    rows = tri + c
    # Pivot-free Gauss-Jordan relies on vy > 0 (A is then SPD with diag >= vy).
    if isinstance(vy, (int, float)):
        assert vy > 0.0, "vy must be > 0"

    tile = _choose_tile(n, tile_n)
    tile_sc = tile // _SUPER
    N = pl.cdiv(n, tile) * tile
    grid = (N // tile,)

    Yf = Y.astype(jnp.float32)
    if N != n:
        Yf = jnp.pad(Yf, ((0, N - n), (0, 0)))   # zero rows: finite & well-posed, dropped later

    wf = w.astype(jnp.float32)                                   # (d, c)
    mf = m.astype(jnp.float32).reshape(d)
    wT = wf.T                                                    # (c, d)
    lm_rows = [wf[:, k] * wf[:, l] for (k, l) in _tri_pairs(c)]  # upper-tri w⊗w rows
    lm_rows += [wf[:, k] * mf for k in range(c)]                 # mean-correction rows
    Lm = jnp.stack(lm_rows, axis=0)                              # (rows, d)
    vy_arr = jnp.full((1,), vy, jnp.float32)

    param_specs = [
        pl.BlockSpec((c, d), lambda i: (0, 0)),                  # w^T
        pl.BlockSpec((rows, d), lambda i: (0, 0)),               # stacked LHS
        pl.BlockSpec(memory_space=pltpu.MemorySpace.SMEM),       # vy scalar
    ]
    out_spec = pl.BlockSpec((tile_sc, rows, _SUB, 128), lambda i: (i, 0, 0, 0))
    out_shape = jax.ShapeDtypeStruct((N // _SUPER, rows, _SUB, 128), jnp.float32)
    cparams = pltpu.CompilerParams(dimension_semantics=("parallel",))

    if O is None:
        packed = pl.pallas_call(
            functools.partial(_ppca_kernel_auto_mask, c=c, precision=precision),
            grid=grid,
            in_specs=[pl.BlockSpec((tile, d), lambda i: (i, 0))] + param_specs,
            out_specs=out_spec,
            out_shape=out_shape,
            compiler_params=cparams,
        )(Yf, wT, Lm, vy_arr)
    else:
        O_bf = O.astype(jnp.bfloat16)                            # 0/1 exact in bf16
        if N != n:
            O_bf = jnp.pad(O_bf, ((0, N - n), (0, 0)))
        packed = pl.pallas_call(
            functools.partial(_ppca_kernel_with_mask, c=c, precision=precision),
            grid=grid,
            in_specs=[pl.BlockSpec((tile, d), lambda i: (i, 0)),
                      pl.BlockSpec((tile, d), lambda i: (i, 0))] + param_specs,
            out_specs=out_spec,
            out_shape=out_shape,
            compiler_params=cparams,
        )(Yf, O_bf, wT, Lm, vy_arr)

    # Unscramble: sample s lives at packed[s//1024, :, (s%1024)//128, s%128].
    # (Kept in the wrapper on purpose: an in-kernel transpose would force
    #  masked narrow-lane stores, which is exactly what the packed layout avoids.)
    flat = packed.transpose(0, 2, 3, 1).reshape(N, rows)[:n]
    xbarn = flat[:, tri:]
    # Rebuild the full symmetric Sigma from its packed upper triangle.
    idx = np.zeros((c, c), np.int32)
    for r, (k, l) in enumerate(_tri_pairs(c)):
        idx[k, l] = r
        idx[l, k] = r
    Sigma_xn = jnp.take(flat[:, :tri], jnp.asarray(idx.reshape(-1)), axis=1)
    Sigma_xn = Sigma_xn.reshape(n, c, c)
    return xbarn, Sigma_xn


def ppca_forward_ref(Y, w, m, vy, O=None):
    """Plain-JAX reference matching the PyTorch forward."""
    if O is None:
        O = jnp.isfinite(Y)
    O_ = O.astype(jnp.float32)
    Yc = jnp.nan_to_num(Y)
    c = w.shape[1]
    Oww = jnp.einsum('ni,ik,il->nkl', O_, w, w, precision='highest')
    A = vy * jnp.eye(c, dtype=jnp.float32)[None] + Oww
    Sigma = vy * jnp.linalg.inv(A)
    xbar = jnp.einsum('nlk,ni,ik,ni->nl', Sigma / vy, O_, w, Yc - m,
                      precision='highest')
    return xbar, Sigma


# TODO(synk): initialize_from (SVD), m_step and fit_transform are host-side EM
# driver code (linalg.svd / linalg.solve over tiny c x c systems + a Python
# loop); they are intentionally not kernelized here — only forward() is.

if __name__ == "__main__":
    key = jax.random.PRNGKey(0)
    k1, k2, k3, k4, k5 = jax.random.split(key, 5)

    # Shapes consistent with the module: n samples, d features, c latents.
    # n is not a multiple of 1024 (exercises padding) and large enough that the
    # in-kernel superchunk loop and a multi-step grid both run (tile=2048 here).
    n, d, c = 2500, 32, 4
    Y = jax.random.normal(k1, (n, d), jnp.float32)
    nan_mask = jax.random.bernoulli(k2, 0.15, (n, d))
    Y = jnp.where(nan_mask, jnp.nan, Y)

    # Deterministic parameters (module __init__ gives zeros, which is degenerate;
    # use PRNGKey(0)-derived values of the same shapes/dtypes).
    w = 0.5 * jax.random.normal(k3, (d, c), jnp.float32)
    m = 0.1 * jax.random.normal(k4, (d,), jnp.float32)
    vy = 0.8

    # Default path: O = None (mask recomputed in-kernel from isfinite(Y)).
    xbar, Sigma = ppca_forward(Y, w, m, vy)
    jax.block_until_ready((xbar, Sigma))
    xbar_r, Sigma_r = ppca_forward_ref(Y, w, m, vy)
    assert xbar.shape == (n, c) and Sigma.shape == (n, c, c)
    assert np.allclose(np.asarray(xbar), np.asarray(xbar_r), atol=1e-3, rtol=1e-3)
    assert np.allclose(np.asarray(Sigma), np.asarray(Sigma_r), atol=1e-3, rtol=1e-3)

    # Explicit-O path (API parity with the PyTorch module).
    O = jax.random.bernoulli(k5, 0.8, (n, d))
    xbar2, Sigma2 = ppca_forward(Y, w, m, vy, O=O)
    jax.block_until_ready((xbar2, Sigma2))
    xbar2_r, Sigma2_r = ppca_forward_ref(Y, w, m, vy, O=O)
    assert np.allclose(np.asarray(xbar2), np.asarray(xbar2_r), atol=1e-3, rtol=1e-3)
    assert np.allclose(np.asarray(Sigma2), np.asarray(Sigma2_r), atol=1e-3, rtol=1e-3)

    print("KERNEL_OK")
</pallas_src>

<mosaic_0001>
module attributes {stable_mosaic.version = 11 : i64} {
  func.func @_ppca_kernel_auto_mask(%arg0: i32, %arg1: memref<2048x32xf32, #tpu.memory_space<vmem>>, %arg2: memref<4x32xf32, #tpu.memory_space<vmem>>, %arg3: memref<14x32xf32, #tpu.memory_space<vmem>>, %arg4: memref<1xf32, #tpu.memory_space<smem>>, %arg5: memref<2x14x8x128xf32, #tpu.memory_space<vmem>>) attributes {dimension_semantics = [#tpu.dimension_semantics<parallel>], iteration_bounds = array<i64: 2>, scalar_prefetch = 0 : i64, scratch_operands = 0 : i64, tpu.core_type = #tpu.core_type<tc>, window_params = [{transform_indices = @transform_0, window_bounds = array<i64: 2048, 32>}, {pipeline_mode = #tpu.pipeline_mode<synchronous>, transform_indices = @transform_1, window_bounds = array<i64: 4, 32>}, {pipeline_mode = #tpu.pipeline_mode<synchronous>, transform_indices = @transform_2, window_bounds = array<i64: 14, 32>}, {transform_indices = @transform_3, window_bounds = array<i64: 1>}, {transform_indices = @transform_4, window_bounds = array<i64: 2, 14, 8, 128>}]} {
    %c0 = arith.constant 0 : index
    %0 = memref.load %arg4[%c0] : memref<1xf32, #tpu.memory_space<smem>>
    %c0_0 = arith.constant 0 : index
    %c0_1 = arith.constant 0 : index
    %1 = vector.load %arg2[%c0_0, %c0_1] : memref<4x32xf32, #tpu.memory_space<vmem>>, vector<4x32xf32>
    %c0_2 = arith.constant 0 : index
    %c0_3 = arith.constant 0 : index
    %2 = vector.load %arg3[%c0_2, %c0_3] : memref<14x32xf32, #tpu.memory_space<vmem>>, vector<14x32xf32>
    %c0_i32 = arith.constant 0 : i32
    %c2_i32 = arith.constant 2 : i32
    %3 = arith.addi %c0_i32, %c2_i32 : i32
    %c1_i32 = arith.constant 1 : i32
    scf.for %arg6 = %c0_i32 to %3 step %c1_i32  : i32 {
      %c1024_i32 = arith.constant 1024 : i32
      %4 = arith.muli %arg6, %c1024_i32 : i32
      %5 = tpu.assume_multiple %4, 1024 : i32
      %6 = arith.index_cast %5 : i32 to index
      %c0_5 = arith.constant 0 : index
      %7 = vector.load %arg1[%6, %c0_5] : memref<2048x32xf32, #tpu.memory_space<vmem>>, vector<1024x32xf32>
      %8 = tpu.weird %7 : vector<1024x32xf32> -> vector<1024x32xi1>
      %cst = arith.constant dense<true> : vector<1024x32xi1>
      %9 = arith.xori %8, %cst : vector<1024x32xi1>
      %10 = arith.extui %9 : vector<1024x32xi1> to vector<1024x32xi32>
      %11 = arith.sitofp %10 : vector<1024x32xi32> to vector<1024x32xf32>
      %cst_6 = arith.constant 0.000000e+00 : f32
      %12 = vector.broadcast %cst_6 : f32 to vector<1024x32xf32>
      %13 = arith.select %9, %7, %12 : vector<1024x32xi1>, vector<1024x32xf32>
      %cst_7 = arith.constant dense<0.000000e+00> : vector<14x1024xf32>
      %14 = tpu.matmul %2, %11, %cst_7 {dimension_numbers = #tpu.dot_dimension_numbers<[1], [1], [0], [0], [0, 0, 1, 0], [], []>, precision = #tpu.contract_precision<fp32>} : vector<14x32xf32>, vector<1024x32xf32>, vector<14x1024xf32> -> vector<14x1024xf32>
      %cst_8 = arith.constant dense<0.000000e+00> : vector<4x1024xf32>
      %15 = tpu.matmul %1, %13, %cst_8 {dimension_numbers = #tpu.dot_dimension_numbers<[1], [1], [0], [0], [0, 0, 1, 0], [], []>, precision = #tpu.contract_precision<fp32>} : vector<4x32xf32>, vector<1024x32xf32>, vector<4x1024xf32> -> vector<4x1024xf32>
      %16 = vector.shape_cast %14 : vector<14x1024xf32> to vector<14x8x128xf32>
      %17 = vector.shape_cast %15 : vector<4x1024xf32> to vector<4x8x128xf32>
      %18 = vector.extract_strided_slice %16 {offsets = [0, 0, 0], sizes = [1, 8, 128], strides = [1, 1, 1]} : vector<14x8x128xf32> to vector<1x8x128xf32>
      %19 = vector.shape_cast %18 : vector<1x8x128xf32> to vector<8x128xf32>
      %20 = vector.broadcast %0 : f32 to vector<8x128xf32>
      %21 = arith.addf %19, %20 : vector<8x128xf32>
      %22 = vector.extract_strided_slice %16 {offsets = [1, 0, 0], sizes = [1, 8, 128], strides = [1, 1, 1]} : vector<14x8x128xf32> to vector<1x8x128xf32>
      %23 = vector.shape_cast %22 : vector<1x8x128xf32> to vector<8x128xf32>
      %24 = vector.extract_strided_slice %16 {offsets = [2, 0, 0], sizes = [1, 8, 128], strides = [1, 1, 1]} : vector<14x8x128xf32> to vector<1x8x128xf32>
      %25 = vector.shape_cast %24 : vector<1x8x128xf32> to vector<8x128xf32>
      %26 = vector.extract_strided_slice %16 {offsets = [3, 0, 0], sizes = [1, 8, 128], strides = [1, 1, 1]} : vector<14x8x128xf32> to vector<1x8x128xf32>
      %27 = vector.shape_cast %26 : vector<1x8x128xf32> to vector<8x128xf32>
      %28 = vector.extract_strided_slice %16 {offsets = [4, 0, 0], sizes = [1, 8, 128], strides = [1, 1, 1]} : vector<14x8x128xf32> to vector<1x8x128xf32>
      %29 = vector.shape_cast %28 : vector<1x8x128xf32> to vector<8x128xf32>
      %30 = vector.broadcast %0 : f32 to vector<8x128xf32>
      %31 = arith.addf %29, %30 : vector<8x128xf32>
      %32 = vector.extract_strided_slice %16 {offsets = [5, 0, 0], sizes = [1, 8, 128], strides = [1, 1, 1]} : vector<14x8x128xf32> to vector<1x8x128xf32>
      %33 = vector.shape_cast %32 : vector<1x8x128xf32> to vector<8x128xf32>
      %34 = vector.extract_strided_slice %16 {offsets = [6, 0, 0], sizes = [1, 8, 128], strides = [1, 1, 1]} : vector<14x8x128xf32> to vector<1x8x128xf32>
      %35 = vector.shape_cast %34 : vector<1x8x128xf32> to vector<8x128xf32>
      %36 = vector.extract_strided_slice %16 {offsets = [7, 0, 0], sizes = [1, 8, 128], strides = [1, 1, 1]} : vector<14x8x128xf32> to vector<1x8x128xf32>
      %37 = vector.shape_cast %36 : vector<1x8x128xf32> to vector<8x128xf32>
      %38 = vector.broadcast %0 : f32 to vector<8x128xf32>
      %39 = arith.addf %37, %38 : vector<8x128xf32>
      %40 = vector.extract_strided_slice %16 {offsets = [8, 0, 0], sizes = [1, 8, 128], strides = [1, 1, 1]} : vector<14x8x128xf32> to vector<1x8x128xf32>
      %41 = vector.shape_cast %40 : vector<1x8x128xf32> to vector<8x128xf32>
      %42 = vector.extract_strided_slice %16 {offsets = [9, 0, 0], sizes = [1, 8, 128], strides = [1, 1, 1]} : vector<14x8x128xf32> to vector<1x8x128xf32>
      %43 = vector.shape_cast %42 : vector<1x8x128xf32> to vector<8x128xf32>
      %44 = vector.broadcast %0 : f32 to vector<8x128xf32>
      %45 = arith.addf %43, %44 : vector<8x128xf32>
      %46 = vector.extract_strided_slice %17 {offsets = [0, 0, 0], sizes = [1, 8, 128], strides = [1, 1, 1]} : vector<4x8x128xf32> to vector<1x8x128xf32>
      %47 = vector.shape_cast %46 : vector<1x8x128xf32> to vector<8x128xf32>
      %48 = vector.extract_strided_slice %16 {offsets = [10, 0, 0], sizes = [1, 8, 128], strides = [1, 1, 1]} : vector<14x8x128xf32> to vector<1x8x128xf32>
      %49 = vector.shape_cast %48 : vector<1x8x128xf32> to vector<8x128xf32>
      %50 = arith.subf %47, %49 : vector<8x128xf32>
      %51 = vector.extract_strided_slice %17 {offsets = [1, 0, 0], sizes = [1, 8, 128], strides = [1, 1, 1]} : vector<4x8x128xf32> to vector<1x8x128xf32>
      %52 = vector.shape_cast %51 : vector<1x8x128xf32> to vector<8x128xf32>
      %53 = vector.extract_strided_slice %16 {offsets = [11, 0, 0], sizes = [1, 8, 128], strides = [1, 1, 1]} : vector<14x8x128xf32> to vector<1x8x128xf32>
      %54 = vector.shape_cast %53 : vector<1x8x128xf32> to vector<8x128xf32>
      %55 = arith.subf %52, %54 : vector<8x128xf32>
      %56 = vector.extract_strided_slice %17 {offsets = [2, 0, 0], sizes = [1, 8, 128], strides = [1, 1, 1]} : vector<4x8x128xf32> to vector<1x8x128xf32>
      %57 = vector.shape_cast %56 : vector<1x8x128xf32> to vector<8x128xf32>
      %58 = vector.extract_strided_slice %16 {offsets = [12, 0, 0], sizes = [1, 8, 128], strides = [1, 1, 1]} : vector<14x8x128xf32> to vector<1x8x128xf32>
      %59 = vector.shape_cast %58 : vector<1x8x128xf32> to vector<8x128xf32>
      %60 = arith.subf %57, %59 : vector<8x128xf32>
      %61 = vector.extract_strided_slice %17 {offsets = [3, 0, 0], sizes = [1, 8, 128], strides = [1, 1, 1]} : vector<4x8x128xf32> to vector<1x8x128xf32>
      %62 = vector.shape_cast %61 : vector<1x8x128xf32> to vector<8x128xf32>
      %63 = vector.extract_strided_slice %16 {offsets = [13, 0, 0], sizes = [1, 8, 128], strides = [1, 1, 1]} : vector<14x8x128xf32> to vector<1x8x128xf32>
      %64 = vector.shape_cast %63 : vector<1x8x128xf32> to vector<8x128xf32>
      %65 = arith.subf %62, %64 : vector<8x128xf32>
      %cst_9 = arith.constant 1.000000e+00 : f32
      %66 = vector.broadcast %cst_9 : f32 to vector<8x128xf32>
      %cst_10 = arith.constant 0.000000e+00 : f32
      %67 = vector.broadcast %cst_10 : f32 to vector<8x128xf32>
      %cst_11 = arith.constant 1.000000e+00 : f32
      %68 = vector.broadcast %cst_11 : f32 to vector<8x128xf32>
      %69 = arith.divf %68, %21 : vector<8x128xf32>
      %70 = arith.mulf %23, %69 : vector<8x128xf32>
      %71 = arith.mulf %25, %69 : vector<8x128xf32>
      %72 = arith.mulf %27, %69 : vector<8x128xf32>
      %73 = arith.mulf %66, %69 : vector<8x128xf32>
      %74 = arith.mulf %23, %70 : vector<8x128xf32>
      %75 = arith.subf %31, %74 : vector<8x128xf32>
      %76 = arith.mulf %23, %71 : vector<8x128xf32>
      %77 = arith.subf %33, %76 : vector<8x128xf32>
      %78 = arith.mulf %23, %72 : vector<8x128xf32>
      %79 = arith.subf %35, %78 : vector<8x128xf32>
      %80 = arith.mulf %23, %73 : vector<8x128xf32>
      %81 = arith.subf %67, %80 : vector<8x128xf32>
      %82 = arith.mulf %25, %70 : vector<8x128xf32>
      %83 = arith.subf %33, %82 : vector<8x128xf32>
      %84 = arith.mulf %25, %71 : vector<8x128xf32>
      %85 = arith.subf %39, %84 : vector<8x128xf32>
      %86 = arith.mulf %25, %72 : vector<8x128xf32>
      %87 = arith.subf %41, %86 : vector<8x128xf32>
      %88 = arith.mulf %25, %73 : vector<8x128xf32>
      %89 = arith.subf %67, %88 : vector<8x128xf32>
      %90 = arith.mulf %27, %70 : vector<8x128xf32>
      %91 = arith.subf %35, %90 : vector<8x128xf32>
      %92 = arith.mulf %27, %71 : vector<8x128xf32>
      %93 = arith.subf %41, %92 : vector<8x128xf32>
      %94 = arith.mulf %27, %72 : vector<8x128xf32>
      %95 = arith.subf %45, %94 : vector<8x128xf32>
      %96 = arith.mulf %27, %73 : vector<8x128xf32>
      %97 = arith.subf %67, %96 : vector<8x128xf32>
      %cst_12 = arith.constant 1.000000e+00 : f32
      %98 = vector.broadcast %cst_12 : f32 to vector<8x128xf32>
      %99 = arith.divf %98, %75 : vector<8x128xf32>
      %100 = arith.mulf %77, %99 : vector<8x128xf32>
      %101 = arith.mulf %79, %99 : vector<8x128xf32>
      %102 = arith.mulf %81, %99 : vector<8x128xf32>
      %103 = arith.mulf %66, %99 : vector<8x128xf32>
      %104 = arith.mulf %70, %100 : vector<8x128xf32>
      %105 = arith.subf %71, %104 : vector<8x128xf32>
      %106 = arith.mulf %70, %101 : vector<8x128xf32>
      %107 = arith.subf %72, %106 : vector<8x128xf32>
      %108 = arith.mulf %70, %102 : vector<8x128xf32>
      %109 = arith.subf %73, %108 : vector<8x128xf32>
      %110 = arith.mulf %70, %103 : vector<8x128xf32>
      %111 = arith.subf %67, %110 : vector<8x128xf32>
      %112 = arith.mulf %83, %100 : vector<8x128xf32>
      %113 = arith.subf %85, %112 : vector<8x128xf32>
      %114 = arith.mulf %83, %101 : vector<8x128xf32>
      %115 = arith.subf %87, %114 : vector<8x128xf32>
      %116 = arith.mulf %83, %102 : vector<8x128xf32>
      %117 = arith.subf %89, %116 : vector<8x128xf32>
      %118 = arith.mulf %83, %103 : vector<8x128xf32>
      %119 = arith.subf %67, %118 : vector<8x128xf32>
      %120 = arith.mulf %91, %100 : vector<8x128xf32>
      %121 = arith.subf %93, %120 : vector<8x128xf32>
      %122 = arith.mulf %91, %101 : vector<8x128xf32>
      %123 = arith.subf %95, %122 : vector<8x128xf32>
      %124 = arith.mulf %91, %102 : vector<8x128xf32>
      %125 = arith.subf %97, %124 : vector<8x128xf32>
      %126 = arith.mulf %91, %103 : vector<8x128xf32>
      %127 = arith.subf %67, %126 : vector<8x128xf32>
      %cst_13 = arith.constant 1.000000e+00 : f32
      %128 = vector.broadcast %cst_13 : f32 to vector<8x128xf32>
      %129 = arith.divf %128, %113 : vector<8x128xf32>
      %130 = arith.mulf %115, %129 : vector<8x128xf32>
      %131 = arith.mulf %117, %129 : vector<8x128xf32>
      %132 = arith.mulf %119, %129 : vector<8x128xf32>
      %133 = arith.mulf %66, %129 : vector<8x128xf32>
      %134 = arith.mulf %105, %130 : vector<8x128xf32>
      %135 = arith.subf %107, %134 : vector<8x128xf32>
      %136 = arith.mulf %105, %131 : vector<8x128xf32>
      %137 = arith.subf %109, %136 : vector<8x128xf32>
      %138 = arith.mulf %105, %132 : vector<8x128xf32>
      %139 = arith.subf %111, %138 : vector<8x128xf32>
      %140 = arith.mulf %105, %133 : vector<8x128xf32>
      %141 = arith.subf %67, %140 : vector<8x128xf32>
      %142 = arith.mulf %100, %130 : vector<8x128xf32>
      %143 = arith.subf %101, %142 : vector<8x128xf32>
      %144 = arith.mulf %100, %131 : vector<8x128xf32>
      %145 = arith.subf %102, %144 : vector<8x128xf32>
      %146 = arith.mulf %100, %132 : vector<8x128xf32>
      %147 = arith.subf %103, %146 : vector<8x128xf32>
      %148 = arith.mulf %100, %133 : vector<8x128xf32>
      %149 = arith.subf %67, %148 : vector<8x128xf32>
      %150 = arith.mulf %121, %130 : vector<8x128xf32>
      %151 = arith.subf %123, %150 : vector<8x128xf32>
      %152 = arith.mulf %121, %131 : vector<8x128xf32>
      %153 = arith.subf %125, %152 : vector<8x128xf32>
      %154 = arith.mulf %121, %132 : vector<8x128xf32>
      %155 = arith.subf %127, %154 : vector<8x128xf32>
      %156 = arith.mulf %121, %133 : vector<8x128xf32>
      %157 = arith.subf %67, %156 : vector<8x128xf32>
      %cst_14 = arith.constant 1.000000e+00 : f32
      %158 = vector.broadcast %cst_14 : f32 to vector<8x128xf32>
      %159 = arith.divf %158, %151 : vector<8x128xf32>
      %160 = arith.mulf %153, %159 : vector<8x128xf32>
      %161 = arith.mulf %155, %159 : vector<8x128xf32>
      %162 = arith.mulf %157, %159 : vector<8x128xf32>
      %163 = arith.mulf %66, %159 : vector<8x128xf32>
      %164 = arith.mulf %135, %160 : vector<8x128xf32>
      %165 = arith.subf %137, %164 : vector<8x128xf32>
      %166 = arith.mulf %135, %161 : vector<8x128xf32>
      %167 = arith.subf %139, %166 : vector<8x128xf32>
      %168 = arith.mulf %135, %162 : vector<8x128xf32>
      %169 = arith.subf %141, %168 : vector<8x128xf32>
      %170 = arith.mulf %135, %163 : vector<8x128xf32>
      %171 = arith.subf %67, %170 : vector<8x128xf32>
      %172 = arith.mulf %143, %160 : vector<8x128xf32>
      %173 = arith.subf %145, %172 : vector<8x128xf32>
      %174 = arith.mulf %143, %161 : vector<8x128xf32>
      %175 = arith.subf %147, %174 : vector<8x128xf32>
      %176 = arith.mulf %143, %162 : vector<8x128xf32>
      %177 = arith.subf %149, %176 : vector<8x128xf32>
      %178 = arith.mulf %143, %163 : vector<8x128xf32>
      %179 = arith.subf %67, %178 : vector<8x128xf32>
      %180 = arith.mulf %130, %160 : vector<8x128xf32>
      %181 = arith.subf %131, %180 : vector<8x128xf32>
      %182 = arith.mulf %130, %161 : vector<8x128xf32>
      %183 = arith.subf %132, %182 : vector<8x128xf32>
      %184 = arith.mulf %130, %162 : vector<8x128xf32>
      %185 = arith.subf %133, %184 : vector<8x128xf32>
      %186 = arith.mulf %130, %163 : vector<8x128xf32>
      %187 = arith.subf %67, %186 : vector<8x128xf32>
      %188 = vector.broadcast %0 : f32 to vector<8x128xf32>
      %189 = arith.mulf %188, %165 : vector<8x128xf32>
      %190 = vector.broadcast %0 : f32 to vector<8x128xf32>
      %191 = arith.mulf %190, %167 : vector<8x128xf32>
      %192 = vector.broadcast %0 : f32 to vector<8x128xf32>
      %193 = arith.mulf %192, %169 : vector<8x128xf32>
      %194 = vector.broadcast %0 : f32 to vector<8x128xf32>
      %195 = arith.mulf %194, %171 : vector<8x128xf32>
      %196 = vector.broadcast %0 : f32 to vector<8x128xf32>
      %197 = arith.mulf %196, %175 : vector<8x128xf32>
      %198 = vector.broadcast %0 : f32 to vector<8x128xf32>
      %199 = arith.mulf %198, %177 : vector<8x128xf32>
      %200 = vector.broadcast %0 : f32 to vector<8x128xf32>
      %201 = arith.mulf %200, %179 : vector<8x128xf32>
      %202 = vector.broadcast %0 : f32 to vector<8x128xf32>
      %203 = arith.mulf %202, %185 : vector<8x128xf32>
      %204 = vector.broadcast %0 : f32 to vector<8x128xf32>
      %205 = arith.mulf %204, %187 : vector<8x128xf32>
      %206 = vector.broadcast %0 : f32 to vector<8x128xf32>
      %207 = arith.mulf %206, %163 : vector<8x128xf32>
      %208 = arith.mulf %165, %50 : vector<8x128xf32>
      %209 = arith.mulf %167, %55 : vector<8x128xf32>
      %210 = arith.addf %208, %209 : vector<8x128xf32>
      %211 = arith.mulf %169, %60 : vector<8x128xf32>
      %212 = arith.addf %210, %211 : vector<8x128xf32>
      %213 = arith.mulf %171, %65 : vector<8x128xf32>
      %214 = arith.addf %212, %213 : vector<8x128xf32>
      %215 = arith.mulf %173, %50 : vector<8x128xf32>
      %216 = arith.mulf %175, %55 : vector<8x128xf32>
      %217 = arith.addf %215, %216 : vector<8x128xf32>
      %218 = arith.mulf %177, %60 : vector<8x128xf32>
      %219 = arith.addf %217, %218 : vector<8x128xf32>
      %220 = arith.mulf %179, %65 : vector<8x128xf32>
      %221 = arith.addf %219, %220 : vector<8x128xf32>
      %222 = arith.mulf %181, %50 : vector<8x128xf32>
      %223 = arith.mulf %183, %55 : vector<8x128xf32>
      %224 = arith.addf %222, %223 : vector<8x128xf32>
      %225 = arith.mulf %185, %60 : vector<8x128xf32>
      %226 = arith.addf %224, %225 : vector<8x128xf32>
      %227 = arith.mulf %187, %65 : vector<8x128xf32>
      %228 = arith.addf %226, %227 : vector<8x128xf32>
      %229 = arith.mulf %160, %50 : vector<8x128xf32>
      %230 = arith.mulf %161, %55 : vector<8x128xf32>
      %231 = arith.addf %229, %230 : vector<8x128xf32>
      %232 = arith.mulf %162, %60 : vector<8x128xf32>
      %233 = arith.addf %231, %232 : vector<8x128xf32>
      %234 = arith.mulf %163, %65 : vector<8x128xf32>
      %235 = arith.addf %233, %234 : vector<8x128xf32>
      %236 = vector.shape_cast %189 : vector<8x128xf32> to vector<1x8x128xf32>
      %237 = vector.shape_cast %191 : vector<8x128xf32> to vector<1x8x128xf32>
      %238 = vector.shape_cast %193 : vector<8x128xf32> to vector<1x8x128xf32>
      %239 = vector.shape_cast %195 : vector<8x128xf32> to vector<1x8x128xf32>
      %240 = vector.shape_cast %197 : vector<8x128xf32> to vector<1x8x128xf32>
      %241 = vector.shape_cast %199 : vector<8x128xf32> to vector<1x8x128xf32>
      %242 = vector.shape_cast %201 : vector<8x128xf32> to vector<1x8x128xf32>
      %243 = vector.shape_cast %203 : vector<8x128xf32> to vector<1x8x128xf32>
      %244 = vector.shape_cast %205 : vector<8x128xf32> to vector<1x8x128xf32>
      %245 = vector.shape_cast %207 : vector<8x128xf32> to vector<1x8x128xf32>
      %246 = vector.shape_cast %214 : vector<8x128xf32> to vector<1x8x128xf32>
      %247 = vector.shape_cast %221 : vector<8x128xf32> to vector<1x8x128xf32>
      %248 = vector.shape_cast %228 : vector<8x128xf32> to vector<1x8x128xf32>
      %249 = vector.shape_cast %235 : vector<8x128xf32> to vector<1x8x128xf32>
      %250 = tpu.concatenate %236, %237, %238, %239, %240, %241, %242, %243, %244, %245, %246, %247, %248, %249 in 0 : vector<1x8x128xf32>, vector<1x8x128xf32>, vector<1x8x128xf32>, vector<1x8x128xf32>, vector<1x8x128xf32>, vector<1x8x128xf32>, vector<1x8x128xf32>, vector<1x8x128xf32>, vector<1x8x128xf32>, vector<1x8x128xf32>, vector<1x8x128xf32>, vector<1x8x128xf32>, vector<1x8x128xf32>, vector<1x8x128xf32> -> vector<14x8x128xf32>
      %251 = arith.index_cast %arg6 : i32 to index
      %c0_15 = arith.constant 0 : index
      %c0_16 = arith.constant 0 : index
      %c0_17 = arith.constant 0 : index
      %252 = vector.load %arg5[%251, %c0_15, %c0_16, %c0_17] : memref<2x14x8x128xf32, #tpu.memory_space<vmem>>, vector<1x14x8x128xf32>
      %253 = vector.shape_cast %252 : vector<1x14x8x128xf32> to vector<14x8x128xf32>
      %254 = vector.shape_cast %250 : vector<14x8x128xf32> to vector<1x14x8x128xf32>
      tpu.vector_store %arg5[%251, %c0_15, %c0_16, %c0_17], %254 {strides = array<i32>} : memref<2x14x8x128xf32, #tpu.memory_space<vmem>>, vector<1x14x8x128xf32>,
    }
    %c2_i32_4 = arith.constant 2 : i32
    return
  }
  func.func @transform_0(%arg0: i32) -> (i32, i32) {
    %c0_i32 = arith.constant 0 : i32
    %c0_i32_0 = arith.constant 0 : i32
    return %arg0, %c0_i32 : i32, i32
  }
  func.func @transform_1(%arg0: i32) -> (i32, i32) {
    %c0_i32 = arith.constant 0 : i32
    %c0_i32_0 = arith.constant 0 : i32
    %c0_i32_1 = arith.constant 0 : i32
    return %c0_i32, %c0_i32_0 : i32, i32
  }
  func.func @transform_2(%arg0: i32) -> (i32, i32) {
    %c0_i32 = arith.constant 0 : i32
    %c0_i32_0 = arith.constant 0 : i32
    %c0_i32_1 = arith.constant 0 : i32
    return %c0_i32, %c0_i32_0 : i32, i32
  }
  func.func @transform_3(%arg0: i32) -> i32 {
    %c0_i32 = arith.constant 0 : i32
    %c0_i32_0 = arith.constant 0 : i32
    return %c0_i32 : i32
  }
  func.func @transform_4(%arg0: i32) -> (i32, i32, i32, i32) {
    %c0_i32 = arith.constant 0 : i32
    %c0_i32_0 = arith.constant 0 : i32
    %c0_i32_1 = arith.constant 0 : i32
    %c0_i32_2 = arith.constant 0 : i32
    return %arg0, %c0_i32, %c0_i32_0, %c0_i32_1 : i32, i32, i32, i32
  }
}

</mosaic_0001>

<llo_original>
// kernel: tpu_custom_call.1
$region0: #{tpu_custom_call.1}
  #allocation0 [shape = 'u32[]', space=smem, size = 0x4, offset = 0x4, fixed_abs, tag = 'smem constant byte address 0x4 - core index']
  #allocation1 [shape = 'u32[72,128]{1,0:T(1,128)}', space=vmem, size = 0x9000, scoped, tag = 'internal scratch']
  #allocation2 [shape = 'f32[1]{0:T(128)S(6)}', space=smem, size = 0x200, scoped, tag = 'scoped memory for tpu_custom_call.1']
  %s0 = inlined_call_operand.vmem [shape: f32[4096,32], index: 0, kind: input, shape index: {}]
  %s1 = inlined_call_operand.vmem [shape: f32[4,32], index: 1, kind: input, shape index: {}]
  %s2 = inlined_call_operand.vmem [shape: f32[14,32], index: 2, kind: input, shape index: {}]
  %s3 = inlined_call_operand.<no memory space> [shape: f32[1], index: 3, kind: input, shape index: {}]
  %s4 = inlined_call_operand.hbm [shape: f32[4,14,8,128], index: 4, kind: output, shape index: {}]
  %s5 = sld [smem:[#allocation0]]
  $region56: #{tpu_custom_call.1} parent=0
    _
  %s7 = ssub.s32 1, %s5
  %s8 = scalar_select 0, %s7, %s5
  %9 = sst [smem:[#allocation2]] %s3
  $region1: #{tpu_custom_call.1} parent=0
    #allocation3 [shape = 'u8[229376]{0}', space=vmem, size = 0x38000, scoped, tag = 'output window, operand 0']
    #allocation4 [shape = 's32[2]{0}', space=sflag, size = 0x8, scoped, tag = 'scoped memory for tpu_custom_call.1']
    %10 = vsyncpa [#allocation4], 0
    %s11 = scalar_lea.sflag [#allocation4], 1
    %12 = vsyncpa %s11, 0
    loop: start=0, step=1, limit=4
    $region2: #{tpu_custom_call.1} parent=1 // loop_pre_header
      _
    $region3: #{tpu_custom_call.1} parent=1 // loop_header
      %s14 = sphi 0, %s18
      %p15 = scmp.ge.s32.totalorder %s14, 4
      %s24 = sphi 0, %s26
      %s27 = sphi 0, %s24
      %s28 = sphi 0, %s27
      %s44 = sphi 0, %s28
      %s48 = sphi 0, %s48
      %s50 = sphi 0, %s48
      %s51 = sphi 0, %s50
      %s65 = sphi 0, %s51
      %s69 = sphi 0, %s69
      %s71 = sphi 0, %s69
      %s72 = sphi 0, %s71
      %s86 = sphi 0, %s72
      %s90 = sphi 0, %s90
      %s92 = sphi 0, %s90
      %s93 = sphi 0, %s92
      %s107 = sphi 0, %s93
      %s113 = sphi 0, %s115
      %s116 = sphi 0, %s113
      %s117 = sphi 0, %s116
      %s133 = sphi 0, %s117
    $region4: #{tpu_custom_call.1} parent=1 // loop_header_branch
      %17 = sbr.rel (%p15) target = $region8
    $region5: #{tpu_custom_call.1} parent=1 // loop_body
      %s19 = ssub.s32 %s14, 1
      %s20 = ssub.s32 %s14, 2
      %s21 = sadd.s32 %s14, 1
      %s22 = ssub.s32 %s14, %s21
      %p23 = scmp.eq.s32.totalorder %s22, 0
      %s25 = sadd.s32 %s24, 1
      %s26 = scalar_select %p23, %s24, %s25
      %p29 = pneg %p23
      %p30 = scmp.eq.s32.totalorder %s14, 1
      %p31 = por %p29, %p30
      %p32 = scmp.ne.s32.totalorder %s24, %s27
      %p33 = scmp.eq.s32.totalorder %s14, 0
      %p34 = por %p32, %p33
      %p35 = scmp.ne.s32.totalorder %s24, %s27
      %p36 = scmp.eq.s32.totalorder %s19, 1
      %p37 = por %p35, %p36
      %p38 = scmp.ne.s32.totalorder %s27, %s28
      %p39 = scmp.eq.s32.totalorder %s19, 0
      %p40 = por %p38, %p39
      %p41 = scmp.ne.s32.totalorder %s27, %s28
      %p42 = scmp.eq.s32.totalorder %s20, 1
      %p43 = por %p41, %p42
      %p45 = scmp.ne.s32.totalorder %s28, %s44
      %p46 = scmp.eq.s32.totalorder %s20, 0
      %p47 = por %p45, %p46
      %s49 = sadd.s32 %s48, 1
      %p52 = scmp.eq.s32.totalorder %s14, 1
      %p53 = scmp.ne.s32.totalorder %s48, %s50
      %p54 = scmp.eq.s32.totalorder %s14, 0
      %p55 = por %p53, %p54
      %p56 = scmp.ne.s32.totalorder %s48, %s50
      %p57 = scmp.eq.s32.totalorder %s19, 1
      %p58 = por %p56, %p57
      %p59 = scmp.ne.s32.totalorder %s50, %s51
      %p60 = scmp.eq.s32.totalorder %s19, 0
      %p61 = por %p59, %p60
      %p62 = scmp.ne.s32.totalorder %s50, %s51
      %p63 = scmp.eq.s32.totalorder %s20, 1
      %p64 = por %p62, %p63
      %p66 = scmp.ne.s32.totalorder %s51, %s65
      %p67 = scmp.eq.s32.totalorder %s20, 0
      %p68 = por %p66, %p67
      %s70 = sadd.s32 %s69, 1
      %p73 = scmp.eq.s32.totalorder %s14, 1
      %p74 = scmp.ne.s32.totalorder %s69, %s71
      %p75 = scmp.eq.s32.totalorder %s14, 0
      %p76 = por %p74, %p75
      %p77 = scmp.ne.s32.totalorder %s69, %s71
      %p78 = scmp.eq.s32.totalorder %s19, 1
      %p79 = por %p77, %p78
      %p80 = scmp.ne.s32.totalorder %s71, %s72
      %p81 = scmp.eq.s32.totalorder %s19, 0
      %p82 = por %p80, %p81
      %p83 = scmp.ne.s32.totalorder %s71, %s72
      %p84 = scmp.eq.s32.totalorder %s20, 1
      %p85 = por %p83, %p84
      %p87 = scmp.ne.s32.totalorder %s72, %s86
      %p88 = scmp.eq.s32.totalorder %s20, 0
      %p89 = por %p87, %p88
      %s91 = sadd.s32 %s90, 1
      %p94 = scmp.eq.s32.totalorder %s14, 1
      %p95 = scmp.ne.s32.totalorder %s90, %s92
      %p96 = scmp.eq.s32.totalorder %s14, 0
      %p97 = por %p95, %p96
      %p98 = scmp.ne.s32.totalorder %s90, %s92
      %p99 = scmp.eq.s32.totalorder %s19, 1
      %p100 = por %p98, %p99
      %p101 = scmp.ne.s32.totalorder %s92, %s93
      %p102 = scmp.eq.s32.totalorder %s19, 0
      %p103 = por %p101, %p102
      %p104 = scmp.ne.s32.totalorder %s92, %s93
      %p105 = scmp.eq.s32.totalorder %s20, 1
      %p106 = por %p104, %p105
      %p108 = scmp.ne.s32.totalorder %s93, %s107
      %p109 = scmp.eq.s32.totalorder %s20, 0
      %p110 = por %p108, %p109
      %s111 = ssub.s32 %s14, %s21
      %p112 = scmp.eq.s32.totalorder %s111, 0
      %s114 = sadd.s32 %s113, 1
      %s115 = scalar_select %p112, %s113, %s114
      %p118 = pneg %p112
      %p119 = scmp.eq.s32.totalorder %s14, 1
      %p120 = por %p118, %p119
      %p121 = scmp.ne.s32.totalorder %s113, %s116
      %p122 = scmp.eq.s32.totalorder %s14, 0
      %p123 = por %p121, %p122
      %p124 = scmp.ne.s32.totalorder %s113, %s116
      %p125 = scmp.eq.s32.totalorder %s19, 1
      %p126 = por %p124, %p125
      %p127 = scmp.ne.s32.totalorder %s116, %s117
      %p128 = scmp.eq.s32.totalorder %s19, 0
      %p129 = por %p127, %p128
      %p130 = scmp.ne.s32.totalorder %s116, %s117
      %p131 = scmp.eq.s32.totalorder %s20, 1
      %p132 = por %p130, %p131
      %p134 = scmp.ne.s32.totalorder %s117, %s133
      %p135 = scmp.eq.s32.totalorder %s20, 0
      %p136 = por %p134, %p135
      %p137 = scmp.le.s32.totalorder 1, %s14
      %p138 = scmp.lt.s32.totalorder %s14, 3
      %p139 = pnand %p137, %p138
      %p140 = pneg %p139
      // Predicated region
      $region9: #{tpu_custom_call.1} parent=5 // pred_check
        _
      $region10: #{tpu_custom_call.1} parent=5 // pred_check_branch
        %142 = sbr.rel (%p139) target = $region12
      $region11: #{tpu_custom_call.1} parent=5 // pred_region
        %s143 = ssub.s32 %s14, 1
        // Predicated region
        $region13: #{tpu_custom_call.1} parent=11 // pred_check
          %p144 = pneg %p61
        $region14: #{tpu_custom_call.1} parent=11 // pred_check_branch
          %146 = sbr.rel (%p144) target = $region16
        $region15: #{tpu_custom_call.1} parent=11 // pred_region
          _
        $region16: #{tpu_custom_call.1} parent=11 // pred_fallthru
          _
        // Predicated region
        $region17: #{tpu_custom_call.1} parent=11 // pred_check
          %p147 = pneg %p82
        $region18: #{tpu_custom_call.1} parent=11 // pred_check_branch
          %149 = sbr.rel (%p147) target = $region20
        $region19: #{tpu_custom_call.1} parent=11 // pred_region
          _
        $region20: #{tpu_custom_call.1} parent=11 // pred_fallthru
          _
        // Predicated region
        $region21: #{tpu_custom_call.1} parent=11 // pred_check
          %p150 = pneg %p103
        $region22: #{tpu_custom_call.1} parent=11 // pred_check_branch
          %152 = sbr.rel (%p150) target = $region24
        $region23: #{tpu_custom_call.1} parent=11 // pred_region
          _
        $region24: #{tpu_custom_call.1} parent=11 // pred_fallthru
          _
      $region12: #{tpu_custom_call.1} parent=5 // pred_fallthru
        _
      %p153 = scmp.lt.s32.totalorder %s14, 2
      // Predicated region
      $region25: #{tpu_custom_call.1} parent=5 // pred_check
        %p154 = pneg %p153
      $region26: #{tpu_custom_call.1} parent=5 // pred_check_branch
        %156 = sbr.rel (%p154) target = $region28
      $region27: #{tpu_custom_call.1} parent=5 // pred_region
        // Predicated region
        $region29: #{tpu_custom_call.1} parent=27 // pred_check
          %p157 = pneg %p34
        $region30: #{tpu_custom_call.1} parent=27 // pred_check_branch
          %159 = sbr.rel (%p157) target = $region32
        $region31: #{tpu_custom_call.1} parent=27 // pred_region
          %s160 = smul.u32 256, %s14
          %p161 = scmp.lt.s32.totalorder %s160, 511
          %s162 = scalar_select %p161, %s160, 511
          %s163 = smul.addr %s162, 8
          %s164 = scalar_lea.vmem %s0, %s163
          %s165 = smul.u32 256, %s14
        $region32: #{tpu_custom_call.1} parent=27 // pred_fallthru
          _
      $region28: #{tpu_custom_call.1} parent=5 // pred_fallthru
        _
      %p166 = scmp.le.s32.totalorder 1, %s14
      %p167 = scmp.lt.s32.totalorder %s14, 3
      %p168 = pnand %p166, %p167
      %p169 = pneg %p168
      // Predicated region
      $region33: #{tpu_custom_call.1} parent=5 // pred_check
        _
      $region34: #{tpu_custom_call.1} parent=5 // pred_check_branch
        %171 = sbr.rel (%p168) target = $region36
      $region35: #{tpu_custom_call.1} parent=5 // pred_region
        %s172 = ssub.s32 %s14, 1
        %s173 = smul.u32 256, %s19
        %p174 = scmp.lt.s32.totalorder %s173, 511
        %s175 = scalar_select %p174, %s173, 511
        %s176 = smul.addr %s175, 8
        %s177 = scalar_lea.vmem %s0, %s176
        %p178 = pneg %p40
        %p179 = pneg %p37
        %p180 = pneg %p61
        %p181 = pneg %p58
        %p182 = pneg %p82
        %p183 = pneg %p79
        %p184 = pneg %p103
        %p185 = pneg %p100
        %p186 = pneg %p129
        %p187 = pneg %p126
        %s188 = sand.u32 %s116, 1
        %s189 = scalar_lea.sflag [#allocation4], %s188
        %s190 = sand.u32 %s116, 1
        %s191 = smul.addr %s190, 224
        %s192 = scalar_lea.vmem [#allocation3], %s191
        %s193 = smul.u32 256, %s19
        %p194 = scmp.lt.s32.totalorder %s193, 511
        %s195 = scalar_select %p194, %s193, 511
        %s196 = smul.addr %s195, 8
        %s197 = scalar_lea.vmem %s0, %s196
        %s198 = smul.u32 256, %s19
        %s199 = smul.u32 2, %s19
        %s200 = sld [smem:[#allocation2]]
        %v201 = vld [vmem:[%s1] sm:$0xf]
        %v202 = vld [vmem:[%s2] sm:$0xff]
        %v203 = vld [vmem:[%s2 + $0x8] sm:$0x3f]
        loop: start=0, step=1, limit=2
        $region37: #{tpu_custom_call.1} parent=35 // loop_pre_header
          _
        $region38: #{tpu_custom_call.1} parent=35 // loop_header
          %s205 = sphi 0, %s209
          %p206 = scmp.ge.s32.totalorder %s205, 2
        $region39: #{tpu_custom_call.1} parent=35 // loop_header_branch
          %208 = sbr.rel (%p206) target = $region43
        $region40: #{tpu_custom_call.1} parent=35 // loop_body
          %s210 = smul.u32 %s205, 1024
          %s211 = scalar_lea.vmem %s197, %s210
          %v212 = vld [vmem:[%s211] sm:$0xff]
          %v213 = vld [vmem:[%s211 + $0x8] sm:$0xff]
          %v214 = vld [vmem:[%s211 + $0x10] sm:$0xff]
          %v215 = vld [vmem:[%s211 + $0x18] sm:$0xff]
          %v216 = vld [vmem:[%s211 + $0x20] sm:$0xff]
          %v217 = vld [vmem:[%s211 + $0x28] sm:$0xff]
          %v218 = vld [vmem:[%s211 + $0x30] sm:$0xff]
          %v219 = vld [vmem:[%s211 + $0x38] sm:$0xff]
          %v220 = vld [vmem:[%s211 + $0x40] sm:$0xff]
          %v221 = vld [vmem:[%s211 + $0x48] sm:$0xff]
          %v222 = vld [vmem:[%s211 + $0x50] sm:$0xff]
          %v223 = vld [vmem:[%s211 + $0x58] sm:$0xff]
          %v224 = vld [vmem:[%s211 + $0x60] sm:$0xff]
          %v225 = vld [vmem:[%s211 + $0x68] sm:$0xff]
          %v226 = vld [vmem:[%s211 + $0x70] sm:$0xff]
          %v227 = vld [vmem:[%s211 + $0x78] sm:$0xff]
          %v228 = vld [vmem:[%s211 + $0x80] sm:$0xff]
          %v229 = vld [vmem:[%s211 + $0x88] sm:$0xff]
          %v230 = vld [vmem:[%s211 + $0x90] sm:$0xff]
          %v231 = vld [vmem:[%s211 + $0x98] sm:$0xff]
          %v232 = vld [vmem:[%s211 + $0xa0] sm:$0xff]
          %v233 = vld [vmem:[%s211 + $0xa8] sm:$0xff]
          %v234 = vld [vmem:[%s211 + $0xb0] sm:$0xff]
          %v235 = vld [vmem:[%s211 + $0xb8] sm:$0xff]
          %v236 = vld [vmem:[%s211 + $0xc0] sm:$0xff]
          %v237 = vld [vmem:[%s211 + $0xc8] sm:$0xff]
          %v238 = vld [vmem:[%s211 + $0xd0] sm:$0xff]
          %v239 = vld [vmem:[%s211 + $0xd8] sm:$0xff]
          %v240 = vld [vmem:[%s211 + $0xe0] sm:$0xff]
          %v241 = vld [vmem:[%s211 + $0xe8] sm:$0xff]
          %v242 = vld [vmem:[%s211 + $0xf0] sm:$0xff]
          %v243 = vld [vmem:[%s211 + $0xf8] sm:$0xff]
          %v244 = vld [vmem:[%s211 + $0x100] sm:$0xff]
          %v245 = vld [vmem:[%s211 + $0x108] sm:$0xff]
          %v246 = vld [vmem:[%s211 + $0x110] sm:$0xff]
          %v247 = vld [vmem:[%s211 + $0x118] sm:$0xff]
          %v248 = vld [vmem:[%s211 + $0x120] sm:$0xff]
          %v249 = vld [vmem:[%s211 + $0x128] sm:$0xff]
          %v250 = vld [vmem:[%s211 + $0x130] sm:$0xff]
          %v251 = vld [vmem:[%s211 + $0x138] sm:$0xff]
          %v252 = vld [vmem:[%s211 + $0x140] sm:$0xff]
          %v253 = vld [vmem:[%s211 + $0x148] sm:$0xff]
          %v254 = vld [vmem:[%s211 + $0x150] sm:$0xff]
          %v255 = vld [vmem:[%s211 + $0x158] sm:$0xff]
          %v256 = vld [vmem:[%s211 + $0x160] sm:$0xff]
          %v257 = vld [vmem:[%s211 + $0x168] sm:$0xff]
          %v258 = vld [vmem:[%s211 + $0x170] sm:$0xff]
          %v259 = vld [vmem:[%s211 + $0x178] sm:$0xff]
          %v260 = vld [vmem:[%s211 + $0x180] sm:$0xff]
          %v261 = vld [vmem:[%s211 + $0x188] sm:$0xff]
          %v262 = vld [vmem:[%s211 + $0x190] sm:$0xff]
          %v263 = vld [vmem:[%s211 + $0x198] sm:$0xff]
          %v264 = vld [vmem:[%s211 + $0x1a0] sm:$0xff]
          %v265 = vld [vmem:[%s211 + $0x1a8] sm:$0xff]
          %v266 = vld [vmem:[%s211 + $0x1b0] sm:$0xff]
          %v267 = vld [vmem:[%s211 + $0x1b8] sm:$0xff]
          %v268 = vld [vmem:[%s211 + $0x1c0] sm:$0xff]
          %v269 = vld [vmem:[%s211 + $0x1c8] sm:$0xff]
          %v270 = vld [vmem:[%s211 + $0x1d0] sm:$0xff]
          %v271 = vld [vmem:[%s211 + $0x1d8] sm:$0xff]
          %v272 = vld [vmem:[%s211 + $0x1e0] sm:$0xff]
          %v273 = vld [vmem:[%s211 + $0x1e8] sm:$0xff]
          %v274 = vld [vmem:[%s211 + $0x1f0] sm:$0xff]
          %v275 = vld [vmem:[%s211 + $0x1f8] sm:$0xff]
          %v276 = vld [vmem:[%s211 + $0x200] sm:$0xff]
          %v277 = vld [vmem:[%s211 + $0x208] sm:$0xff]
          %v278 = vld [vmem:[%s211 + $0x210] sm:$0xff]
          %v279 = vld [vmem:[%s211 + $0x218] sm:$0xff]
          %v280 = vld [vmem:[%s211 + $0x220] sm:$0xff]
          %v281 = vld [vmem:[%s211 + $0x228] sm:$0xff]
          %v282 = vld [vmem:[%s211 + $0x230] sm:$0xff]
          %v283 = vld [vmem:[%s211 + $0x238] sm:$0xff]
          %v284 = vld [vmem:[%s211 + $0x240] sm:$0xff]
          %v285 = vld [vmem:[%s211 + $0x248] sm:$0xff]
          %v286 = vld [vmem:[%s211 + $0x250] sm:$0xff]
          %v287 = vld [vmem:[%s211 + $0x258] sm:$0xff]
          %v288 = vld [vmem:[%s211 + $0x260] sm:$0xff]
          %v289 = vld [vmem:[%s211 + $0x268] sm:$0xff]
          %v290 = vld [vmem:[%s211 + $0x270] sm:$0xff]
          %v291 = vld [vmem:[%s211 + $0x278] sm:$0xff]
          %v292 = vld [vmem:[%s211 + $0x280] sm:$0xff]
          %v293 = vld [vmem:[%s211 + $0x288] sm:$0xff]
          %v294 = vld [vmem:[%s211 + $0x290] sm:$0xff]
          %v295 = vld [vmem:[%s211 + $0x298] sm:$0xff]
          %v296 = vld [vmem:[%s211 + $0x2a0] sm:$0xff]
          %v297 = vld [vmem:[%s211 + $0x2a8] sm:$0xff]
          %v298 = vld [vmem:[%s211 + $0x2b0] sm:$0xff]
          %v299 = vld [vmem:[%s211 + $0x2b8] sm:$0xff]
          %v300 = vld [vmem:[%s211 + $0x2c0] sm:$0xff]
          %v301 = vld [vmem:[%s211 + $0x2c8] sm:$0xff]
          %v302 = vld [vmem:[%s211 + $0x2d0] sm:$0xff]
          %v303 = vld [vmem:[%s211 + $0x2d8] sm:$0xff]
          %v304 = vld [vmem:[%s211 + $0x2e0] sm:$0xff]
          %v305 = vld [vmem:[%s211 + $0x2e8] sm:$0xff]
          %v306 = vld [vmem:[%s211 + $0x2f0] sm:$0xff]
          %v307 = vld [vmem:[%s211 + $0x2f8] sm:$0xff]
          %v308 = vld [vmem:[%s211 + $0x300] sm:$0xff]
          %v309 = vld [vmem:[%s211 + $0x308] sm:$0xff]
          %v310 = vld [vmem:[%s211 + $0x310] sm:$0xff]
          %v311 = vld [vmem:[%s211 + $0x318] sm:$0xff]
          %v312 = vld [vmem:[%s211 + $0x320] sm:$0xff]
          %v313 = vld [vmem:[%s211 + $0x328] sm:$0xff]
          %v314 = vld [vmem:[%s211 + $0x330] sm:$0xff]
          %v315 = vld [vmem:[%s211 + $0x338] sm:$0xff]
          %v316 = vld [vmem:[%s211 + $0x340] sm:$0xff]
          %v317 = vld [vmem:[%s211 + $0x348] sm:$0xff]
          %v318 = vld [vmem:[%s211 + $0x350] sm:$0xff]
          %v319 = vld [vmem:[%s211 + $0x358] sm:$0xff]
          %v320 = vld [vmem:[%s211 + $0x360] sm:$0xff]
          %v321 = vld [vmem:[%s211 + $0x368] sm:$0xff]
          %v322 = vld [vmem:[%s211 + $0x370] sm:$0xff]
          %v323 = vld [vmem:[%s211 + $0x378] sm:$0xff]
          %v324 = vld [vmem:[%s211 + $0x380] sm:$0xff]
          %v325 = vld [vmem:[%s211 + $0x388] sm:$0xff]
          %v326 = vld [vmem:[%s211 + $0x390] sm:$0xff]
          %v327 = vld [vmem:[%s211 + $0x398] sm:$0xff]
          %v328 = vld [vmem:[%s211 + $0x3a0] sm:$0xff]
          %v329 = vld [vmem:[%s211 + $0x3a8] sm:$0xff]
          %v330 = vld [vmem:[%s211 + $0x3b0] sm:$0xff]
          %v331 = vld [vmem:[%s211 + $0x3b8] sm:$0xff]
          %v332 = vld [vmem:[%s211 + $0x3c0] sm:$0xff]
          %v333 = vld [vmem:[%s211 + $0x3c8] sm:$0xff]
          %v334 = vld [vmem:[%s211 + $0x3d0] sm:$0xff]
          %v335 = vld [vmem:[%s211 + $0x3d8] sm:$0xff]
          %v336 = vld [vmem:[%s211 + $0x3e0] sm:$0xff]
          %v337 = vld [vmem:[%s211 + $0x3e8] sm:$0xff]
          %v338 = vld [vmem:[%s211 + $0x3f0] sm:$0xff]
          %v339 = vld [vmem:[%s211 + $0x3f8] sm:$0xff]
          %vm340 = vweird.f32 %v212
          %vm341 = vweird.f32 %v213
          %vm342 = vweird.f32 %v214
          %vm343 = vweird.f32 %v215
          %vm344 = vweird.f32 %v216
          %vm345 = vweird.f32 %v217
          %vm346 = vweird.f32 %v218
          %vm347 = vweird.f32 %v219
          %vm348 = vweird.f32 %v220
          %vm349 = vweird.f32 %v221
          %vm350 = vweird.f32 %v222
          %vm351 = vweird.f32 %v223
          %vm352 = vweird.f32 %v224
          %vm353 = vweird.f32 %v225
          %vm354 = vweird.f32 %v226
          %vm355 = vweird.f32 %v227
          %vm356 = vweird.f32 %v228
          %vm357 = vweird.f32 %v229
          %vm358 = vweird.f32 %v230
          %vm359 = vweird.f32 %v231
          %vm360 = vweird.f32 %v232
          %vm361 = vweird.f32 %v233
          %vm362 = vweird.f32 %v234
          %vm363 = vweird.f32 %v235
          %vm364 = vweird.f32 %v236
          %vm365 = vweird.f32 %v237
          %vm366 = vweird.f32 %v238
          %vm367 = vweird.f32 %v239
          %vm368 = vweird.f32 %v240
          %vm369 = vweird.f32 %v241
          %vm370 = vweird.f32 %v242
          %vm371 = vweird.f32 %v243
          %vm372 = vweird.f32 %v244
          %vm373 = vweird.f32 %v245
          %vm374 = vweird.f32 %v246
          %vm375 = vweird.f32 %v247
          %vm376 = vweird.f32 %v248
          %vm377 = vweird.f32 %v249
          %vm378 = vweird.f32 %v250
          %vm379 = vweird.f32 %v251
          %vm380 = vweird.f32 %v252
          %vm381 = vweird.f32 %v253
          %vm382 = vweird.f32 %v254
          %vm383 = vweird.f32 %v255
          %vm384 = vweird.f32 %v256
          %vm385 = vweird.f32 %v257
          %vm386 = vweird.f32 %v258
          %vm387 = vweird.f32 %v259
          %vm388 = vweird.f32 %v260
          %vm389 = vweird.f32 %v261
          %vm390 = vweird.f32 %v262
          %vm391 = vweird.f32 %v263
          %vm392 = vweird.f32 %v264
          %vm393 = vweird.f32 %v265
          %vm394 = vweird.f32 %v266
          %vm395 = vweird.f32 %v267
          %vm396 = vweird.f32 %v268
          %vm397 = vweird.f32 %v269
          %vm398 = vweird.f32 %v270
          %vm399 = vweird.f32 %v271
          %vm400 = vweird.f32 %v272
          %vm401 = vweird.f32 %v273
          %vm402 = vweird.f32 %v274
          %vm403 = vweird.f32 %v275
          %vm404 = vweird.f32 %v276
          %vm405 = vweird.f32 %v277
          %vm406 = vweird.f32 %v278
          %vm407 = vweird.f32 %v279
          %vm408 = vweird.f32 %v280
          %vm409 = vweird.f32 %v281
          %vm410 = vweird.f32 %v282
          %vm411 = vweird.f32 %v283
          %vm412 = vweird.f32 %v284
          %vm413 = vweird.f32 %v285
          %vm414 = vweird.f32 %v286
          %vm415 = vweird.f32 %v287
          %vm416 = vweird.f32 %v288
          %vm417 = vweird.f32 %v289
          %vm418 = vweird.f32 %v290
          %vm419 = vweird.f32 %v291
          %vm420 = vweird.f32 %v292
          %vm421 = vweird.f32 %v293
          %vm422 = vweird.f32 %v294
          %vm423 = vweird.f32 %v295
          %vm424 = vweird.f32 %v296
          %vm425 = vweird.f32 %v297
          %vm426 = vweird.f32 %v298
          %vm427 = vweird.f32 %v299
          %vm428 = vweird.f32 %v300
          %vm429 = vweird.f32 %v301
          %vm430 = vweird.f32 %v302
          %vm431 = vweird.f32 %v303
          %vm432 = vweird.f32 %v304
          %vm433 = vweird.f32 %v305
          %vm434 = vweird.f32 %v306
          %vm435 = vweird.f32 %v307
          %vm436 = vweird.f32 %v308
          %vm437 = vweird.f32 %v309
          %vm438 = vweird.f32 %v310
          %vm439 = vweird.f32 %v311
          %vm440 = vweird.f32 %v312
          %vm441 = vweird.f32 %v313
          %vm442 = vweird.f32 %v314
          %vm443 = vweird.f32 %v315
          %vm444 = vweird.f32 %v316
          %vm445 = vweird.f32 %v317
          %vm446 = vweird.f32 %v318
          %vm447 = vweird.f32 %v319
          %vm448 = vweird.f32 %v320
          %vm449 = vweird.f32 %v321
          %vm450 = vweird.f32 %v322
          %vm451 = vweird.f32 %v323
          %vm452 = vweird.f32 %v324
          %vm453 = vweird.f32 %v325
          %vm454 = vweird.f32 %v326
          %vm455 = vweird.f32 %v327
          %vm456 = vweird.f32 %v328
          %vm457 = vweird.f32 %v329
          %vm458 = vweird.f32 %v330
          %vm459 = vweird.f32 %v331
          %vm460 = vweird.f32 %v332
          %vm461 = vweird.f32 %v333
          %vm462 = vweird.f32 %v334
          %vm463 = vweird.f32 %v335
          %vm464 = vweird.f32 %v336
          %vm465 = vweird.f32 %v337
          %vm466 = vweird.f32 %v338
          %vm467 = vweird.f32 %v339
          %vm468 = vmxor %vm340, 1
          %vm469 = vmxor %vm341, 1
          %vm470 = vmxor %vm342, 1
          %vm471 = vmxor %vm343, 1
          %vm472 = vmxor %vm344, 1
          %vm473 = vmxor %vm345, 1
          %vm474 = vmxor %vm346, 1
          %vm475 = vmxor %vm347, 1
          %vm476 = vmxor %vm348, 1
          %vm477 = vmxor %vm349, 1
          %vm478 = vmxor %vm350, 1
          %vm479 = vmxor %vm351, 1
          %vm480 = vmxor %vm352, 1
          %vm481 = vmxor %vm353, 1
          %vm482 = vmxor %vm354, 1
          %vm483 = vmxor %vm355, 1
          %vm484 = vmxor %vm356, 1
          %vm485 = vmxor %vm357, 1
          %vm486 = vmxor %vm358, 1
          %vm487 = vmxor %vm359, 1
          %vm488 = vmxor %vm360, 1
          %vm489 = vmxor %vm361, 1
          %vm490 = vmxor %vm362, 1
          %vm491 = vmxor %vm363, 1
          %vm492 = vmxor %vm364, 1
          %vm493 = vmxor %vm365, 1
          %vm494 = vmxor %vm366, 1
          %vm495 = vmxor %vm367, 1
          %vm496 = vmxor %vm368, 1
          %vm497 = vmxor %vm369, 1
          %vm498 = vmxor %vm370, 1
          %vm499 = vmxor %vm371, 1
          %vm500 = vmxor %vm372, 1
          %vm501 = vmxor %vm373, 1
          %vm502 = vmxor %vm374, 1
          %vm503 = vmxor %vm375, 1
          %vm504 = vmxor %vm376, 1
          %vm505 = vmxor %vm377, 1
          %vm506 = vmxor %vm378, 1
          %vm507 = vmxor %vm379, 1
          %vm508 = vmxor %vm380, 1
          %vm509 = vmxor %vm381, 1
          %vm510 = vmxor %vm382, 1
          %vm511 = vmxor %vm383, 1
          %vm512 = vmxor %vm384, 1
          %vm513 = vmxor %vm385, 1
          %vm514 = vmxor %vm386, 1
          %vm515 = vmxor %vm387, 1
          %vm516 = vmxor %vm388, 1
          %vm517 = vmxor %vm389, 1
          %vm518 = vmxor %vm390, 1
          %vm519 = vmxor %vm391, 1
          %vm520 = vmxor %vm392, 1
          %vm521 = vmxor %vm393, 1
          %vm522 = vmxor %vm394, 1
          %vm523 = vmxor %vm395, 1
          %vm524 = vmxor %vm396, 1
          %vm525 = vmxor %vm397, 1
          %vm526 = vmxor %vm398, 1
          %vm527 = vmxor %vm399, 1
          %vm528 = vmxor %vm400, 1
          %vm529 = vmxor %vm401, 1
          %vm530 = vmxor %vm402, 1
          %vm531 = vmxor %vm403, 1
          %vm532 = vmxor %vm404, 1
          %vm533 = vmxor %vm405, 1
          %vm534 = vmxor %vm406, 1
          %vm535 = vmxor %vm407, 1
          %vm536 = vmxor %vm408, 1
          %vm537 = vmxor %vm409, 1
          %vm538 = vmxor %vm410, 1
          %vm539 = vmxor %vm411, 1
          %vm540 = vmxor %vm412, 1
          %vm541 = vmxor %vm413, 1
          %vm542 = vmxor %vm414, 1
          %vm543 = vmxor %vm415, 1
          %vm544 = vmxor %vm416, 1
          %vm545 = vmxor %vm417, 1
          %vm546 = vmxor %vm418, 1
          %vm547 = vmxor %vm419, 1
          %vm548 = vmxor %vm420, 1
          %vm549 = vmxor %vm421, 1
          %vm550 = vmxor %vm422, 1
          %vm551 = vmxor %vm423, 1
          %vm552 = vmxor %vm424, 1
          %vm553 = vmxor %vm425, 1
          %vm554 = vmxor %vm426, 1
          %vm555 = vmxor %vm427, 1
          %vm556 = vmxor %vm428, 1
          %vm557 = vmxor %vm429, 1
          %vm558 = vmxor %vm430, 1
          %vm559 = vmxor %vm431, 1
          %vm560 = vmxor %vm432, 1
          %vm561 = vmxor %vm433, 1
          %vm562 = vmxor %vm434, 1
          %vm563 = vmxor %vm435, 1
          %vm564 = vmxor %vm436, 1
          %vm565 = vmxor %vm437, 1
          %vm566 = vmxor %vm438, 1
          %vm567 = vmxor %vm439, 1
          %vm568 = vmxor %vm440, 1
          %vm569 = vmxor %vm441, 1
          %vm570 = vmxor %vm442, 1
          %vm571 = vmxor %vm443, 1
          %vm572 = vmxor %vm444, 1
          %vm573 = vmxor %vm445, 1
          %vm574 = vmxor %vm446, 1
          %vm575 = vmxor %vm447, 1
          %vm576 = vmxor %vm448, 1
          %vm577 = vmxor %vm449, 1
          %vm578 = vmxor %vm450, 1
          %vm579 = vmxor %vm451, 1
          %vm580 = vmxor %vm452, 1
          %vm581 = vmxor %vm453, 1
          %vm582 = vmxor %vm454, 1
          %vm583 = vmxor %vm455, 1
          %vm584 = vmxor %vm456, 1
          %vm585 = vmxor %vm457, 1
          %vm586 = vmxor %vm458, 1
          %vm587 = vmxor %vm459, 1
          %vm588 = vmxor %vm460, 1
          %vm589 = vmxor %vm461, 1
          %vm590 = vmxor %vm462, 1
          %vm591 = vmxor %vm463, 1
          %vm592 = vmxor %vm464, 1
          %vm593 = vmxor %vm465, 1
          %vm594 = vmxor %vm466, 1
          %vm595 = vmxor %vm467, 1
          %v596 = vsel %vm468, 1, 0
          %v597 = vsel %vm469, 1, 0
          %v598 = vsel %vm470, 1, 0
          %v599 = vsel %vm471, 1, 0
          %v600 = vsel %vm472, 1, 0
          %v601 = vsel %vm473, 1, 0
          %v602 = vsel %vm474, 1, 0
          %v603 = vsel %vm475, 1, 0
          %v604 = vsel %vm476, 1, 0
          %v605 = vsel %vm477, 1, 0
          %v606 = vsel %vm478, 1, 0
          %v607 = vsel %vm479, 1, 0
          %v608 = vsel %vm480, 1, 0
          %v609 = vsel %vm481, 1, 0
          %v610 = vsel %vm482, 1, 0
          %v611 = vsel %vm483, 1, 0
          %v612 = vsel %vm484, 1, 0
          %v613 = vsel %vm485, 1, 0
          %v614 = vsel %vm486, 1, 0
          %v615 = vsel %vm487, 1, 0
          %v616 = vsel %vm488, 1, 0
          %v617 = vsel %vm489, 1, 0
          %v618 = vsel %vm490, 1, 0
          %v619 = vsel %vm491, 1, 0
          %v620 = vsel %vm492, 1, 0
          %v621 = vsel %vm493, 1, 0
          %v622 = vsel %vm494, 1, 0
          %v623 = vsel %vm495, 1, 0
          %v624 = vsel %vm496, 1, 0
          %v625 = vsel %vm497, 1, 0
          %v626 = vsel %vm498, 1, 0
          %v627 = vsel %vm499, 1, 0
          %v628 = vsel %vm500, 1, 0
          %v629 = vsel %vm501, 1, 0
          %v630 = vsel %vm502, 1, 0
          %v631 = vsel %vm503, 1, 0
          %v632 = vsel %vm504, 1, 0
          %v633 = vsel %vm505, 1, 0
          %v634 = vsel %vm506, 1, 0
          %v635 = vsel %vm507, 1, 0
          %v636 = vsel %vm508, 1, 0
          %v637 = vsel %vm509, 1, 0
          %v638 = vsel %vm510, 1, 0
          %v639 = vsel %vm511, 1, 0
          %v640 = vsel %vm512, 1, 0
          %v641 = vsel %vm513, 1, 0
          %v642 = vsel %vm514, 1, 0
          %v643 = vsel %vm515, 1, 0
          %v644 = vsel %vm516, 1, 0
          %v645 = vsel %vm517, 1, 0
          %v646 = vsel %vm518, 1, 0
          %v647 = vsel %vm519, 1, 0
          %v648 = vsel %vm520, 1, 0
          %v649 = vsel %vm521, 1, 0
          %v650 = vsel %vm522, 1, 0
          %v651 = vsel %vm523, 1, 0
          %v652 = vsel %vm524, 1, 0
          %v653 = vsel %vm525, 1, 0
          %v654 = vsel %vm526, 1, 0
          %v655 = vsel %vm527, 1, 0
          %v656 = vsel %vm528, 1, 0
          %v657 = vsel %vm529, 1, 0
          %v658 = vsel %vm530, 1, 0
          %v659 = vsel %vm531, 1, 0
          %v660 = vsel %vm532, 1, 0
          %v661 = vsel %vm533, 1, 0
          %v662 = vsel %vm534, 1, 0
          %v663 = vsel %vm535, 1, 0
          %v664 = vsel %vm536, 1, 0
          %v665 = vsel %vm537, 1, 0
          %v666 = vsel %vm538, 1, 0
          %v667 = vsel %vm539, 1, 0
          %v668 = vsel %vm540, 1, 0
          %v669 = vsel %vm541, 1, 0
          %v670 = vsel %vm542, 1, 0
          %v671 = vsel %vm543, 1, 0
          %v672 = vsel %vm544, 1, 0
          %v673 = vsel %vm545, 1, 0
          %v674 = vsel %vm546, 1, 0
          %v675 = vsel %vm547, 1, 0
          %v676 = vsel %vm548, 1, 0
          %v677 = vsel %vm549, 1, 0
          %v678 = vsel %vm550, 1, 0
          %v679 = vsel %vm551, 1, 0
          %v680 = vsel %vm552, 1, 0
          %v681 = vsel %vm553, 1, 0
          %v682 = vsel %vm554, 1, 0
          %v683 = vsel %vm555, 1, 0
          %v684 = vsel %vm556, 1, 0
          %v685 = vsel %vm557, 1, 0
          %v686 = vsel %vm558, 1, 0
          %v687 = vsel %vm559, 1, 0
          %v688 = vsel %vm560, 1, 0
          %v689 = vsel %vm561, 1, 0
          %v690 = vsel %vm562, 1, 0
          %v691 = vsel %vm563, 1, 0
          %v692 = vsel %vm564, 1, 0
          %v693 = vsel %vm565, 1, 0
          %v694 = vsel %vm566, 1, 0
          %v695 = vsel %vm567, 1, 0
          %v696 = vsel %vm568, 1, 0
          %v697 = vsel %vm569, 1, 0
          %v698 = vsel %vm570, 1, 0
          %v699 = vsel %vm571, 1, 0
          %v700 = vsel %vm572, 1, 0
          %v701 = vsel %vm573, 1, 0
          %v702 = vsel %vm574, 1, 0
          %v703 = vsel %vm575, 1, 0
          %v704 = vsel %vm576, 1, 0
          %v705 = vsel %vm577, 1, 0
          %v706 = vsel %vm578, 1, 0
          %v707 = vsel %vm579, 1, 0
          %v708 = vsel %vm580, 1, 0
          %v709 = vsel %vm581, 1, 0
          %v710 = vsel %vm582, 1, 0
          %v711 = vsel %vm583, 1, 0
          %v712 = vsel %vm584, 1, 0
          %v713 = vsel %vm585, 1, 0
          %v714 = vsel %vm586, 1, 0
          %v715 = vsel %vm587, 1, 0
          %v716 = vsel %vm588, 1, 0
          %v717 = vsel %vm589, 1, 0
          %v718 = vsel %vm590, 1, 0
          %v719 = vsel %vm591, 1, 0
          %v720 = vsel %vm592, 1, 0
          %v721 = vsel %vm593, 1, 0
          %v722 = vsel %vm594, 1, 0
          %v723 = vsel %vm595, 1, 0
          %v724 = vcvt.s32.f32 %v596
          %v725 = vcvt.s32.f32 %v597
          %v726 = vcvt.s32.f32 %v598
          %v727 = vcvt.s32.f32 %v599
          %v728 = vcvt.s32.f32 %v600
          %v729 = vcvt.s32.f32 %v601
          %v730 = vcvt.s32.f32 %v602
          %v731 = vcvt.s32.f32 %v603
          %v732 = vcvt.s32.f32 %v604
          %v733 = vcvt.s32.f32 %v605
          %v734 = vcvt.s32.f32 %v606
          %v735 = vcvt.s32.f32 %v607
          %v736 = vcvt.s32.f32 %v608
          %v737 = vcvt.s32.f32 %v609
          %v738 = vcvt.s32.f32 %v610
          %v739 = vcvt.s32.f32 %v611
          %v740 = vcvt.s32.f32 %v612
          %v741 = vcvt.s32.f32 %v613
          %v742 = vcvt.s32.f32 %v614
          %v743 = vcvt.s32.f32 %v615
          %v744 = vcvt.s32.f32 %v616
          %v745 = vcvt.s32.f32 %v617
          %v746 = vcvt.s32.f32 %v618
          %v747 = vcvt.s32.f32 %v619
          %v748 = vcvt.s32.f32 %v620
          %v749 = vcvt.s32.f32 %v621
          %v750 = vcvt.s32.f32 %v622
          %v751 = vcvt.s32.f32 %v623
          %v752 = vcvt.s32.f32 %v624
          %v753 = vcvt.s32.f32 %v625
          %v754 = vcvt.s32.f32 %v626
          %v755 = vcvt.s32.f32 %v627
          %v756 = vcvt.s32.f32 %v628
          %v757 = vcvt.s32.f32 %v629
          %v758 = vcvt.s32.f32 %v630
          %v759 = vcvt.s32.f32 %v631
          %v760 = vcvt.s32.f32 %v632
          %v761 = vcvt.s32.f32 %v633
          %v762 = vcvt.s32.f32 %v634
          %v763 = vcvt.s32.f32 %v635
          %v764 = vcvt.s32.f32 %v636
          %v765 = vcvt.s32.f32 %v637
          %v766 = vcvt.s32.f32 %v638
          %v767 = vcvt.s32.f32 %v639
          %v768 = vcvt.s32.f32 %v640
          %v769 = vcvt.s32.f32 %v641
          %v770 = vcvt.s32.f32 %v642
          %v771 = vcvt.s32.f32 %v643
          %v772 = vcvt.s32.f32 %v644
          %v773 = vcvt.s32.f32 %v645
          %v774 = vcvt.s32.f32 %v646
          %v775 = vcvt.s32.f32 %v647
          %v776 = vcvt.s32.f32 %v648
          %v777 = vcvt.s32.f32 %v649
          %v778 = vcvt.s32.f32 %v650
          %v779 = vcvt.s32.f32 %v651
          %v780 = vcvt.s32.f32 %v652
          %v781 = vcvt.s32.f32 %v653
          %v782 = vcvt.s32.f32 %v654
          %v783 = vcvt.s32.f32 %v655
          %v784 = vcvt.s32.f32 %v656
          %v785 = vcvt.s32.f32 %v657
          %v786 = vcvt.s32.f32 %v658
          %v787 = vcvt.s32.f32 %v659
          %v788 = vcvt.s32.f32 %v660
          %v789 = vcvt.s32.f32 %v661
          %v790 = vcvt.s32.f32 %v662
          %v791 = vcvt.s32.f32 %v663
          %v792 = vcvt.s32.f32 %v664
          %v793 = vcvt.s32.f32 %v665
          %v794 = vcvt.s32.f32 %v666
          %v795 = vcvt.s32.f32 %v667
          %v796 = vcvt.s32.f32 %v668
          %v797 = vcvt.s32.f32 %v669
          %v798 = vcvt.s32.f32 %v670
          %v799 = vcvt.s32.f32 %v671
          %v800 = vcvt.s32.f32 %v672
          %v801 = vcvt.s32.f32 %v673
          %v802 = vcvt.s32.f32 %v674
          %v803 = vcvt.s32.f32 %v675
          %v804 = vcvt.s32.f32 %v676
          %v805 = vcvt.s32.f32 %v677
          %v806 = vcvt.s32.f32 %v678
          %v807 = vcvt.s32.f32 %v679
          %v808 = vcvt.s32.f32 %v680
          %v809 = vcvt.s32.f32 %v681
          %v810 = vcvt.s32.f32 %v682
          %v811 = vcvt.s32.f32 %v683
          %v812 = vcvt.s32.f32 %v684
          %v813 = vcvt.s32.f32 %v685
          %v814 = vcvt.s32.f32 %v686
          %v815 = vcvt.s32.f32 %v687
          %v816 = vcvt.s32.f32 %v688
          %v817 = vcvt.s32.f32 %v689
          %v818 = vcvt.s32.f32 %v690
          %v819 = vcvt.s32.f32 %v691
          %v820 = vcvt.s32.f32 %v692
          %v821 = vcvt.s32.f32 %v693
          %v822 = vcvt.s32.f32 %v694
          %v823 = vcvt.s32.f32 %v695
          %v824 = vcvt.s32.f32 %v696
          %v825 = vcvt.s32.f32 %v697
          %v826 = vcvt.s32.f32 %v698
          %v827 = vcvt.s32.f32 %v699
          %v828 = vcvt.s32.f32 %v700
          %v829 = vcvt.s32.f32 %v701
          %v830 = vcvt.s32.f32 %v702
          %v831 = vcvt.s32.f32 %v703
          %v832 = vcvt.s32.f32 %v704
          %v833 = vcvt.s32.f32 %v705
          %v834 = vcvt.s32.f32 %v706
          %v835 = vcvt.s32.f32 %v707
          %v836 = vcvt.s32.f32 %v708
          %v837 = vcvt.s32.f32 %v709
          %v838 = vcvt.s32.f32 %v710
          %v839 = vcvt.s32.f32 %v711
          %v840 = vcvt.s32.f32 %v712
          %v841 = vcvt.s32.f32 %v713
          %v842 = vcvt.s32.f32 %v714
          %v843 = vcvt.s32.f32 %v715
          %v844 = vcvt.s32.f32 %v716
          %v845 = vcvt.s32.f32 %v717
          %v846 = vcvt.s32.f32 %v718
          %v847 = vcvt.s32.f32 %v719
          %v848 = vcvt.s32.f32 %v720
          %v849 = vcvt.s32.f32 %v721
          %v850 = vcvt.s32.f32 %v722
          %v851 = vcvt.s32.f32 %v723
          %v852 = vsel %vm468, %v212, 0.0
          %v853 = vsel %vm469, %v213, 0.0
          %v854 = vsel %vm470, %v214, 0.0
          %v855 = vsel %vm471, %v215, 0.0
          %v856 = vsel %vm472, %v216, 0.0
          %v857 = vsel %vm473, %v217, 0.0
          %v858 = vsel %vm474, %v218, 0.0
          %v859 = vsel %vm475, %v219, 0.0
          %v860 = vsel %vm476, %v220, 0.0
          %v861 = vsel %vm477, %v221, 0.0
          %v862 = vsel %vm478, %v222, 0.0
          %v863 = vsel %vm479, %v223, 0.0
          %v864 = vsel %vm480, %v224, 0.0
          %v865 = vsel %vm481, %v225, 0.0
          %v866 = vsel %vm482, %v226, 0.0
          %v867 = vsel %vm483, %v227, 0.0
          %v868 = vsel %vm484, %v228, 0.0
          %v869 = vsel %vm485, %v229, 0.0
          %v870 = vsel %vm486, %v230, 0.0
          %v871 = vsel %vm487, %v231, 0.0
          %v872 = vsel %vm488, %v232, 0.0
          %v873 = vsel %vm489, %v233, 0.0
          %v874 = vsel %vm490, %v234, 0.0
          %v875 = vsel %vm491, %v235, 0.0
          %v876 = vsel %vm492, %v236, 0.0
          %v877 = vsel %vm493, %v237, 0.0
          %v878 = vsel %vm494, %v238, 0.0
          %v879 = vsel %vm495, %v239, 0.0
          %v880 = vsel %vm496, %v240, 0.0
          %v881 = vsel %vm497, %v241, 0.0
          %v882 = vsel %vm498, %v242, 0.0
          %v883 = vsel %vm499, %v243, 0.0
          %v884 = vsel %vm500, %v244, 0.0
          %v885 = vsel %vm501, %v245, 0.0
          %v886 = vsel %vm502, %v246, 0.0
          %v887 = vsel %vm503, %v247, 0.0
          %v888 = vsel %vm504, %v248, 0.0
          %v889 = vsel %vm505, %v249, 0.0
          %v890 = vsel %vm506, %v250, 0.0
          %v891 = vsel %vm507, %v251, 0.0
          %v892 = vsel %vm508, %v252, 0.0
          %v893 = vsel %vm509, %v253, 0.0
          %v894 = vsel %vm510, %v254, 0.0
          %v895 = vsel %vm511, %v255, 0.0
          %v896 = vsel %vm512, %v256, 0.0
          %v897 = vsel %vm513, %v257, 0.0
          %v898 = vsel %vm514, %v258, 0.0
          %v899 = vsel %vm515, %v259, 0.0
          %v900 = vsel %vm516, %v260, 0.0
          %v901 = vsel %vm517, %v261, 0.0
          %v902 = vsel %vm518, %v262, 0.0
          %v903 = vsel %vm519, %v263, 0.0
          %v904 = vsel %vm520, %v264, 0.0
          %v905 = vsel %vm521, %v265, 0.0
          %v906 = vsel %vm522, %v266, 0.0
          %v907 = vsel %vm523, %v267, 0.0
          %v908 = vsel %vm524, %v268, 0.0
          %v909 = vsel %vm525, %v269, 0.0
          %v910 = vsel %vm526, %v270, 0.0
          %v911 = vsel %vm527, %v271, 0.0
          %v912 = vsel %vm528, %v272, 0.0
          %v913 = vsel %vm529, %v273, 0.0
          %v914 = vsel %vm530, %v274, 0.0
          %v915 = vsel %vm531, %v275, 0.0
          %v916 = vsel %vm532, %v276, 0.0
          %v917 = vsel %vm533, %v277, 0.0
          %v918 = vsel %vm534, %v278, 0.0
          %v919 = vsel %vm535, %v279, 0.0
          %v920 = vsel %vm536, %v280, 0.0
          %v921 = vsel %vm537, %v281, 0.0
          %v922 = vsel %vm538, %v282, 0.0
          %v923 = vsel %vm539, %v283, 0.0
          %v924 = vsel %vm540, %v284, 0.0
          %v925 = vsel %vm541, %v285, 0.0
          %v926 = vsel %vm542, %v286, 0.0
          %v927 = vsel %vm543, %v287, 0.0
          %v928 = vsel %vm544, %v288, 0.0
          %v929 = vsel %vm545, %v289, 0.0
          %v930 = vsel %vm546, %v290, 0.0
          %v931 = vsel %vm547, %v291, 0.0
          %v932 = vsel %vm548, %v292, 0.0
          %v933 = vsel %vm549, %v293, 0.0
          %v934 = vsel %vm550, %v294, 0.0
          %v935 = vsel %vm551, %v295, 0.0
          %v936 = vsel %vm552, %v296, 0.0
          %v937 = vsel %vm553, %v297, 0.0
          %v938 = vsel %vm554, %v298, 0.0
          %v939 = vsel %vm555, %v299, 0.0
          %v940 = vsel %vm556, %v300, 0.0
          %v941 = vsel %vm557, %v301, 0.0
          %v942 = vsel %vm558, %v302, 0.0
          %v943 = vsel %vm559, %v303, 0.0
          %v944 = vsel %vm560, %v304, 0.0
          %v945 = vsel %vm561, %v305, 0.0
          %v946 = vsel %vm562, %v306, 0.0
          %v947 = vsel %vm563, %v307, 0.0
          %v948 = vsel %vm564, %v308, 0.0
          %v949 = vsel %vm565, %v309, 0.0
          %v950 = vsel %vm566, %v310, 0.0
          %v951 = vsel %vm567, %v311, 0.0
          %v952 = vsel %vm568, %v312, 0.0
          %v953 = vsel %vm569, %v313, 0.0
          %v954 = vsel %vm570, %v314, 0.0
          %v955 = vsel %vm571, %v315, 0.0
          %v956 = vsel %vm572, %v316, 0.0
          %v957 = vsel %vm573, %v317, 0.0
          %v958 = vsel %vm574, %v318, 0.0
          %v959 = vsel %vm575, %v319, 0.0
          %v960 = vsel %vm576, %v320, 0.0
          %v961 = vsel %vm577, %v321, 0.0
          %v962 = vsel %vm578, %v322, 0.0
          %v963 = vsel %vm579, %v323, 0.0
          %v964 = vsel %vm580, %v324, 0.0
          %v965 = vsel %vm581, %v325, 0.0
          %v966 = vsel %vm582, %v326, 0.0
          %v967 = vsel %vm583, %v327, 0.0
          %v968 = vsel %vm584, %v328, 0.0
          %v969 = vsel %vm585, %v329, 0.0
          %v970 = vsel %vm586, %v330, 0.0
          %v971 = vsel %vm587, %v331, 0.0
          %v972 = vsel %vm588, %v332, 0.0
          %v973 = vsel %vm589, %v333, 0.0
          %v974 = vsel %vm590, %v334, 0.0
          %v975 = vsel %vm591, %v335, 0.0
          %v976 = vsel %vm592, %v336, 0.0
          %v977 = vsel %vm593, %v337, 0.0
          %v978 = vsel %vm594, %v338, 0.0
          %v979 = vsel %vm595, %v339, 0.0
          %vm980 = vcmask 261120
          %v982 = vsel %vm980, %v202, 0
          %v985 = vsel %vm980, %v203, 0
          %v988 = vsel %vm980, %v724, 0
          %v991 = vsel %vm980, %v725, 0
          %v994 = vsel %vm980, %v726, 0
          %v997 = vsel %vm980, %v727, 0
          %v1000 = vsel %vm980, %v728, 0
          %v1003 = vsel %vm980, %v729, 0
          %v1006 = vsel %vm980, %v730, 0
          %v1009 = vsel %vm980, %v731, 0
          %v1012 = vsel %vm980, %v732, 0
          %v1015 = vsel %vm980, %v733, 0
          %v1018 = vsel %vm980, %v734, 0
          %v1021 = vsel %vm980, %v735, 0
          %v1024 = vsel %vm980, %v736, 0
          %v1027 = vsel %vm980, %v737, 0
          %v1030 = vsel %vm980, %v738, 0
          %v1033 = vsel %vm980, %v739, 0
          %v1036 = vsel %vm980, %v740, 0
          %v1039 = vsel %vm980, %v741, 0
          %v1042 = vsel %vm980, %v742, 0
          %v1045 = vsel %vm980, %v743, 0
          %v1048 = vsel %vm980, %v744, 0
          %v1051 = vsel %vm980, %v745, 0
          %v1054 = vsel %vm980, %v746, 0
          %v1057 = vsel %vm980, %v747, 0
          %v1060 = vsel %vm980, %v748, 0
          %v1063 = vsel %vm980, %v749, 0
          %v1066 = vsel %vm980, %v750, 0
          %v1069 = vsel %vm980, %v751, 0
          %v1072 = vsel %vm980, %v752, 0
          %v1075 = vsel %vm980, %v753, 0
          %v1078 = vsel %vm980, %v754, 0
          %v1081 = vsel %vm980, %v755, 0
          %v1084 = vsel %vm980, %v756, 0
          %v1087 = vsel %vm980, %v757, 0
          %v1090 = vsel %vm980, %v758, 0
          %v1093 = vsel %vm980, %v759, 0
          %v1096 = vsel %vm980, %v760, 0
          %v1099 = vsel %vm980, %v761, 0
          %v1102 = vsel %vm980, %v762, 0
          %v1105 = vsel %vm980, %v763, 0
          %v1108 = vsel %vm980, %v764, 0
          %v1111 = vsel %vm980, %v765, 0
          %v1114 = vsel %vm980, %v766, 0
          %v1117 = vsel %vm980, %v767, 0
          %v1120 = vsel %vm980, %v768, 0
          %v1123 = vsel %vm980, %v769, 0
          %v1126 = vsel %vm980, %v770, 0
          %v1129 = vsel %vm980, %v771, 0
          %v1132 = vsel %vm980, %v772, 0
          %v1135 = vsel %vm980, %v773, 0
          %v1138 = vsel %vm980, %v774, 0
          %v1141 = vsel %vm980, %v775, 0
          %v1144 = vsel %vm980, %v776, 0
          %v1147 = vsel %vm980, %v777, 0
          %v1150 = vsel %vm980, %v778, 0
          %v1153 = vsel %vm980, %v779, 0
          %v1156 = vsel %vm980, %v780, 0
          %v1159 = vsel %vm980, %v781, 0
          %v1162 = vsel %vm980, %v782, 0
          %v1165 = vsel %vm980, %v783, 0
          %v1168 = vsel %vm980, %v784, 0
          %v1171 = vsel %vm980, %v785, 0
          %v1174 = vsel %vm980, %v786, 0
          %v1177 = vsel %vm980, %v787, 0
          %v1180 = vsel %vm980, %v788, 0
          %v1183 = vsel %vm980, %v789, 0
          %v1186 = vsel %vm980, %v790, 0
          %v1189 = vsel %vm980, %v791, 0
          %v1192 = vsel %vm980, %v792, 0
          %v1195 = vsel %vm980, %v793, 0
          %v1198 = vsel %vm980, %v794, 0
          %v1201 = vsel %vm980, %v795, 0
          %v1204 = vsel %vm980, %v796, 0
          %v1207 = vsel %vm980, %v797, 0
          %v1210 = vsel %vm980, %v798, 0
          %v1213 = vsel %vm980, %v799, 0
          %v1216 = vsel %vm980, %v800, 0
          %v1219 = vsel %vm980, %v801, 0
          %v1222 = vsel %vm980, %v802, 0
          %v1225 = vsel %vm980, %v803, 0
          %v1228 = vsel %vm980, %v804, 0
          %v1231 = vsel %vm980, %v805, 0
          %v1234 = vsel %vm980, %v806, 0
          %v1237 = vsel %vm980, %v807, 0
          %v1240 = vsel %vm980, %v808, 0
          %v1243 = vsel %vm980, %v809, 0
          %v1246 = vsel %vm980, %v810, 0
          %v1249 = vsel %vm980, %v811, 0
          %v1252 = vsel %vm980, %v812, 0
          %v1255 = vsel %vm980, %v813, 0
          %v1258 = vsel %vm980, %v814, 0
          %v1261 = vsel %vm980, %v815, 0
          %v1264 = vsel %vm980, %v816, 0
          %v1267 = vsel %vm980, %v817, 0
          %v1270 = vsel %vm980, %v818, 0
          %v1273 = vsel %vm980, %v819, 0
          %v1276 = vsel %vm980, %v820, 0
          %v1279 = vsel %vm980, %v821, 0
          %v1282 = vsel %vm980, %v822, 0
          %v1285 = vsel %vm980, %v823, 0
          %v1288 = vsel %vm980, %v824, 0
          %v1291 = vsel %vm980, %v825, 0
          %v1294 = vsel %vm980, %v826, 0
          %v1297 = vsel %vm980, %v827, 0
          %v1300 = vsel %vm980, %v828, 0
          %v1303 = vsel %vm980, %v829, 0
          %v1306 = vsel %vm980, %v830, 0
          %v1309 = vsel %vm980, %v831, 0
          %v1312 = vsel %vm980, %v832, 0
          %v1315 = vsel %vm980, %v833, 0
          %v1318 = vsel %vm980, %v834, 0
          %v1321 = vsel %vm980, %v835, 0
          %v1324 = vsel %vm980, %v836, 0
          %v1327 = vsel %vm980, %v837, 0
          %v1330 = vsel %vm980, %v838, 0
          %v1333 = vsel %vm980, %v839, 0
          %v1336 = vsel %vm980, %v840, 0
          %v1339 = vsel %vm980, %v841, 0
          %v1342 = vsel %vm980, %v842, 0
          %v1345 = vsel %vm980, %v843, 0
          %v1348 = vsel %vm980, %v844, 0
          %v1351 = vsel %vm980, %v845, 0
          %v1354 = vsel %vm980, %v846, 0
          %v1357 = vsel %vm980, %v847, 0
          %v1360 = vsel %vm980, %v848, 0
          %v1363 = vsel %vm980, %v849, 0
          %v1366 = vsel %vm980, %v850, 0
          %v1369 = vsel %vm980, %v851, 0
          %v1371 = vand.u32 %v1033, 4294901760
          %1372 = vmatpush.xpose.msra.mxu0 %v1371
          %v1373 = vand.u32 %v1030, 4294901760
          %1374 = vmatpush.xpose.msra.mxu0 %v1373
          %v1375 = vand.u32 %v1027, 4294901760
          %1376 = vmatpush.xpose.msra.mxu0 %v1375
          %v1377 = vand.u32 %v1024, 4294901760
          %1378 = vmatpush.xpose.msra.mxu0 %v1377
          %v1379 = vand.u32 %v1021, 4294901760
          %1380 = vmatpush.xpose.msra.mxu0 %v1379
          %v1381 = vand.u32 %v1018, 4294901760
          %1382 = vmatpush.xpose.msra.mxu0 %v1381
          %v1383 = vand.u32 %v1015, 4294901760
          %1384 = vmatpush.xpose.msra.mxu0 %v1383
          %v1385 = vand.u32 %v1012, 4294901760
          %1386 = vmatpush.xpose.msra.mxu0 %v1385
          %v1387 = vand.u32 %v1009, 4294901760
          %1388 = vmatpush.xpose.msra.mxu0 %v1387
          %v1389 = vand.u32 %v1006, 4294901760
          %1390 = vmatpush.xpose.msra.mxu0 %v1389
          %v1391 = vand.u32 %v1003, 4294901760
          %1392 = vmatpush.xpose.msra.mxu0 %v1391
          %v1393 = vand.u32 %v1000, 4294901760
          %1394 = vmatpush.xpose.msra.mxu0 %v1393
          %v1395 = vand.u32 %v997, 4294901760
          %1396 = vmatpush.xpose.msra.mxu0 %v1395
          %v1397 = vand.u32 %v994, 4294901760
          %1398 = vmatpush.xpose.msra.mxu0 %v1397
          %v1399 = vand.u32 %v991, 4294901760
          %1400 = vmatpush.xpose.msra.mxu0 %v1399
          %v1401 = vand.u32 %v988, 4294901760
          %1402 = vmatpush.xpose.msra.mxu0 %v1401
          %v1403 = vand.u32 %v982, 4294901760
          %v1404 = vsub.f32 %v982, %v1403
          %v1405 = vand.u32 %v1404, 4294901760
          %v1406 = vsub.f32 %v1404, %v1405
          %v1407 = vand.u32 %v1406, 4294901760
          %1408 = vmatmul.f32.gmra.mxu0 %v1407
          %v1409 = vpop.f32.mrf.mxu0
          %v1410 = vadd.f32 0.0, %v1409
          %v1411 = vand.u32 %v985, 4294901760
          %v1412 = vsub.f32 %v985, %v1411
          %v1413 = vand.u32 %v1412, 4294901760
          %v1414 = vsub.f32 %v1412, %v1413
          %v1415 = vand.u32 %v1414, 4294901760
          %1416 = vmatmul.f32.gmra.mxu0 %v1415
          %v1417 = vpop.f32.mrf.mxu0
          %v1418 = vadd.f32 0.0, %v1417
          %1419 = vdwg.mxu0
          %v1420 = vand.u32 %v1033, 4294901760
          %v1421 = vsub.f32 %v1033, %v1420
          %v1422 = vand.u32 %v1421, 4294901760
          %v1423 = vsub.f32 %v1421, %v1422
          %v1424 = vand.u32 %v1423, 4294901760
          %1425 = vmatpush.xpose.msra.mxu0 %v1424
          %v1426 = vand.u32 %v1030, 4294901760
          %v1427 = vsub.f32 %v1030, %v1426
          %v1428 = vand.u32 %v1427, 4294901760
          %v1429 = vsub.f32 %v1427, %v1428
          %v1430 = vand.u32 %v1429, 4294901760
          %1431 = vmatpush.xpose.msra.mxu0 %v1430
          %v1432 = vand.u32 %v1027, 4294901760
          %v1433 = vsub.f32 %v1027, %v1432
          %v1434 = vand.u32 %v1433, 4294901760
          %v1435 = vsub.f32 %v1433, %v1434
          %v1436 = vand.u32 %v1435, 4294901760
          %1437 = vmatpush.xpose.msra.mxu0 %v1436
          %v1438 = vand.u32 %v1024, 4294901760
          %v1439 = vsub.f32 %v1024, %v1438
          %v1440 = vand.u32 %v1439, 4294901760
          %v1441 = vsub.f32 %v1439, %v1440
          %v1442 = vand.u32 %v1441, 4294901760
          %1443 = vmatpush.xpose.msra.mxu0 %v1442
          %v1444 = vand.u32 %v1021, 4294901760
          %v1445 = vsub.f32 %v1021, %v1444
          %v1446 = vand.u32 %v1445, 4294901760
          %v1447 = vsub.f32 %v1445, %v1446
          %v1448 = vand.u32 %v1447, 4294901760
          %1449 = vmatpush.xpose.msra.mxu0 %v1448
          %v1450 = vand.u32 %v1018, 4294901760
          %v1451 = vsub.f32 %v1018, %v1450
          %v1452 = vand.u32 %v1451, 4294901760
          %v1453 = vsub.f32 %v1451, %v1452
          %v1454 = vand.u32 %v1453, 4294901760
          %1455 = vmatpush.xpose.msra.mxu0 %v1454
          %v1456 = vand.u32 %v1015, 4294901760
          %v1457 = vsub.f32 %v1015, %v1456
          %v1458 = vand.u32 %v1457, 4294901760
          %v1459 = vsub.f32 %v1457, %v1458
          %v1460 = vand.u32 %v1459, 4294901760
          %1461 = vmatpush.xpose.msra.mxu0 %v1460
          %v1462 = vand.u32 %v1012, 4294901760
          %v1463 = vsub.f32 %v1012, %v1462
          %v1464 = vand.u32 %v1463, 4294901760
          %v1465 = vsub.f32 %v1463, %v1464
          %v1466 = vand.u32 %v1465, 4294901760
          %1467 = vmatpush.xpose.msra.mxu0 %v1466
          %v1468 = vand.u32 %v1009, 4294901760
          %v1469 = vsub.f32 %v1009, %v1468
          %v1470 = vand.u32 %v1469, 4294901760
          %v1471 = vsub.f32 %v1469, %v1470
          %v1472 = vand.u32 %v1471, 4294901760
          %1473 = vmatpush.xpose.msra.mxu0 %v1472
          %v1474 = vand.u32 %v1006, 4294901760
          %v1475 = vsub.f32 %v1006, %v1474
          %v1476 = vand.u32 %v1475, 4294901760
          %v1477 = vsub.f32 %v1475, %v1476
          %v1478 = vand.u32 %v1477, 4294901760
          %1479 = vmatpush.xpose.msra.mxu0 %v1478
          %v1480 = vand.u32 %v1003, 4294901760
          %v1481 = vsub.f32 %v1003, %v1480
          %v1482 = vand.u32 %v1481, 4294901760
          %v1483 = vsub.f32 %v1481, %v1482
          %v1484 = vand.u32 %v1483, 4294901760
          %1485 = vmatpush.xpose.msra.mxu0 %v1484
          %v1486 = vand.u32 %v1000, 4294901760
          %v1487 = vsub.f32 %v1000, %v1486
          %v1488 = vand.u32 %v1487, 4294901760
          %v1489 = vsub.f32 %v1487, %v1488
          %v1490 = vand.u32 %v1489, 4294901760
          %1491 = vmatpush.xpose.msra.mxu0 %v1490
          %v1492 = vand.u32 %v997, 4294901760
          %v1493 = vsub.f32 %v997, %v1492
          %v1494 = vand.u32 %v1493, 4294901760
          %v1495 = vsub.f32 %v1493, %v1494
          %v1496 = vand.u32 %v1495, 4294901760
          %1497 = vmatpush.xpose.msra.mxu0 %v1496
          %v1498 = vand.u32 %v994, 4294901760
          %v1499 = vsub.f32 %v994, %v1498
          %v1500 = vand.u32 %v1499, 4294901760
          %v1501 = vsub.f32 %v1499, %v1500
          %v1502 = vand.u32 %v1501, 4294901760
          %1503 = vmatpush.xpose.msra.mxu0 %v1502
          %v1504 = vand.u32 %v991, 4294901760
          %v1505 = vsub.f32 %v991, %v1504
          %v1506 = vand.u32 %v1505, 4294901760
          %v1507 = vsub.f32 %v1505, %v1506
          %v1508 = vand.u32 %v1507, 4294901760
          %1509 = vmatpush.xpose.msra.mxu0 %v1508
          %v1510 = vand.u32 %v988, 4294901760
          %v1511 = vsub.f32 %v988, %v1510
          %v1512 = vand.u32 %v1511, 4294901760
          %v1513 = vsub.f32 %v1511, %v1512
          %v1514 = vand.u32 %v1513, 4294901760
          %1515 = vmatpush.xpose.msra.mxu0 %v1514
          %v1516 = vand.u32 %v982, 4294901760
          %1517 = vmatmul.f32.gmra.mxu0 %v1516
          %v1518 = vpop.f32.mrf.mxu0
          %v1519 = vadd.f32 %v1410, %v1518
          %v1520 = vand.u32 %v985, 4294901760
          %1521 = vmatmul.f32.gmra.mxu0 %v1520
          %v1522 = vpop.f32.mrf.mxu0
          %v1523 = vadd.f32 %v1418, %v1522
          %1524 = vdwg.mxu0
          %v1525 = vand.u32 %v1033, 4294901760
          %v1526 = vsub.f32 %v1033, %v1525
          %1527 = vmatpush.xpose.msra.mxu0 %v1526
          %v1528 = vand.u32 %v1030, 4294901760
          %v1529 = vsub.f32 %v1030, %v1528
          %1530 = vmatpush.xpose.msra.mxu0 %v1529
          %v1531 = vand.u32 %v1027, 4294901760
          %v1532 = vsub.f32 %v1027, %v1531
          %1533 = vmatpush.xpose.msra.mxu0 %v1532
          %v1534 = vand.u32 %v1024, 4294901760
          %v1535 = vsub.f32 %v1024, %v1534
          %1536 = vmatpush.xpose.msra.mxu0 %v1535
          %v1537 = vand.u32 %v1021, 4294901760
          %v1538 = vsub.f32 %v1021, %v1537
          %1539 = vmatpush.xpose.msra.mxu0 %v1538
          %v1540 = vand.u32 %v1018, 4294901760
          %v1541 = vsub.f32 %v1018, %v1540
          %1542 = vmatpush.xpose.msra.mxu0 %v1541
          %v1543 = vand.u32 %v1015, 4294901760
          %v1544 = vsub.f32 %v1015, %v1543
          %1545 = vmatpush.xpose.msra.mxu0 %v1544
          %v1546 = vand.u32 %v1012, 4294901760
          %v1547 = vsub.f32 %v1012, %v1546
          %1548 = vmatpush.xpose.msra.mxu0 %v1547
          %v1549 = vand.u32 %v1009, 4294901760
          %v1550 = vsub.f32 %v1009, %v1549
          %1551 = vmatpush.xpose.msra.mxu0 %v1550
          %v1552 = vand.u32 %v1006, 4294901760
          %v1553 = vsub.f32 %v1006, %v1552
          %1554 = vmatpush.xpose.msra.mxu0 %v1553
          %v1555 = vand.u32 %v1003, 4294901760
          %v1556 = vsub.f32 %v1003, %v1555
          %1557 = vmatpush.xpose.msra.mxu0 %v1556
          %v1558 = vand.u32 %v1000, 4294901760
          %v1559 = vsub.f32 %v1000, %v1558
          %1560 = vmatpush.xpose.msra.mxu0 %v1559
          %v1561 = vand.u32 %v997, 4294901760
          %v1562 = vsub.f32 %v997, %v1561
          %1563 = vmatpush.xpose.msra.mxu0 %v1562
          %v1564 = vand.u32 %v994, 4294901760
          %v1565 = vsub.f32 %v994, %v1564
          %1566 = vmatpush.xpose.msra.mxu0 %v1565
          %v1567 = vand.u32 %v991, 4294901760
          %v1568 = vsub.f32 %v991, %v1567
          %1569 = vmatpush.xpose.msra.mxu0 %v1568
          %v1570 = vand.u32 %v988, 4294901760
          %v1571 = vsub.f32 %v988, %v1570
          %1572 = vmatpush.xpose.msra.mxu0 %v1571
          %v1573 = vand.u32 %v982, 4294901760
          %v1574 = vsub.f32 %v982, %v1573
          %1575 = vmatmul.f32.gmra.mxu0 %v1574
          %v1576 = vpop.f32.mrf.mxu0
          %v1577 = vadd.f32 %v1519, %v1576
          %v1578 = vand.u32 %v985, 4294901760
          %v1579 = vsub.f32 %v985, %v1578
          %1580 = vmatmul.f32.gmra.mxu0 %v1579
          %v1581 = vpop.f32.mrf.mxu0
          %v1582 = vadd.f32 %v1523, %v1581
          %1583 = vdwg.mxu0
          %v1584 = vand.u32 %v1033, 4294901760
          %1585 = vmatpush.xpose.msra.mxu0 %v1584
          %v1586 = vand.u32 %v1030, 4294901760
          %1587 = vmatpush.xpose.msra.mxu0 %v1586
          %v1588 = vand.u32 %v1027, 4294901760
          %1589 = vmatpush.xpose.msra.mxu0 %v1588
          %v1590 = vand.u32 %v1024, 4294901760
          %1591 = vmatpush.xpose.msra.mxu0 %v1590
          %v1592 = vand.u32 %v1021, 4294901760
          %1593 = vmatpush.xpose.msra.mxu0 %v1592
          %v1594 = vand.u32 %v1018, 4294901760
          %1595 = vmatpush.xpose.msra.mxu0 %v1594
          %v1596 = vand.u32 %v1015, 4294901760
          %1597 = vmatpush.xpose.msra.mxu0 %v1596
          %v1598 = vand.u32 %v1012, 4294901760
          %1599 = vmatpush.xpose.msra.mxu0 %v1598
          %v1600 = vand.u32 %v1009, 4294901760
          %1601 = vmatpush.xpose.msra.mxu0 %v1600
          %v1602 = vand.u32 %v1006, 4294901760
          %1603 = vmatpush.xpose.msra.mxu0 %v1602
          %v1604 = vand.u32 %v1003, 4294901760
          %1605 = vmatpush.xpose.msra.mxu0 %v1604
          %v1606 = vand.u32 %v1000, 4294901760
          %1607 = vmatpush.xpose.msra.mxu0 %v1606
          %v1608 = vand.u32 %v997, 4294901760
          %1609 = vmatpush.xpose.msra.mxu0 %v1608
          %v1610 = vand.u32 %v994, 4294901760
          %1611 = vmatpush.xpose.msra.mxu0 %v1610
          %v1612 = vand.u32 %v991, 4294901760
          %1613 = vmatpush.xpose.msra.mxu0 %v1612
          %v1614 = vand.u32 %v988, 4294901760
          %1615 = vmatpush.xpose.msra.mxu0 %v1614
          %v1616 = vand.u32 %v982, 4294901760
          %v1617 = vsub.f32 %v982, %v1616
          %v1618 = vand.u32 %v1617, 4294901760
          %1619 = vmatmul.f32.gmra.mxu0 %v1618
          %v1620 = vpop.f32.mrf.mxu0
          %v1621 = vadd.f32 %v1577, %v1620
          %v1622 = vand.u32 %v985, 4294901760
          %v1623 = vsub.f32 %v985, %v1622
          %v1624 = vand.u32 %v1623, 4294901760
          %1625 = vmatmul.f32.gmra.mxu0 %v1624
          %v1626 = vpop.f32.mrf.mxu0
          %v1627 = vadd.f32 %v1582, %v1626
          %1628 = vdwg.mxu0
          %v1629 = vand.u32 %v1033, 4294901760
          %v1630 = vsub.f32 %v1033, %v1629
          %v1631 = vand.u32 %v1630, 4294901760
          %1632 = vmatpush.xpose.msra.mxu0 %v1631
          %v1633 = vand.u32 %v1030, 4294901760
          %v1634 = vsub.f32 %v1030, %v1633
          %v1635 = vand.u32 %v1634, 4294901760
          %1636 = vmatpush.xpose.msra.mxu0 %v1635
          %v1637 = vand.u32 %v1027, 4294901760
          %v1638 = vsub.f32 %v1027, %v1637
          %v1639 = vand.u32 %v1638, 4294901760
          %1640 = vmatpush.xpose.msra.mxu0 %v1639
          %v1641 = vand.u32 %v1024, 4294901760
          %v1642 = vsub.f32 %v1024, %v1641
          %v1643 = vand.u32 %v1642, 4294901760
          %1644 = vmatpush.xpose.msra.mxu0 %v1643
          %v1645 = vand.u32 %v1021, 4294901760
          %v1646 = vsub.f32 %v1021, %v1645
          %v1647 = vand.u32 %v1646, 4294901760
          %1648 = vmatpush.xpose.msra.mxu0 %v1647
          %v1649 = vand.u32 %v1018, 4294901760
          %v1650 = vsub.f32 %v1018, %v1649
          %v1651 = vand.u32 %v1650, 4294901760
          %1652 = vmatpush.xpose.msra.mxu0 %v1651
          %v1653 = vand.u32 %v1015, 4294901760
          %v1654 = vsub.f32 %v1015, %v1653
          %v1655 = vand.u32 %v1654, 4294901760
          %1656 = vmatpush.xpose.msra.mxu0 %v1655
          %v1657 = vand.u32 %v1012, 4294901760
          %v1658 = vsub.f32 %v1012, %v1657
          %v1659 = vand.u32 %v1658, 4294901760
          %1660 = vmatpush.xpose.msra.mxu0 %v1659
          %v1661 = vand.u32 %v1009, 4294901760
          %v1662 = vsub.f32 %v1009, %v1661
          %v1663 = vand.u32 %v1662, 4294901760
          %1664 = vmatpush.xpose.msra.mxu0 %v1663
          %v1665 = vand.u32 %v1006, 4294901760
          %v1666 = vsub.f32 %v1006, %v1665
          %v1667 = vand.u32 %v1666, 4294901760
          %1668 = vmatpush.xpose.msra.mxu0 %v1667
          %v1669 = vand.u32 %v1003, 4294901760
          %v1670 = vsub.f32 %v1003, %v1669
          %v1671 = vand.u32 %v1670, 4294901760
          %1672 = vmatpush.xpose.msra.mxu0 %v1671
          %v1673 = vand.u32 %v1000, 4294901760
          %v1674 = vsub.f32 %v1000, %v1673
          %v1675 = vand.u32 %v1674, 4294901760
          %1676 = vmatpush.xpose.msra.mxu0 %v1675
          %v1677 = vand.u32 %v997, 4294901760
          %v1678 = vsub.f32 %v997, %v1677
          %v1679 = vand.u32 %v1678, 4294901760
          %1680 = vmatpush.xpose.msra.mxu0 %v1679
          %v1681 = vand.u32 %v994, 4294901760
          %v1682 = vsub.f32 %v994, %v1681
          %v1683 = vand.u32 %v1682, 4294901760
          %1684 = vmatpush.xpose.msra.mxu0 %v1683
          %v1685 = vand.u32 %v991, 4294901760
          %v1686 = vsub.f32 %v991, %v1685
          %v1687 = vand.u32 %v1686, 4294901760
          %1688 = vmatpush.xpose.msra.mxu0 %v1687
          %v1689 = vand.u32 %v988, 4294901760
          %v1690 = vsub.f32 %v988, %v1689
          %v1691 = vand.u32 %v1690, 4294901760
          %1692 = vmatpush.xpose.msra.mxu0 %v1691
          %v1693 = vand.u32 %v982, 4294901760
          %1694 = vmatmul.f32.gmra.mxu0 %v1693
          %v1695 = vpop.f32.mrf.mxu0
          %v1696 = vadd.f32 %v1621, %v1695
          %v1697 = vand.u32 %v985, 4294901760
          %1698 = vmatmul.f32.gmra.mxu0 %v1697
          %v1699 = vpop.f32.mrf.mxu0
          %v1700 = vadd.f32 %v1627, %v1699
          %1701 = vdwg.mxu0
          %v1702 = vand.u32 %v1033, 4294901760
          %1703 = vmatpush.xpose.msra.mxu0 %v1702
          %v1704 = vand.u32 %v1030, 4294901760
          %1705 = vmatpush.xpose.msra.mxu0 %v1704
          %v1706 = vand.u32 %v1027, 4294901760
          %1707 = vmatpush.xpose.msra.mxu0 %v1706
          %v1708 = vand.u32 %v1024, 4294901760
          %1709 = vmatpush.xpose.msra.mxu0 %v1708
          %v1710 = vand.u32 %v1021, 4294901760
          %1711 = vmatpush.xpose.msra.mxu0 %v1710
          %v1712 = vand.u32 %v1018, 4294901760
          %1713 = vmatpush.xpose.msra.mxu0 %v1712
          %v1714 = vand.u32 %v1015, 4294901760
          %1715 = vmatpush.xpose.msra.mxu0 %v1714
          %v1716 = vand.u32 %v1012, 4294901760
          %1717 = vmatpush.xpose.msra.mxu0 %v1716
          %v1718 = vand.u32 %v1009, 4294901760
          %1719 = vmatpush.xpose.msra.mxu0 %v1718
          %v1720 = vand.u32 %v1006, 4294901760
          %1721 = vmatpush.xpose.msra.mxu0 %v1720
          %v1722 = vand.u32 %v1003, 4294901760
          %1723 = vmatpush.xpose.msra.mxu0 %v1722
          %v1724 = vand.u32 %v1000, 4294901760
          %1725 = vmatpush.xpose.msra.mxu0 %v1724
          %v1726 = vand.u32 %v997, 4294901760
          %1727 = vmatpush.xpose.msra.mxu0 %v1726
          %v1728 = vand.u32 %v994, 4294901760
          %1729 = vmatpush.xpose.msra.mxu0 %v1728
          %v1730 = vand.u32 %v991, 4294901760
          %1731 = vmatpush.xpose.msra.mxu0 %v1730
          %v1732 = vand.u32 %v988, 4294901760
          %1733 = vmatpush.xpose.msra.mxu0 %v1732
          %v1734 = vand.u32 %v982, 4294901760
          %1735 = vmatmul.f32.gmra.mxu0 %v1734
          %v1736 = vpop.f32.mrf.mxu0
          %v1737 = vadd.f32 %v1696, %v1736
          %v1738 = vand.u32 %v985, 4294901760
          %1739 = vmatmul.f32.gmra.mxu0 %v1738
          %v1740 = vpop.f32.mrf.mxu0
          %v1741 = vadd.f32 %v1700, %v1740
          %1742 = vdwg.mxu0
          %v1743 = vand.u32 %v1081, 4294901760
          %1744 = vmatpush.xpose.msra.mxu0 %v1743
          %v1745 = vand.u32 %v1078, 4294901760
          %1746 = vmatpush.xpose.msra.mxu0 %v1745
          %v1747 = vand.u32 %v1075, 4294901760
          %1748 = vmatpush.xpose.msra.mxu0 %v1747
          %v1749 = vand.u32 %v1072, 4294901760
          %1750 = vmatpush.xpose.msra.mxu0 %v1749
          %v1751 = vand.u32 %v1069, 4294901760
          %1752 = vmatpush.xpose.msra.mxu0 %v1751
          %v1753 = vand.u32 %v1066, 4294901760
          %1754 = vmatpush.xpose.msra.mxu0 %v1753
          %v1755 = vand.u32 %v1063, 4294901760
          %1756 = vmatpush.xpose.msra.mxu0 %v1755
          %v1757 = vand.u32 %v1060, 4294901760
          %1758 = vmatpush.xpose.msra.mxu0 %v1757
          %v1759 = vand.u32 %v1057, 4294901760
          %1760 = vmatpush.xpose.msra.mxu0 %v1759
          %v1761 = vand.u32 %v1054, 4294901760
          %1762 = vmatpush.xpose.msra.mxu0 %v1761
          %v1763 = vand.u32 %v1051, 4294901760
          %1764 = vmatpush.xpose.msra.mxu0 %v1763
          %v1765 = vand.u32 %v1048, 4294901760
          %1766 = vmatpush.xpose.msra.mxu0 %v1765
          %v1767 = vand.u32 %v1045, 4294901760
          %1768 = vmatpush.xpose.msra.mxu0 %v1767
          %v1769 = vand.u32 %v1042, 4294901760
          %1770 = vmatpush.xpose.msra.mxu0 %v1769
          %v1771 = vand.u32 %v1039, 4294901760
          %1772 = vmatpush.xpose.msra.mxu0 %v1771
          %v1773 = vand.u32 %v1036, 4294901760
          %1774 = vmatpush.xpose.msra.mxu0 %v1773
          %v1775 = vand.u32 %v982, 4294901760
          %v1776 = vsub.f32 %v982, %v1775
          %v1777 = vand.u32 %v1776, 4294901760
          %v1778 = vsub.f32 %v1776, %v1777
          %v1779 = vand.u32 %v1778, 4294901760
          %1780 = vmatmul.f32.gmra.mxu0 %v1779
          %v1781 = vpop.f32.mrf.mxu0
          %v1782 = vadd.f32 0.0, %v1781
          %v1783 = vand.u32 %v985, 4294901760
          %v1784 = vsub.f32 %v985, %v1783
          %v1785 = vand.u32 %v1784, 4294901760
          %v1786 = vsub.f32 %v1784, %v1785
          %v1787 = vand.u32 %v1786, 4294901760
          %1788 = vmatmul.f32.gmra.mxu0 %v1787
          %v1789 = vpop.f32.mrf.mxu0
          %v1790 = vadd.f32 0.0, %v1789
          %1791 = vdwg.mxu0
          %v1792 = vand.u32 %v1081, 4294901760
          %v1793 = vsub.f32 %v1081, %v1792
          %v1794 = vand.u32 %v1793, 4294901760
          %v1795 = vsub.f32 %v1793, %v1794
          %v1796 = vand.u32 %v1795, 4294901760
          %1797 = vmatpush.xpose.msra.mxu0 %v1796
          %v1798 = vand.u32 %v1078, 4294901760
          %v1799 = vsub.f32 %v1078, %v1798
          %v1800 = vand.u32 %v1799, 4294901760
          %v1801 = vsub.f32 %v1799, %v1800
          %v1802 = vand.u32 %v1801, 4294901760
          %1803 = vmatpush.xpose.msra.mxu0 %v1802
          %v1804 = vand.u32 %v1075, 4294901760
          %v1805 = vsub.f32 %v1075, %v1804
          %v1806 = vand.u32 %v1805, 4294901760
          %v1807 = vsub.f32 %v1805, %v1806
          %v1808 = vand.u32 %v1807, 4294901760
          %1809 = vmatpush.xpose.msra.mxu0 %v1808
          %v1810 = vand.u32 %v1072, 4294901760
          %v1811 = vsub.f32 %v1072, %v1810
          %v1812 = vand.u32 %v1811, 4294901760
          %v1813 = vsub.f32 %v1811, %v1812
          %v1814 = vand.u32 %v1813, 4294901760
          %1815 = vmatpush.xpose.msra.mxu0 %v1814
          %v1816 = vand.u32 %v1069, 4294901760
          %v1817 = vsub.f32 %v1069, %v1816
          %v1818 = vand.u32 %v1817, 4294901760
          %v1819 = vsub.f32 %v1817, %v1818
          %v1820 = vand.u32 %v1819, 4294901760
          %1821 = vmatpush.xpose.msra.mxu0 %v1820
          %v1822 = vand.u32 %v1066, 4294901760
          %v1823 = vsub.f32 %v1066, %v1822
          %v1824 = vand.u32 %v1823, 4294901760
          %v1825 = vsub.f32 %v1823, %v1824
          %v1826 = vand.u32 %v1825, 4294901760
          %1827 = vmatpush.xpose.msra.mxu0 %v1826
          %v1828 = vand.u32 %v1063, 4294901760
          %v1829 = vsub.f32 %v1063, %v1828
          %v1830 = vand.u32 %v1829, 4294901760
          %v1831 = vsub.f32 %v1829, %v1830
          %v1832 = vand.u32 %v1831, 4294901760
          %1833 = vmatpush.xpose.msra.mxu0 %v1832
          %v1834 = vand.u32 %v1060, 4294901760
          %v1835 = vsub.f32 %v1060, %v1834
          %v1836 = vand.u32 %v1835, 4294901760
          %v1837 = vsub.f32 %v1835, %v1836
          %v1838 = vand.u32 %v1837, 4294901760
          %1839 = vmatpush.xpose.msra.mxu0 %v1838
          %v1840 = vand.u32 %v1057, 4294901760
          %v1841 = vsub.f32 %v1057, %v1840
          %v1842 = vand.u32 %v1841, 4294901760
          %v1843 = vsub.f32 %v1841, %v1842
          %v1844 = vand.u32 %v1843, 4294901760
          %1845 = vmatpush.xpose.msra.mxu0 %v1844
          %v1846 = vand.u32 %v1054, 4294901760
          %v1847 = vsub.f32 %v1054, %v1846
          %v1848 = vand.u32 %v1847, 4294901760
          %v1849 = vsub.f32 %v1847, %v1848
          %v1850 = vand.u32 %v1849, 4294901760
          %1851 = vmatpush.xpose.msra.mxu0 %v1850
          %v1852 = vand.u32 %v1051, 4294901760
          %v1853 = vsub.f32 %v1051, %v1852
          %v1854 = vand.u32 %v1853, 4294901760
          %v1855 = vsub.f32 %v1853, %v1854
          %v1856 = vand.u32 %v1855, 4294901760
          %1857 = vmatpush.xpose.msra.mxu0 %v1856
          %v1858 = vand.u32 %v1048, 4294901760
          %v1859 = vsub.f32 %v1048, %v1858
          %v1860 = vand.u32 %v1859, 4294901760
          %v1861 = vsub.f32 %v1859, %v1860
          %v1862 = vand.u32 %v1861, 4294901760
          %1863 = vmatpush.xpose.msra.mxu0 %v1862
          %v1864 = vand.u32 %v1045, 4294901760
          %v1865 = vsub.f32 %v1045, %v1864
          %v1866 = vand.u32 %v1865, 4294901760
          %v1867 = vsub.f32 %v1865, %v1866
          %v1868 = vand.u32 %v1867, 4294901760
          %1869 = vmatpush.xpose.msra.mxu0 %v1868
          %v1870 = vand.u32 %v1042, 4294901760
          %v1871 = vsub.f32 %v1042, %v1870
          %v1872 = vand.u32 %v1871, 4294901760
          %v1873 = vsub.f32 %v1871, %v1872
          %v1874 = vand.u32 %v1873, 4294901760
          %1875 = vmatpush.xpose.msra.mxu0 %v1874
          %v1876 = vand.u32 %v1039, 4294901760
          %v1877 = vsub.f32 %v1039, %v1876
          %v1878 = vand.u32 %v1877, 4294901760
          %v1879 = vsub.f32 %v1877, %v1878
          %v1880 = vand.u32 %v1879, 4294901760
          %1881 = vmatpush.xpose.msra.mxu0 %v1880
          %v1882 = vand.u32 %v1036, 4294901760
          %v1883 = vsub.f32 %v1036, %v1882
          %v1884 = vand.u32 %v1883, 4294901760
          %v1885 = vsub.f32 %v1883, %v1884
          %v1886 = vand.u32 %v1885, 4294901760
          %1887 = vmatpush.xpose.msra.mxu0 %v1886
          %v1888 = vand.u32 %v982, 4294901760
          %1889 = vmatmul.f32.gmra.mxu0 %v1888
          %v1890 = vpop.f32.mrf.mxu0
          %v1891 = vadd.f32 %v1782, %v1890
          %v1892 = vand.u32 %v985, 4294901760
          %1893 = vmatmul.f32.gmra.mxu0 %v1892
          %v1894 = vpop.f32.mrf.mxu0
          %v1895 = vadd.f32 %v1790, %v1894
          %1896 = vdwg.mxu0
          %v1897 = vand.u32 %v1081, 4294901760
          %v1898 = vsub.f32 %v1081, %v1897
          %1899 = vmatpush.xpose.msra.mxu0 %v1898
          %v1900 = vand.u32 %v1078, 4294901760
          %v1901 = vsub.f32 %v1078, %v1900
          %1902 = vmatpush.xpose.msra.mxu0 %v1901
          %v1903 = vand.u32 %v1075, 4294901760
          %v1904 = vsub.f32 %v1075, %v1903
          %1905 = vmatpush.xpose.msra.mxu0 %v1904
          %v1906 = vand.u32 %v1072, 4294901760
          %v1907 = vsub.f32 %v1072, %v1906
          %1908 = vmatpush.xpose.msra.mxu0 %v1907
          %v1909 = vand.u32 %v1069, 4294901760
          %v1910 = vsub.f32 %v1069, %v1909
          %1911 = vmatpush.xpose.msra.mxu0 %v1910
          %v1912 = vand.u32 %v1066, 4294901760
          %v1913 = vsub.f32 %v1066, %v1912
          %1914 = vmatpush.xpose.msra.mxu0 %v1913
          %v1915 = vand.u32 %v1063, 4294901760
          %v1916 = vsub.f32 %v1063, %v1915
          %1917 = vmatpush.xpose.msra.mxu0 %v1916
          %v1918 = vand.u32 %v1060, 4294901760
          %v1919 = vsub.f32 %v1060, %v1918
          %1920 = vmatpush.xpose.msra.mxu0 %v1919
          %v1921 = vand.u32 %v1057, 4294901760
          %v1922 = vsub.f32 %v1057, %v1921
          %1923 = vmatpush.xpose.msra.mxu0 %v1922
          %v1924 = vand.u32 %v1054, 4294901760
          %v1925 = vsub.f32 %v1054, %v1924
          %1926 = vmatpush.xpose.msra.mxu0 %v1925
          %v1927 = vand.u32 %v1051, 4294901760
          %v1928 = vsub.f32 %v1051, %v1927
          %1929 = vmatpush.xpose.msra.mxu0 %v1928
          %v1930 = vand.u32 %v1048, 4294901760
          %v1931 = vsub.f32 %v1048, %v1930
          %1932 = vmatpush.xpose.msra.mxu0 %v1931
          %v1933 = vand.u32 %v1045, 4294901760
          %v1934 = vsub.f32 %v1045, %v1933
          %1935 = vmatpush.xpose.msra.mxu0 %v1934
          %v1936 = vand.u32 %v1042, 4294901760
          %v1937 = vsub.f32 %v1042, %v1936
          %1938 = vmatpush.xpose.msra.mxu0 %v1937
          %v1939 = vand.u32 %v1039, 4294901760
          %v1940 = vsub.f32 %v1039, %v1939
          %1941 = vmatpush.xpose.msra.mxu0 %v1940
          %v1942 = vand.u32 %v1036, 4294901760
          %v1943 = vsub.f32 %v1036, %v1942
          %1944 = vmatpush.xpose.msra.mxu0 %v1943
          %v1945 = vand.u32 %v982, 4294901760
          %v1946 = vsub.f32 %v982, %v1945
          %1947 = vmatmul.f32.gmra.mxu0 %v1946
          %v1948 = vpop.f32.mrf.mxu0
          %v1949 = vadd.f32 %v1891, %v1948
          %v1950 = vand.u32 %v985, 4294901760
          %v1951 = vsub.f32 %v985, %v1950
          %1952 = vmatmul.f32.gmra.mxu0 %v1951
          %v1953 = vpop.f32.mrf.mxu0
          %v1954 = vadd.f32 %v1895, %v1953
          %1955 = vdwg.mxu0
          %v1956 = vand.u32 %v1081, 4294901760
          %1957 = vmatpush.xpose.msra.mxu0 %v1956
          %v1958 = vand.u32 %v1078, 4294901760
          %1959 = vmatpush.xpose.msra.mxu0 %v1958
          %v1960 = vand.u32 %v1075, 4294901760
          %1961 = vmatpush.xpose.msra.mxu0 %v1960
          %v1962 = vand.u32 %v1072, 4294901760
          %1963 = vmatpush.xpose.msra.mxu0 %v1962
          %v1964 = vand.u32 %v1069, 4294901760
          %1965 = vmatpush.xpose.msra.mxu0 %v1964
          %v1966 = vand.u32 %v1066, 4294901760
          %1967 = vmatpush.xpose.msra.mxu0 %v1966
          %v1968 = vand.u32 %v1063, 4294901760
          %1969 = vmatpush.xpose.msra.mxu0 %v1968
          %v1970 = vand.u32 %v1060, 4294901760
          %1971 = vmatpush.xpose.msra.mxu0 %v1970
          %v1972 = vand.u32 %v1057, 4294901760
          %1973 = vmatpush.xpose.msra.mxu0 %v1972
          %v1974 = vand.u32 %v1054, 4294901760
          %1975 = vmatpush.xpose.msra.mxu0 %v1974
          %v1976 = vand.u32 %v1051, 4294901760
          %1977 = vmatpush.xpose.msra.mxu0 %v1976
          %v1978 = vand.u32 %v1048, 4294901760
          %1979 = vmatpush.xpose.msra.mxu0 %v1978
          %v1980 = vand.u32 %v1045, 4294901760
          %1981 = vmatpush.xpose.msra.mxu0 %v1980
          %v1982 = vand.u32 %v1042, 4294901760
          %1983 = vmatpush.xpose.msra.mxu0 %v1982
          %v1984 = vand.u32 %v1039, 4294901760
          %1985 = vmatpush.xpose.msra.mxu0 %v1984
          %v1986 = vand.u32 %v1036, 4294901760
          %1987 = vmatpush.xpose.msra.mxu0 %v1986
          %v1988 = vand.u32 %v982, 4294901760
          %v1989 = vsub.f32 %v982, %v1988
          %v1990 = vand.u32 %v1989, 4294901760
          %1991 = vmatmul.f32.gmra.mxu0 %v1990
          %v1992 = vpop.f32.mrf.mxu0
          %v1993 = vadd.f32 %v1949, %v1992
          %v1994 = vand.u32 %v985, 4294901760
          %v1995 = vsub.f32 %v985, %v1994
          %v1996 = vand.u32 %v1995, 4294901760
          %1997 = vmatmul.f32.gmra.mxu0 %v1996
          %v1998 = vpop.f32.mrf.mxu0
          %v1999 = vadd.f32 %v1954, %v1998
          %2000 = vdwg.mxu0
          %v2001 = vand.u32 %v1081, 4294901760
          %v2002 = vsub.f32 %v1081, %v2001
          %v2003 = vand.u32 %v2002, 4294901760
          %2004 = vmatpush.xpose.msra.mxu0 %v2003
          %v2005 = vand.u32 %v1078, 4294901760
          %v2006 = vsub.f32 %v1078, %v2005
          %v2007 = vand.u32 %v2006, 4294901760
          %2008 = vmatpush.xpose.msra.mxu0 %v2007
          %v2009 = vand.u32 %v1075, 4294901760
          %v2010 = vsub.f32 %v1075, %v2009
          %v2011 = vand.u32 %v2010, 4294901760
          %2012 = vmatpush.xpose.msra.mxu0 %v2011
          %v2013 = vand.u32 %v1072, 4294901760
          %v2014 = vsub.f32 %v1072, %v2013
          %v2015 = vand.u32 %v2014, 4294901760
          %2016 = vmatpush.xpose.msra.mxu0 %v2015
          %v2017 = vand.u32 %v1069, 4294901760
          %v2018 = vsub.f32 %v1069, %v2017
          %v2019 = vand.u32 %v2018, 4294901760
          %2020 = vmatpush.xpose.msra.mxu0 %v2019
          %v2021 = vand.u32 %v1066, 4294901760
          %v2022 = vsub.f32 %v1066, %v2021
          %v2023 = vand.u32 %v2022, 4294901760
          %2024 = vmatpush.xpose.msra.mxu0 %v2023
          %v2025 = vand.u32 %v1063, 4294901760
          %v2026 = vsub.f32 %v1063, %v2025
          %v2027 = vand.u32 %v2026, 4294901760
          %2028 = vmatpush.xpose.msra.mxu0 %v2027
          %v2029 = vand.u32 %v1060, 4294901760
          %v2030 = vsub.f32 %v1060, %v2029
          %v2031 = vand.u32 %v2030, 4294901760
          %2032 = vmatpush.xpose.msra.mxu0 %v2031
          %v2033 = vand.u32 %v1057, 4294901760
          %v2034 = vsub.f32 %v1057, %v2033
          %v2035 = vand.u32 %v2034, 4294901760
          %2036 = vmatpush.xpose.msra.mxu0 %v2035
          %v2037 = vand.u32 %v1054, 4294901760
          %v2038 = vsub.f32 %v1054, %v2037
          %v2039 = vand.u32 %v2038, 4294901760
          %2040 = vmatpush.xpose.msra.mxu0 %v2039
          %v2041 = vand.u32 %v1051, 4294901760
          %v2042 = vsub.f32 %v1051, %v2041
          %v2043 = vand.u32 %v2042, 4294901760
          %2044 = vmatpush.xpose.msra.mxu0 %v2043
          %v2045 = vand.u32 %v1048, 4294901760
          %v2046 = vsub.f32 %v1048, %v2045
          %v2047 = vand.u32 %v2046, 4294901760
          %2048 = vmatpush.xpose.msra.mxu0 %v2047
          %v2049 = vand.u32 %v1045, 4294901760
          %v2050 = vsub.f32 %v1045, %v2049
          %v2051 = vand.u32 %v2050, 4294901760
          %2052 = vmatpush.xpose.msra.mxu0 %v2051
          %v2053 = vand.u32 %v1042, 4294901760
          %v2054 = vsub.f32 %v1042, %v2053
          %v2055 = vand.u32 %v2054, 4294901760
          %2056 = vmatpush.xpose.msra.mxu0 %v2055
          %v2057 = vand.u32 %v1039, 4294901760
          %v2058 = vsub.f32 %v1039, %v2057
          %v2059 = vand.u32 %v2058, 4294901760
          %2060 = vmatpush.xpose.msra.mxu0 %v2059
          %v2061 = vand.u32 %v1036, 4294901760
          %v2062 = vsub.f32 %v1036, %v2061
          %v2063 = vand.u32 %v2062, 4294901760
          %2064 = vmatpush.xpose.msra.mxu0 %v2063
          %v2065 = vand.u32 %v982, 4294901760
          %2066 = vmatmul.f32.gmra.mxu0 %v2065
          %v2067 = vpop.f32.mrf.mxu0
          %v2068 = vadd.f32 %v1993, %v2067
          %v2069 = vand.u32 %v985, 4294901760
          %2070 = vmatmul.f32.gmra.mxu0 %v2069
          %v2071 = vpop.f32.mrf.mxu0
          %v2072 = vadd.f32 %v1999, %v2071
          %2073 = vdwg.mxu0
          %v2074 = vand.u32 %v1081, 4294901760
          %2075 = vmatpush.xpose.msra.mxu0 %v2074
          %v2076 = vand.u32 %v1078, 4294901760
          %2077 = vmatpush.xpose.msra.mxu0 %v2076
          %v2078 = vand.u32 %v1075, 4294901760
          %2079 = vmatpush.xpose.msra.mxu0 %v2078
          %v2080 = vand.u32 %v1072, 4294901760
          %2081 = vmatpush.xpose.msra.mxu0 %v2080
          %v2082 = vand.u32 %v1069, 4294901760
          %2083 = vmatpush.xpose.msra.mxu0 %v2082
          %v2084 = vand.u32 %v1066, 4294901760
          %2085 = vmatpush.xpose.msra.mxu0 %v2084
          %v2086 = vand.u32 %v1063, 4294901760
          %2087 = vmatpush.xpose.msra.mxu0 %v2086
          %v2088 = vand.u32 %v1060, 4294901760
          %2089 = vmatpush.xpose.msra.mxu0 %v2088
          %v2090 = vand.u32 %v1057, 4294901760
          %2091 = vmatpush.xpose.msra.mxu0 %v2090
          %v2092 = vand.u32 %v1054, 4294901760
          %2093 = vmatpush.xpose.msra.mxu0 %v2092
          %v2094 = vand.u32 %v1051, 4294901760
          %2095 = vmatpush.xpose.msra.mxu0 %v2094
          %v2096 = vand.u32 %v1048, 4294901760
          %2097 = vmatpush.xpose.msra.mxu0 %v2096
          %v2098 = vand.u32 %v1045, 4294901760
          %2099 = vmatpush.xpose.msra.mxu0 %v2098
          %v2100 = vand.u32 %v1042, 4294901760
          %2101 = vmatpush.xpose.msra.mxu0 %v2100
          %v2102 = vand.u32 %v1039, 4294901760
          %2103 = vmatpush.xpose.msra.mxu0 %v2102
          %v2104 = vand.u32 %v1036, 4294901760
          %2105 = vmatpush.xpose.msra.mxu0 %v2104
          %v2106 = vand.u32 %v982, 4294901760
          %2107 = vmatmul.f32.gmra.mxu0 %v2106
          %v2108 = vpop.f32.mrf.mxu0
          %v2109 = vadd.f32 %v2068, %v2108
          %v2110 = vand.u32 %v985, 4294901760
          %2111 = vmatmul.f32.gmra.mxu0 %v2110
          %v2112 = vpop.f32.mrf.mxu0
          %v2113 = vadd.f32 %v2072, %v2112
          %2114 = vdwg.mxu0
          %v2115 = vand.u32 %v1129, 4294901760
          %2116 = vmatpush.xpose.msra.mxu0 %v2115
          %v2117 = vand.u32 %v1126, 4294901760
          %2118 = vmatpush.xpose.msra.mxu0 %v2117
          %v2119 = vand.u32 %v1123, 4294901760
          %2120 = vmatpush.xpose.msra.mxu0 %v2119
          %v2121 = vand.u32 %v1120, 4294901760
          %2122 = vmatpush.xpose.msra.mxu0 %v2121
          %v2123 = vand.u32 %v1117, 4294901760
          %2124 = vmatpush.xpose.msra.mxu0 %v2123
          %v2125 = vand.u32 %v1114, 4294901760
          %2126 = vmatpush.xpose.msra.mxu0 %v2125
          %v2127 = vand.u32 %v1111, 4294901760
          %2128 = vmatpush.xpose.msra.mxu0 %v2127
          %v2129 = vand.u32 %v1108, 4294901760
          %2130 = vmatpush.xpose.msra.mxu0 %v2129
          %v2131 = vand.u32 %v1105, 4294901760
          %2132 = vmatpush.xpose.msra.mxu0 %v2131
          %v2133 = vand.u32 %v1102, 4294901760
          %2134 = vmatpush.xpose.msra.mxu0 %v2133
          %v2135 = vand.u32 %v1099, 4294901760
          %2136 = vmatpush.xpose.msra.mxu0 %v2135
          %v2137 = vand.u32 %v1096, 4294901760
          %2138 = vmatpush.xpose.msra.mxu0 %v2137
          %v2139 = vand.u32 %v1093, 4294901760
          %2140 = vmatpush.xpose.msra.mxu0 %v2139
          %v2141 = vand.u32 %v1090, 4294901760
          %2142 = vmatpush.xpose.msra.mxu0 %v2141
          %v2143 = vand.u32 %v1087, 4294901760
          %2144 = vmatpush.xpose.msra.mxu0 %v2143
          %v2145 = vand.u32 %v1084, 4294901760
          %2146 = vmatpush.xpose.msra.mxu0 %v2145
          %v2147 = vand.u32 %v982, 4294901760
          %v2148 = vsub.f32 %v982, %v2147
          %v2149 = vand.u32 %v2148, 4294901760
          %v2150 = vsub.f32 %v2148, %v2149
          %v2151 = vand.u32 %v2150, 4294901760
          %2152 = vmatmul.f32.gmra.mxu0 %v2151
          %v2153 = vpop.f32.mrf.mxu0
          %v2154 = vadd.f32 0.0, %v2153
          %v2155 = vand.u32 %v985, 4294901760
          %v2156 = vsub.f32 %v985, %v2155
          %v2157 = vand.u32 %v2156, 4294901760
          %v2158 = vsub.f32 %v2156, %v2157
          %v2159 = vand.u32 %v2158, 4294901760
          %2160 = vmatmul.f32.gmra.mxu0 %v2159
          %v2161 = vpop.f32.mrf.mxu0
          %v2162 = vadd.f32 0.0, %v2161
          %2163 = vdwg.mxu0
          %v2164 = vand.u32 %v1129, 4294901760
          %v2165 = vsub.f32 %v1129, %v2164
          %v2166 = vand.u32 %v2165, 4294901760
          %v2167 = vsub.f32 %v2165, %v2166
          %v2168 = vand.u32 %v2167, 4294901760
          %2169 = vmatpush.xpose.msra.mxu0 %v2168
          %v2170 = vand.u32 %v1126, 4294901760
          %v2171 = vsub.f32 %v1126, %v2170
          %v2172 = vand.u32 %v2171, 4294901760
          %v2173 = vsub.f32 %v2171, %v2172
          %v2174 = vand.u32 %v2173, 4294901760
          %2175 = vmatpush.xpose.msra.mxu0 %v2174
          %v2176 = vand.u32 %v1123, 4294901760
          %v2177 = vsub.f32 %v1123, %v2176
          %v2178 = vand.u32 %v2177, 4294901760
          %v2179 = vsub.f32 %v2177, %v2178
          %v2180 = vand.u32 %v2179, 4294901760
          %2181 = vmatpush.xpose.msra.mxu0 %v2180
          %v2182 = vand.u32 %v1120, 4294901760
          %v2183 = vsub.f32 %v1120, %v2182
          %v2184 = vand.u32 %v2183, 4294901760
          %v2185 = vsub.f32 %v2183, %v2184
          %v2186 = vand.u32 %v2185, 4294901760
          %2187 = vmatpush.xpose.msra.mxu0 %v2186
          %v2188 = vand.u32 %v1117, 4294901760
          %v2189 = vsub.f32 %v1117, %v2188
          %v2190 = vand.u32 %v2189, 4294901760
          %v2191 = vsub.f32 %v2189, %v2190
          %v2192 = vand.u32 %v2191, 4294901760
          %2193 = vmatpush.xpose.msra.mxu0 %v2192
          %v2194 = vand.u32 %v1114, 4294901760
          %v2195 = vsub.f32 %v1114, %v2194
          %v2196 = vand.u32 %v2195, 4294901760
          %v2197 = vsub.f32 %v2195, %v2196
          %v2198 = vand.u32 %v2197, 4294901760
          %2199 = vmatpush.xpose.msra.mxu0 %v2198
          %v2200 = vand.u32 %v1111, 4294901760
          %v2201 = vsub.f32 %v1111, %v2200
          %v2202 = vand.u32 %v2201, 4294901760
          %v2203 = vsub.f32 %v2201, %v2202
          %v2204 = vand.u32 %v2203, 4294901760
          %2205 = vmatpush.xpose.msra.mxu0 %v2204
          %v2206 = vand.u32 %v1108, 4294901760
          %v2207 = vsub.f32 %v1108, %v2206
          %v2208 = vand.u32 %v2207, 4294901760
          %v2209 = vsub.f32 %v2207, %v2208
          %v2210 = vand.u32 %v2209, 4294901760
          %2211 = vmatpush.xpose.msra.mxu0 %v2210
          %v2212 = vand.u32 %v1105, 4294901760
          %v2213 = vsub.f32 %v1105, %v2212
          %v2214 = vand.u32 %v2213, 4294901760
          %v2215 = vsub.f32 %v2213, %v2214
          %v2216 = vand.u32 %v2215, 4294901760
          %2217 = vmatpush.xpose.msra.mxu0 %v2216
          %v2218 = vand.u32 %v1102, 4294901760
          %v2219 = vsub.f32 %v1102, %v2218
          %v2220 = vand.u32 %v2219, 4294901760
          %v2221 = vsub.f32 %v2219, %v2220
          %v2222 = vand.u32 %v2221, 4294901760
          %2223 = vmatpush.xpose.msra.mxu0 %v2222
          %v2224 = vand.u32 %v1099, 4294901760
          %v2225 = vsub.f32 %v1099, %v2224
          %v2226 = vand.u32 %v2225, 4294901760
          %v2227 = vsub.f32 %v2225, %v2226
          %v2228 = vand.u32 %v2227, 4294901760
          %2229 = vmatpush.xpose.msra.mxu0 %v2228
          %v2230 = vand.u32 %v1096, 4294901760
          %v2231 = vsub.f32 %v1096, %v2230
          %v2232 = vand.u32 %v2231, 4294901760
          %v2233 = vsub.f32 %v2231, %v2232
          %v2234 = vand.u32 %v2233, 4294901760
          %2235 = vmatpush.xpose.msra.mxu0 %v2234
          %v2236 = vand.u32 %v1093, 4294901760
          %v2237 = vsub.f32 %v1093, %v2236
          %v2238 = vand.u32 %v2237, 4294901760
          %v2239 = vsub.f32 %v2237, %v2238
          %v2240 = vand.u32 %v2239, 4294901760
          %2241 = vmatpush.xpose.msra.mxu0 %v2240
          %v2242 = vand.u32 %v1090, 4294901760
          %v2243 = vsub.f32 %v1090, %v2242
          %v2244 = vand.u32 %v2243, 4294901760
          %v2245 = vsub.f32 %v2243, %v2244
          %v2246 = vand.u32 %v2245, 4294901760
          %2247 = vmatpush.xpose.msra.mxu0 %v2246
          %v2248 = vand.u32 %v1087, 4294901760
          %v2249 = vsub.f32 %v1087, %v2248
          %v2250 = vand.u32 %v2249, 4294901760
          %v2251 = vsub.f32 %v2249, %v2250
          %v2252 = vand.u32 %v2251, 4294901760
          %2253 = vmatpush.xpose.msra.mxu0 %v2252
          %v2254 = vand.u32 %v1084, 4294901760
          %v2255 = vsub.f32 %v1084, %v2254
          %v2256 = vand.u32 %v2255, 4294901760
          %v2257 = vsub.f32 %v2255, %v2256
          %v2258 = vand.u32 %v2257, 4294901760
          %2259 = vmatpush.xpose.msra.mxu0 %v2258
          %v2260 = vand.u32 %v982, 4294901760
          %2261 = vmatmul.f32.gmra.mxu0 %v2260
          %v2262 = vpop.f32.mrf.mxu0
          %v2263 = vadd.f32 %v2154, %v2262
          %v2264 = vand.u32 %v985, 4294901760
          %2265 = vmatmul.f32.gmra.mxu0 %v2264
          %v2266 = vpop.f32.mrf.mxu0
          %v2267 = vadd.f32 %v2162, %v2266
          %2268 = vdwg.mxu0
          %v2269 = vand.u32 %v1129, 4294901760
          %v2270 = vsub.f32 %v1129, %v2269
          %2271 = vmatpush.xpose.msra.mxu0 %v2270
          %v2272 = vand.u32 %v1126, 4294901760
          %v2273 = vsub.f32 %v1126, %v2272
          %2274 = vmatpush.xpose.msra.mxu0 %v2273
          %v2275 = vand.u32 %v1123, 4294901760
          %v2276 = vsub.f32 %v1123, %v2275
          %2277 = vmatpush.xpose.msra.mxu0 %v2276
          %v2278 = vand.u32 %v1120, 4294901760
          %v2279 = vsub.f32 %v1120, %v2278
          %2280 = vmatpush.xpose.msra.mxu0 %v2279
          %v2281 = vand.u32 %v1117, 4294901760
          %v2282 = vsub.f32 %v1117, %v2281
          %2283 = vmatpush.xpose.msra.mxu0 %v2282
          %v2284 = vand.u32 %v1114, 4294901760
          %v2285 = vsub.f32 %v1114, %v2284
          %2286 = vmatpush.xpose.msra.mxu0 %v2285
          %v2287 = vand.u32 %v1111, 4294901760
          %v2288 = vsub.f32 %v1111, %v2287
          %2289 = vmatpush.xpose.msra.mxu0 %v2288
          %v2290 = vand.u32 %v1108, 4294901760
          %v2291 = vsub.f32 %v1108, %v2290
          %2292 = vmatpush.xpose.msra.mxu0 %v2291
          %v2293 = vand.u32 %v1105, 4294901760
          %v2294 = vsub.f32 %v1105, %v2293
          %2295 = vmatpush.xpose.msra.mxu0 %v2294
          %v2296 = vand.u32 %v1102, 4294901760
          %v2297 = vsub.f32 %v1102, %v2296
          %2298 = vmatpush.xpose.msra.mxu0 %v2297
          %v2299 = vand.u32 %v1099, 4294901760
          %v2300 = vsub.f32 %v1099, %v2299
          %2301 = vmatpush.xpose.msra.mxu0 %v2300
          %v2302 = vand.u32 %v1096, 4294901760
          %v2303 = vsub.f32 %v1096, %v2302
          %2304 = vmatpush.xpose.msra.mxu0 %v2303
          %v2305 = vand.u32 %v1093, 4294901760
          %v2306 = vsub.f32 %v1093, %v2305
          %2307 = vmatpush.xpose.msra.mxu0 %v2306
          %v2308 = vand.u32 %v1090, 4294901760
          %v2309 = vsub.f32 %v1090, %v2308
          %2310 = vmatpush.xpose.msra.mxu0 %v2309
          %v2311 = vand.u32 %v1087, 4294901760
          %v2312 = vsub.f32 %v1087, %v2311
          %2313 = vmatpush.xpose.msra.mxu0 %v2312
          %v2314 = vand.u32 %v1084, 4294901760
          %v2315 = vsub.f32 %v1084, %v2314
          %2316 = vmatpush.xpose.msra.mxu0 %v2315
          %v2317 = vand.u32 %v982, 4294901760
          %v2318 = vsub.f32 %v982, %v2317
          %2319 = vmatmul.f32.gmra.mxu0 %v2318
          %v2320 = vpop.f32.mrf.mxu0
          %v2321 = vadd.f32 %v2263, %v2320
          %v2322 = vand.u32 %v985, 4294901760
          %v2323 = vsub.f32 %v985, %v2322
          %2324 = vmatmul.f32.gmra.mxu0 %v2323
          %v2325 = vpop.f32.mrf.mxu0
          %v2326 = vadd.f32 %v2267, %v2325
          %2327 = vdwg.mxu0
          %v2328 = vand.u32 %v1129, 4294901760
          %2329 = vmatpush.xpose.msra.mxu0 %v2328
          %v2330 = vand.u32 %v1126, 4294901760
          %2331 = vmatpush.xpose.msra.mxu0 %v2330
          %v2332 = vand.u32 %v1123, 4294901760
          %2333 = vmatpush.xpose.msra.mxu0 %v2332
          %v2334 = vand.u32 %v1120, 4294901760
          %2335 = vmatpush.xpose.msra.mxu0 %v2334
          %v2336 = vand.u32 %v1117, 4294901760
          %2337 = vmatpush.xpose.msra.mxu0 %v2336
          %v2338 = vand.u32 %v1114, 4294901760
          %2339 = vmatpush.xpose.msra.mxu0 %v2338
          %v2340 = vand.u32 %v1111, 4294901760
          %2341 = vmatpush.xpose.msra.mxu0 %v2340
          %v2342 = vand.u32 %v1108, 4294901760
          %2343 = vmatpush.xpose.msra.mxu0 %v2342
          %v2344 = vand.u32 %v1105, 4294901760
          %2345 = vmatpush.xpose.msra.mxu0 %v2344
          %v2346 = vand.u32 %v1102, 4294901760
          %2347 = vmatpush.xpose.msra.mxu0 %v2346
          %v2348 = vand.u32 %v1099, 4294901760
          %2349 = vmatpush.xpose.msra.mxu0 %v2348
          %v2350 = vand.u32 %v1096, 4294901760
          %2351 = vmatpush.xpose.msra.mxu0 %v2350
          %v2352 = vand.u32 %v1093, 4294901760
          %2353 = vmatpush.xpose.msra.mxu0 %v2352
          %v2354 = vand.u32 %v1090, 4294901760
          %2355 = vmatpush.xpose.msra.mxu0 %v2354
          %v2356 = vand.u32 %v1087, 4294901760
          %2357 = vmatpush.xpose.msra.mxu0 %v2356
          %v2358 = vand.u32 %v1084, 4294901760
          %2359 = vmatpush.xpose.msra.mxu0 %v2358
          %v2360 = vand.u32 %v982, 4294901760
          %v2361 = vsub.f32 %v982, %v2360
          %v2362 = vand.u32 %v2361, 4294901760
          %2363 = vmatmul.f32.gmra.mxu0 %v2362
          %v2364 = vpop.f32.mrf.mxu0
          %v2365 = vadd.f32 %v2321, %v2364
          %v2366 = vand.u32 %v985, 4294901760
          %v2367 = vsub.f32 %v985, %v2366
          %v2368 = vand.u32 %v2367, 4294901760
          %2369 = vmatmul.f32.gmra.mxu0 %v2368
          %v2370 = vpop.f32.mrf.mxu0
          %v2371 = vadd.f32 %v2326, %v2370
          %2372 = vdwg.mxu0
          %v2373 = vand.u32 %v1129, 4294901760
          %v2374 = vsub.f32 %v1129, %v2373
          %v2375 = vand.u32 %v2374, 4294901760
          %2376 = vmatpush.xpose.msra.mxu0 %v2375
          %v2377 = vand.u32 %v1126, 4294901760
          %v2378 = vsub.f32 %v1126, %v2377
          %v2379 = vand.u32 %v2378, 4294901760
          %2380 = vmatpush.xpose.msra.mxu0 %v2379
          %v2381 = vand.u32 %v1123, 4294901760
          %v2382 = vsub.f32 %v1123, %v2381
          %v2383 = vand.u32 %v2382, 4294901760
          %2384 = vmatpush.xpose.msra.mxu0 %v2383
          %v2385 = vand.u32 %v1120, 4294901760
          %v2386 = vsub.f32 %v1120, %v2385
          %v2387 = vand.u32 %v2386, 4294901760
          %2388 = vmatpush.xpose.msra.mxu0 %v2387
          %v2389 = vand.u32 %v1117, 4294901760
          %v2390 = vsub.f32 %v1117, %v2389
          %v2391 = vand.u32 %v2390, 4294901760
          %2392 = vmatpush.xpose.msra.mxu0 %v2391
          %v2393 = vand.u32 %v1114, 4294901760
          %v2394 = vsub.f32 %v1114, %v2393
          %v2395 = vand.u32 %v2394, 4294901760
          %2396 = vmatpush.xpose.msra.mxu0 %v2395
          %v2397 = vand.u32 %v1111, 4294901760
          %v2398 = vsub.f32 %v1111, %v2397
          %v2399 = vand.u32 %v2398, 4294901760
          %2400 = vmatpush.xpose.msra.mxu0 %v2399
          %v2401 = vand.u32 %v1108, 4294901760
          %v2402 = vsub.f32 %v1108, %v2401
          %v2403 = vand.u32 %v2402, 4294901760
          %2404 = vmatpush.xpose.msra.mxu0 %v2403
          %v2405 = vand.u32 %v1105, 4294901760
          %v2406 = vsub.f32 %v1105, %v2405
          %v2407 = vand.u32 %v2406, 4294901760
          %2408 = vmatpush.xpose.msra.mxu0 %v2407
          %v2409 = vand.u32 %v1102, 4294901760
          %v2410 = vsub.f32 %v1102, %v2409
          %v2411 = vand.u32 %v2410, 4294901760
          %2412 = vmatpush.xpose.msra.mxu0 %v2411
          %v2413 = vand.u32 %v1099, 4294901760
          %v2414 = vsub.f32 %v1099, %v2413
          %v2415 = vand.u32 %v2414, 4294901760
          %2416 = vmatpush.xpose.msra.mxu0 %v2415
          %v2417 = vand.u32 %v1096, 4294901760
          %v2418 = vsub.f32 %v1096, %v2417
          %v2419 = vand.u32 %v2418, 4294901760
          %2420 = vmatpush.xpose.msra.mxu0 %v2419
          %v2421 = vand.u32 %v1093, 4294901760
          %v2422 = vsub.f32 %v1093, %v2421
          %v2423 = vand.u32 %v2422, 4294901760
          %2424 = vmatpush.xpose.msra.mxu0 %v2423
          %v2425 = vand.u32 %v1090, 4294901760
          %v2426 = vsub.f32 %v1090, %v2425
          %v2427 = vand.u32 %v2426, 4294901760
          %2428 = vmatpush.xpose.msra.mxu0 %v2427
          %v2429 = vand.u32 %v1087, 4294901760
          %v2430 = vsub.f32 %v1087, %v2429
          %v2431 = vand.u32 %v2430, 4294901760
          %2432 = vmatpush.xpose.msra.mxu0 %v2431
          %v2433 = vand.u32 %v1084, 4294901760
          %v2434 = vsub.f32 %v1084, %v2433
          %v2435 = vand.u32 %v2434, 4294901760
          %2436 = vmatpush.xpose.msra.mxu0 %v2435
          %v2437 = vand.u32 %v982, 4294901760
          %2438 = vmatmul.f32.gmra.mxu0 %v2437
          %v2439 = vpop.f32.mrf.mxu0
          %v2440 = vadd.f32 %v2365, %v2439
          %v2441 = vand.u32 %v985, 4294901760
          %2442 = vmatmul.f32.gmra.mxu0 %v2441
          %v2443 = vpop.f32.mrf.mxu0
          %v2444 = vadd.f32 %v2371, %v2443
          %2445 = vdwg.mxu0
          %v2446 = vand.u32 %v1129, 4294901760
          %2447 = vmatpush.xpose.msra.mxu0 %v2446
          %v2448 = vand.u32 %v1126, 4294901760
          %2449 = vmatpush.xpose.msra.mxu0 %v2448
          %v2450 = vand.u32 %v1123, 4294901760
          %2451 = vmatpush.xpose.msra.mxu0 %v2450
          %v2452 = vand.u32 %v1120, 4294901760
          %2453 = vmatpush.xpose.msra.mxu0 %v2452
          %v2454 = vand.u32 %v1117, 4294901760
          %2455 = vmatpush.xpose.msra.mxu0 %v2454
          %v2456 = vand.u32 %v1114, 4294901760
          %2457 = vmatpush.xpose.msra.mxu0 %v2456
          %v2458 = vand.u32 %v1111, 4294901760
          %2459 = vmatpush.xpose.msra.mxu0 %v2458
          %v2460 = vand.u32 %v1108, 4294901760
          %2461 = vmatpush.xpose.msra.mxu0 %v2460
          %v2462 = vand.u32 %v1105, 4294901760
          %2463 = vmatpush.xpose.msra.mxu0 %v2462
          %v2464 = vand.u32 %v1102, 4294901760
          %2465 = vmatpush.xpose.msra.mxu0 %v2464
          %v2466 = vand.u32 %v1099, 4294901760
          %2467 = vmatpush.xpose.msra.mxu0 %v2466
          %v2468 = vand.u32 %v1096, 4294901760
          %2469 = vmatpush.xpose.msra.mxu0 %v2468
          %v2470 = vand.u32 %v1093, 4294901760
          %2471 = vmatpush.xpose.msra.mxu0 %v2470
          %v2472 = vand.u32 %v1090, 4294901760
          %2473 = vmatpush.xpose.msra.mxu0 %v2472
          %v2474 = vand.u32 %v1087, 4294901760
          %2475 = vmatpush.xpose.msra.mxu0 %v2474
          %v2476 = vand.u32 %v1084, 4294901760
          %2477 = vmatpush.xpose.msra.mxu0 %v2476
          %v2478 = vand.u32 %v982, 4294901760
          %2479 = vmatmul.f32.gmra.mxu0 %v2478
          %v2480 = vpop.f32.mrf.mxu0
          %v2481 = vadd.f32 %v2440, %v2480
          %v2482 = vand.u32 %v985, 4294901760
          %2483 = vmatmul.f32.gmra.mxu0 %v2482
          %v2484 = vpop.f32.mrf.mxu0
          %v2485 = vadd.f32 %v2444, %v2484
          %2486 = vdwg.mxu0
          %v2487 = vand.u32 %v1177, 4294901760
          %2488 = vmatpush.xpose.msra.mxu0 %v2487
          %v2489 = vand.u32 %v1174, 4294901760
          %2490 = vmatpush.xpose.msra.mxu0 %v2489
          %v2491 = vand.u32 %v1171, 4294901760
          %2492 = vmatpush.xpose.msra.mxu0 %v2491
          %v2493 = vand.u32 %v1168, 4294901760
          %2494 = vmatpush.xpose.msra.mxu0 %v2493
          %v2495 = vand.u32 %v1165, 4294901760
          %2496 = vmatpush.xpose.msra.mxu0 %v2495
          %v2497 = vand.u32 %v1162, 4294901760
          %2498 = vmatpush.xpose.msra.mxu0 %v2497
          %v2499 = vand.u32 %v1159, 4294901760
          %2500 = vmatpush.xpose.msra.mxu0 %v2499
          %v2501 = vand.u32 %v1156, 4294901760
          %2502 = vmatpush.xpose.msra.mxu0 %v2501
          %v2503 = vand.u32 %v1153, 4294901760
          %2504 = vmatpush.xpose.msra.mxu0 %v2503
          %v2505 = vand.u32 %v1150, 4294901760
          %2506 = vmatpush.xpose.msra.mxu0 %v2505
          %v2507 = vand.u32 %v1147, 4294901760
          %2508 = vmatpush.xpose.msra.mxu0 %v2507
          %v2509 = vand.u32 %v1144, 4294901760
          %2510 = vmatpush.xpose.msra.mxu0 %v2509
          %v2511 = vand.u32 %v1141, 4294901760
          %2512 = vmatpush.xpose.msra.mxu0 %v2511
          %v2513 = vand.u32 %v1138, 4294901760
          %2514 = vmatpush.xpose.msra.mxu0 %v2513
          %v2515 = vand.u32 %v1135, 4294901760
          %2516 = vmatpush.xpose.msra.mxu0 %v2515
          %v2517 = vand.u32 %v1132, 4294901760
          %2518 = vmatpush.xpose.msra.mxu0 %v2517
          %v2519 = vand.u32 %v982, 4294901760
          %v2520 = vsub.f32 %v982, %v2519
          %v2521 = vand.u32 %v2520, 4294901760
          %v2522 = vsub.f32 %v2520, %v2521
          %v2523 = vand.u32 %v2522, 4294901760
          %2524 = vmatmul.f32.gmra.mxu0 %v2523
          %v2525 = vpop.f32.mrf.mxu0
          %v2526 = vadd.f32 0.0, %v2525
          %v2527 = vand.u32 %v985, 4294901760
          %v2528 = vsub.f32 %v985, %v2527
          %v2529 = vand.u32 %v2528, 4294901760
          %v2530 = vsub.f32 %v2528, %v2529
          %v2531 = vand.u32 %v2530, 4294901760
          %2532 = vmatmul.f32.gmra.mxu0 %v2531
          %v2533 = vpop.f32.mrf.mxu0
          %v2534 = vadd.f32 0.0, %v2533
          %2535 = vdwg.mxu0
          %v2536 = vand.u32 %v1177, 4294901760
          %v2537 = vsub.f32 %v1177, %v2536
          %v2538 = vand.u32 %v2537, 4294901760
          %v2539 = vsub.f32 %v2537, %v2538
          %v2540 = vand.u32 %v2539, 4294901760
          %2541 = vmatpush.xpose.msra.mxu0 %v2540
          %v2542 = vand.u32 %v1174, 4294901760
          %v2543 = vsub.f32 %v1174, %v2542
          %v2544 = vand.u32 %v2543, 4294901760
          %v2545 = vsub.f32 %v2543, %v2544
          %v2546 = vand.u32 %v2545, 4294901760
          %2547 = vmatpush.xpose.msra.mxu0 %v2546
          %v2548 = vand.u32 %v1171, 4294901760
          %v2549 = vsub.f32 %v1171, %v2548
          %v2550 = vand.u32 %v2549, 4294901760
          %v2551 = vsub.f32 %v2549, %v2550
          %v2552 = vand.u32 %v2551, 4294901760
          %2553 = vmatpush.xpose.msra.mxu0 %v2552
          %v2554 = vand.u32 %v1168, 4294901760
          %v2555 = vsub.f32 %v1168, %v2554
          %v2556 = vand.u32 %v2555, 4294901760
          %v2557 = vsub.f32 %v2555, %v2556
          %v2558 = vand.u32 %v2557, 4294901760
          %2559 = vmatpush.xpose.msra.mxu0 %v2558
          %v2560 = vand.u32 %v1165, 4294901760
          %v2561 = vsub.f32 %v1165, %v2560
          %v2562 = vand.u32 %v2561, 4294901760
          %v2563 = vsub.f32 %v2561, %v2562
          %v2564 = vand.u32 %v2563, 4294901760
          %2565 = vmatpush.xpose.msra.mxu0 %v2564
          %v2566 = vand.u32 %v1162, 4294901760
          %v2567 = vsub.f32 %v1162, %v2566
          %v2568 = vand.u32 %v2567, 4294901760
          %v2569 = vsub.f32 %v2567, %v2568
          %v2570 = vand.u32 %v2569, 4294901760
          %2571 = vmatpush.xpose.msra.mxu0 %v2570
          %v2572 = vand.u32 %v1159, 4294901760
          %v2573 = vsub.f32 %v1159, %v2572
          %v2574 = vand.u32 %v2573, 4294901760
          %v2575 = vsub.f32 %v2573, %v2574
          %v2576 = vand.u32 %v2575, 4294901760
          %2577 = vmatpush.xpose.msra.mxu0 %v2576
          %v2578 = vand.u32 %v1156, 4294901760
          %v2579 = vsub.f32 %v1156, %v2578
          %v2580 = vand.u32 %v2579, 4294901760
          %v2581 = vsub.f32 %v2579, %v2580
          %v2582 = vand.u32 %v2581, 4294901760
          %2583 = vmatpush.xpose.msra.mxu0 %v2582
          %v2584 = vand.u32 %v1153, 4294901760
          %v2585 = vsub.f32 %v1153, %v2584
          %v2586 = vand.u32 %v2585, 4294901760
          %v2587 = vsub.f32 %v2585, %v2586
          %v2588 = vand.u32 %v2587, 4294901760
          %2589 = vmatpush.xpose.msra.mxu0 %v2588
          %v2590 = vand.u32 %v1150, 4294901760
          %v2591 = vsub.f32 %v1150, %v2590
          %v2592 = vand.u32 %v2591, 4294901760
          %v2593 = vsub.f32 %v2591, %v2592
          %v2594 = vand.u32 %v2593, 4294901760
          %2595 = vmatpush.xpose.msra.mxu0 %v2594
          %v2596 = vand.u32 %v1147, 4294901760
          %v2597 = vsub.f32 %v1147, %v2596
          %v2598 = vand.u32 %v2597, 4294901760
          %v2599 = vsub.f32 %v2597, %v2598
          %v2600 = vand.u32 %v2599, 4294901760
          %2601 = vmatpush.xpose.msra.mxu0 %v2600
          %v2602 = vand.u32 %v1144, 4294901760
          %v2603 = vsub.f32 %v1144, %v2602
          %v2604 = vand.u32 %v2603, 4294901760
          %v2605 = vsub.f32 %v2603, %v2604
          %v2606 = vand.u32 %v2605, 4294901760
          %2607 = vmatpush.xpose.msra.mxu0 %v2606
          %v2608 = vand.u32 %v1141, 4294901760
          %v2609 = vsub.f32 %v1141, %v2608
          %v2610 = vand.u32 %v2609, 4294901760
          %v2611 = vsub.f32 %v2609, %v2610
          %v2612 = vand.u32 %v2611, 4294901760
          %2613 = vmatpush.xpose.msra.mxu0 %v2612
          %v2614 = vand.u32 %v1138, 4294901760
          %v2615 = vsub.f32 %v1138, %v2614
          %v2616 = vand.u32 %v2615, 4294901760
          %v2617 = vsub.f32 %v2615, %v2616
          %v2618 = vand.u32 %v2617, 4294901760
          %2619 = vmatpush.xpose.msra.mxu0 %v2618
          %v2620 = vand.u32 %v1135, 4294901760
          %v2621 = vsub.f32 %v1135, %v2620
          %v2622 = vand.u32 %v2621, 4294901760
          %v2623 = vsub.f32 %v2621, %v2622
          %v2624 = vand.u32 %v2623, 4294901760
          %2625 = vmatpush.xpose.msra.mxu0 %v2624
          %v2626 = vand.u32 %v1132, 4294901760
          %v2627 = vsub.f32 %v1132, %v2626
          %v2628 = vand.u32 %v2627, 4294901760
          %v2629 = vsub.f32 %v2627, %v2628
          %v2630 = vand.u32 %v2629, 4294901760
          %2631 = vmatpush.xpose.msra.mxu0 %v2630
          %v2632 = vand.u32 %v982, 4294901760
          %2633 = vmatmul.f32.gmra.mxu0 %v2632
          %v2634 = vpop.f32.mrf.mxu0
          %v2635 = vadd.f32 %v2526, %v2634
          %v2636 = vand.u32 %v985, 4294901760
          %2637 = vmatmul.f32.gmra.mxu0 %v2636
          %v2638 = vpop.f32.mrf.mxu0
          %v2639 = vadd.f32 %v2534, %v2638
          %2640 = vdwg.mxu0
          %v2641 = vand.u32 %v1177, 4294901760
          %v2642 = vsub.f32 %v1177, %v2641
          %2643 = vmatpush.xpose.msra.mxu0 %v2642
          %v2644 = vand.u32 %v1174, 4294901760
          %v2645 = vsub.f32 %v1174, %v2644
          %2646 = vmatpush.xpose.msra.mxu0 %v2645
          %v2647 = vand.u32 %v1171, 4294901760
          %v2648 = vsub.f32 %v1171, %v2647
          %2649 = vmatpush.xpose.msra.mxu0 %v2648
          %v2650 = vand.u32 %v1168, 4294901760
          %v2651 = vsub.f32 %v1168, %v2650
          %2652 = vmatpush.xpose.msra.mxu0 %v2651
          %v2653 = vand.u32 %v1165, 4294901760
          %v2654 = vsub.f32 %v1165, %v2653
          %2655 = vmatpush.xpose.msra.mxu0 %v2654
          %v2656 = vand.u32 %v1162, 4294901760
          %v2657 = vsub.f32 %v1162, %v2656
          %2658 = vmatpush.xpose.msra.mxu0 %v2657
          %v2659 = vand.u32 %v1159, 4294901760
          %v2660 = vsub.f32 %v1159, %v2659
          %2661 = vmatpush.xpose.msra.mxu0 %v2660
          %v2662 = vand.u32 %v1156, 4294901760
          %v2663 = vsub.f32 %v1156, %v2662
          %2664 = vmatpush.xpose.msra.mxu0 %v2663
          %v2665 = vand.u32 %v1153, 4294901760
          %v2666 = vsub.f32 %v1153, %v2665
          %2667 = vmatpush.xpose.msra.mxu0 %v2666
          %v2668 = vand.u32 %v1150, 4294901760
          %v2669 = vsub.f32 %v1150, %v2668
          %2670 = vmatpush.xpose.msra.mxu0 %v2669
          %v2671 = vand.u32 %v1147, 4294901760
          %v2672 = vsub.f32 %v1147, %v2671
          %2673 = vmatpush.xpose.msra.mxu0 %v2672
          %v2674 = vand.u32 %v1144, 4294901760
          %v2675 = vsub.f32 %v1144, %v2674
          %2676 = vmatpush.xpose.msra.mxu0 %v2675
          %v2677 = vand.u32 %v1141, 4294901760
          %v2678 = vsub.f32 %v1141, %v2677
          %2679 = vmatpush.xpose.msra.mxu0 %v2678
          %v2680 = vand.u32 %v1138, 4294901760
          %v2681 = vsub.f32 %v1138, %v2680
          %2682 = vmatpush.xpose.msra.mxu0 %v2681
          %v2683 = vand.u32 %v1135, 4294901760
          %v2684 = vsub.f32 %v1135, %v2683
          %2685 = vmatpush.xpose.msra.mxu0 %v2684
          %v2686 = vand.u32 %v1132, 4294901760
          %v2687 = vsub.f32 %v1132, %v2686
          %2688 = vmatpush.xpose.msra.mxu0 %v2687
          %v2689 = vand.u32 %v982, 4294901760
          %v2690 = vsub.f32 %v982, %v2689
          %2691 = vmatmul.f32.gmra.mxu0 %v2690
          %v2692 = vpop.f32.mrf.mxu0
          %v2693 = vadd.f32 %v2635, %v2692
          %v2694 = vand.u32 %v985, 4294901760
          %v2695 = vsub.f32 %v985, %v2694
          %2696 = vmatmul.f32.gmra.mxu0 %v2695
          %v2697 = vpop.f32.mrf.mxu0
          %v2698 = vadd.f32 %v2639, %v2697
          %2699 = vdwg.mxu0
          %v2700 = vand.u32 %v1177, 4294901760
          %2701 = vmatpush.xpose.msra.mxu0 %v2700
          %v2702 = vand.u32 %v1174, 4294901760
          %2703 = vmatpush.xpose.msra.mxu0 %v2702
          %v2704 = vand.u32 %v1171, 4294901760
          %2705 = vmatpush.xpose.msra.mxu0 %v2704
          %v2706 = vand.u32 %v1168, 4294901760
          %2707 = vmatpush.xpose.msra.mxu0 %v2706
          %v2708 = vand.u32 %v1165, 4294901760
          %2709 = vmatpush.xpose.msra.mxu0 %v2708
          %v2710 = vand.u32 %v1162, 4294901760
          %2711 = vmatpush.xpose.msra.mxu0 %v2710
          %v2712 = vand.u32 %v1159, 4294901760
          %2713 = vmatpush.xpose.msra.mxu0 %v2712
          %v2714 = vand.u32 %v1156, 4294901760
          %2715 = vmatpush.xpose.msra.mxu0 %v2714
          %v2716 = vand.u32 %v1153, 4294901760
          %2717 = vmatpush.xpose.msra.mxu0 %v2716
          %v2718 = vand.u32 %v1150, 4294901760
          %2719 = vmatpush.xpose.msra.mxu0 %v2718
          %v2720 = vand.u32 %v1147, 4294901760
          %2721 = vmatpush.xpose.msra.mxu0 %v2720
          %v2722 = vand.u32 %v1144, 4294901760
          %2723 = vmatpush.xpose.msra.mxu0 %v2722
          %v2724 = vand.u32 %v1141, 4294901760
          %2725 = vmatpush.xpose.msra.mxu0 %v2724
          %v2726 = vand.u32 %v1138, 4294901760
          %2727 = vmatpush.xpose.msra.mxu0 %v2726
          %v2728 = vand.u32 %v1135, 4294901760
          %2729 = vmatpush.xpose.msra.mxu0 %v2728
          %v2730 = vand.u32 %v1132, 4294901760
          %2731 = vmatpush.xpose.msra.mxu0 %v2730
          %v2732 = vand.u32 %v982, 4294901760
          %v2733 = vsub.f32 %v982, %v2732
          %v2734 = vand.u32 %v2733, 4294901760
          %2735 = vmatmul.f32.gmra.mxu0 %v2734
          %v2736 = vpop.f32.mrf.mxu0
          %v2737 = vadd.f32 %v2693, %v2736
          %v2738 = vand.u32 %v985, 4294901760
          %v2739 = vsub.f32 %v985, %v2738
          %v2740 = vand.u32 %v2739, 4294901760
          %2741 = vmatmul.f32.gmra.mxu0 %v2740
          %v2742 = vpop.f32.mrf.mxu0
          %v2743 = vadd.f32 %v2698, %v2742
          %2744 = vdwg.mxu0
          %v2745 = vand.u32 %v1177, 4294901760
          %v2746 = vsub.f32 %v1177, %v2745
          %v2747 = vand.u32 %v2746, 4294901760
          %2748 = vmatpush.xpose.msra.mxu0 %v2747
          %v2749 = vand.u32 %v1174, 4294901760
          %v2750 = vsub.f32 %v1174, %v2749
          %v2751 = vand.u32 %v2750, 4294901760
          %2752 = vmatpush.xpose.msra.mxu0 %v2751
          %v2753 = vand.u32 %v1171, 4294901760
          %v2754 = vsub.f32 %v1171, %v2753
          %v2755 = vand.u32 %v2754, 4294901760
          %2756 = vmatpush.xpose.msra.mxu0 %v2755
          %v2757 = vand.u32 %v1168, 4294901760
          %v2758 = vsub.f32 %v1168, %v2757
          %v2759 = vand.u32 %v2758, 4294901760
          %2760 = vmatpush.xpose.msra.mxu0 %v2759
          %v2761 = vand.u32 %v1165, 4294901760
          %v2762 = vsub.f32 %v1165, %v2761
          %v2763 = vand.u32 %v2762, 4294901760
          %2764 = vmatpush.xpose.msra.mxu0 %v2763
          %v2765 = vand.u32 %v1162, 4294901760
          %v2766 = vsub.f32 %v1162, %v2765
          %v2767 = vand.u32 %v2766, 4294901760
          %2768 = vmatpush.xpose.msra.mxu0 %v2767
          %v2769 = vand.u32 %v1159, 4294901760
          %v2770 = vsub.f32 %v1159, %v2769
          %v2771 = vand.u32 %v2770, 4294901760
          %2772 = vmatpush.xpose.msra.mxu0 %v2771
          %v2773 = vand.u32 %v1156, 4294901760
          %v2774 = vsub.f32 %v1156, %v2773
          %v2775 = vand.u32 %v2774, 4294901760
          %2776 = vmatpush.xpose.msra.mxu0 %v2775
          %v2777 = vand.u32 %v1153, 4294901760
          %v2778 = vsub.f32 %v1153, %v2777
          %v2779 = vand.u32 %v2778, 4294901760
          %2780 = vmatpush.xpose.msra.mxu0 %v2779
          %v2781 = vand.u32 %v1150, 4294901760
          %v2782 = vsub.f32 %v1150, %v2781
          %v2783 = vand.u32 %v2782, 4294901760
          %2784 = vmatpush.xpose.msra.mxu0 %v2783
          %v2785 = vand.u32 %v1147, 4294901760
          %v2786 = vsub.f32 %v1147, %v2785
          %v2787 = vand.u32 %v2786, 4294901760
          %2788 = vmatpush.xpose.msra.mxu0 %v2787
          %v2789 = vand.u32 %v1144, 4294901760
          %v2790 = vsub.f32 %v1144, %v2789
          %v2791 = vand.u32 %v2790, 4294901760
          %2792 = vmatpush.xpose.msra.mxu0 %v2791
          %v2793 = vand.u32 %v1141, 4294901760
          %v2794 = vsub.f32 %v1141, %v2793
          %v2795 = vand.u32 %v2794, 4294901760
          %2796 = vmatpush.xpose.msra.mxu0 %v2795
          %v2797 = vand.u32 %v1138, 4294901760
          %v2798 = vsub.f32 %v1138, %v2797
          %v2799 = vand.u32 %v2798, 4294901760
          %2800 = vmatpush.xpose.msra.mxu0 %v2799
          %v2801 = vand.u32 %v1135, 4294901760
          %v2802 = vsub.f32 %v1135, %v2801
          %v2803 = vand.u32 %v2802, 4294901760
          %2804 = vmatpush.xpose.msra.mxu0 %v2803
          %v2805 = vand.u32 %v1132, 4294901760
          %v2806 = vsub.f32 %v1132, %v2805
          %v2807 = vand.u32 %v2806, 4294901760
          %2808 = vmatpush.xpose.msra.mxu0 %v2807
          %v2809 = vand.u32 %v982, 4294901760
          %2810 = vmatmul.f32.gmra.mxu0 %v2809
          %v2811 = vpop.f32.mrf.mxu0
          %v2812 = vadd.f32 %v2737, %v2811
          %v2813 = vand.u32 %v985, 4294901760
          %2814 = vmatmul.f32.gmra.mxu0 %v2813
          %v2815 = vpop.f32.mrf.mxu0
          %v2816 = vadd.f32 %v2743, %v2815
          %2817 = vdwg.mxu0
          %v2818 = vand.u32 %v1177, 4294901760
          %2819 = vmatpush.xpose.msra.mxu0 %v2818
          %v2820 = vand.u32 %v1174, 4294901760
          %2821 = vmatpush.xpose.msra.mxu0 %v2820
          %v2822 = vand.u32 %v1171, 4294901760
          %2823 = vmatpush.xpose.msra.mxu0 %v2822
          %v2824 = vand.u32 %v1168, 4294901760
          %2825 = vmatpush.xpose.msra.mxu0 %v2824
          %v2826 = vand.u32 %v1165, 4294901760
          %2827 = vmatpush.xpose.msra.mxu0 %v2826
          %v2828 = vand.u32 %v1162, 4294901760
          %2829 = vmatpush.xpose.msra.mxu0 %v2828
          %v2830 = vand.u32 %v1159, 4294901760
          %2831 = vmatpush.xpose.msra.mxu0 %v2830
          %v2832 = vand.u32 %v1156, 4294901760
          %2833 = vmatpush.xpose.msra.mxu0 %v2832
          %v2834 = vand.u32 %v1153, 4294901760
          %2835 = vmatpush.xpose.msra.mxu0 %v2834
          %v2836 = vand.u32 %v1150, 4294901760
          %2837 = vmatpush.xpose.msra.mxu0 %v2836
          %v2838 = vand.u32 %v1147, 4294901760
          %2839 = vmatpush.xpose.msra.mxu0 %v2838
          %v2840 = vand.u32 %v1144, 4294901760
          %2841 = vmatpush.xpose.msra.mxu0 %v2840
          %v2842 = vand.u32 %v1141, 4294901760
          %2843 = vmatpush.xpose.msra.mxu0 %v2842
          %v2844 = vand.u32 %v1138, 4294901760
          %2845 = vmatpush.xpose.msra.mxu0 %v2844
          %v2846 = vand.u32 %v1135, 4294901760
          %2847 = vmatpush.xpose.msra.mxu0 %v2846
          %v2848 = vand.u32 %v1132, 4294901760
          %2849 = vmatpush.xpose.msra.mxu0 %v2848
          %v2850 = vand.u32 %v982, 4294901760
          %2851 = vmatmul.f32.gmra.mxu0 %v2850
          %v2852 = vpop.f32.mrf.mxu0
          %v2853 = vadd.f32 %v2812, %v2852
          %v2854 = vand.u32 %v985, 4294901760
          %2855 = vmatmul.f32.gmra.mxu0 %v2854
          %v2856 = vpop.f32.mrf.mxu0
          %v2857 = vadd.f32 %v2816, %v2856
          %2858 = vdwg.mxu0
          %v2859 = vand.u32 %v1225, 4294901760
          %2860 = vmatpush.xpose.msra.mxu0 %v2859
          %v2861 = vand.u32 %v1222, 4294901760
          %2862 = vmatpush.xpose.msra.mxu0 %v2861
          %v2863 = vand.u32 %v1219, 4294901760
          %2864 = vmatpush.xpose.msra.mxu0 %v2863
          %v2865 = vand.u32 %v1216, 4294901760
          %2866 = vmatpush.xpose.msra.mxu0 %v2865
          %v2867 = vand.u32 %v1213, 4294901760
          %2868 = vmatpush.xpose.msra.mxu0 %v2867
          %v2869 = vand.u32 %v1210, 4294901760
          %2870 = vmatpush.xpose.msra.mxu0 %v2869
          %v2871 = vand.u32 %v1207, 4294901760
          %2872 = vmatpush.xpose.msra.mxu0 %v2871
          %v2873 = vand.u32 %v1204, 4294901760
          %2874 = vmatpush.xpose.msra.mxu0 %v2873
          %v2875 = vand.u32 %v1201, 4294901760
          %2876 = vmatpush.xpose.msra.mxu0 %v2875
          %v2877 = vand.u32 %v1198, 4294901760
          %2878 = vmatpush.xpose.msra.mxu0 %v2877
          %v2879 = vand.u32 %v1195, 4294901760
          %2880 = vmatpush.xpose.msra.mxu0 %v2879
          %v2881 = vand.u32 %v1192, 4294901760
          %2882 = vmatpush.xpose.msra.mxu0 %v2881
          %v2883 = vand.u32 %v1189, 4294901760
          %2884 = vmatpush.xpose.msra.mxu0 %v2883
          %v2885 = vand.u32 %v1186, 4294901760
          %2886 = vmatpush.xpose.msra.mxu0 %v2885
          %v2887 = vand.u32 %v1183, 4294901760
          %2888 = vmatpush.xpose.msra.mxu0 %v2887
          %v2889 = vand.u32 %v1180, 4294901760
          %2890 = vmatpush.xpose.msra.mxu0 %v2889
          %v2891 = vand.u32 %v982, 4294901760
          %v2892 = vsub.f32 %v982, %v2891
          %v2893 = vand.u32 %v2892, 4294901760
          %v2894 = vsub.f32 %v2892, %v2893
          %v2895 = vand.u32 %v2894, 4294901760
          %2896 = vmatmul.f32.gmra.mxu0 %v2895
          %v2897 = vpop.f32.mrf.mxu0
          %v2898 = vadd.f32 0.0, %v2897
          %v2899 = vand.u32 %v985, 4294901760
          %v2900 = vsub.f32 %v985, %v2899
          %v2901 = vand.u32 %v2900, 4294901760
          %v2902 = vsub.f32 %v2900, %v2901
          %v2903 = vand.u32 %v2902, 4294901760
          %2904 = vmatmul.f32.gmra.mxu0 %v2903
          %v2905 = vpop.f32.mrf.mxu0
          %v2906 = vadd.f32 0.0, %v2905
          %2907 = vdwg.mxu0
          %v2908 = vand.u32 %v1225, 4294901760
          %v2909 = vsub.f32 %v1225, %v2908
          %v2910 = vand.u32 %v2909, 4294901760
          %v2911 = vsub.f32 %v2909, %v2910
          %v2912 = vand.u32 %v2911, 4294901760
          %2913 = vmatpush.xpose.msra.mxu0 %v2912
          %v2914 = vand.u32 %v1222, 4294901760
          %v2915 = vsub.f32 %v1222, %v2914
          %v2916 = vand.u32 %v2915, 4294901760
          %v2917 = vsub.f32 %v2915, %v2916
          %v2918 = vand.u32 %v2917, 4294901760
          %2919 = vmatpush.xpose.msra.mxu0 %v2918
          %v2920 = vand.u32 %v1219, 4294901760
          %v2921 = vsub.f32 %v1219, %v2920
          %v2922 = vand.u32 %v2921, 4294901760
          %v2923 = vsub.f32 %v2921, %v2922
          %v2924 = vand.u32 %v2923, 4294901760
          %2925 = vmatpush.xpose.msra.mxu0 %v2924
          %v2926 = vand.u32 %v1216, 4294901760
          %v2927 = vsub.f32 %v1216, %v2926
          %v2928 = vand.u32 %v2927, 4294901760
          %v2929 = vsub.f32 %v2927, %v2928
          %v2930 = vand.u32 %v2929, 4294901760
          %2931 = vmatpush.xpose.msra.mxu0 %v2930
          %v2932 = vand.u32 %v1213, 4294901760
          %v2933 = vsub.f32 %v1213, %v2932
          %v2934 = vand.u32 %v2933, 4294901760
          %v2935 = vsub.f32 %v2933, %v2934
          %v2936 = vand.u32 %v2935, 4294901760
          %2937 = vmatpush.xpose.msra.mxu0 %v2936
          %v2938 = vand.u32 %v1210, 4294901760
          %v2939 = vsub.f32 %v1210, %v2938
          %v2940 = vand.u32 %v2939, 4294901760
          %v2941 = vsub.f32 %v2939, %v2940
          %v2942 = vand.u32 %v2941, 4294901760
          %2943 = vmatpush.xpose.msra.mxu0 %v2942
          %v2944 = vand.u32 %v1207, 4294901760
          %v2945 = vsub.f32 %v1207, %v2944
          %v2946 = vand.u32 %v2945, 4294901760
          %v2947 = vsub.f32 %v2945, %v2946
          %v2948 = vand.u32 %v2947, 4294901760
          %2949 = vmatpush.xpose.msra.mxu0 %v2948
          %v2950 = vand.u32 %v1204, 4294901760
          %v2951 = vsub.f32 %v1204, %v2950
          %v2952 = vand.u32 %v2951, 4294901760
          %v2953 = vsub.f32 %v2951, %v2952
          %v2954 = vand.u32 %v2953, 4294901760
          %2955 = vmatpush.xpose.msra.mxu0 %v2954
          %v2956 = vand.u32 %v1201, 4294901760
          %v2957 = vsub.f32 %v1201, %v2956
          %v2958 = vand.u32 %v2957, 4294901760
          %v2959 = vsub.f32 %v2957, %v2958
          %v2960 = vand.u32 %v2959, 4294901760
          %2961 = vmatpush.xpose.msra.mxu0 %v2960
          %v2962 = vand.u32 %v1198, 4294901760
          %v2963 = vsub.f32 %v1198, %v2962
          %v2964 = vand.u32 %v2963, 4294901760
          %v2965 = vsub.f32 %v2963, %v2964
          %v2966 = vand.u32 %v2965, 4294901760
          %2967 = vmatpush.xpose.msra.mxu0 %v2966
          %v2968 = vand.u32 %v1195, 4294901760
          %v2969 = vsub.f32 %v1195, %v2968
          %v2970 = vand.u32 %v2969, 4294901760
          %v2971 = vsub.f32 %v2969, %v2970
          %v2972 = vand.u32 %v2971, 4294901760
          %2973 = vmatpush.xpose.msra.mxu0 %v2972
          %v2974 = vand.u32 %v1192, 4294901760
          %v2975 = vsub.f32 %v1192, %v2974
          %v2976 = vand.u32 %v2975, 4294901760
          %v2977 = vsub.f32 %v2975, %v2976
          %v2978 = vand.u32 %v2977, 4294901760
          %2979 = vmatpush.xpose.msra.mxu0 %v2978
          %v2980 = vand.u32 %v1189, 4294901760
          %v2981 = vsub.f32 %v1189, %v2980
          %v2982 = vand.u32 %v2981, 4294901760
          %v2983 = vsub.f32 %v2981, %v2982
          %v2984 = vand.u32 %v2983, 4294901760
          %2985 = vmatpush.xpose.msra.mxu0 %v2984
          %v2986 = vand.u32 %v1186, 4294901760
          %v2987 = vsub.f32 %v1186, %v2986
          %v2988 = vand.u32 %v2987, 4294901760
          %v2989 = vsub.f32 %v2987, %v2988
          %v2990 = vand.u32 %v2989, 4294901760
          %2991 = vmatpush.xpose.msra.mxu0 %v2990
          %v2992 = vand.u32 %v1183, 4294901760
          %v2993 = vsub.f32 %v1183, %v2992
          %v2994 = vand.u32 %v2993, 4294901760
          %v2995 = vsub.f32 %v2993, %v2994
          %v2996 = vand.u32 %v2995, 4294901760
          %2997 = vmatpush.xpose.msra.mxu0 %v2996
          %v2998 = vand.u32 %v1180, 4294901760
          %v2999 = vsub.f32 %v1180, %v2998
          %v3000 = vand.u32 %v2999, 4294901760
          %v3001 = vsub.f32 %v2999, %v3000
          %v3002 = vand.u32 %v3001, 4294901760
          %3003 = vmatpush.xpose.msra.mxu0 %v3002
          %v3004 = vand.u32 %v982, 4294901760
          %3005 = vmatmul.f32.gmra.mxu0 %v3004
          %v3006 = vpop.f32.mrf.mxu0
          %v3007 = vadd.f32 %v2898, %v3006
          %v3008 = vand.u32 %v985, 4294901760
          %3009 = vmatmul.f32.gmra.mxu0 %v3008
          %v3010 = vpop.f32.mrf.mxu0
          %v3011 = vadd.f32 %v2906, %v3010
          %3012 = vdwg.mxu0
          %v3013 = vand.u32 %v1225, 4294901760
          %v3014 = vsub.f32 %v1225, %v3013
          %3015 = vmatpush.xpose.msra.mxu0 %v3014
          %v3016 = vand.u32 %v1222, 4294901760
          %v3017 = vsub.f32 %v1222, %v3016
          %3018 = vmatpush.xpose.msra.mxu0 %v3017
          %v3019 = vand.u32 %v1219, 4294901760
          %v3020 = vsub.f32 %v1219, %v3019
          %3021 = vmatpush.xpose.msra.mxu0 %v3020
          %v3022 = vand.u32 %v1216, 4294901760
          %v3023 = vsub.f32 %v1216, %v3022
          %3024 = vmatpush.xpose.msra.mxu0 %v3023
          %v3025 = vand.u32 %v1213, 4294901760
          %v3026 = vsub.f32 %v1213, %v3025
          %3027 = vmatpush.xpose.msra.mxu0 %v3026
          %v3028 = vand.u32 %v1210, 4294901760
          %v3029 = vsub.f32 %v1210, %v3028
          %3030 = vmatpush.xpose.msra.mxu0 %v3029
          %v3031 = vand.u32 %v1207, 4294901760
          %v3032 = vsub.f32 %v1207, %v3031
          %3033 = vmatpush.xpose.msra.mxu0 %v3032
          %v3034 = vand.u32 %v1204, 4294901760
          %v3035 = vsub.f32 %v1204, %v3034
          %3036 = vmatpush.xpose.msra.mxu0 %v3035
          %v3037 = vand.u32 %v1201, 4294901760
          %v3038 = vsub.f32 %v1201, %v3037
          %3039 = vmatpush.xpose.msra.mxu0 %v3038
          %v3040 = vand.u32 %v1198, 4294901760
          %v3041 = vsub.f32 %v1198, %v3040
          %3042 = vmatpush.xpose.msra.mxu0 %v3041
          %v3043 = vand.u32 %v1195, 4294901760
          %v3044 = vsub.f32 %v1195, %v3043
          %3045 = vmatpush.xpose.msra.mxu0 %v3044
          %v3046 = vand.u32 %v1192, 4294901760
          %v3047 = vsub.f32 %v1192, %v3046
          %3048 = vmatpush.xpose.msra.mxu0 %v3047
          %v3049 = vand.u32 %v1189, 4294901760
          %v3050 = vsub.f32 %v1189, %v3049
          %3051 = vmatpush.xpose.msra.mxu0 %v3050
          %v3052 = vand.u32 %v1186, 4294901760
          %v3053 = vsub.f32 %v1186, %v3052
          %3054 = vmatpush.xpose.msra.mxu0 %v3053
          %v3055 = vand.u32 %v1183, 4294901760
          %v3056 = vsub.f32 %v1183, %v3055
          %3057 = vmatpush.xpose.msra.mxu0 %v3056
          %v3058 = vand.u32 %v1180, 4294901760
          %v3059 = vsub.f32 %v1180, %v3058
          %3060 = vmatpush.xpose.msra.mxu0 %v3059
          %v3061 = vand.u32 %v982, 4294901760
          %v3062 = vsub.f32 %v982, %v3061
          %3063 = vmatmul.f32.gmra.mxu0 %v3062
          %v3064 = vpop.f32.mrf.mxu0
          %v3065 = vadd.f32 %v3007, %v3064
          %v3066 = vand.u32 %v985, 4294901760
          %v3067 = vsub.f32 %v985, %v3066
          %3068 = vmatmul.f32.gmra.mxu0 %v3067
          %v3069 = vpop.f32.mrf.mxu0
          %v3070 = vadd.f32 %v3011, %v3069
          %3071 = vdwg.mxu0
          %v3072 = vand.u32 %v1225, 4294901760
          %3073 = vmatpush.xpose.msra.mxu0 %v3072
          %v3074 = vand.u32 %v1222, 4294901760
          %3075 = vmatpush.xpose.msra.mxu0 %v3074
          %v3076 = vand.u32 %v1219, 4294901760
          %3077 = vmatpush.xpose.msra.mxu0 %v3076
          %v3078 = vand.u32 %v1216, 4294901760
          %3079 = vmatpush.xpose.msra.mxu0 %v3078
          %v3080 = vand.u32 %v1213, 4294901760
          %3081 = vmatpush.xpose.msra.mxu0 %v3080
          %v3082 = vand.u32 %v1210, 4294901760
          %3083 = vmatpush.xpose.msra.mxu0 %v3082
          %v3084 = vand.u32 %v1207, 4294901760
          %3085 = vmatpush.xpose.msra.mxu0 %v3084
          %v3086 = vand.u32 %v1204, 4294901760
          %3087 = vmatpush.xpose.msra.mxu0 %v3086
          %v3088 = vand.u32 %v1201, 4294901760
          %3089 = vmatpush.xpose.msra.mxu0 %v3088
          %v3090 = vand.u32 %v1198, 4294901760
          %3091 = vmatpush.xpose.msra.mxu0 %v3090
          %v3092 = vand.u32 %v1195, 4294901760
          %3093 = vmatpush.xpose.msra.mxu0 %v3092
          %v3094 = vand.u32 %v1192, 4294901760
          %3095 = vmatpush.xpose.msra.mxu0 %v3094
          %v3096 = vand.u32 %v1189, 4294901760
          %3097 = vmatpush.xpose.msra.mxu0 %v3096
          %v3098 = vand.u32 %v1186, 4294901760
          %3099 = vmatpush.xpose.msra.mxu0 %v3098
          %v3100 = vand.u32 %v1183, 4294901760
          %3101 = vmatpush.xpose.msra.mxu0 %v3100
          %v3102 = vand.u32 %v1180, 4294901760
          %3103 = vmatpush.xpose.msra.mxu0 %v3102
          %v3104 = vand.u32 %v982, 4294901760
          %v3105 = vsub.f32 %v982, %v3104
          %v3106 = vand.u32 %v3105, 4294901760
          %3107 = vmatmul.f32.gmra.mxu0 %v3106
          %v3108 = vpop.f32.mrf.mxu0
          %v3109 = vadd.f32 %v3065, %v3108
          %v3110 = vand.u32 %v985, 4294901760
          %v3111 = vsub.f32 %v985, %v3110
          %v3112 = vand.u32 %v3111, 4294901760
          %3113 = vmatmul.f32.gmra.mxu0 %v3112
          %v3114 = vpop.f32.mrf.mxu0
          %v3115 = vadd.f32 %v3070, %v3114
          %3116 = vdwg.mxu0
          %v3117 = vand.u32 %v1225, 4294901760
          %v3118 = vsub.f32 %v1225, %v3117
          %v3119 = vand.u32 %v3118, 4294901760
          %3120 = vmatpush.xpose.msra.mxu0 %v3119
          %v3121 = vand.u32 %v1222, 4294901760
          %v3122 = vsub.f32 %v1222, %v3121
          %v3123 = vand.u32 %v3122, 4294901760
          %3124 = vmatpush.xpose.msra.mxu0 %v3123
          %v3125 = vand.u32 %v1219, 4294901760
          %v3126 = vsub.f32 %v1219, %v3125
          %v3127 = vand.u32 %v3126, 4294901760
          %3128 = vmatpush.xpose.msra.mxu0 %v3127
          %v3129 = vand.u32 %v1216, 4294901760
          %v3130 = vsub.f32 %v1216, %v3129
          %v3131 = vand.u32 %v3130, 4294901760
          %3132 = vmatpush.xpose.msra.mxu0 %v3131
          %v3133 = vand.u32 %v1213, 4294901760
          %v3134 = vsub.f32 %v1213, %v3133
          %v3135 = vand.u32 %v3134, 4294901760
          %3136 = vmatpush.xpose.msra.mxu0 %v3135
          %v3137 = vand.u32 %v1210, 4294901760
          %v3138 = vsub.f32 %v1210, %v3137
          %v3139 = vand.u32 %v3138, 4294901760
          %3140 = vmatpush.xpose.msra.mxu0 %v3139
          %v3141 = vand.u32 %v1207, 4294901760
          %v3142 = vsub.f32 %v1207, %v3141
          %v3143 = vand.u32 %v3142, 4294901760
          %3144 = vmatpush.xpose.msra.mxu0 %v3143
          %v3145 = vand.u32 %v1204, 4294901760
          %v3146 = vsub.f32 %v1204, %v3145
          %v3147 = vand.u32 %v3146, 4294901760
          %3148 = vmatpush.xpose.msra.mxu0 %v3147
          %v3149 = vand.u32 %v1201, 4294901760
          %v3150 = vsub.f32 %v1201, %v3149
          %v3151 = vand.u32 %v3150, 4294901760
          %3152 = vmatpush.xpose.msra.mxu0 %v3151
          %v3153 = vand.u32 %v1198, 4294901760
          %v3154 = vsub.f32 %v1198, %v3153
          %v3155 = vand.u32 %v3154, 4294901760
          %3156 = vmatpush.xpose.msra.mxu0 %v3155
          %v3157 = vand.u32 %v1195, 4294901760
          %v3158 = vsub.f32 %v1195, %v3157
          %v3159 = vand.u32 %v3158, 4294901760
          %3160 = vmatpush.xpose.msra.mxu0 %v3159
          %v3161 = vand.u32 %v1192, 4294901760
          %v3162 = vsub.f32 %v1192, %v3161
          %v3163 = vand.u32 %v3162, 4294901760
          %3164 = vmatpush.xpose.msra.mxu0 %v3163
          %v3165 = vand.u32 %v1189, 4294901760
          %v3166 = vsub.f32 %v1189, %v3165
          %v3167 = vand.u32 %v3166, 4294901760
          %3168 = vmatpush.xpose.msra.mxu0 %v3167
          %v3169 = vand.u32 %v1186, 4294901760
          %v3170 = vsub.f32 %v1186, %v3169
          %v3171 = vand.u32 %v3170, 4294901760
          %3172 = vmatpush.xpose.msra.mxu0 %v3171
          %v3173 = vand.u32 %v1183, 4294901760
          %v3174 = vsub.f32 %v1183, %v3173
          %v3175 = vand.u32 %v3174, 4294901760
          %3176 = vmatpush.xpose.msra.mxu0 %v3175
          %v3177 = vand.u32 %v1180, 4294901760
          %v3178 = vsub.f32 %v1180, %v3177
          %v3179 = vand.u32 %v3178, 4294901760
          %3180 = vmatpush.xpose.msra.mxu0 %v3179
          %v3181 = vand.u32 %v982, 4294901760
          %3182 = vmatmul.f32.gmra.mxu0 %v3181
          %v3183 = vpop.f32.mrf.mxu0
          %v3184 = vadd.f32 %v3109, %v3183
          %v3185 = vand.u32 %v985, 4294901760
          %3186 = vmatmul.f32.gmra.mxu0 %v3185
          %v3187 = vpop.f32.mrf.mxu0
          %v3188 = vadd.f32 %v3115, %v3187
          %3189 = vdwg.mxu0
          %v3190 = vand.u32 %v1225, 4294901760
          %3191 = vmatpush.xpose.msra.mxu0 %v3190
          %v3192 = vand.u32 %v1222, 4294901760
          %3193 = vmatpush.xpose.msra.mxu0 %v3192
          %v3194 = vand.u32 %v1219, 4294901760
          %3195 = vmatpush.xpose.msra.mxu0 %v3194
          %v3196 = vand.u32 %v1216, 4294901760
          %3197 = vmatpush.xpose.msra.mxu0 %v3196
          %v3198 = vand.u32 %v1213, 4294901760
          %3199 = vmatpush.xpose.msra.mxu0 %v3198
          %v3200 = vand.u32 %v1210, 4294901760
          %3201 = vmatpush.xpose.msra.mxu0 %v3200
          %v3202 = vand.u32 %v1207, 4294901760
          %3203 = vmatpush.xpose.msra.mxu0 %v3202
          %v3204 = vand.u32 %v1204, 4294901760
          %3205 = vmatpush.xpose.msra.mxu0 %v3204
          %v3206 = vand.u32 %v1201, 4294901760
          %3207 = vmatpush.xpose.msra.mxu0 %v3206
          %v3208 = vand.u32 %v1198, 4294901760
          %3209 = vmatpush.xpose.msra.mxu0 %v3208
          %v3210 = vand.u32 %v1195, 4294901760
          %3211 = vmatpush.xpose.msra.mxu0 %v3210
          %v3212 = vand.u32 %v1192, 4294901760
          %3213 = vmatpush.xpose.msra.mxu0 %v3212
          %v3214 = vand.u32 %v1189, 4294901760
          %3215 = vmatpush.xpose.msra.mxu0 %v3214
          %v3216 = vand.u32 %v1186, 4294901760
          %3217 = vmatpush.xpose.msra.mxu0 %v3216
          %v3218 = vand.u32 %v1183, 4294901760
          %3219 = vmatpush.xpose.msra.mxu0 %v3218
          %v3220 = vand.u32 %v1180, 4294901760
          %3221 = vmatpush.xpose.msra.mxu0 %v3220
          %v3222 = vand.u32 %v982, 4294901760
          %3223 = vmatmul.f32.gmra.mxu0 %v3222
          %v3224 = vpop.f32.mrf.mxu0
          %v3225 = vadd.f32 %v3184, %v3224
          %v3226 = vand.u32 %v985, 4294901760
          %3227 = vmatmul.f32.gmra.mxu0 %v3226
          %v3228 = vpop.f32.mrf.mxu0
          %v3229 = vadd.f32 %v3188, %v3228
          %3230 = vdwg.mxu0
          %v3231 = vand.u32 %v1273, 4294901760
          %3232 = vmatpush.xpose.msra.mxu0 %v3231
          %v3233 = vand.u32 %v1270, 4294901760
          %3234 = vmatpush.xpose.msra.mxu0 %v3233
          %v3235 = vand.u32 %v1267, 4294901760
          %3236 = vmatpush.xpose.msra.mxu0 %v3235
          %v3237 = vand.u32 %v1264, 4294901760
          %3238 = vmatpush.xpose.msra.mxu0 %v3237
          %v3239 = vand.u32 %v1261, 4294901760
          %3240 = vmatpush.xpose.msra.mxu0 %v3239
          %v3241 = vand.u32 %v1258, 4294901760
          %3242 = vmatpush.xpose.msra.mxu0 %v3241
          %v3243 = vand.u32 %v1255, 4294901760
          %3244 = vmatpush.xpose.msra.mxu0 %v3243
          %v3245 = vand.u32 %v1252, 4294901760
          %3246 = vmatpush.xpose.msra.mxu0 %v3245
          %v3247 = vand.u32 %v1249, 4294901760
          %3248 = vmatpush.xpose.msra.mxu0 %v3247
          %v3249 = vand.u32 %v1246, 4294901760
          %3250 = vmatpush.xpose.msra.mxu0 %v3249
          %v3251 = vand.u32 %v1243, 4294901760
          %3252 = vmatpush.xpose.msra.mxu0 %v3251
          %v3253 = vand.u32 %v1240, 4294901760
          %3254 = vmatpush.xpose.msra.mxu0 %v3253
          %v3255 = vand.u32 %v1237, 4294901760
          %3256 = vmatpush.xpose.msra.mxu0 %v3255
          %v3257 = vand.u32 %v1234, 4294901760
          %3258 = vmatpush.xpose.msra.mxu0 %v3257
          %v3259 = vand.u32 %v1231, 4294901760
          %3260 = vmatpush.xpose.msra.mxu0 %v3259
          %v3261 = vand.u32 %v1228, 4294901760
          %3262 = vmatpush.xpose.msra.mxu0 %v3261
          %v3263 = vand.u32 %v982, 4294901760
          %v3264 = vsub.f32 %v982, %v3263
          %v3265 = vand.u32 %v3264, 4294901760
          %v3266 = vsub.f32 %v3264, %v3265
          %v3267 = vand.u32 %v3266, 4294901760
          %3268 = vmatmul.f32.gmra.mxu0 %v3267
          %v3269 = vpop.f32.mrf.mxu0
          %v3270 = vadd.f32 0.0, %v3269
          %v3271 = vand.u32 %v985, 4294901760
          %v3272 = vsub.f32 %v985, %v3271
          %v3273 = vand.u32 %v3272, 4294901760
          %v3274 = vsub.f32 %v3272, %v3273
          %v3275 = vand.u32 %v3274, 4294901760
          %3276 = vmatmul.f32.gmra.mxu0 %v3275
          %v3277 = vpop.f32.mrf.mxu0
          %v3278 = vadd.f32 0.0, %v3277
          %3279 = vdwg.mxu0
          %v3280 = vand.u32 %v1273, 4294901760
          %v3281 = vsub.f32 %v1273, %v3280
          %v3282 = vand.u32 %v3281, 4294901760
          %v3283 = vsub.f32 %v3281, %v3282
          %v3284 = vand.u32 %v3283, 4294901760
          %3285 = vmatpush.xpose.msra.mxu0 %v3284
          %v3286 = vand.u32 %v1270, 4294901760
          %v3287 = vsub.f32 %v1270, %v3286
          %v3288 = vand.u32 %v3287, 4294901760
          %v3289 = vsub.f32 %v3287, %v3288
          %v3290 = vand.u32 %v3289, 4294901760
          %3291 = vmatpush.xpose.msra.mxu0 %v3290
          %v3292 = vand.u32 %v1267, 4294901760
          %v3293 = vsub.f32 %v1267, %v3292
          %v3294 = vand.u32 %v3293, 4294901760
          %v3295 = vsub.f32 %v3293, %v3294
          %v3296 = vand.u32 %v3295, 4294901760
          %3297 = vmatpush.xpose.msra.mxu0 %v3296
          %v3298 = vand.u32 %v1264, 4294901760
          %v3299 = vsub.f32 %v1264, %v3298
          %v3300 = vand.u32 %v3299, 4294901760
          %v3301 = vsub.f32 %v3299, %v3300
          %v3302 = vand.u32 %v3301, 4294901760
          %3303 = vmatpush.xpose.msra.mxu0 %v3302
          %v3304 = vand.u32 %v1261, 4294901760
          %v3305 = vsub.f32 %v1261, %v3304
          %v3306 = vand.u32 %v3305, 4294901760
          %v3307 = vsub.f32 %v3305, %v3306
          %v3308 = vand.u32 %v3307, 4294901760
          %3309 = vmatpush.xpose.msra.mxu0 %v3308
          %v3310 = vand.u32 %v1258, 4294901760
          %v3311 = vsub.f32 %v1258, %v3310
          %v3312 = vand.u32 %v3311, 4294901760
          %v3313 = vsub.f32 %v3311, %v3312
          %v3314 = vand.u32 %v3313, 4294901760
          %3315 = vmatpush.xpose.msra.mxu0 %v3314
          %v3316 = vand.u32 %v1255, 4294901760
          %v3317 = vsub.f32 %v1255, %v3316
          %v3318 = vand.u32 %v3317, 4294901760
          %v3319 = vsub.f32 %v3317, %v3318
          %v3320 = vand.u32 %v3319, 4294901760
          %3321 = vmatpush.xpose.msra.mxu0 %v3320
          %v3322 = vand.u32 %v1252, 4294901760
          %v3323 = vsub.f32 %v1252, %v3322
          %v3324 = vand.u32 %v3323, 4294901760
          %v3325 = vsub.f32 %v3323, %v3324
          %v3326 = vand.u32 %v3325, 4294901760
          %3327 = vmatpush.xpose.msra.mxu0 %v3326
          %v3328 = vand.u32 %v1249, 4294901760
          %v3329 = vsub.f32 %v1249, %v3328
          %v3330 = vand.u32 %v3329, 4294901760
          %v3331 = vsub.f32 %v3329, %v3330
          %v3332 = vand.u32 %v3331, 4294901760
          %3333 = vmatpush.xpose.msra.mxu0 %v3332
          %v3334 = vand.u32 %v1246, 4294901760
          %v3335 = vsub.f32 %v1246, %v3334
          %v3336 = vand.u32 %v3335, 4294901760
          %v3337 = vsub.f32 %v3335, %v3336
          %v3338 = vand.u32 %v3337, 4294901760
          %3339 = vmatpush.xpose.msra.mxu0 %v3338
          %v3340 = vand.u32 %v1243, 4294901760
          %v3341 = vsub.f32 %v1243, %v3340
          %v3342 = vand.u32 %v3341, 4294901760
          %v3343 = vsub.f32 %v3341, %v3342
          %v3344 = vand.u32 %v3343, 4294901760
          %3345 = vmatpush.xpose.msra.mxu0 %v3344
          %v3346 = vand.u32 %v1240, 4294901760
          %v3347 = vsub.f32 %v1240, %v3346
          %v3348 = vand.u32 %v3347, 4294901760
          %v3349 = vsub.f32 %v3347, %v3348
          %v3350 = vand.u32 %v3349, 4294901760
          %3351 = vmatpush.xpose.msra.mxu0 %v3350
          %v3352 = vand.u32 %v1237, 4294901760
          %v3353 = vsub.f32 %v1237, %v3352
          %v3354 = vand.u32 %v3353, 4294901760
          %v3355 = vsub.f32 %v3353, %v3354
          %v3356 = vand.u32 %v3355, 4294901760
          %3357 = vmatpush.xpose.msra.mxu0 %v3356
          %v3358 = vand.u32 %v1234, 4294901760
          %v3359 = vsub.f32 %v1234, %v3358
          %v3360 = vand.u32 %v3359, 4294901760
          %v3361 = vsub.f32 %v3359, %v3360
          %v3362 = vand.u32 %v3361, 4294901760
          %3363 = vmatpush.xpose.msra.mxu0 %v3362
          %v3364 = vand.u32 %v1231, 4294901760
          %v3365 = vsub.f32 %v1231, %v3364
          %v3366 = vand.u32 %v3365, 4294901760
          %v3367 = vsub.f32 %v3365, %v3366
          %v3368 = vand.u32 %v3367, 4294901760
          %3369 = vmatpush.xpose.msra.mxu0 %v3368
          %v3370 = vand.u32 %v1228, 4294901760
          %v3371 = vsub.f32 %v1228, %v3370
          %v3372 = vand.u32 %v3371, 4294901760
          %v3373 = vsub.f32 %v3371, %v3372
          %v3374 = vand.u32 %v3373, 4294901760
          %3375 = vmatpush.xpose.msra.mxu0 %v3374
          %v3376 = vand.u32 %v982, 4294901760
          %3377 = vmatmul.f32.gmra.mxu0 %v3376
          %v3378 = vpop.f32.mrf.mxu0
          %v3379 = vadd.f32 %v3270, %v3378
          %v3380 = vand.u32 %v985, 4294901760
          %3381 = vmatmul.f32.gmra.mxu0 %v3380
          %v3382 = vpop.f32.mrf.mxu0
          %v3383 = vadd.f32 %v3278, %v3382
          %3384 = vdwg.mxu0
          %v3385 = vand.u32 %v1273, 4294901760
          %v3386 = vsub.f32 %v1273, %v3385
          %3387 = vmatpush.xpose.msra.mxu0 %v3386
          %v3388 = vand.u32 %v1270, 4294901760
          %v3389 = vsub.f32 %v1270, %v3388
          %3390 = vmatpush.xpose.msra.mxu0 %v3389
          %v3391 = vand.u32 %v1267, 4294901760
          %v3392 = vsub.f32 %v1267, %v3391
          %3393 = vmatpush.xpose.msra.mxu0 %v3392
          %v3394 = vand.u32 %v1264, 4294901760
          %v3395 = vsub.f32 %v1264, %v3394
          %3396 = vmatpush.xpose.msra.mxu0 %v3395
          %v3397 = vand.u32 %v1261, 4294901760
          %v3398 = vsub.f32 %v1261, %v3397
          %3399 = vmatpush.xpose.msra.mxu0 %v3398
          %v3400 = vand.u32 %v1258, 4294901760
          %v3401 = vsub.f32 %v1258, %v3400
          %3402 = vmatpush.xpose.msra.mxu0 %v3401
          %v3403 = vand.u32 %v1255, 4294901760
          %v3404 = vsub.f32 %v1255, %v3403
          %3405 = vmatpush.xpose.msra.mxu0 %v3404
          %v3406 = vand.u32 %v1252, 4294901760
          %v3407 = vsub.f32 %v1252, %v3406
          %3408 = vmatpush.xpose.msra.mxu0 %v3407
          %v3409 = vand.u32 %v1249, 4294901760
          %v3410 = vsub.f32 %v1249, %v3409
          %3411 = vmatpush.xpose.msra.mxu0 %v3410
          %v3412 = vand.u32 %v1246, 4294901760
          %v3413 = vsub.f32 %v1246, %v3412
          %3414 = vmatpush.xpose.msra.mxu0 %v3413
          %v3415 = vand.u32 %v1243, 4294901760
          %v3416 = vsub.f32 %v1243, %v3415
          %3417 = vmatpush.xpose.msra.mxu0 %v3416
          %v3418 = vand.u32 %v1240, 4294901760
          %v3419 = vsub.f32 %v1240, %v3418
          %3420 = vmatpush.xpose.msra.mxu0 %v3419
          %v3421 = vand.u32 %v1237, 4294901760
          %v3422 = vsub.f32 %v1237, %v3421
          %3423 = vmatpush.xpose.msra.mxu0 %v3422
          %v3424 = vand.u32 %v1234, 4294901760
          %v3425 = vsub.f32 %v1234, %v3424
          %3426 = vmatpush.xpose.msra.mxu0 %v3425
          %v3427 = vand.u32 %v1231, 4294901760
          %v3428 = vsub.f32 %v1231, %v3427
          %3429 = vmatpush.xpose.msra.mxu0 %v3428
          %v3430 = vand.u32 %v1228, 4294901760
          %v3431 = vsub.f32 %v1228, %v3430
          %3432 = vmatpush.xpose.msra.mxu0 %v3431
          %v3433 = vand.u32 %v982, 4294901760
          %v3434 = vsub.f32 %v982, %v3433
          %3435 = vmatmul.f32.gmra.mxu0 %v3434
          %v3436 = vpop.f32.mrf.mxu0
          %v3437 = vadd.f32 %v3379, %v3436
          %v3438 = vand.u32 %v985, 4294901760
          %v3439 = vsub.f32 %v985, %v3438
          %3440 = vmatmul.f32.gmra.mxu0 %v3439
          %v3441 = vpop.f32.mrf.mxu0
          %v3442 = vadd.f32 %v3383, %v3441
          %3443 = vdwg.mxu0
          %v3444 = vand.u32 %v1273, 4294901760
          %3445 = vmatpush.xpose.msra.mxu0 %v3444
          %v3446 = vand.u32 %v1270, 4294901760
          %3447 = vmatpush.xpose.msra.mxu0 %v3446
          %v3448 = vand.u32 %v1267, 4294901760
          %3449 = vmatpush.xpose.msra.mxu0 %v3448
          %v3450 = vand.u32 %v1264, 4294901760
          %3451 = vmatpush.xpose.msra.mxu0 %v3450
          %v3452 = vand.u32 %v1261, 4294901760
          %3453 = vmatpush.xpose.msra.mxu0 %v3452
          %v3454 = vand.u32 %v1258, 4294901760
          %3455 = vmatpush.xpose.msra.mxu0 %v3454
          %v3456 = vand.u32 %v1255, 4294901760
          %3457 = vmatpush.xpose.msra.mxu0 %v3456
          %v3458 = vand.u32 %v1252, 4294901760
          %3459 = vmatpush.xpose.msra.mxu0 %v3458
          %v3460 = vand.u32 %v1249, 4294901760
          %3461 = vmatpush.xpose.msra.mxu0 %v3460
          %v3462 = vand.u32 %v1246, 4294901760
          %3463 = vmatpush.xpose.msra.mxu0 %v3462
          %v3464 = vand.u32 %v1243, 4294901760
          %3465 = vmatpush.xpose.msra.mxu0 %v3464
          %v3466 = vand.u32 %v1240, 4294901760
          %3467 = vmatpush.xpose.msra.mxu0 %v3466
          %v3468 = vand.u32 %v1237, 4294901760
          %3469 = vmatpush.xpose.msra.mxu0 %v3468
          %v3470 = vand.u32 %v1234, 4294901760
          %3471 = vmatpush.xpose.msra.mxu0 %v3470
          %v3472 = vand.u32 %v1231, 4294901760
          %3473 = vmatpush.xpose.msra.mxu0 %v3472
          %v3474 = vand.u32 %v1228, 4294901760
          %3475 = vmatpush.xpose.msra.mxu0 %v3474
          %v3476 = vand.u32 %v982, 4294901760
          %v3477 = vsub.f32 %v982, %v3476
          %v3478 = vand.u32 %v3477, 4294901760
          %3479 = vmatmul.f32.gmra.mxu0 %v3478
          %v3480 = vpop.f32.mrf.mxu0
          %v3481 = vadd.f32 %v3437, %v3480
          %v3482 = vand.u32 %v985, 4294901760
          %v3483 = vsub.f32 %v985, %v3482
          %v3484 = vand.u32 %v3483, 4294901760
          %3485 = vmatmul.f32.gmra.mxu0 %v3484
          %v3486 = vpop.f32.mrf.mxu0
          %v3487 = vadd.f32 %v3442, %v3486
          %3488 = vdwg.mxu0
          %v3489 = vand.u32 %v1273, 4294901760
          %v3490 = vsub.f32 %v1273, %v3489
          %v3491 = vand.u32 %v3490, 4294901760
          %3492 = vmatpush.xpose.msra.mxu0 %v3491
          %v3493 = vand.u32 %v1270, 4294901760
          %v3494 = vsub.f32 %v1270, %v3493
          %v3495 = vand.u32 %v3494, 4294901760
          %3496 = vmatpush.xpose.msra.mxu0 %v3495
          %v3497 = vand.u32 %v1267, 4294901760
          %v3498 = vsub.f32 %v1267, %v3497
          %v3499 = vand.u32 %v3498, 4294901760
          %3500 = vmatpush.xpose.msra.mxu0 %v3499
          %v3501 = vand.u32 %v1264, 4294901760
          %v3502 = vsub.f32 %v1264, %v3501
          %v3503 = vand.u32 %v3502, 4294901760
          %3504 = vmatpush.xpose.msra.mxu0 %v3503
          %v3505 = vand.u32 %v1261, 4294901760
          %v3506 = vsub.f32 %v1261, %v3505
          %v3507 = vand.u32 %v3506, 4294901760
          %3508 = vmatpush.xpose.msra.mxu0 %v3507
          %v3509 = vand.u32 %v1258, 4294901760
          %v3510 = vsub.f32 %v1258, %v3509
          %v3511 = vand.u32 %v3510, 4294901760
          %3512 = vmatpush.xpose.msra.mxu0 %v3511
          %v3513 = vand.u32 %v1255, 4294901760
          %v3514 = vsub.f32 %v1255, %v3513
          %v3515 = vand.u32 %v3514, 4294901760
          %3516 = vmatpush.xpose.msra.mxu0 %v3515
          %v3517 = vand.u32 %v1252, 4294901760
          %v3518 = vsub.f32 %v1252, %v3517
          %v3519 = vand.u32 %v3518, 4294901760
          %3520 = vmatpush.xpose.msra.mxu0 %v3519
          %v3521 = vand.u32 %v1249, 4294901760
          %v3522 = vsub.f32 %v1249, %v3521
          %v3523 = vand.u32 %v3522, 4294901760
          %3524 = vmatpush.xpose.msra.mxu0 %v3523
          %v3525 = vand.u32 %v1246, 4294901760
          %v3526 = vsub.f32 %v1246, %v3525
          %v3527 = vand.u32 %v3526, 4294901760
          %3528 = vmatpush.xpose.msra.mxu0 %v3527
          %v3529 = vand.u32 %v1243, 4294901760
          %v3530 = vsub.f32 %v1243, %v3529
          %v3531 = vand.u32 %v3530, 4294901760
          %3532 = vmatpush.xpose.msra.mxu0 %v3531
          %v3533 = vand.u32 %v1240, 4294901760
          %v3534 = vsub.f32 %v1240, %v3533
          %v3535 = vand.u32 %v3534, 4294901760
          %3536 = vmatpush.xpose.msra.mxu0 %v3535
          %v3537 = vand.u32 %v1237, 4294901760
          %v3538 = vsub.f32 %v1237, %v3537
          %v3539 = vand.u32 %v3538, 4294901760
          %3540 = vmatpush.xpose.msra.mxu0 %v3539
          %v3541 = vand.u32 %v1234, 4294901760
          %v3542 = vsub.f32 %v1234, %v3541
          %v3543 = vand.u32 %v3542, 4294901760
          %3544 = vmatpush.xpose.msra.mxu0 %v3543
          %v3545 = vand.u32 %v1231, 4294901760
          %v3546 = vsub.f32 %v1231, %v3545
          %v3547 = vand.u32 %v3546, 4294901760
          %3548 = vmatpush.xpose.msra.mxu0 %v3547
          %v3549 = vand.u32 %v1228, 4294901760
          %v3550 = vsub.f32 %v1228, %v3549
          %v3551 = vand.u32 %v3550, 4294901760
          %3552 = vmatpush.xpose.msra.mxu0 %v3551
          %v3553 = vand.u32 %v982, 4294901760
          %3554 = vmatmul.f32.gmra.mxu0 %v3553
          %v3555 = vpop.f32.mrf.mxu0
          %v3556 = vadd.f32 %v3481, %v3555
          %v3557 = vand.u32 %v985, 4294901760
          %3558 = vmatmul.f32.gmra.mxu0 %v3557
          %v3559 = vpop.f32.mrf.mxu0
          %v3560 = vadd.f32 %v3487, %v3559
          %3561 = vdwg.mxu0
          %v3562 = vand.u32 %v1273, 4294901760
          %3563 = vmatpush.xpose.msra.mxu0 %v3562
          %v3564 = vand.u32 %v1270, 4294901760
          %3565 = vmatpush.xpose.msra.mxu0 %v3564
          %v3566 = vand.u32 %v1267, 4294901760
          %3567 = vmatpush.xpose.msra.mxu0 %v3566
          %v3568 = vand.u32 %v1264, 4294901760
          %3569 = vmatpush.xpose.msra.mxu0 %v3568
          %v3570 = vand.u32 %v1261, 4294901760
          %3571 = vmatpush.xpose.msra.mxu0 %v3570
          %v3572 = vand.u32 %v1258, 4294901760
          %3573 = vmatpush.xpose.msra.mxu0 %v3572
          %v3574 = vand.u32 %v1255, 4294901760
          %3575 = vmatpush.xpose.msra.mxu0 %v3574
          %v3576 = vand.u32 %v1252, 4294901760
          %3577 = vmatpush.xpose.msra.mxu0 %v3576
          %v3578 = vand.u32 %v1249, 4294901760
          %3579 = vmatpush.xpose.msra.mxu0 %v3578
          %v3580 = vand.u32 %v1246, 4294901760
          %3581 = vmatpush.xpose.msra.mxu0 %v3580
          %v3582 = vand.u32 %v1243, 4294901760
          %3583 = vmatpush.xpose.msra.mxu0 %v3582
          %v3584 = vand.u32 %v1240, 4294901760
          %3585 = vmatpush.xpose.msra.mxu0 %v3584
          %v3586 = vand.u32 %v1237, 4294901760
          %3587 = vmatpush.xpose.msra.mxu0 %v3586
          %v3588 = vand.u32 %v1234, 4294901760
          %3589 = vmatpush.xpose.msra.mxu0 %v3588
          %v3590 = vand.u32 %v1231, 4294901760
          %3591 = vmatpush.xpose.msra.mxu0 %v3590
          %v3592 = vand.u32 %v1228, 4294901760
          %3593 = vmatpush.xpose.msra.mxu0 %v3592
          %v3594 = vand.u32 %v982, 4294901760
          %3595 = vmatmul.f32.gmra.mxu0 %v3594
          %v3596 = vpop.f32.mrf.mxu0
          %v3597 = vadd.f32 %v3556, %v3596
          %v3598 = vand.u32 %v985, 4294901760
          %3599 = vmatmul.f32.gmra.mxu0 %v3598
          %v3600 = vpop.f32.mrf.mxu0
          %v3601 = vadd.f32 %v3560, %v3600
          %3602 = vdwg.mxu0
          %v3603 = vand.u32 %v1321, 4294901760
          %3604 = vmatpush.xpose.msra.mxu0 %v3603
          %v3605 = vand.u32 %v1318, 4294901760
          %3606 = vmatpush.xpose.msra.mxu0 %v3605
          %v3607 = vand.u32 %v1315, 4294901760
          %3608 = vmatpush.xpose.msra.mxu0 %v3607
          %v3609 = vand.u32 %v1312, 4294901760
          %3610 = vmatpush.xpose.msra.mxu0 %v3609
          %v3611 = vand.u32 %v1309, 4294901760
          %3612 = vmatpush.xpose.msra.mxu0 %v3611
          %v3613 = vand.u32 %v1306, 4294901760
          %3614 = vmatpush.xpose.msra.mxu0 %v3613
          %v3615 = vand.u32 %v1303, 4294901760
          %3616 = vmatpush.xpose.msra.mxu0 %v3615
          %v3617 = vand.u32 %v1300, 4294901760
          %3618 = vmatpush.xpose.msra.mxu0 %v3617
          %v3619 = vand.u32 %v1297, 4294901760
          %3620 = vmatpush.xpose.msra.mxu0 %v3619
          %v3621 = vand.u32 %v1294, 4294901760
          %3622 = vmatpush.xpose.msra.mxu0 %v3621
          %v3623 = vand.u32 %v1291, 4294901760
          %3624 = vmatpush.xpose.msra.mxu0 %v3623
          %v3625 = vand.u32 %v1288, 4294901760
          %3626 = vmatpush.xpose.msra.mxu0 %v3625
          %v3627 = vand.u32 %v1285, 4294901760
          %3628 = vmatpush.xpose.msra.mxu0 %v3627
          %v3629 = vand.u32 %v1282, 4294901760
          %3630 = vmatpush.xpose.msra.mxu0 %v3629
          %v3631 = vand.u32 %v1279, 4294901760
          %3632 = vmatpush.xpose.msra.mxu0 %v3631
          %v3633 = vand.u32 %v1276, 4294901760
          %3634 = vmatpush.xpose.msra.mxu0 %v3633
          %v3635 = vand.u32 %v982, 4294901760
          %v3636 = vsub.f32 %v982, %v3635
          %v3637 = vand.u32 %v3636, 4294901760
          %v3638 = vsub.f32 %v3636, %v3637
          %v3639 = vand.u32 %v3638, 4294901760
          %3640 = vmatmul.f32.gmra.mxu0 %v3639
          %v3641 = vpop.f32.mrf.mxu0
          %v3642 = vadd.f32 0.0, %v3641
          %v3643 = vand.u32 %v985, 4294901760
          %v3644 = vsub.f32 %v985, %v3643
          %v3645 = vand.u32 %v3644, 4294901760
          %v3646 = vsub.f32 %v3644, %v3645
          %v3647 = vand.u32 %v3646, 4294901760
          %3648 = vmatmul.f32.gmra.mxu0 %v3647
          %v3649 = vpop.f32.mrf.mxu0
          %v3650 = vadd.f32 0.0, %v3649
          %3651 = vdwg.mxu0
          %v3652 = vand.u32 %v1321, 4294901760
          %v3653 = vsub.f32 %v1321, %v3652
          %v3654 = vand.u32 %v3653, 4294901760
          %v3655 = vsub.f32 %v3653, %v3654
          %v3656 = vand.u32 %v3655, 4294901760
          %3657 = vmatpush.xpose.msra.mxu0 %v3656
          %v3658 = vand.u32 %v1318, 4294901760
          %v3659 = vsub.f32 %v1318, %v3658
          %v3660 = vand.u32 %v3659, 4294901760
          %v3661 = vsub.f32 %v3659, %v3660
          %v3662 = vand.u32 %v3661, 4294901760
          %3663 = vmatpush.xpose.msra.mxu0 %v3662
          %v3664 = vand.u32 %v1315, 4294901760
          %v3665 = vsub.f32 %v1315, %v3664
          %v3666 = vand.u32 %v3665, 4294901760
          %v3667 = vsub.f32 %v3665, %v3666
          %v3668 = vand.u32 %v3667, 4294901760
          %3669 = vmatpush.xpose.msra.mxu0 %v3668
          %v3670 = vand.u32 %v1312, 4294901760
          %v3671 = vsub.f32 %v1312, %v3670
          %v3672 = vand.u32 %v3671, 4294901760
          %v3673 = vsub.f32 %v3671, %v3672
          %v3674 = vand.u32 %v3673, 4294901760
          %3675 = vmatpush.xpose.msra.mxu0 %v3674
          %v3676 = vand.u32 %v1309, 4294901760
          %v3677 = vsub.f32 %v1309, %v3676
          %v3678 = vand.u32 %v3677, 4294901760
          %v3679 = vsub.f32 %v3677, %v3678
          %v3680 = vand.u32 %v3679, 4294901760
          %3681 = vmatpush.xpose.msra.mxu0 %v3680
          %v3682 = vand.u32 %v1306, 4294901760
          %v3683 = vsub.f32 %v1306, %v3682
          %v3684 = vand.u32 %v3683, 4294901760
          %v3685 = vsub.f32 %v3683, %v3684
          %v3686 = vand.u32 %v3685, 4294901760
          %3687 = vmatpush.xpose.msra.mxu0 %v3686
          %v3688 = vand.u32 %v1303, 4294901760
          %v3689 = vsub.f32 %v1303, %v3688
          %v3690 = vand.u32 %v3689, 4294901760
          %v3691 = vsub.f32 %v3689, %v3690
          %v3692 = vand.u32 %v3691, 4294901760
          %3693 = vmatpush.xpose.msra.mxu0 %v3692
          %v3694 = vand.u32 %v1300, 4294901760
          %v3695 = vsub.f32 %v1300, %v3694
          %v3696 = vand.u32 %v3695, 4294901760
          %v3697 = vsub.f32 %v3695, %v3696
          %v3698 = vand.u32 %v3697, 4294901760
          %3699 = vmatpush.xpose.msra.mxu0 %v3698
          %v3700 = vand.u32 %v1297, 4294901760
          %v3701 = vsub.f32 %v1297, %v3700
          %v3702 = vand.u32 %v3701, 4294901760
          %v3703 = vsub.f32 %v3701, %v3702
          %v3704 = vand.u32 %v3703, 4294901760
          %3705 = vmatpush.xpose.msra.mxu0 %v3704
          %v3706 = vand.u32 %v1294, 4294901760
          %v3707 = vsub.f32 %v1294, %v3706
          %v3708 = vand.u32 %v3707, 4294901760
          %v3709 = vsub.f32 %v3707, %v3708
          %v3710 = vand.u32 %v3709, 4294901760
          %3711 = vmatpush.xpose.msra.mxu0 %v3710
          %v3712 = vand.u32 %v1291, 4294901760
          %v3713 = vsub.f32 %v1291, %v3712
          %v3714 = vand.u32 %v3713, 4294901760
          %v3715 = vsub.f32 %v3713, %v3714
          %v3716 = vand.u32 %v3715, 4294901760
          %3717 = vmatpush.xpose.msra.mxu0 %v3716
          %v3718 = vand.u32 %v1288, 4294901760
          %v3719 = vsub.f32 %v1288, %v3718
          %v3720 = vand.u32 %v3719, 4294901760
          %v3721 = vsub.f32 %v3719, %v3720
          %v3722 = vand.u32 %v3721, 4294901760
          %3723 = vmatpush.xpose.msra.mxu0 %v3722
          %v3724 = vand.u32 %v1285, 4294901760
          %v3725 = vsub.f32 %v1285, %v3724
          %v3726 = vand.u32 %v3725, 4294901760
          %v3727 = vsub.f32 %v3725, %v3726
          %v3728 = vand.u32 %v3727, 4294901760
          %3729 = vmatpush.xpose.msra.mxu0 %v3728
          %v3730 = vand.u32 %v1282, 4294901760
          %v3731 = vsub.f32 %v1282, %v3730
          %v3732 = vand.u32 %v3731, 4294901760
          %v3733 = vsub.f32 %v3731, %v3732
          %v3734 = vand.u32 %v3733, 4294901760
          %3735 = vmatpush.xpose.msra.mxu0 %v3734
          %v3736 = vand.u32 %v1279, 4294901760
          %v3737 = vsub.f32 %v1279, %v3736
          %v3738 = vand.u32 %v3737, 4294901760
          %v3739 = vsub.f32 %v3737, %v3738
          %v3740 = vand.u32 %v3739, 4294901760
          %3741 = vmatpush.xpose.msra.mxu0 %v3740
          %v3742 = vand.u32 %v1276, 4294901760
          %v3743 = vsub.f32 %v1276, %v3742
          %v3744 = vand.u32 %v3743, 4294901760
          %v3745 = vsub.f32 %v3743, %v3744
          %v3746 = vand.u32 %v3745, 4294901760
          %3747 = vmatpush.xpose.msra.mxu0 %v3746
          %v3748 = vand.u32 %v982, 4294901760
          %3749 = vmatmul.f32.gmra.mxu0 %v3748
          %v3750 = vpop.f32.mrf.mxu0
          %v3751 = vadd.f32 %v3642, %v3750
          %v3752 = vand.u32 %v985, 4294901760
          %3753 = vmatmul.f32.gmra.mxu0 %v3752
          %v3754 = vpop.f32.mrf.mxu0
          %v3755 = vadd.f32 %v3650, %v3754
          %3756 = vdwg.mxu0
          %v3757 = vand.u32 %v1321, 4294901760
          %v3758 = vsub.f32 %v1321, %v3757
          %3759 = vmatpush.xpose.msra.mxu0 %v3758
          %v3760 = vand.u32 %v1318, 4294901760
          %v3761 = vsub.f32 %v1318, %v3760
          %3762 = vmatpush.xpose.msra.mxu0 %v3761
          %v3763 = vand.u32 %v1315, 4294901760
          %v3764 = vsub.f32 %v1315, %v3763
          %3765 = vmatpush.xpose.msra.mxu0 %v3764
          %v3766 = vand.u32 %v1312, 4294901760
          %v3767 = vsub.f32 %v1312, %v3766
          %3768 = vmatpush.xpose.msra.mxu0 %v3767
          %v3769 = vand.u32 %v1309, 4294901760
          %v3770 = vsub.f32 %v1309, %v3769
          %3771 = vmatpush.xpose.msra.mxu0 %v3770
          %v3772 = vand.u32 %v1306, 4294901760
          %v3773 = vsub.f32 %v1306, %v3772
          %3774 = vmatpush.xpose.msra.mxu0 %v3773
          %v3775 = vand.u32 %v1303, 4294901760
          %v3776 = vsub.f32 %v1303, %v3775
          %3777 = vmatpush.xpose.msra.mxu0 %v3776
          %v3778 = vand.u32 %v1300, 4294901760
          %v3779 = vsub.f32 %v1300, %v3778
          %3780 = vmatpush.xpose.msra.mxu0 %v3779
          %v3781 = vand.u32 %v1297, 4294901760
          %v3782 = vsub.f32 %v1297, %v3781
          %3783 = vmatpush.xpose.msra.mxu0 %v3782
          %v3784 = vand.u32 %v1294, 4294901760
          %v3785 = vsub.f32 %v1294, %v3784
          %3786 = vmatpush.xpose.msra.mxu0 %v3785
          %v3787 = vand.u32 %v1291, 4294901760
          %v3788 = vsub.f32 %v1291, %v3787
          %3789 = vmatpush.xpose.msra.mxu0 %v3788
          %v3790 = vand.u32 %v1288, 4294901760
          %v3791 = vsub.f32 %v1288, %v3790
          %3792 = vmatpush.xpose.msra.mxu0 %v3791
          %v3793 = vand.u32 %v1285, 4294901760
          %v3794 = vsub.f32 %v1285, %v3793
          %3795 = vmatpush.xpose.msra.mxu0 %v3794
          %v3796 = vand.u32 %v1282, 4294901760
          %v3797 = vsub.f32 %v1282, %v3796
          %3798 = vmatpush.xpose.msra.mxu0 %v3797
          %v3799 = vand.u32 %v1279, 4294901760
          %v3800 = vsub.f32 %v1279, %v3799
          %3801 = vmatpush.xpose.msra.mxu0 %v3800
          %v3802 = vand.u32 %v1276, 4294901760
          %v3803 = vsub.f32 %v1276, %v3802
          %3804 = vmatpush.xpose.msra.mxu0 %v3803
          %v3805 = vand.u32 %v982, 4294901760
          %v3806 = vsub.f32 %v982, %v3805
          %3807 = vmatmul.f32.gmra.mxu0 %v3806
          %v3808 = vpop.f32.mrf.mxu0
          %v3809 = vadd.f32 %v3751, %v3808
          %v3810 = vand.u32 %v985, 4294901760
          %v3811 = vsub.f32 %v985, %v3810
          %3812 = vmatmul.f32.gmra.mxu0 %v3811
          %v3813 = vpop.f32.mrf.mxu0
          %v3814 = vadd.f32 %v3755, %v3813
          %3815 = vdwg.mxu0
          %v3816 = vand.u32 %v1321, 4294901760
          %3817 = vmatpush.xpose.msra.mxu0 %v3816
          %v3818 = vand.u32 %v1318, 4294901760
          %3819 = vmatpush.xpose.msra.mxu0 %v3818
          %v3820 = vand.u32 %v1315, 4294901760
          %3821 = vmatpush.xpose.msra.mxu0 %v3820
          %v3822 = vand.u32 %v1312, 4294901760
          %3823 = vmatpush.xpose.msra.mxu0 %v3822
          %v3824 = vand.u32 %v1309, 4294901760
          %3825 = vmatpush.xpose.msra.mxu0 %v3824
          %v3826 = vand.u32 %v1306, 4294901760
          %3827 = vmatpush.xpose.msra.mxu0 %v3826
          %v3828 = vand.u32 %v1303, 4294901760
          %3829 = vmatpush.xpose.msra.mxu0 %v3828
          %v3830 = vand.u32 %v1300, 4294901760
          %3831 = vmatpush.xpose.msra.mxu0 %v3830
          %v3832 = vand.u32 %v1297, 4294901760
          %3833 = vmatpush.xpose.msra.mxu0 %v3832
          %v3834 = vand.u32 %v1294, 4294901760
          %3835 = vmatpush.xpose.msra.mxu0 %v3834
          %v3836 = vand.u32 %v1291, 4294901760
          %3837 = vmatpush.xpose.msra.mxu0 %v3836
          %v3838 = vand.u32 %v1288, 4294901760
          %3839 = vmatpush.xpose.msra.mxu0 %v3838
          %v3840 = vand.u32 %v1285, 4294901760
          %3841 = vmatpush.xpose.msra.mxu0 %v3840
          %v3842 = vand.u32 %v1282, 4294901760
          %3843 = vmatpush.xpose.msra.mxu0 %v3842
          %v3844 = vand.u32 %v1279, 4294901760
          %3845 = vmatpush.xpose.msra.mxu0 %v3844
          %v3846 = vand.u32 %v1276, 4294901760
          %3847 = vmatpush.xpose.msra.mxu0 %v3846
          %v3848 = vand.u32 %v982, 4294901760
          %v3849 = vsub.f32 %v982, %v3848
          %v3850 = vand.u32 %v3849, 4294901760
          %3851 = vmatmul.f32.gmra.mxu0 %v3850
          %v3852 = vpop.f32.mrf.mxu0
          %v3853 = vadd.f32 %v3809, %v3852
          %v3854 = vand.u32 %v985, 4294901760
          %v3855 = vsub.f32 %v985, %v3854
          %v3856 = vand.u32 %v3855, 4294901760
          %3857 = vmatmul.f32.gmra.mxu0 %v3856
          %v3858 = vpop.f32.mrf.mxu0
          %v3859 = vadd.f32 %v3814, %v3858
          %3860 = vdwg.mxu0
          %v3861 = vand.u32 %v1321, 4294901760
          %v3862 = vsub.f32 %v1321, %v3861
          %v3863 = vand.u32 %v3862, 4294901760
          %3864 = vmatpush.xpose.msra.mxu0 %v3863
          %v3865 = vand.u32 %v1318, 4294901760
          %v3866 = vsub.f32 %v1318, %v3865
          %v3867 = vand.u32 %v3866, 4294901760
          %3868 = vmatpush.xpose.msra.mxu0 %v3867
          %v3869 = vand.u32 %v1315, 4294901760
          %v3870 = vsub.f32 %v1315, %v3869
          %v3871 = vand.u32 %v3870, 4294901760
          %3872 = vmatpush.xpose.msra.mxu0 %v3871
          %v3873 = vand.u32 %v1312, 4294901760
          %v3874 = vsub.f32 %v1312, %v3873
          %v3875 = vand.u32 %v3874, 4294901760
          %3876 = vmatpush.xpose.msra.mxu0 %v3875
          %v3877 = vand.u32 %v1309, 4294901760
          %v3878 = vsub.f32 %v1309, %v3877
          %v3879 = vand.u32 %v3878, 4294901760
          %3880 = vmatpush.xpose.msra.mxu0 %v3879
          %v3881 = vand.u32 %v1306, 4294901760
          %v3882 = vsub.f32 %v1306, %v3881
          %v3883 = vand.u32 %v3882, 4294901760
          %3884 = vmatpush.xpose.msra.mxu0 %v3883
          %v3885 = vand.u32 %v1303, 4294901760
          %v3886 = vsub.f32 %v1303, %v3885
          %v3887 = vand.u32 %v3886, 4294901760
          %3888 = vmatpush.xpose.msra.mxu0 %v3887
          %v3889 = vand.u32 %v1300, 4294901760
          %v3890 = vsub.f32 %v1300, %v3889
          %v3891 = vand.u32 %v3890, 4294901760
          %3892 = vmatpush.xpose.msra.mxu0 %v3891
          %v3893 = vand.u32 %v1297, 4294901760
          %v3894 = vsub.f32 %v1297, %v3893
          %v3895 = vand.u32 %v3894, 4294901760
          %3896 = vmatpush.xpose.msra.mxu0 %v3895
          %v3897 = vand.u32 %v1294, 4294901760
          %v3898 = vsub.f32 %v1294, %v3897
          %v3899 = vand.u32 %v3898, 4294901760
          %3900 = vmatpush.xpose.msra.mxu0 %v3899
          %v3901 = vand.u32 %v1291, 4294901760
          %v3902 = vsub.f32 %v1291, %v3901
          %v3903 = vand.u32 %v3902, 4294901760
          %3904 = vmatpush.xpose.msra.mxu0 %v3903
          %v3905 = vand.u32 %v1288, 4294901760
          %v3906 = vsub.f32 %v1288, %v3905
          %v3907 = vand.u32 %v3906, 4294901760
          %3908 = vmatpush.xpose.msra.mxu0 %v3907
          %v3909 = vand.u32 %v1285, 4294901760
          %v3910 = vsub.f32 %v1285, %v3909
          %v3911 = vand.u32 %v3910, 4294901760
          %3912 = vmatpush.xpose.msra.mxu0 %v3911
          %v3913 = vand.u32 %v1282, 4294901760
          %v3914 = vsub.f32 %v1282, %v3913
          %v3915 = vand.u32 %v3914, 4294901760
          %3916 = vmatpush.xpose.msra.mxu0 %v3915
          %v3917 = vand.u32 %v1279, 4294901760
          %v3918 = vsub.f32 %v1279, %v3917
          %v3919 = vand.u32 %v3918, 4294901760
          %3920 = vmatpush.xpose.msra.mxu0 %v3919
          %v3921 = vand.u32 %v1276, 4294901760
          %v3922 = vsub.f32 %v1276, %v3921
          %v3923 = vand.u32 %v3922, 4294901760
          %3924 = vmatpush.xpose.msra.mxu0 %v3923
          %v3925 = vand.u32 %v982, 4294901760
          %3926 = vmatmul.f32.gmra.mxu0 %v3925
          %v3927 = vpop.f32.mrf.mxu0
          %v3928 = vadd.f32 %v3853, %v3927
          %v3929 = vand.u32 %v985, 4294901760
          %3930 = vmatmul.f32.gmra.mxu0 %v3929
          %v3931 = vpop.f32.mrf.mxu0
          %v3932 = vadd.f32 %v3859, %v3931
          %3933 = vdwg.mxu0
          %v3934 = vand.u32 %v1321, 4294901760
          %3935 = vmatpush.xpose.msra.mxu0 %v3934
          %v3936 = vand.u32 %v1318, 4294901760
          %3937 = vmatpush.xpose.msra.mxu0 %v3936
          %v3938 = vand.u32 %v1315, 4294901760
          %3939 = vmatpush.xpose.msra.mxu0 %v3938
          %v3940 = vand.u32 %v1312, 4294901760
          %3941 = vmatpush.xpose.msra.mxu0 %v3940
          %v3942 = vand.u32 %v1309, 4294901760
          %3943 = vmatpush.xpose.msra.mxu0 %v3942
          %v3944 = vand.u32 %v1306, 4294901760
          %3945 = vmatpush.xpose.msra.mxu0 %v3944
          %v3946 = vand.u32 %v1303, 4294901760
          %3947 = vmatpush.xpose.msra.mxu0 %v3946
          %v3948 = vand.u32 %v1300, 4294901760
          %3949 = vmatpush.xpose.msra.mxu0 %v3948
          %v3950 = vand.u32 %v1297, 4294901760
          %3951 = vmatpush.xpose.msra.mxu0 %v3950
          %v3952 = vand.u32 %v1294, 4294901760
          %3953 = vmatpush.xpose.msra.mxu0 %v3952
          %v3954 = vand.u32 %v1291, 4294901760
          %3955 = vmatpush.xpose.msra.mxu0 %v3954
          %v3956 = vand.u32 %v1288, 4294901760
          %3957 = vmatpush.xpose.msra.mxu0 %v3956
          %v3958 = vand.u32 %v1285, 4294901760
          %3959 = vmatpush.xpose.msra.mxu0 %v3958
          %v3960 = vand.u32 %v1282, 4294901760
          %3961 = vmatpush.xpose.msra.mxu0 %v3960
          %v3962 = vand.u32 %v1279, 4294901760
          %3963 = vmatpush.xpose.msra.mxu0 %v3962
          %v3964 = vand.u32 %v1276, 4294901760
          %3965 = vmatpush.xpose.msra.mxu0 %v3964
          %v3966 = vand.u32 %v982, 4294901760
          %3967 = vmatmul.f32.gmra.mxu0 %v3966
          %v3968 = vpop.f32.mrf.mxu0
          %v3969 = vadd.f32 %v3928, %v3968
          %v3970 = vand.u32 %v985, 4294901760
          %3971 = vmatmul.f32.gmra.mxu0 %v3970
          %v3972 = vpop.f32.mrf.mxu0
          %v3973 = vadd.f32 %v3932, %v3972
          %3974 = vdwg.mxu0
          %v3975 = vand.u32 %v1369, 4294901760
          %3976 = vmatpush.xpose.msra.mxu0 %v3975
          %v3977 = vand.u32 %v1366, 4294901760
          %3978 = vmatpush.xpose.msra.mxu0 %v3977
          %v3979 = vand.u32 %v1363, 4294901760
          %3980 = vmatpush.xpose.msra.mxu0 %v3979
          %v3981 = vand.u32 %v1360, 4294901760
          %3982 = vmatpush.xpose.msra.mxu0 %v3981
          %v3983 = vand.u32 %v1357, 4294901760
          %3984 = vmatpush.xpose.msra.mxu0 %v3983
          %v3985 = vand.u32 %v1354, 4294901760
          %3986 = vmatpush.xpose.msra.mxu0 %v3985
          %v3987 = vand.u32 %v1351, 4294901760
          %3988 = vmatpush.xpose.msra.mxu0 %v3987
          %v3989 = vand.u32 %v1348, 4294901760
          %3990 = vmatpush.xpose.msra.mxu0 %v3989
          %v3991 = vand.u32 %v1345, 4294901760
          %3992 = vmatpush.xpose.msra.mxu0 %v3991
          %v3993 = vand.u32 %v1342, 4294901760
          %3994 = vmatpush.xpose.msra.mxu0 %v3993
          %v3995 = vand.u32 %v1339, 4294901760
          %3996 = vmatpush.xpose.msra.mxu0 %v3995
          %v3997 = vand.u32 %v1336, 4294901760
          %3998 = vmatpush.xpose.msra.mxu0 %v3997
          %v3999 = vand.u32 %v1333, 4294901760
          %4000 = vmatpush.xpose.msra.mxu0 %v3999
          %v4001 = vand.u32 %v1330, 4294901760
          %4002 = vmatpush.xpose.msra.mxu0 %v4001
          %v4003 = vand.u32 %v1327, 4294901760
          %4004 = vmatpush.xpose.msra.mxu0 %v4003
          %v4005 = vand.u32 %v1324, 4294901760
          %4006 = vmatpush.xpose.msra.mxu0 %v4005
          %v4007 = vand.u32 %v982, 4294901760
          %v4008 = vsub.f32 %v982, %v4007
          %v4009 = vand.u32 %v4008, 4294901760
          %v4010 = vsub.f32 %v4008, %v4009
          %v4011 = vand.u32 %v4010, 4294901760
          %4012 = vmatmul.f32.gmra.mxu0 %v4011
          %v4013 = vpop.f32.mrf.mxu0
          %v4014 = vadd.f32 0.0, %v4013
          %v4015 = vand.u32 %v985, 4294901760
          %v4016 = vsub.f32 %v985, %v4015
          %v4017 = vand.u32 %v4016, 4294901760
          %v4018 = vsub.f32 %v4016, %v4017
          %v4019 = vand.u32 %v4018, 4294901760
          %4020 = vmatmul.f32.gmra.mxu0 %v4019
          %v4021 = vpop.f32.mrf.mxu0
          %v4022 = vadd.f32 0.0, %v4021
          %4023 = vdwg.mxu0
          %v4024 = vand.u32 %v1369, 4294901760
          %v4025 = vsub.f32 %v1369, %v4024
          %v4026 = vand.u32 %v4025, 4294901760
          %v4027 = vsub.f32 %v4025, %v4026
          %v4028 = vand.u32 %v4027, 4294901760
          %4029 = vmatpush.xpose.msra.mxu0 %v4028
          %v4030 = vand.u32 %v1366, 4294901760
          %v4031 = vsub.f32 %v1366, %v4030
          %v4032 = vand.u32 %v4031, 4294901760
          %v4033 = vsub.f32 %v4031, %v4032
          %v4034 = vand.u32 %v4033, 4294901760
          %4035 = vmatpush.xpose.msra.mxu0 %v4034
          %v4036 = vand.u32 %v1363, 4294901760
          %v4037 = vsub.f32 %v1363, %v4036
          %v4038 = vand.u32 %v4037, 4294901760
          %v4039 = vsub.f32 %v4037, %v4038
          %v4040 = vand.u32 %v4039, 4294901760
          %4041 = vmatpush.xpose.msra.mxu0 %v4040
          %v4042 = vand.u32 %v1360, 4294901760
          %v4043 = vsub.f32 %v1360, %v4042
          %v4044 = vand.u32 %v4043, 4294901760
          %v4045 = vsub.f32 %v4043, %v4044
          %v4046 = vand.u32 %v4045, 4294901760
          %4047 = vmatpush.xpose.msra.mxu0 %v4046
          %v4048 = vand.u32 %v1357, 4294901760
          %v4049 = vsub.f32 %v1357, %v4048
          %v4050 = vand.u32 %v4049, 4294901760
          %v4051 = vsub.f32 %v4049, %v4050
          %v4052 = vand.u32 %v4051, 4294901760
          %4053 = vmatpush.xpose.msra.mxu0 %v4052
          %v4054 = vand.u32 %v1354, 4294901760
          %v4055 = vsub.f32 %v1354, %v4054
          %v4056 = vand.u32 %v4055, 4294901760
          %v4057 = vsub.f32 %v4055, %v4056
          %v4058 = vand.u32 %v4057, 4294901760
          %4059 = vmatpush.xpose.msra.mxu0 %v4058
          %v4060 = vand.u32 %v1351, 4294901760
          %v4061 = vsub.f32 %v1351, %v4060
          %v4062 = vand.u32 %v4061, 4294901760
          %v4063 = vsub.f32 %v4061, %v4062
          %v4064 = vand.u32 %v4063, 4294901760
          %4065 = vmatpush.xpose.msra.mxu0 %v4064
          %v4066 = vand.u32 %v1348, 4294901760
          %v4067 = vsub.f32 %v1348, %v4066
          %v4068 = vand.u32 %v4067, 4294901760
          %v4069 = vsub.f32 %v4067, %v4068
          %v4070 = vand.u32 %v4069, 4294901760
          %4071 = vmatpush.xpose.msra.mxu0 %v4070
          %v4072 = vand.u32 %v1345, 4294901760
          %v4073 = vsub.f32 %v1345, %v4072
          %v4074 = vand.u32 %v4073, 4294901760
          %v4075 = vsub.f32 %v4073, %v4074
          %v4076 = vand.u32 %v4075, 4294901760
          %4077 = vmatpush.xpose.msra.mxu0 %v4076
          %v4078 = vand.u32 %v1342, 4294901760
          %v4079 = vsub.f32 %v1342, %v4078
          %v4080 = vand.u32 %v4079, 4294901760
          %v4081 = vsub.f32 %v4079, %v4080
          %v4082 = vand.u32 %v4081, 4294901760
          %4083 = vmatpush.xpose.msra.mxu0 %v4082
          %v4084 = vand.u32 %v1339, 4294901760
          %v4085 = vsub.f32 %v1339, %v4084
          %v4086 = vand.u32 %v4085, 4294901760
          %v4087 = vsub.f32 %v4085, %v4086
          %v4088 = vand.u32 %v4087, 4294901760
          %4089 = vmatpush.xpose.msra.mxu0 %v4088
          %v4090 = vand.u32 %v1336, 4294901760
          %v4091 = vsub.f32 %v1336, %v4090
          %v4092 = vand.u32 %v4091, 4294901760
          %v4093 = vsub.f32 %v4091, %v4092
          %v4094 = vand.u32 %v4093, 4294901760
          %4095 = vmatpush.xpose.msra.mxu0 %v4094
          %v4096 = vand.u32 %v1333, 4294901760
          %v4097 = vsub.f32 %v1333, %v4096
          %v4098 = vand.u32 %v4097, 4294901760
          %v4099 = vsub.f32 %v4097, %v4098
          %v4100 = vand.u32 %v4099, 4294901760
          %4101 = vmatpush.xpose.msra.mxu0 %v4100
          %v4102 = vand.u32 %v1330, 4294901760
          %v4103 = vsub.f32 %v1330, %v4102
          %v4104 = vand.u32 %v4103, 4294901760
          %v4105 = vsub.f32 %v4103, %v4104
          %v4106 = vand.u32 %v4105, 4294901760
          %4107 = vmatpush.xpose.msra.mxu0 %v4106
          %v4108 = vand.u32 %v1327, 4294901760
          %v4109 = vsub.f32 %v1327, %v4108
          %v4110 = vand.u32 %v4109, 4294901760
          %v4111 = vsub.f32 %v4109, %v4110
          %v4112 = vand.u32 %v4111, 4294901760
          %4113 = vmatpush.xpose.msra.mxu0 %v4112
          %v4114 = vand.u32 %v1324, 4294901760
          %v4115 = vsub.f32 %v1324, %v4114
          %v4116 = vand.u32 %v4115, 4294901760
          %v4117 = vsub.f32 %v4115, %v4116
          %v4118 = vand.u32 %v4117, 4294901760
          %4119 = vmatpush.xpose.msra.mxu0 %v4118
          %v4120 = vand.u32 %v982, 4294901760
          %4121 = vmatmul.f32.gmra.mxu0 %v4120
          %v4122 = vpop.f32.mrf.mxu0
          %v4123 = vadd.f32 %v4014, %v4122
          %v4124 = vand.u32 %v985, 4294901760
          %4125 = vmatmul.f32.gmra.mxu0 %v4124
          %v4126 = vpop.f32.mrf.mxu0
          %v4127 = vadd.f32 %v4022, %v4126
          %4128 = vdwg.mxu0
          %v4129 = vand.u32 %v1369, 4294901760
          %v4130 = vsub.f32 %v1369, %v4129
          %4131 = vmatpush.xpose.msra.mxu0 %v4130
          %v4132 = vand.u32 %v1366, 4294901760
          %v4133 = vsub.f32 %v1366, %v4132
          %4134 = vmatpush.xpose.msra.mxu0 %v4133
          %v4135 = vand.u32 %v1363, 4294901760
          %v4136 = vsub.f32 %v1363, %v4135
          %4137 = vmatpush.xpose.msra.mxu0 %v4136
          %v4138 = vand.u32 %v1360, 4294901760
          %v4139 = vsub.f32 %v1360, %v4138
          %4140 = vmatpush.xpose.msra.mxu0 %v4139
          %v4141 = vand.u32 %v1357, 4294901760
          %v4142 = vsub.f32 %v1357, %v4141
          %4143 = vmatpush.xpose.msra.mxu0 %v4142
          %v4144 = vand.u32 %v1354, 4294901760
          %v4145 = vsub.f32 %v1354, %v4144
          %4146 = vmatpush.xpose.msra.mxu0 %v4145
          %v4147 = vand.u32 %v1351, 4294901760
          %v4148 = vsub.f32 %v1351, %v4147
          %4149 = vmatpush.xpose.msra.mxu0 %v4148
          %v4150 = vand.u32 %v1348, 4294901760
          %v4151 = vsub.f32 %v1348, %v4150
          %4152 = vmatpush.xpose.msra.mxu0 %v4151
          %v4153 = vand.u32 %v1345, 4294901760
          %v4154 = vsub.f32 %v1345, %v4153
          %4155 = vmatpush.xpose.msra.mxu0 %v4154
          %v4156 = vand.u32 %v1342, 4294901760
          %v4157 = vsub.f32 %v1342, %v4156
          %4158 = vmatpush.xpose.msra.mxu0 %v4157
          %v4159 = vand.u32 %v1339, 4294901760
          %v4160 = vsub.f32 %v1339, %v4159
          %4161 = vmatpush.xpose.msra.mxu0 %v4160
          %v4162 = vand.u32 %v1336, 4294901760
          %v4163 = vsub.f32 %v1336, %v4162
          %4164 = vmatpush.xpose.msra.mxu0 %v4163
          %v4165 = vand.u32 %v1333, 4294901760
          %v4166 = vsub.f32 %v1333, %v4165
          %4167 = vmatpush.xpose.msra.mxu0 %v4166
          %v4168 = vand.u32 %v1330, 4294901760
          %v4169 = vsub.f32 %v1330, %v4168
          %4170 = vmatpush.xpose.msra.mxu0 %v4169
          %v4171 = vand.u32 %v1327, 4294901760
          %v4172 = vsub.f32 %v1327, %v4171
          %4173 = vmatpush.xpose.msra.mxu0 %v4172
          %v4174 = vand.u32 %v1324, 4294901760
          %v4175 = vsub.f32 %v1324, %v4174
          %4176 = vmatpush.xpose.msra.mxu0 %v4175
          %v4177 = vand.u32 %v982, 4294901760
          %v4178 = vsub.f32 %v982, %v4177
          %4179 = vmatmul.f32.gmra.mxu0 %v4178
          %v4180 = vpop.f32.mrf.mxu0
          %v4181 = vadd.f32 %v4123, %v4180
          %v4182 = vand.u32 %v985, 4294901760
          %v4183 = vsub.f32 %v985, %v4182
          %4184 = vmatmul.f32.gmra.mxu0 %v4183
          %v4185 = vpop.f32.mrf.mxu0
          %v4186 = vadd.f32 %v4127, %v4185
          %4187 = vdwg.mxu0
          %v4188 = vand.u32 %v1369, 4294901760
          %4189 = vmatpush.xpose.msra.mxu0 %v4188
          %v4190 = vand.u32 %v1366, 4294901760
          %4191 = vmatpush.xpose.msra.mxu0 %v4190
          %v4192 = vand.u32 %v1363, 4294901760
          %4193 = vmatpush.xpose.msra.mxu0 %v4192
          %v4194 = vand.u32 %v1360, 4294901760
          %4195 = vmatpush.xpose.msra.mxu0 %v4194
          %v4196 = vand.u32 %v1357, 4294901760
          %4197 = vmatpush.xpose.msra.mxu0 %v4196
          %v4198 = vand.u32 %v1354, 4294901760
          %4199 = vmatpush.xpose.msra.mxu0 %v4198
          %v4200 = vand.u32 %v1351, 4294901760
          %4201 = vmatpush.xpose.msra.mxu0 %v4200
          %v4202 = vand.u32 %v1348, 4294901760
          %4203 = vmatpush.xpose.msra.mxu0 %v4202
          %v4204 = vand.u32 %v1345, 4294901760
          %4205 = vmatpush.xpose.msra.mxu0 %v4204
          %v4206 = vand.u32 %v1342, 4294901760
          %4207 = vmatpush.xpose.msra.mxu0 %v4206
          %v4208 = vand.u32 %v1339, 4294901760
          %4209 = vmatpush.xpose.msra.mxu0 %v4208
          %v4210 = vand.u32 %v1336, 4294901760
          %4211 = vmatpush.xpose.msra.mxu0 %v4210
          %v4212 = vand.u32 %v1333, 4294901760
          %4213 = vmatpush.xpose.msra.mxu0 %v4212
          %v4214 = vand.u32 %v1330, 4294901760
          %4215 = vmatpush.xpose.msra.mxu0 %v4214
          %v4216 = vand.u32 %v1327, 4294901760
          %4217 = vmatpush.xpose.msra.mxu0 %v4216
          %v4218 = vand.u32 %v1324, 4294901760
          %4219 = vmatpush.xpose.msra.mxu0 %v4218
          %v4220 = vand.u32 %v982, 4294901760
          %v4221 = vsub.f32 %v982, %v4220
          %v4222 = vand.u32 %v4221, 4294901760
          %4223 = vmatmul.f32.gmra.mxu0 %v4222
          %v4224 = vpop.f32.mrf.mxu0
          %v4225 = vadd.f32 %v4181, %v4224
          %v4226 = vand.u32 %v985, 4294901760
          %v4227 = vsub.f32 %v985, %v4226
          %v4228 = vand.u32 %v4227, 4294901760
          %4229 = vmatmul.f32.gmra.mxu0 %v4228
          %v4230 = vpop.f32.mrf.mxu0
          %v4231 = vadd.f32 %v4186, %v4230
          %4232 = vdwg.mxu0
          %v4233 = vand.u32 %v1369, 4294901760
          %v4234 = vsub.f32 %v1369, %v4233
          %v4235 = vand.u32 %v4234, 4294901760
          %4236 = vmatpush.xpose.msra.mxu0 %v4235
          %v4237 = vand.u32 %v1366, 4294901760
          %v4238 = vsub.f32 %v1366, %v4237
          %v4239 = vand.u32 %v4238, 4294901760
          %4240 = vmatpush.xpose.msra.mxu0 %v4239
          %v4241 = vand.u32 %v1363, 4294901760
          %v4242 = vsub.f32 %v1363, %v4241
          %v4243 = vand.u32 %v4242, 4294901760
          %4244 = vmatpush.xpose.msra.mxu0 %v4243
          %v4245 = vand.u32 %v1360, 4294901760
          %v4246 = vsub.f32 %v1360, %v4245
          %v4247 = vand.u32 %v4246, 4294901760
          %4248 = vmatpush.xpose.msra.mxu0 %v4247
          %v4249 = vand.u32 %v1357, 4294901760
          %v4250 = vsub.f32 %v1357, %v4249
          %v4251 = vand.u32 %v4250, 4294901760
          %4252 = vmatpush.xpose.msra.mxu0 %v4251
          %v4253 = vand.u32 %v1354, 4294901760
          %v4254 = vsub.f32 %v1354, %v4253
          %v4255 = vand.u32 %v4254, 4294901760
          %4256 = vmatpush.xpose.msra.mxu0 %v4255
          %v4257 = vand.u32 %v1351, 4294901760
          %v4258 = vsub.f32 %v1351, %v4257
          %v4259 = vand.u32 %v4258, 4294901760
          %4260 = vmatpush.xpose.msra.mxu0 %v4259
          %v4261 = vand.u32 %v1348, 4294901760
          %v4262 = vsub.f32 %v1348, %v4261
          %v4263 = vand.u32 %v4262, 4294901760
          %4264 = vmatpush.xpose.msra.mxu0 %v4263
          %v4265 = vand.u32 %v1345, 4294901760
          %v4266 = vsub.f32 %v1345, %v4265
          %v4267 = vand.u32 %v4266, 4294901760
          %4268 = vmatpush.xpose.msra.mxu0 %v4267
          %v4269 = vand.u32 %v1342, 4294901760
          %v4270 = vsub.f32 %v1342, %v4269
          %v4271 = vand.u32 %v4270, 4294901760
          %4272 = vmatpush.xpose.msra.mxu0 %v4271
          %v4273 = vand.u32 %v1339, 4294901760
          %v4274 = vsub.f32 %v1339, %v4273
          %v4275 = vand.u32 %v4274, 4294901760
          %4276 = vmatpush.xpose.msra.mxu0 %v4275
          %v4277 = vand.u32 %v1336, 4294901760
          %v4278 = vsub.f32 %v1336, %v4277
          %v4279 = vand.u32 %v4278, 4294901760
          %4280 = vmatpush.xpose.msra.mxu0 %v4279
          %v4281 = vand.u32 %v1333, 4294901760
          %v4282 = vsub.f32 %v1333, %v4281
          %v4283 = vand.u32 %v4282, 4294901760
          %4284 = vmatpush.xpose.msra.mxu0 %v4283
          %v4285 = vand.u32 %v1330, 4294901760
          %v4286 = vsub.f32 %v1330, %v4285
          %v4287 = vand.u32 %v4286, 4294901760
          %4288 = vmatpush.xpose.msra.mxu0 %v4287
          %v4289 = vand.u32 %v1327, 4294901760
          %v4290 = vsub.f32 %v1327, %v4289
          %v4291 = vand.u32 %v4290, 4294901760
          %4292 = vmatpush.xpose.msra.mxu0 %v4291
          %v4293 = vand.u32 %v1324, 4294901760
          %v4294 = vsub.f32 %v1324, %v4293
          %v4295 = vand.u32 %v4294, 4294901760
          %4296 = vmatpush.xpose.msra.mxu0 %v4295
          %v4297 = vand.u32 %v982, 4294901760
          %4298 = vmatmul.f32.gmra.mxu0 %v4297
          %v4299 = vpop.f32.mrf.mxu0
          %v4300 = vadd.f32 %v4225, %v4299
          %v4301 = vand.u32 %v985, 4294901760
          %4302 = vmatmul.f32.gmra.mxu0 %v4301
          %v4303 = vpop.f32.mrf.mxu0
          %v4304 = vadd.f32 %v4231, %v4303
          %4305 = vdwg.mxu0
          %v4306 = vand.u32 %v1369, 4294901760
          %4307 = vmatpush.xpose.msra.mxu0 %v4306
          %v4308 = vand.u32 %v1366, 4294901760
          %4309 = vmatpush.xpose.msra.mxu0 %v4308
          %v4310 = vand.u32 %v1363, 4294901760
          %4311 = vmatpush.xpose.msra.mxu0 %v4310
          %v4312 = vand.u32 %v1360, 4294901760
          %4313 = vmatpush.xpose.msra.mxu0 %v4312
          %v4314 = vand.u32 %v1357, 4294901760
          %4315 = vmatpush.xpose.msra.mxu0 %v4314
          %v4316 = vand.u32 %v1354, 4294901760
          %4317 = vmatpush.xpose.msra.mxu0 %v4316
          %v4318 = vand.u32 %v1351, 4294901760
          %4319 = vmatpush.xpose.msra.mxu0 %v4318
          %v4320 = vand.u32 %v1348, 4294901760
          %4321 = vmatpush.xpose.msra.mxu0 %v4320
          %v4322 = vand.u32 %v1345, 4294901760
          %4323 = vmatpush.xpose.msra.mxu0 %v4322
          %v4324 = vand.u32 %v1342, 4294901760
          %4325 = vmatpush.xpose.msra.mxu0 %v4324
          %v4326 = vand.u32 %v1339, 4294901760
          %4327 = vmatpush.xpose.msra.mxu0 %v4326
          %v4328 = vand.u32 %v1336, 4294901760
          %4329 = vmatpush.xpose.msra.mxu0 %v4328
          %v4330 = vand.u32 %v1333, 4294901760
          %4331 = vmatpush.xpose.msra.mxu0 %v4330
          %v4332 = vand.u32 %v1330, 4294901760
          %4333 = vmatpush.xpose.msra.mxu0 %v4332
          %v4334 = vand.u32 %v1327, 4294901760
          %4335 = vmatpush.xpose.msra.mxu0 %v4334
          %v4336 = vand.u32 %v1324, 4294901760
          %4337 = vmatpush.xpose.msra.mxu0 %v4336
          %v4338 = vand.u32 %v982, 4294901760
          %4339 = vmatmul.f32.gmra.mxu0 %v4338
          %v4340 = vpop.f32.mrf.mxu0
          %v4341 = vadd.f32 %v4300, %v4340
          %v4342 = vand.u32 %v985, 4294901760
          %4343 = vmatmul.f32.gmra.mxu0 %v4342
          %v4344 = vpop.f32.mrf.mxu0
          %v4345 = vadd.f32 %v4304, %v4344
          %4346 = vdwg.mxu0
          %v4348 = vsel %vm980, %v201, 0
          %v4351 = vsel %vm980, %v852, 0
          %v4354 = vsel %vm980, %v853, 0
          %v4357 = vsel %vm980, %v854, 0
          %v4360 = vsel %vm980, %v855, 0
          %v4363 = vsel %vm980, %v856, 0
          %v4366 = vsel %vm980, %v857, 0
          %v4369 = vsel %vm980, %v858, 0
          %v4372 = vsel %vm980, %v859, 0
          %v4375 = vsel %vm980, %v860, 0
          %v4378 = vsel %vm980, %v861, 0
          %v4381 = vsel %vm980, %v862, 0
          %v4384 = vsel %vm980, %v863, 0
          %v4387 = vsel %vm980, %v864, 0
          %v4390 = vsel %vm980, %v865, 0
          %v4393 = vsel %vm980, %v866, 0
          %v4396 = vsel %vm980, %v867, 0
          %v4399 = vsel %vm980, %v868, 0
          %v4402 = vsel %vm980, %v869, 0
          %v4405 = vsel %vm980, %v870, 0
          %v4408 = vsel %vm980, %v871, 0
          %v4411 = vsel %vm980, %v872, 0
          %v4414 = vsel %vm980, %v873, 0
          %v4417 = vsel %vm980, %v874, 0
          %v4420 = vsel %vm980, %v875, 0
          %v4423 = vsel %vm980, %v876, 0
          %v4426 = vsel %vm980, %v877, 0
          %v4429 = vsel %vm980, %v878, 0
          %v4432 = vsel %vm980, %v879, 0
          %v4435 = vsel %vm980, %v880, 0
          %v4438 = vsel %vm980, %v881, 0
          %v4441 = vsel %vm980, %v882, 0
          %v4444 = vsel %vm980, %v883, 0
          %v4447 = vsel %vm980, %v884, 0
          %v4450 = vsel %vm980, %v885, 0
          %v4453 = vsel %vm980, %v886, 0
          %v4456 = vsel %vm980, %v887, 0
          %v4459 = vsel %vm980, %v888, 0
          %v4462 = vsel %vm980, %v889, 0
          %v4465 = vsel %vm980, %v890, 0
          %v4468 = vsel %vm980, %v891, 0
          %v4471 = vsel %vm980, %v892, 0
          %v4474 = vsel %vm980, %v893, 0
          %v4477 = vsel %vm980, %v894, 0
          %v4480 = vsel %vm980, %v895, 0
          %v4483 = vsel %vm980, %v896, 0
          %v4486 = vsel %vm980, %v897, 0
          %v4489 = vsel %vm980, %v898, 0
          %v4492 = vsel %vm980, %v899, 0
          %v4495 = vsel %vm980, %v900, 0
          %v4498 = vsel %vm980, %v901, 0
          %v4501 = vsel %vm980, %v902, 0
          %v4504 = vsel %vm980, %v903, 0
          %v4507 = vsel %vm980, %v904, 0
          %v4510 = vsel %vm980, %v905, 0
          %v4513 = vsel %vm980, %v906, 0
          %v4516 = vsel %vm980, %v907, 0
          %v4519 = vsel %vm980, %v908, 0
          %v4522 = vsel %vm980, %v909, 0
          %v4525 = vsel %vm980, %v910, 0
          %v4528 = vsel %vm980, %v911, 0
          %v4531 = vsel %vm980, %v912, 0
          %v4534 = vsel %vm980, %v913, 0
          %v4537 = vsel %vm980, %v914, 0
          %v4540 = vsel %vm980, %v915, 0
          %v4543 = vsel %vm980, %v916, 0
          %v4546 = vsel %vm980, %v917, 0
          %v4549 = vsel %vm980, %v918, 0
          %v4552 = vsel %vm980, %v919, 0
          %v4555 = vsel %vm980, %v920, 0
          %v4558 = vsel %vm980, %v921, 0
          %v4561 = vsel %vm980, %v922, 0
          %v4564 = vsel %vm980, %v923, 0
          %v4567 = vsel %vm980, %v924, 0
          %v4570 = vsel %vm980, %v925, 0
          %v4573 = vsel %vm980, %v926, 0
          %v4576 = vsel %vm980, %v927, 0
          %v4579 = vsel %vm980, %v928, 0
          %v4582 = vsel %vm980, %v929, 0
          %v4585 = vsel %vm980, %v930, 0
          %v4588 = vsel %vm980, %v931, 0
          %v4591 = vsel %vm980, %v932, 0
          %v4594 = vsel %vm980, %v933, 0
          %v4597 = vsel %vm980, %v934, 0
          %v4600 = vsel %vm980, %v935, 0
          %v4603 = vsel %vm980, %v936, 0
          %v4606 = vsel %vm980, %v937, 0
          %v4609 = vsel %vm980, %v938, 0
          %v4612 = vsel %vm980, %v939, 0
          %v4615 = vsel %vm980, %v940, 0
          %v4618 = vsel %vm980, %v941, 0
          %v4621 = vsel %vm980, %v942, 0
          %v4624 = vsel %vm980, %v943, 0
          %v4627 = vsel %vm980, %v944, 0
          %v4630 = vsel %vm980, %v945, 0
          %v4633 = vsel %vm980, %v946, 0
          %v4636 = vsel %vm980, %v947, 0
          %v4639 = vsel %vm980, %v948, 0
          %v4642 = vsel %vm980, %v949, 0
          %v4645 = vsel %vm980, %v950, 0
          %v4648 = vsel %vm980, %v951, 0
          %v4651 = vsel %vm980, %v952, 0
          %v4654 = vsel %vm980, %v953, 0
          %v4657 = vsel %vm980, %v954, 0
          %v4660 = vsel %vm980, %v955, 0
          %v4663 = vsel %vm980, %v956, 0
          %v4666 = vsel %vm980, %v957, 0
          %v4669 = vsel %vm980, %v958, 0
          %v4672 = vsel %vm980, %v959, 0
          %v4675 = vsel %vm980, %v960, 0
          %v4678 = vsel %vm980, %v961, 0
          %v4681 = vsel %vm980, %v962, 0
          %v4684 = vsel %vm980, %v963, 0
          %v4687 = vsel %vm980, %v964, 0
          %v4690 = vsel %vm980, %v965, 0
          %v4693 = vsel %vm980, %v966, 0
          %v4696 = vsel %vm980, %v967, 0
          %v4699 = vsel %vm980, %v968, 0
          %v4702 = vsel %vm980, %v969, 0
          %v4705 = vsel %vm980, %v970, 0
          %v4708 = vsel %vm980, %v971, 0
          %v4711 = vsel %vm980, %v972, 0
          %v4714 = vsel %vm980, %v973, 0
          %v4717 = vsel %vm980, %v974, 0
          %v4720 = vsel %vm980, %v975, 0
          %v4723 = vsel %vm980, %v976, 0
          %v4726 = vsel %vm980, %v977, 0
          %v4729 = vsel %vm980, %v978, 0
          %v4732 = vsel %vm980, %v979, 0
          %v4734 = vand.u32 %v4396, 4294901760
          %4735 = vmatpush.xpose.msra.mxu0 %v4734
          %v4736 = vand.u32 %v4393, 4294901760
          %4737 = vmatpush.xpose.msra.mxu0 %v4736
          %v4738 = vand.u32 %v4390, 4294901760
          %4739 = vmatpush.xpose.msra.mxu0 %v4738
          %v4740 = vand.u32 %v4387, 4294901760
          %4741 = vmatpush.xpose.msra.mxu0 %v4740
          %v4742 = vand.u32 %v4384, 4294901760
          %4743 = vmatpush.xpose.msra.mxu0 %v4742
          %v4744 = vand.u32 %v4381, 4294901760
          %4745 = vmatpush.xpose.msra.mxu0 %v4744
          %v4746 = vand.u32 %v4378, 4294901760
          %4747 = vmatpush.xpose.msra.mxu0 %v4746
          %v4748 = vand.u32 %v4375, 4294901760
          %4749 = vmatpush.xpose.msra.mxu0 %v4748
          %v4750 = vand.u32 %v4372, 4294901760
          %4751 = vmatpush.xpose.msra.mxu0 %v4750
          %v4752 = vand.u32 %v4369, 4294901760
          %4753 = vmatpush.xpose.msra.mxu0 %v4752
          %v4754 = vand.u32 %v4366, 4294901760
          %4755 = vmatpush.xpose.msra.mxu0 %v4754
          %v4756 = vand.u32 %v4363, 4294901760
          %4757 = vmatpush.xpose.msra.mxu0 %v4756
          %v4758 = vand.u32 %v4360, 4294901760
          %4759 = vmatpush.xpose.msra.mxu0 %v4758
          %v4760 = vand.u32 %v4357, 4294901760
          %4761 = vmatpush.xpose.msra.mxu0 %v4760
          %v4762 = vand.u32 %v4354, 4294901760
          %4763 = vmatpush.xpose.msra.mxu0 %v4762
          %v4764 = vand.u32 %v4351, 4294901760
          %4765 = vmatpush.xpose.msra.mxu0 %v4764
          %v4766 = vand.u32 %v4348, 4294901760
          %v4767 = vsub.f32 %v4348, %v4766
          %v4768 = vand.u32 %v4767, 4294901760
          %v4769 = vsub.f32 %v4767, %v4768
          %v4770 = vand.u32 %v4769, 4294901760
          %4771 = vmatmul.f32.gmra.mxu0 %v4770
          %v4772 = vpop.f32.mrf.mxu0
          %v4773 = vadd.f32 0.0, %v4772
          %4774 = vdwg.mxu0
          %v4775 = vand.u32 %v4396, 4294901760
          %v4776 = vsub.f32 %v4396, %v4775
          %v4777 = vand.u32 %v4776, 4294901760
          %v4778 = vsub.f32 %v4776, %v4777
          %v4779 = vand.u32 %v4778, 4294901760
          %4780 = vmatpush.xpose.msra.mxu0 %v4779
          %v4781 = vand.u32 %v4393, 4294901760
          %v4782 = vsub.f32 %v4393, %v4781
          %v4783 = vand.u32 %v4782, 4294901760
          %v4784 = vsub.f32 %v4782, %v4783
          %v4785 = vand.u32 %v4784, 4294901760
          %4786 = vmatpush.xpose.msra.mxu0 %v4785
          %v4787 = vand.u32 %v4390, 4294901760
          %v4788 = vsub.f32 %v4390, %v4787
          %v4789 = vand.u32 %v4788, 4294901760
          %v4790 = vsub.f32 %v4788, %v4789
          %v4791 = vand.u32 %v4790, 4294901760
          %4792 = vmatpush.xpose.msra.mxu0 %v4791
          %v4793 = vand.u32 %v4387, 4294901760
          %v4794 = vsub.f32 %v4387, %v4793
          %v4795 = vand.u32 %v4794, 4294901760
          %v4796 = vsub.f32 %v4794, %v4795
          %v4797 = vand.u32 %v4796, 4294901760
          %4798 = vmatpush.xpose.msra.mxu0 %v4797
          %v4799 = vand.u32 %v4384, 4294901760
          %v4800 = vsub.f32 %v4384, %v4799
          %v4801 = vand.u32 %v4800, 4294901760
          %v4802 = vsub.f32 %v4800, %v4801
          %v4803 = vand.u32 %v4802, 4294901760
          %4804 = vmatpush.xpose.msra.mxu0 %v4803
          %v4805 = vand.u32 %v4381, 4294901760
          %v4806 = vsub.f32 %v4381, %v4805
          %v4807 = vand.u32 %v4806, 4294901760
          %v4808 = vsub.f32 %v4806, %v4807
          %v4809 = vand.u32 %v4808, 4294901760
          %4810 = vmatpush.xpose.msra.mxu0 %v4809
          %v4811 = vand.u32 %v4378, 4294901760
          %v4812 = vsub.f32 %v4378, %v4811
          %v4813 = vand.u32 %v4812, 4294901760
          %v4814 = vsub.f32 %v4812, %v4813
          %v4815 = vand.u32 %v4814, 4294901760
          %4816 = vmatpush.xpose.msra.mxu0 %v4815
          %v4817 = vand.u32 %v4375, 4294901760
          %v4818 = vsub.f32 %v4375, %v4817
          %v4819 = vand.u32 %v4818, 4294901760
          %v4820 = vsub.f32 %v4818, %v4819
          %v4821 = vand.u32 %v4820, 4294901760
          %4822 = vmatpush.xpose.msra.mxu0 %v4821
          %v4823 = vand.u32 %v4372, 4294901760
          %v4824 = vsub.f32 %v4372, %v4823
          %v4825 = vand.u32 %v4824, 4294901760
          %v4826 = vsub.f32 %v4824, %v4825
          %v4827 = vand.u32 %v4826, 4294901760
          %4828 = vmatpush.xpose.msra.mxu0 %v4827
          %v4829 = vand.u32 %v4369, 4294901760
          %v4830 = vsub.f32 %v4369, %v4829
          %v4831 = vand.u32 %v4830, 4294901760
          %v4832 = vsub.f32 %v4830, %v4831
          %v4833 = vand.u32 %v4832, 4294901760
          %4834 = vmatpush.xpose.msra.mxu0 %v4833
          %v4835 = vand.u32 %v4366, 4294901760
          %v4836 = vsub.f32 %v4366, %v4835
          %v4837 = vand.u32 %v4836, 4294901760
          %v4838 = vsub.f32 %v4836, %v4837
          %v4839 = vand.u32 %v4838, 4294901760
          %4840 = vmatpush.xpose.msra.mxu0 %v4839
          %v4841 = vand.u32 %v4363, 4294901760
          %v4842 = vsub.f32 %v4363, %v4841
          %v4843 = vand.u32 %v4842, 4294901760
          %v4844 = vsub.f32 %v4842, %v4843
          %v4845 = vand.u32 %v4844, 4294901760
          %4846 = vmatpush.xpose.msra.mxu0 %v4845
          %v4847 = vand.u32 %v4360, 4294901760
          %v4848 = vsub.f32 %v4360, %v4847
          %v4849 = vand.u32 %v4848, 4294901760
          %v4850 = vsub.f32 %v4848, %v4849
          %v4851 = vand.u32 %v4850, 4294901760
          %4852 = vmatpush.xpose.msra.mxu0 %v4851
          %v4853 = vand.u32 %v4357, 4294901760
          %v4854 = vsub.f32 %v4357, %v4853
          %v4855 = vand.u32 %v4854, 4294901760
          %v4856 = vsub.f32 %v4854, %v4855
          %v4857 = vand.u32 %v4856, 4294901760
          %4858 = vmatpush.xpose.msra.mxu0 %v4857
          %v4859 = vand.u32 %v4354, 4294901760
          %v4860 = vsub.f32 %v4354, %v4859
          %v4861 = vand.u32 %v4860, 4294901760
          %v4862 = vsub.f32 %v4860, %v4861
          %v4863 = vand.u32 %v4862, 4294901760
          %4864 = vmatpush.xpose.msra.mxu0 %v4863
          %v4865 = vand.u32 %v4351, 4294901760
          %v4866 = vsub.f32 %v4351, %v4865
          %v4867 = vand.u32 %v4866, 4294901760
          %v4868 = vsub.f32 %v4866, %v4867
          %v4869 = vand.u32 %v4868, 4294901760
          %4870 = vmatpush.xpose.msra.mxu0 %v4869
          %v4871 = vand.u32 %v4348, 4294901760
          %4872 = vmatmul.f32.gmra.mxu0 %v4871
          %v4873 = vpop.f32.mrf.mxu0
          %v4874 = vadd.f32 %v4773, %v4873
          %4875 = vdwg.mxu0
          %v4876 = vand.u32 %v4396, 4294901760
          %v4877 = vsub.f32 %v4396, %v4876
          %4878 = vmatpush.xpose.msra.mxu0 %v4877
          %v4879 = vand.u32 %v4393, 4294901760
          %v4880 = vsub.f32 %v4393, %v4879
          %4881 = vmatpush.xpose.msra.mxu0 %v4880
          %v4882 = vand.u32 %v4390, 4294901760
          %v4883 = vsub.f32 %v4390, %v4882
          %4884 = vmatpush.xpose.msra.mxu0 %v4883
          %v4885 = vand.u32 %v4387, 4294901760
          %v4886 = vsub.f32 %v4387, %v4885
          %4887 = vmatpush.xpose.msra.mxu0 %v4886
          %v4888 = vand.u32 %v4384, 4294901760
          %v4889 = vsub.f32 %v4384, %v4888
          %4890 = vmatpush.xpose.msra.mxu0 %v4889
          %v4891 = vand.u32 %v4381, 4294901760
          %v4892 = vsub.f32 %v4381, %v4891
          %4893 = vmatpush.xpose.msra.mxu0 %v4892
          %v4894 = vand.u32 %v4378, 4294901760
          %v4895 = vsub.f32 %v4378, %v4894
          %4896 = vmatpush.xpose.msra.mxu0 %v4895
          %v4897 = vand.u32 %v4375, 4294901760
          %v4898 = vsub.f32 %v4375, %v4897
          %4899 = vmatpush.xpose.msra.mxu0 %v4898
          %v4900 = vand.u32 %v4372, 4294901760
          %v4901 = vsub.f32 %v4372, %v4900
          %4902 = vmatpush.xpose.msra.mxu0 %v4901
          %v4903 = vand.u32 %v4369, 4294901760
          %v4904 = vsub.f32 %v4369, %v4903
          %4905 = vmatpush.xpose.msra.mxu0 %v4904
          %v4906 = vand.u32 %v4366, 4294901760
          %v4907 = vsub.f32 %v4366, %v4906
          %4908 = vmatpush.xpose.msra.mxu0 %v4907
          %v4909 = vand.u32 %v4363, 4294901760
          %v4910 = vsub.f32 %v4363, %v4909
          %4911 = vmatpush.xpose.msra.mxu0 %v4910
          %v4912 = vand.u32 %v4360, 4294901760
          %v4913 = vsub.f32 %v4360, %v4912
          %4914 = vmatpush.xpose.msra.mxu0 %v4913
          %v4915 = vand.u32 %v4357, 4294901760
          %v4916 = vsub.f32 %v4357, %v4915
          %4917 = vmatpush.xpose.msra.mxu0 %v4916
          %v4918 = vand.u32 %v4354, 4294901760
          %v4919 = vsub.f32 %v4354, %v4918
          %4920 = vmatpush.xpose.msra.mxu0 %v4919
          %v4921 = vand.u32 %v4351, 4294901760
          %v4922 = vsub.f32 %v4351, %v4921
          %4923 = vmatpush.xpose.msra.mxu0 %v4922
          %v4924 = vand.u32 %v4348, 4294901760
          %v4925 = vsub.f32 %v4348, %v4924
          %4926 = vmatmul.f32.gmra.mxu0 %v4925
          %v4927 = vpop.f32.mrf.mxu0
          %v4928 = vadd.f32 %v4874, %v4927
          %4929 = vdwg.mxu0
          %v4930 = vand.u32 %v4396, 4294901760
          %4931 = vmatpush.xpose.msra.mxu0 %v4930
          %v4932 = vand.u32 %v4393, 4294901760
          %4933 = vmatpush.xpose.msra.mxu0 %v4932
          %v4934 = vand.u32 %v4390, 4294901760
          %4935 = vmatpush.xpose.msra.mxu0 %v4934
          %v4936 = vand.u32 %v4387, 4294901760
          %4937 = vmatpush.xpose.msra.mxu0 %v4936
          %v4938 = vand.u32 %v4384, 4294901760
          %4939 = vmatpush.xpose.msra.mxu0 %v4938
          %v4940 = vand.u32 %v4381, 4294901760
          %4941 = vmatpush.xpose.msra.mxu0 %v4940
          %v4942 = vand.u32 %v4378, 4294901760
          %4943 = vmatpush.xpose.msra.mxu0 %v4942
          %v4944 = vand.u32 %v4375, 4294901760
          %4945 = vmatpush.xpose.msra.mxu0 %v4944
          %v4946 = vand.u32 %v4372, 4294901760
          %4947 = vmatpush.xpose.msra.mxu0 %v4946
          %v4948 = vand.u32 %v4369, 4294901760
          %4949 = vmatpush.xpose.msra.mxu0 %v4948
          %v4950 = vand.u32 %v4366, 4294901760
          %4951 = vmatpush.xpose.msra.mxu0 %v4950
          %v4952 = vand.u32 %v4363, 4294901760
          %4953 = vmatpush.xpose.msra.mxu0 %v4952
          %v4954 = vand.u32 %v4360, 4294901760
          %4955 = vmatpush.xpose.msra.mxu0 %v4954
          %v4956 = vand.u32 %v4357, 4294901760
          %4957 = vmatpush.xpose.msra.mxu0 %v4956
          %v4958 = vand.u32 %v4354, 4294901760
          %4959 = vmatpush.xpose.msra.mxu0 %v4958
          %v4960 = vand.u32 %v4351, 4294901760
          %4961 = vmatpush.xpose.msra.mxu0 %v4960
          %v4962 = vand.u32 %v4348, 4294901760
          %v4963 = vsub.f32 %v4348, %v4962
          %v4964 = vand.u32 %v4963, 4294901760
          %4965 = vmatmul.f32.gmra.mxu0 %v4964
          %v4966 = vpop.f32.mrf.mxu0
          %v4967 = vadd.f32 %v4928, %v4966
          %4968 = vdwg.mxu0
          %v4969 = vand.u32 %v4396, 4294901760
          %v4970 = vsub.f32 %v4396, %v4969
          %v4971 = vand.u32 %v4970, 4294901760
          %4972 = vmatpush.xpose.msra.mxu0 %v4971
          %v4973 = vand.u32 %v4393, 4294901760
          %v4974 = vsub.f32 %v4393, %v4973
          %v4975 = vand.u32 %v4974, 4294901760
          %4976 = vmatpush.xpose.msra.mxu0 %v4975
          %v4977 = vand.u32 %v4390, 4294901760
          %v4978 = vsub.f32 %v4390, %v4977
          %v4979 = vand.u32 %v4978, 4294901760
          %4980 = vmatpush.xpose.msra.mxu0 %v4979
          %v4981 = vand.u32 %v4387, 4294901760
          %v4982 = vsub.f32 %v4387, %v4981
          %v4983 = vand.u32 %v4982, 4294901760
          %4984 = vmatpush.xpose.msra.mxu0 %v4983
          %v4985 = vand.u32 %v4384, 4294901760
          %v4986 = vsub.f32 %v4384, %v4985
          %v4987 = vand.u32 %v4986, 4294901760
          %4988 = vmatpush.xpose.msra.mxu0 %v4987
          %v4989 = vand.u32 %v4381, 4294901760
          %v4990 = vsub.f32 %v4381, %v4989
          %v4991 = vand.u32 %v4990, 4294901760
          %4992 = vmatpush.xpose.msra.mxu0 %v4991
          %v4993 = vand.u32 %v4378, 4294901760
          %v4994 = vsub.f32 %v4378, %v4993
          %v4995 = vand.u32 %v4994, 4294901760
          %4996 = vmatpush.xpose.msra.mxu0 %v4995
          %v4997 = vand.u32 %v4375, 4294901760
          %v4998 = vsub.f32 %v4375, %v4997
          %v4999 = vand.u32 %v4998, 4294901760
          %5000 = vmatpush.xpose.msra.mxu0 %v4999
          %v5001 = vand.u32 %v4372, 4294901760
          %v5002 = vsub.f32 %v4372, %v5001
          %v5003 = vand.u32 %v5002, 4294901760
          %5004 = vmatpush.xpose.msra.mxu0 %v5003
          %v5005 = vand.u32 %v4369, 4294901760
          %v5006 = vsub.f32 %v4369, %v5005
          %v5007 = vand.u32 %v5006, 4294901760
          %5008 = vmatpush.xpose.msra.mxu0 %v5007
          %v5009 = vand.u32 %v4366, 4294901760
          %v5010 = vsub.f32 %v4366, %v5009
          %v5011 = vand.u32 %v5010, 4294901760
          %5012 = vmatpush.xpose.msra.mxu0 %v5011
          %v5013 = vand.u32 %v4363, 4294901760
          %v5014 = vsub.f32 %v4363, %v5013
          %v5015 = vand.u32 %v5014, 4294901760
          %5016 = vmatpush.xpose.msra.mxu0 %v5015
          %v5017 = vand.u32 %v4360, 4294901760
          %v5018 = vsub.f32 %v4360, %v5017
          %v5019 = vand.u32 %v5018, 4294901760
          %5020 = vmatpush.xpose.msra.mxu0 %v5019
          %v5021 = vand.u32 %v4357, 4294901760
          %v5022 = vsub.f32 %v4357, %v5021
          %v5023 = vand.u32 %v5022, 4294901760
          %5024 = vmatpush.xpose.msra.mxu0 %v5023
          %v5025 = vand.u32 %v4354, 4294901760
          %v5026 = vsub.f32 %v4354, %v5025
          %v5027 = vand.u32 %v5026, 4294901760
          %5028 = vmatpush.xpose.msra.mxu0 %v5027
          %v5029 = vand.u32 %v4351, 4294901760
          %v5030 = vsub.f32 %v4351, %v5029
          %v5031 = vand.u32 %v5030, 4294901760
          %5032 = vmatpush.xpose.msra.mxu0 %v5031
          %v5033 = vand.u32 %v4348, 4294901760
          %5034 = vmatmul.f32.gmra.mxu0 %v5033
          %v5035 = vpop.f32.mrf.mxu0
          %v5036 = vadd.f32 %v4967, %v5035
          %5037 = vdwg.mxu0
          %v5038 = vand.u32 %v4396, 4294901760
          %5039 = vmatpush.xpose.msra.mxu0 %v5038
          %v5040 = vand.u32 %v4393, 4294901760
          %5041 = vmatpush.xpose.msra.mxu0 %v5040
          %v5042 = vand.u32 %v4390, 4294901760
          %5043 = vmatpush.xpose.msra.mxu0 %v5042
          %v5044 = vand.u32 %v4387, 4294901760
          %5045 = vmatpush.xpose.msra.mxu0 %v5044
          %v5046 = vand.u32 %v4384, 4294901760
          %5047 = vmatpush.xpose.msra.mxu0 %v5046
          %v5048 = vand.u32 %v4381, 4294901760
          %5049 = vmatpush.xpose.msra.mxu0 %v5048
          %v5050 = vand.u32 %v4378, 4294901760
          %5051 = vmatpush.xpose.msra.mxu0 %v5050
          %v5052 = vand.u32 %v4375, 4294901760
          %5053 = vmatpush.xpose.msra.mxu0 %v5052
          %v5054 = vand.u32 %v4372, 4294901760
          %5055 = vmatpush.xpose.msra.mxu0 %v5054
          %v5056 = vand.u32 %v4369, 4294901760
          %5057 = vmatpush.xpose.msra.mxu0 %v5056
          %v5058 = vand.u32 %v4366, 4294901760
          %5059 = vmatpush.xpose.msra.mxu0 %v5058
          %v5060 = vand.u32 %v4363, 4294901760
          %5061 = vmatpush.xpose.msra.mxu0 %v5060
          %v5062 = vand.u32 %v4360, 4294901760
          %5063 = vmatpush.xpose.msra.mxu0 %v5062
          %v5064 = vand.u32 %v4357, 4294901760
          %5065 = vmatpush.xpose.msra.mxu0 %v5064
          %v5066 = vand.u32 %v4354, 4294901760
          %5067 = vmatpush.xpose.msra.mxu0 %v5066
          %v5068 = vand.u32 %v4351, 4294901760
          %5069 = vmatpush.xpose.msra.mxu0 %v5068
          %v5070 = vand.u32 %v4348, 4294901760
          %5071 = vmatmul.f32.gmra.mxu0 %v5070
          %v5072 = vpop.f32.mrf.mxu0
          %v5073 = vadd.f32 %v5036, %v5072
          %5074 = vdwg.mxu0
          %v5075 = vand.u32 %v4444, 4294901760
          %5076 = vmatpush.xpose.msra.mxu0 %v5075
          %v5077 = vand.u32 %v4441, 4294901760
          %5078 = vmatpush.xpose.msra.mxu0 %v5077
          %v5079 = vand.u32 %v4438, 4294901760
          %5080 = vmatpush.xpose.msra.mxu0 %v5079
          %v5081 = vand.u32 %v4435, 4294901760
          %5082 = vmatpush.xpose.msra.mxu0 %v5081
          %v5083 = vand.u32 %v4432, 4294901760
          %5084 = vmatpush.xpose.msra.mxu0 %v5083
          %v5085 = vand.u32 %v4429, 4294901760
          %5086 = vmatpush.xpose.msra.mxu0 %v5085
          %v5087 = vand.u32 %v4426, 4294901760
          %5088 = vmatpush.xpose.msra.mxu0 %v5087
          %v5089 = vand.u32 %v4423, 4294901760
          %5090 = vmatpush.xpose.msra.mxu0 %v5089
          %v5091 = vand.u32 %v4420, 4294901760
          %5092 = vmatpush.xpose.msra.mxu0 %v5091
          %v5093 = vand.u32 %v4417, 4294901760
          %5094 = vmatpush.xpose.msra.mxu0 %v5093
          %v5095 = vand.u32 %v4414, 4294901760
          %5096 = vmatpush.xpose.msra.mxu0 %v5095
          %v5097 = vand.u32 %v4411, 4294901760
          %5098 = vmatpush.xpose.msra.mxu0 %v5097
          %v5099 = vand.u32 %v4408, 4294901760
          %5100 = vmatpush.xpose.msra.mxu0 %v5099
          %v5101 = vand.u32 %v4405, 4294901760
          %5102 = vmatpush.xpose.msra.mxu0 %v5101
          %v5103 = vand.u32 %v4402, 4294901760
          %5104 = vmatpush.xpose.msra.mxu0 %v5103
          %v5105 = vand.u32 %v4399, 4294901760
          %5106 = vmatpush.xpose.msra.mxu0 %v5105
          %v5107 = vand.u32 %v4348, 4294901760
          %v5108 = vsub.f32 %v4348, %v5107
          %v5109 = vand.u32 %v5108, 4294901760
          %v5110 = vsub.f32 %v5108, %v5109
          %v5111 = vand.u32 %v5110, 4294901760
          %5112 = vmatmul.f32.gmra.mxu0 %v5111
          %v5113 = vpop.f32.mrf.mxu0
          %v5114 = vadd.f32 0.0, %v5113
          %5115 = vdwg.mxu0
          %v5116 = vand.u32 %v4444, 4294901760
          %v5117 = vsub.f32 %v4444, %v5116
          %v5118 = vand.u32 %v5117, 4294901760
          %v5119 = vsub.f32 %v5117, %v5118
          %v5120 = vand.u32 %v5119, 4294901760
          %5121 = vmatpush.xpose.msra.mxu0 %v5120
          %v5122 = vand.u32 %v4441, 4294901760
          %v5123 = vsub.f32 %v4441, %v5122
          %v5124 = vand.u32 %v5123, 4294901760
          %v5125 = vsub.f32 %v5123, %v5124
          %v5126 = vand.u32 %v5125, 4294901760
          %5127 = vmatpush.xpose.msra.mxu0 %v5126
          %v5128 = vand.u32 %v4438, 4294901760
          %v5129 = vsub.f32 %v4438, %v5128
          %v5130 = vand.u32 %v5129, 4294901760
          %v5131 = vsub.f32 %v5129, %v5130
          %v5132 = vand.u32 %v5131, 4294901760
          %5133 = vmatpush.xpose.msra.mxu0 %v5132
          %v5134 = vand.u32 %v4435, 4294901760
          %v5135 = vsub.f32 %v4435, %v5134
          %v5136 = vand.u32 %v5135, 4294901760
          %v5137 = vsub.f32 %v5135, %v5136
          %v5138 = vand.u32 %v5137, 4294901760
          %5139 = vmatpush.xpose.msra.mxu0 %v5138
          %v5140 = vand.u32 %v4432, 4294901760
          %v5141 = vsub.f32 %v4432, %v5140
          %v5142 = vand.u32 %v5141, 4294901760
          %v5143 = vsub.f32 %v5141, %v5142
          %v5144 = vand.u32 %v5143, 4294901760
          %5145 = vmatpush.xpose.msra.mxu0 %v5144
          %v5146 = vand.u32 %v4429, 4294901760
          %v5147 = vsub.f32 %v4429, %v5146
          %v5148 = vand.u32 %v5147, 4294901760
          %v5149 = vsub.f32 %v5147, %v5148
          %v5150 = vand.u32 %v5149, 4294901760
          %5151 = vmatpush.xpose.msra.mxu0 %v5150
          %v5152 = vand.u32 %v4426, 4294901760
          %v5153 = vsub.f32 %v4426, %v5152
          %v5154 = vand.u32 %v5153, 4294901760
          %v5155 = vsub.f32 %v5153, %v5154
          %v5156 = vand.u32 %v5155, 4294901760
          %5157 = vmatpush.xpose.msra.mxu0 %v5156
          %v5158 = vand.u32 %v4423, 4294901760
          %v5159 = vsub.f32 %v4423, %v5158
          %v5160 = vand.u32 %v5159, 4294901760
          %v5161 = vsub.f32 %v5159, %v5160
          %v5162 = vand.u32 %v5161, 4294901760
          %5163 = vmatpush.xpose.msra.mxu0 %v5162
          %v5164 = vand.u32 %v4420, 4294901760
          %v5165 = vsub.f32 %v4420, %v5164
          %v5166 = vand.u32 %v5165, 4294901760
          %v5167 = vsub.f32 %v5165, %v5166
          %v5168 = vand.u32 %v5167, 4294901760
          %5169 = vmatpush.xpose.msra.mxu0 %v5168
          %v5170 = vand.u32 %v4417, 4294901760
          %v5171 = vsub.f32 %v4417, %v5170
          %v5172 = vand.u32 %v5171, 4294901760
          %v5173 = vsub.f32 %v5171, %v5172
          %v5174 = vand.u32 %v5173, 4294901760
          %5175 = vmatpush.xpose.msra.mxu0 %v5174
          %v5176 = vand.u32 %v4414, 4294901760
          %v5177 = vsub.f32 %v4414, %v5176
          %v5178 = vand.u32 %v5177, 4294901760
          %v5179 = vsub.f32 %v5177, %v5178
          %v5180 = vand.u32 %v5179, 4294901760
          %5181 = vmatpush.xpose.msra.mxu0 %v5180
          %v5182 = vand.u32 %v4411, 4294901760
          %v5183 = vsub.f32 %v4411, %v5182
          %v5184 = vand.u32 %v5183, 4294901760
          %v5185 = vsub.f32 %v5183, %v5184
          %v5186 = vand.u32 %v5185, 4294901760
          %5187 = vmatpush.xpose.msra.mxu0 %v5186
          %v5188 = vand.u32 %v4408, 4294901760
          %v5189 = vsub.f32 %v4408, %v5188
          %v5190 = vand.u32 %v5189, 4294901760
          %v5191 = vsub.f32 %v5189, %v5190
          %v5192 = vand.u32 %v5191, 4294901760
          %5193 = vmatpush.xpose.msra.mxu0 %v5192
          %v5194 = vand.u32 %v4405, 4294901760
          %v5195 = vsub.f32 %v4405, %v5194
          %v5196 = vand.u32 %v5195, 4294901760
          %v5197 = vsub.f32 %v5195, %v5196
          %v5198 = vand.u32 %v5197, 4294901760
          %5199 = vmatpush.xpose.msra.mxu0 %v5198
          %v5200 = vand.u32 %v4402, 4294901760
          %v5201 = vsub.f32 %v4402, %v5200
          %v5202 = vand.u32 %v5201, 4294901760
          %v5203 = vsub.f32 %v5201, %v5202
          %v5204 = vand.u32 %v5203, 4294901760
          %5205 = vmatpush.xpose.msra.mxu0 %v5204
          %v5206 = vand.u32 %v4399, 4294901760
          %v5207 = vsub.f32 %v4399, %v5206
          %v5208 = vand.u32 %v5207, 4294901760
          %v5209 = vsub.f32 %v5207, %v5208
          %v5210 = vand.u32 %v5209, 4294901760
          %5211 = vmatpush.xpose.msra.mxu0 %v5210
          %v5212 = vand.u32 %v4348, 4294901760
          %5213 = vmatmul.f32.gmra.mxu0 %v5212
          %v5214 = vpop.f32.mrf.mxu0
          %v5215 = vadd.f32 %v5114, %v5214
          %5216 = vdwg.mxu0
          %v5217 = vand.u32 %v4444, 4294901760
          %v5218 = vsub.f32 %v4444, %v5217
          %5219 = vmatpush.xpose.msra.mxu0 %v5218
          %v5220 = vand.u32 %v4441, 4294901760
          %v5221 = vsub.f32 %v4441, %v5220
          %5222 = vmatpush.xpose.msra.mxu0 %v5221
          %v5223 = vand.u32 %v4438, 4294901760
          %v5224 = vsub.f32 %v4438, %v5223
          %5225 = vmatpush.xpose.msra.mxu0 %v5224
          %v5226 = vand.u32 %v4435, 4294901760
          %v5227 = vsub.f32 %v4435, %v5226
          %5228 = vmatpush.xpose.msra.mxu0 %v5227
          %v5229 = vand.u32 %v4432, 4294901760
          %v5230 = vsub.f32 %v4432, %v5229
          %5231 = vmatpush.xpose.msra.mxu0 %v5230
          %v5232 = vand.u32 %v4429, 4294901760
          %v5233 = vsub.f32 %v4429, %v5232
          %5234 = vmatpush.xpose.msra.mxu0 %v5233
          %v5235 = vand.u32 %v4426, 4294901760
          %v5236 = vsub.f32 %v4426, %v5235
          %5237 = vmatpush.xpose.msra.mxu0 %v5236
          %v5238 = vand.u32 %v4423, 4294901760
          %v5239 = vsub.f32 %v4423, %v5238
          %5240 = vmatpush.xpose.msra.mxu0 %v5239
          %v5241 = vand.u32 %v4420, 4294901760
          %v5242 = vsub.f32 %v4420, %v5241
          %5243 = vmatpush.xpose.msra.mxu0 %v5242
          %v5244 = vand.u32 %v4417, 4294901760
          %v5245 = vsub.f32 %v4417, %v5244
          %5246 = vmatpush.xpose.msra.mxu0 %v5245
          %v5247 = vand.u32 %v4414, 4294901760
          %v5248 = vsub.f32 %v4414, %v5247
          %5249 = vmatpush.xpose.msra.mxu0 %v5248
          %v5250 = vand.u32 %v4411, 4294901760
          %v5251 = vsub.f32 %v4411, %v5250
          %5252 = vmatpush.xpose.msra.mxu0 %v5251
          %v5253 = vand.u32 %v4408, 4294901760
          %v5254 = vsub.f32 %v4408, %v5253
          %5255 = vmatpush.xpose.msra.mxu0 %v5254
          %v5256 = vand.u32 %v4405, 4294901760
          %v5257 = vsub.f32 %v4405, %v5256
          %5258 = vmatpush.xpose.msra.mxu0 %v5257
          %v5259 = vand.u32 %v4402, 4294901760
          %v5260 = vsub.f32 %v4402, %v5259
          %5261 = vmatpush.xpose.msra.mxu0 %v5260
          %v5262 = vand.u32 %v4399, 4294901760
          %v5263 = vsub.f32 %v4399, %v5262
          %5264 = vmatpush.xpose.msra.mxu0 %v5263
          %v5265 = vand.u32 %v4348, 4294901760
          %v5266 = vsub.f32 %v4348, %v5265
          %5267 = vmatmul.f32.gmra.mxu0 %v5266
          %v5268 = vpop.f32.mrf.mxu0
          %v5269 = vadd.f32 %v5215, %v5268
          %5270 = vdwg.mxu0
          %v5271 = vand.u32 %v4444, 4294901760
          %5272 = vmatpush.xpose.msra.mxu0 %v5271
          %v5273 = vand.u32 %v4441, 4294901760
          %5274 = vmatpush.xpose.msra.mxu0 %v5273
          %v5275 = vand.u32 %v4438, 4294901760
          %5276 = vmatpush.xpose.msra.mxu0 %v5275
          %v5277 = vand.u32 %v4435, 4294901760
          %5278 = vmatpush.xpose.msra.mxu0 %v5277
          %v5279 = vand.u32 %v4432, 4294901760
          %5280 = vmatpush.xpose.msra.mxu0 %v5279
          %v5281 = vand.u32 %v4429, 4294901760
          %5282 = vmatpush.xpose.msra.mxu0 %v5281
          %v5283 = vand.u32 %v4426, 4294901760
          %5284 = vmatpush.xpose.msra.mxu0 %v5283
          %v5285 = vand.u32 %v4423, 4294901760
          %5286 = vmatpush.xpose.msra.mxu0 %v5285
          %v5287 = vand.u32 %v4420, 4294901760
          %5288 = vmatpush.xpose.msra.mxu0 %v5287
          %v5289 = vand.u32 %v4417, 4294901760
          %5290 = vmatpush.xpose.msra.mxu0 %v5289
          %v5291 = vand.u32 %v4414, 4294901760
          %5292 = vmatpush.xpose.msra.mxu0 %v5291
          %v5293 = vand.u32 %v4411, 4294901760
          %5294 = vmatpush.xpose.msra.mxu0 %v5293
          %v5295 = vand.u32 %v4408, 4294901760
          %5296 = vmatpush.xpose.msra.mxu0 %v5295
          %v5297 = vand.u32 %v4405, 4294901760
          %5298 = vmatpush.xpose.msra.mxu0 %v5297
          %v5299 = vand.u32 %v4402, 4294901760
          %5300 = vmatpush.xpose.msra.mxu0 %v5299
          %v5301 = vand.u32 %v4399, 4294901760
          %5302 = vmatpush.xpose.msra.mxu0 %v5301
          %v5303 = vand.u32 %v4348, 4294901760
          %v5304 = vsub.f32 %v4348, %v5303
          %v5305 = vand.u32 %v5304, 4294901760
          %5306 = vmatmul.f32.gmra.mxu0 %v5305
          %v5307 = vpop.f32.mrf.mxu0
          %v5308 = vadd.f32 %v5269, %v5307
          %5309 = vdwg.mxu0
          %v5310 = vand.u32 %v4444, 4294901760
          %v5311 = vsub.f32 %v4444, %v5310
          %v5312 = vand.u32 %v5311, 4294901760
          %5313 = vmatpush.xpose.msra.mxu0 %v5312
          %v5314 = vand.u32 %v4441, 4294901760
          %v5315 = vsub.f32 %v4441, %v5314
          %v5316 = vand.u32 %v5315, 4294901760
          %5317 = vmatpush.xpose.msra.mxu0 %v5316
          %v5318 = vand.u32 %v4438, 4294901760
          %v5319 = vsub.f32 %v4438, %v5318
          %v5320 = vand.u32 %v5319, 4294901760
          %5321 = vmatpush.xpose.msra.mxu0 %v5320
          %v5322 = vand.u32 %v4435, 4294901760
          %v5323 = vsub.f32 %v4435, %v5322
          %v5324 = vand.u32 %v5323, 4294901760
          %5325 = vmatpush.xpose.msra.mxu0 %v5324
          %v5326 = vand.u32 %v4432, 4294901760
          %v5327 = vsub.f32 %v4432, %v5326
          %v5328 = vand.u32 %v5327, 4294901760
          %5329 = vmatpush.xpose.msra.mxu0 %v5328
          %v5330 = vand.u32 %v4429, 4294901760
          %v5331 = vsub.f32 %v4429, %v5330
          %v5332 = vand.u32 %v5331, 4294901760
          %5333 = vmatpush.xpose.msra.mxu0 %v5332
          %v5334 = vand.u32 %v4426, 4294901760
          %v5335 = vsub.f32 %v4426, %v5334
          %v5336 = vand.u32 %v5335, 4294901760
          %5337 = vmatpush.xpose.msra.mxu0 %v5336
          %v5338 = vand.u32 %v4423, 4294901760
          %v5339 = vsub.f32 %v4423, %v5338
          %v5340 = vand.u32 %v5339, 4294901760
          %5341 = vmatpush.xpose.msra.mxu0 %v5340
          %v5342 = vand.u32 %v4420, 4294901760
          %v5343 = vsub.f32 %v4420, %v5342
          %v5344 = vand.u32 %v5343, 4294901760
          %5345 = vmatpush.xpose.msra.mxu0 %v5344
          %v5346 = vand.u32 %v4417, 4294901760
          %v5347 = vsub.f32 %v4417, %v5346
          %v5348 = vand.u32 %v5347, 4294901760
          %5349 = vmatpush.xpose.msra.mxu0 %v5348
          %v5350 = vand.u32 %v4414, 4294901760
          %v5351 = vsub.f32 %v4414, %v5350
          %v5352 = vand.u32 %v5351, 4294901760
          %5353 = vmatpush.xpose.msra.mxu0 %v5352
          %v5354 = vand.u32 %v4411, 4294901760
          %v5355 = vsub.f32 %v4411, %v5354
          %v5356 = vand.u32 %v5355, 4294901760
          %5357 = vmatpush.xpose.msra.mxu0 %v5356
          %v5358 = vand.u32 %v4408, 4294901760
          %v5359 = vsub.f32 %v4408, %v5358
          %v5360 = vand.u32 %v5359, 4294901760
          %5361 = vmatpush.xpose.msra.mxu0 %v5360
          %v5362 = vand.u32 %v4405, 4294901760
          %v5363 = vsub.f32 %v4405, %v5362
          %v5364 = vand.u32 %v5363, 4294901760
          %5365 = vmatpush.xpose.msra.mxu0 %v5364
          %v5366 = vand.u32 %v4402, 4294901760
          %v5367 = vsub.f32 %v4402, %v5366
          %v5368 = vand.u32 %v5367, 4294901760
          %5369 = vmatpush.xpose.msra.mxu0 %v5368
          %v5370 = vand.u32 %v4399, 4294901760
          %v5371 = vsub.f32 %v4399, %v5370
          %v5372 = vand.u32 %v5371, 4294901760
          %5373 = vmatpush.xpose.msra.mxu0 %v5372
          %v5374 = vand.u32 %v4348, 4294901760
          %5375 = vmatmul.f32.gmra.mxu0 %v5374
          %v5376 = vpop.f32.mrf.mxu0
          %v5377 = vadd.f32 %v5308, %v5376
          %5378 = vdwg.mxu0
          %v5379 = vand.u32 %v4444, 4294901760
          %5380 = vmatpush.xpose.msra.mxu0 %v5379
          %v5381 = vand.u32 %v4441, 4294901760
          %5382 = vmatpush.xpose.msra.mxu0 %v5381
          %v5383 = vand.u32 %v4438, 4294901760
          %5384 = vmatpush.xpose.msra.mxu0 %v5383
          %v5385 = vand.u32 %v4435, 4294901760
          %5386 = vmatpush.xpose.msra.mxu0 %v5385
          %v5387 = vand.u32 %v4432, 4294901760
          %5388 = vmatpush.xpose.msra.mxu0 %v5387
          %v5389 = vand.u32 %v4429, 4294901760
          %5390 = vmatpush.xpose.msra.mxu0 %v5389
          %v5391 = vand.u32 %v4426, 4294901760
          %5392 = vmatpush.xpose.msra.mxu0 %v5391
          %v5393 = vand.u32 %v4423, 4294901760
          %5394 = vmatpush.xpose.msra.mxu0 %v5393
          %v5395 = vand.u32 %v4420, 4294901760
          %5396 = vmatpush.xpose.msra.mxu0 %v5395
          %v5397 = vand.u32 %v4417, 4294901760
          %5398 = vmatpush.xpose.msra.mxu0 %v5397
          %v5399 = vand.u32 %v4414, 4294901760
          %5400 = vmatpush.xpose.msra.mxu0 %v5399
          %v5401 = vand.u32 %v4411, 4294901760
          %5402 = vmatpush.xpose.msra.mxu0 %v5401
          %v5403 = vand.u32 %v4408, 4294901760
          %5404 = vmatpush.xpose.msra.mxu0 %v5403
          %v5405 = vand.u32 %v4405, 4294901760
          %5406 = vmatpush.xpose.msra.mxu0 %v5405
          %v5407 = vand.u32 %v4402, 4294901760
          %5408 = vmatpush.xpose.msra.mxu0 %v5407
          %v5409 = vand.u32 %v4399, 4294901760
          %5410 = vmatpush.xpose.msra.mxu0 %v5409
          %v5411 = vand.u32 %v4348, 4294901760
          %5412 = vmatmul.f32.gmra.mxu0 %v5411
          %v5413 = vpop.f32.mrf.mxu0
          %v5414 = vadd.f32 %v5377, %v5413
          %5415 = vdwg.mxu0
          %v5416 = vand.u32 %v4492, 4294901760
          %5417 = vmatpush.xpose.msra.mxu0 %v5416
          %v5418 = vand.u32 %v4489, 4294901760
          %5419 = vmatpush.xpose.msra.mxu0 %v5418
          %v5420 = vand.u32 %v4486, 4294901760
          %5421 = vmatpush.xpose.msra.mxu0 %v5420
          %v5422 = vand.u32 %v4483, 4294901760
          %5423 = vmatpush.xpose.msra.mxu0 %v5422
          %v5424 = vand.u32 %v4480, 4294901760
          %5425 = vmatpush.xpose.msra.mxu0 %v5424
          %v5426 = vand.u32 %v4477, 4294901760
          %5427 = vmatpush.xpose.msra.mxu0 %v5426
          %v5428 = vand.u32 %v4474, 4294901760
          %5429 = vmatpush.xpose.msra.mxu0 %v5428
          %v5430 = vand.u32 %v4471, 4294901760
          %5431 = vmatpush.xpose.msra.mxu0 %v5430
          %v5432 = vand.u32 %v4468, 4294901760
          %5433 = vmatpush.xpose.msra.mxu0 %v5432
          %v5434 = vand.u32 %v4465, 4294901760
          %5435 = vmatpush.xpose.msra.mxu0 %v5434
          %v5436 = vand.u32 %v4462, 4294901760
          %5437 = vmatpush.xpose.msra.mxu0 %v5436
          %v5438 = vand.u32 %v4459, 4294901760
          %5439 = vmatpush.xpose.msra.mxu0 %v5438
          %v5440 = vand.u32 %v4456, 4294901760
          %5441 = vmatpush.xpose.msra.mxu0 %v5440
          %v5442 = vand.u32 %v4453, 4294901760
          %5443 = vmatpush.xpose.msra.mxu0 %v5442
          %v5444 = vand.u32 %v4450, 4294901760
          %5445 = vmatpush.xpose.msra.mxu0 %v5444
          %v5446 = vand.u32 %v4447, 4294901760
          %5447 = vmatpush.xpose.msra.mxu0 %v5446
          %v5448 = vand.u32 %v4348, 4294901760
          %v5449 = vsub.f32 %v4348, %v5448
          %v5450 = vand.u32 %v5449, 4294901760
          %v5451 = vsub.f32 %v5449, %v5450
          %v5452 = vand.u32 %v5451, 4294901760
          %5453 = vmatmul.f32.gmra.mxu0 %v5452
          %v5454 = vpop.f32.mrf.mxu0
          %v5455 = vadd.f32 0.0, %v5454
          %5456 = vdwg.mxu0
          %v5457 = vand.u32 %v4492, 4294901760
          %v5458 = vsub.f32 %v4492, %v5457
          %v5459 = vand.u32 %v5458, 4294901760
          %v5460 = vsub.f32 %v5458, %v5459
          %v5461 = vand.u32 %v5460, 4294901760
          %5462 = vmatpush.xpose.msra.mxu0 %v5461
          %v5463 = vand.u32 %v4489, 4294901760
          %v5464 = vsub.f32 %v4489, %v5463
          %v5465 = vand.u32 %v5464, 4294901760
          %v5466 = vsub.f32 %v5464, %v5465
          %v5467 = vand.u32 %v5466, 4294901760
          %5468 = vmatpush.xpose.msra.mxu0 %v5467
          %v5469 = vand.u32 %v4486, 4294901760
          %v5470 = vsub.f32 %v4486, %v5469
          %v5471 = vand.u32 %v5470, 4294901760
          %v5472 = vsub.f32 %v5470, %v5471
          %v5473 = vand.u32 %v5472, 4294901760
          %5474 = vmatpush.xpose.msra.mxu0 %v5473
          %v5475 = vand.u32 %v4483, 4294901760
          %v5476 = vsub.f32 %v4483, %v5475
          %v5477 = vand.u32 %v5476, 4294901760
          %v5478 = vsub.f32 %v5476, %v5477
          %v5479 = vand.u32 %v5478, 4294901760
          %5480 = vmatpush.xpose.msra.mxu0 %v5479
          %v5481 = vand.u32 %v4480, 4294901760
          %v5482 = vsub.f32 %v4480, %v5481
          %v5483 = vand.u32 %v5482, 4294901760
          %v5484 = vsub.f32 %v5482, %v5483
          %v5485 = vand.u32 %v5484, 4294901760
          %5486 = vmatpush.xpose.msra.mxu0 %v5485
          %v5487 = vand.u32 %v4477, 4294901760
          %v5488 = vsub.f32 %v4477, %v5487
          %v5489 = vand.u32 %v5488, 4294901760
          %v5490 = vsub.f32 %v5488, %v5489
          %v5491 = vand.u32 %v5490, 4294901760
          %5492 = vmatpush.xpose.msra.mxu0 %v5491
          %v5493 = vand.u32 %v4474, 4294901760
          %v5494 = vsub.f32 %v4474, %v5493
          %v5495 = vand.u32 %v5494, 4294901760
          %v5496 = vsub.f32 %v5494, %v5495
          %v5497 = vand.u32 %v5496, 4294901760
          %5498 = vmatpush.xpose.msra.mxu0 %v5497
          %v5499 = vand.u32 %v4471, 4294901760
          %v5500 = vsub.f32 %v4471, %v5499
          %v5501 = vand.u32 %v5500, 4294901760
          %v5502 = vsub.f32 %v5500, %v5501
          %v5503 = vand.u32 %v5502, 4294901760
          %5504 = vmatpush.xpose.msra.mxu0 %v5503
          %v5505 = vand.u32 %v4468, 4294901760
          %v5506 = vsub.f32 %v4468, %v5505
          %v5507 = vand.u32 %v5506, 4294901760
          %v5508 = vsub.f32 %v5506, %v5507
          %v5509 = vand.u32 %v5508, 4294901760
          %5510 = vmatpush.xpose.msra.mxu0 %v5509
          %v5511 = vand.u32 %v4465, 4294901760
          %v5512 = vsub.f32 %v4465, %v5511
          %v5513 = vand.u32 %v5512, 4294901760
          %v5514 = vsub.f32 %v5512, %v5513
          %v5515 = vand.u32 %v5514, 4294901760
          %5516 = vmatpush.xpose.msra.mxu0 %v5515
          %v5517 = vand.u32 %v4462, 4294901760
          %v5518 = vsub.f32 %v4462, %v5517
          %v5519 = vand.u32 %v5518, 4294901760
          %v5520 = vsub.f32 %v5518, %v5519
          %v5521 = vand.u32 %v5520, 4294901760
          %5522 = vmatpush.xpose.msra.mxu0 %v5521
          %v5523 = vand.u32 %v4459, 4294901760
          %v5524 = vsub.f32 %v4459, %v5523
          %v5525 = vand.u32 %v5524, 4294901760
          %v5526 = vsub.f32 %v5524, %v5525
          %v5527 = vand.u32 %v5526, 4294901760
          %5528 = vmatpush.xpose.msra.mxu0 %v5527
          %v5529 = vand.u32 %v4456, 4294901760
          %v5530 = vsub.f32 %v4456, %v5529
          %v5531 = vand.u32 %v5530, 4294901760
          %v5532 = vsub.f32 %v5530, %v5531
          %v5533 = vand.u32 %v5532, 4294901760
          %5534 = vmatpush.xpose.msra.mxu0 %v5533
          %v5535 = vand.u32 %v4453, 4294901760
          %v5536 = vsub.f32 %v4453, %v5535
          %v5537 = vand.u32 %v5536, 4294901760
          %v5538 = vsub.f32 %v5536, %v5537
          %v5539 = vand.u32 %v5538, 4294901760
          %5540 = vmatpush.xpose.msra.mxu0 %v5539
          %v5541 = vand.u32 %v4450, 4294901760
          %v5542 = vsub.f32 %v4450, %v5541
          %v5543 = vand.u32 %v5542, 4294901760
          %v5544 = vsub.f32 %v5542, %v5543
          %v5545 = vand.u32 %v5544, 4294901760
          %5546 = vmatpush.xpose.msra.mxu0 %v5545
          %v5547 = vand.u32 %v4447, 4294901760
          %v5548 = vsub.f32 %v4447, %v5547
          %v5549 = vand.u32 %v5548, 4294901760
          %v5550 = vsub.f32 %v5548, %v5549
          %v5551 = vand.u32 %v5550, 4294901760
          %5552 = vmatpush.xpose.msra.mxu0 %v5551
          %v5553 = vand.u32 %v4348, 4294901760
          %5554 = vmatmul.f32.gmra.mxu0 %v5553
          %v5555 = vpop.f32.mrf.mxu0
          %v5556 = vadd.f32 %v5455, %v5555
          %5557 = vdwg.mxu0
          %v5558 = vand.u32 %v4492, 4294901760
          %v5559 = vsub.f32 %v4492, %v5558
          %5560 = vmatpush.xpose.msra.mxu0 %v5559
          %v5561 = vand.u32 %v4489, 4294901760
          %v5562 = vsub.f32 %v4489, %v5561
          %5563 = vmatpush.xpose.msra.mxu0 %v5562
          %v5564 = vand.u32 %v4486, 4294901760
          %v5565 = vsub.f32 %v4486, %v5564
          %5566 = vmatpush.xpose.msra.mxu0 %v5565
          %v5567 = vand.u32 %v4483, 4294901760
          %v5568 = vsub.f32 %v4483, %v5567
          %5569 = vmatpush.xpose.msra.mxu0 %v5568
          %v5570 = vand.u32 %v4480, 4294901760
          %v5571 = vsub.f32 %v4480, %v5570
          %5572 = vmatpush.xpose.msra.mxu0 %v5571
          %v5573 = vand.u32 %v4477, 4294901760
          %v5574 = vsub.f32 %v4477, %v5573
          %5575 = vmatpush.xpose.msra.mxu0 %v5574
          %v5576 = vand.u32 %v4474, 4294901760
          %v5577 = vsub.f32 %v4474, %v5576
          %5578 = vmatpush.xpose.msra.mxu0 %v5577
          %v5579 = vand.u32 %v4471, 4294901760
          %v5580 = vsub.f32 %v4471, %v5579
          %5581 = vmatpush.xpose.msra.mxu0 %v5580
          %v5582 = vand.u32 %v4468, 4294901760
          %v5583 = vsub.f32 %v4468, %v5582
          %5584 = vmatpush.xpose.msra.mxu0 %v5583
          %v5585 = vand.u32 %v4465, 4294901760
          %v5586 = vsub.f32 %v4465, %v5585
          %5587 = vmatpush.xpose.msra.mxu0 %v5586
          %v5588 = vand.u32 %v4462, 4294901760
          %v5589 = vsub.f32 %v4462, %v5588
          %5590 = vmatpush.xpose.msra.mxu0 %v5589
          %v5591 = vand.u32 %v4459, 4294901760
          %v5592 = vsub.f32 %v4459, %v5591
          %5593 = vmatpush.xpose.msra.mxu0 %v5592
          %v5594 = vand.u32 %v4456, 4294901760
          %v5595 = vsub.f32 %v4456, %v5594
          %5596 = vmatpush.xpose.msra.mxu0 %v5595
          %v5597 = vand.u32 %v4453, 4294901760
          %v5598 = vsub.f32 %v4453, %v5597
          %5599 = vmatpush.xpose.msra.mxu0 %v5598
          %v5600 = vand.u32 %v4450, 4294901760
          %v5601 = vsub.f32 %v4450, %v5600
          %5602 = vmatpush.xpose.msra.mxu0 %v5601
          %v5603 = vand.u32 %v4447, 4294901760
          %v5604 = vsub.f32 %v4447, %v5603
          %5605 = vmatpush.xpose.msra.mxu0 %v5604
          %v5606 = vand.u32 %v4348, 4294901760
          %v5607 = vsub.f32 %v4348, %v5606
          %5608 = vmatmul.f32.gmra.mxu0 %v5607
          %v5609 = vpop.f32.mrf.mxu0
          %v5610 = vadd.f32 %v5556, %v5609
          %5611 = vdwg.mxu0
          %v5612 = vand.u32 %v4492, 4294901760
          %5613 = vmatpush.xpose.msra.mxu0 %v5612
          %v5614 = vand.u32 %v4489, 4294901760
          %5615 = vmatpush.xpose.msra.mxu0 %v5614
          %v5616 = vand.u32 %v4486, 4294901760
          %5617 = vmatpush.xpose.msra.mxu0 %v5616
          %v5618 = vand.u32 %v4483, 4294901760
          %5619 = vmatpush.xpose.msra.mxu0 %v5618
          %v5620 = vand.u32 %v4480, 4294901760
          %5621 = vmatpush.xpose.msra.mxu0 %v5620
          %v5622 = vand.u32 %v4477, 4294901760
          %5623 = vmatpush.xpose.msra.mxu0 %v5622
          %v5624 = vand.u32 %v4474, 4294901760
          %5625 = vmatpush.xpose.msra.mxu0 %v5624
          %v5626 = vand.u32 %v4471, 4294901760
          %5627 = vmatpush.xpose.msra.mxu0 %v5626
          %v5628 = vand.u32 %v4468, 4294901760
          %5629 = vmatpush.xpose.msra.mxu0 %v5628
          %v5630 = vand.u32 %v4465, 4294901760
          %5631 = vmatpush.xpose.msra.mxu0 %v5630
          %v5632 = vand.u32 %v4462, 4294901760
          %5633 = vmatpush.xpose.msra.mxu0 %v5632
          %v5634 = vand.u32 %v4459, 4294901760
          %5635 = vmatpush.xpose.msra.mxu0 %v5634
          %v5636 = vand.u32 %v4456, 4294901760
          %5637 = vmatpush.xpose.msra.mxu0 %v5636
          %v5638 = vand.u32 %v4453, 4294901760
          %5639 = vmatpush.xpose.msra.mxu0 %v5638
          %v5640 = vand.u32 %v4450, 4294901760
          %5641 = vmatpush.xpose.msra.mxu0 %v5640
          %v5642 = vand.u32 %v4447, 4294901760
          %5643 = vmatpush.xpose.msra.mxu0 %v5642
          %v5644 = vand.u32 %v4348, 4294901760
          %v5645 = vsub.f32 %v4348, %v5644
          %v5646 = vand.u32 %v5645, 4294901760
          %5647 = vmatmul.f32.gmra.mxu0 %v5646
          %v5648 = vpop.f32.mrf.mxu0
          %v5649 = vadd.f32 %v5610, %v5648
          %5650 = vdwg.mxu0
          %v5651 = vand.u32 %v4492, 4294901760
          %v5652 = vsub.f32 %v4492, %v5651
          %v5653 = vand.u32 %v5652, 4294901760
          %5654 = vmatpush.xpose.msra.mxu0 %v5653
          %v5655 = vand.u32 %v4489, 4294901760
          %v5656 = vsub.f32 %v4489, %v5655
          %v5657 = vand.u32 %v5656, 4294901760
          %5658 = vmatpush.xpose.msra.mxu0 %v5657
          %v5659 = vand.u32 %v4486, 4294901760
          %v5660 = vsub.f32 %v4486, %v5659
          %v5661 = vand.u32 %v5660, 4294901760
          %5662 = vmatpush.xpose.msra.mxu0 %v5661
          %v5663 = vand.u32 %v4483, 4294901760
          %v5664 = vsub.f32 %v4483, %v5663
          %v5665 = vand.u32 %v5664, 4294901760
          %5666 = vmatpush.xpose.msra.mxu0 %v5665
          %v5667 = vand.u32 %v4480, 4294901760
          %v5668 = vsub.f32 %v4480, %v5667
          %v5669 = vand.u32 %v5668, 4294901760
          %5670 = vmatpush.xpose.msra.mxu0 %v5669
          %v5671 = vand.u32 %v4477, 4294901760
          %v5672 = vsub.f32 %v4477, %v5671
          %v5673 = vand.u32 %v5672, 4294901760
          %5674 = vmatpush.xpose.msra.mxu0 %v5673
          %v5675 = vand.u32 %v4474, 4294901760
          %v5676 = vsub.f32 %v4474, %v5675
          %v5677 = vand.u32 %v5676, 4294901760
          %5678 = vmatpush.xpose.msra.mxu0 %v5677
          %v5679 = vand.u32 %v4471, 4294901760
          %v5680 = vsub.f32 %v4471, %v5679
          %v5681 = vand.u32 %v5680, 4294901760
          %5682 = vmatpush.xpose.msra.mxu0 %v5681
          %v5683 = vand.u32 %v4468, 4294901760
          %v5684 = vsub.f32 %v4468, %v5683
          %v5685 = vand.u32 %v5684, 4294901760
          %5686 = vmatpush.xpose.msra.mxu0 %v5685
          %v5687 = vand.u32 %v4465, 4294901760
          %v5688 = vsub.f32 %v4465, %v5687
          %v5689 = vand.u32 %v5688, 4294901760
          %5690 = vmatpush.xpose.msra.mxu0 %v5689
          %v5691 = vand.u32 %v4462, 4294901760
          %v5692 = vsub.f32 %v4462, %v5691
          %v5693 = vand.u32 %v5692, 4294901760
          %5694 = vmatpush.xpose.msra.mxu0 %v5693
          %v5695 = vand.u32 %v4459, 4294901760
          %v5696 = vsub.f32 %v4459, %v5695
          %v5697 = vand.u32 %v5696, 4294901760
          %5698 = vmatpush.xpose.msra.mxu0 %v5697
          %v5699 = vand.u32 %v4456, 4294901760
          %v5700 = vsub.f32 %v4456, %v5699
          %v5701 = vand.u32 %v5700, 4294901760
          %5702 = vmatpush.xpose.msra.mxu0 %v5701
          %v5703 = vand.u32 %v4453, 4294901760
          %v5704 = vsub.f32 %v4453, %v5703
          %v5705 = vand.u32 %v5704, 4294901760
          %5706 = vmatpush.xpose.msra.mxu0 %v5705
          %v5707 = vand.u32 %v4450, 4294901760
          %v5708 = vsub.f32 %v4450, %v5707
          %v5709 = vand.u32 %v5708, 4294901760
          %5710 = vmatpush.xpose.msra.mxu0 %v5709
          %v5711 = vand.u32 %v4447, 4294901760
          %v5712 = vsub.f32 %v4447, %v5711
          %v5713 = vand.u32 %v5712, 4294901760
          %5714 = vmatpush.xpose.msra.mxu0 %v5713
          %v5715 = vand.u32 %v4348, 4294901760
          %5716 = vmatmul.f32.gmra.mxu0 %v5715
          %v5717 = vpop.f32.mrf.mxu0
          %v5718 = vadd.f32 %v5649, %v5717
          %5719 = vdwg.mxu0
          %v5720 = vand.u32 %v4492, 4294901760
          %5721 = vmatpush.xpose.msra.mxu0 %v5720
          %v5722 = vand.u32 %v4489, 4294901760
          %5723 = vmatpush.xpose.msra.mxu0 %v5722
          %v5724 = vand.u32 %v4486, 4294901760
          %5725 = vmatpush.xpose.msra.mxu0 %v5724
          %v5726 = vand.u32 %v4483, 4294901760
          %5727 = vmatpush.xpose.msra.mxu0 %v5726
          %v5728 = vand.u32 %v4480, 4294901760
          %5729 = vmatpush.xpose.msra.mxu0 %v5728
          %v5730 = vand.u32 %v4477, 4294901760
          %5731 = vmatpush.xpose.msra.mxu0 %v5730
          %v5732 = vand.u32 %v4474, 4294901760
          %5733 = vmatpush.xpose.msra.mxu0 %v5732
          %v5734 = vand.u32 %v4471, 4294901760
          %5735 = vmatpush.xpose.msra.mxu0 %v5734
          %v5736 = vand.u32 %v4468, 4294901760
          %5737 = vmatpush.xpose.msra.mxu0 %v5736
          %v5738 = vand.u32 %v4465, 4294901760
          %5739 = vmatpush.xpose.msra.mxu0 %v5738
          %v5740 = vand.u32 %v4462, 4294901760
          %5741 = vmatpush.xpose.msra.mxu0 %v5740
          %v5742 = vand.u32 %v4459, 4294901760
          %5743 = vmatpush.xpose.msra.mxu0 %v5742
          %v5744 = vand.u32 %v4456, 4294901760
          %5745 = vmatpush.xpose.msra.mxu0 %v5744
          %v5746 = vand.u32 %v4453, 4294901760
          %5747 = vmatpush.xpose.msra.mxu0 %v5746
          %v5748 = vand.u32 %v4450, 4294901760
          %5749 = vmatpush.xpose.msra.mxu0 %v5748
          %v5750 = vand.u32 %v4447, 4294901760
          %5751 = vmatpush.xpose.msra.mxu0 %v5750
          %v5752 = vand.u32 %v4348, 4294901760
          %5753 = vmatmul.f32.gmra.mxu0 %v5752
          %v5754 = vpop.f32.mrf.mxu0
          %v5755 = vadd.f32 %v5718, %v5754
          %5756 = vdwg.mxu0
          %v5757 = vand.u32 %v4540, 4294901760
          %5758 = vmatpush.xpose.msra.mxu0 %v5757
          %v5759 = vand.u32 %v4537, 4294901760
          %5760 = vmatpush.xpose.msra.mxu0 %v5759
          %v5761 = vand.u32 %v4534, 4294901760
          %5762 = vmatpush.xpose.msra.mxu0 %v5761
          %v5763 = vand.u32 %v4531, 4294901760
          %5764 = vmatpush.xpose.msra.mxu0 %v5763
          %v5765 = vand.u32 %v4528, 4294901760
          %5766 = vmatpush.xpose.msra.mxu0 %v5765
          %v5767 = vand.u32 %v4525, 4294901760
          %5768 = vmatpush.xpose.msra.mxu0 %v5767
          %v5769 = vand.u32 %v4522, 4294901760
          %5770 = vmatpush.xpose.msra.mxu0 %v5769
          %v5771 = vand.u32 %v4519, 4294901760
          %5772 = vmatpush.xpose.msra.mxu0 %v5771
          %v5773 = vand.u32 %v4516, 4294901760
          %5774 = vmatpush.xpose.msra.mxu0 %v5773
          %v5775 = vand.u32 %v4513, 4294901760
          %5776 = vmatpush.xpose.msra.mxu0 %v5775
          %v5777 = vand.u32 %v4510, 4294901760
          %5778 = vmatpush.xpose.msra.mxu0 %v5777
          %v5779 = vand.u32 %v4507, 4294901760
          %5780 = vmatpush.xpose.msra.mxu0 %v5779
          %v5781 = vand.u32 %v4504, 4294901760
          %5782 = vmatpush.xpose.msra.mxu0 %v5781
          %v5783 = vand.u32 %v4501, 4294901760
          %5784 = vmatpush.xpose.msra.mxu0 %v5783
          %v5785 = vand.u32 %v4498, 4294901760
          %5786 = vmatpush.xpose.msra.mxu0 %v5785
          %v5787 = vand.u32 %v4495, 4294901760
          %5788 = vmatpush.xpose.msra.mxu0 %v5787
          %v5789 = vand.u32 %v4348, 4294901760
          %v5790 = vsub.f32 %v4348, %v5789
          %v5791 = vand.u32 %v5790, 4294901760
          %v5792 = vsub.f32 %v5790, %v5791
          %v5793 = vand.u32 %v5792, 4294901760
          %5794 = vmatmul.f32.gmra.mxu0 %v5793
          %v5795 = vpop.f32.mrf.mxu0
          %v5796 = vadd.f32 0.0, %v5795
          %5797 = vdwg.mxu0
          %v5798 = vand.u32 %v4540, 4294901760
          %v5799 = vsub.f32 %v4540, %v5798
          %v5800 = vand.u32 %v5799, 4294901760
          %v5801 = vsub.f32 %v5799, %v5800
          %v5802 = vand.u32 %v5801, 4294901760
          %5803 = vmatpush.xpose.msra.mxu0 %v5802
          %v5804 = vand.u32 %v4537, 4294901760
          %v5805 = vsub.f32 %v4537, %v5804
          %v5806 = vand.u32 %v5805, 4294901760
          %v5807 = vsub.f32 %v5805, %v5806
          %v5808 = vand.u32 %v5807, 4294901760
          %5809 = vmatpush.xpose.msra.mxu0 %v5808
          %v5810 = vand.u32 %v4534, 4294901760
          %v5811 = vsub.f32 %v4534, %v5810
          %v5812 = vand.u32 %v5811, 4294901760
          %v5813 = vsub.f32 %v5811, %v5812
          %v5814 = vand.u32 %v5813, 4294901760
          %5815 = vmatpush.xpose.msra.mxu0 %v5814
          %v5816 = vand.u32 %v4531, 4294901760
          %v5817 = vsub.f32 %v4531, %v5816
          %v5818 = vand.u32 %v5817, 4294901760
          %v5819 = vsub.f32 %v5817, %v5818
          %v5820 = vand.u32 %v5819, 4294901760
          %5821 = vmatpush.xpose.msra.mxu0 %v5820
          %v5822 = vand.u32 %v4528, 4294901760
          %v5823 = vsub.f32 %v4528, %v5822
          %v5824 = vand.u32 %v5823, 4294901760
          %v5825 = vsub.f32 %v5823, %v5824
          %v5826 = vand.u32 %v5825, 4294901760
          %5827 = vmatpush.xpose.msra.mxu0 %v5826
          %v5828 = vand.u32 %v4525, 4294901760
          %v5829 = vsub.f32 %v4525, %v5828
          %v5830 = vand.u32 %v5829, 4294901760
          %v5831 = vsub.f32 %v5829, %v5830
          %v5832 = vand.u32 %v5831, 4294901760
          %5833 = vmatpush.xpose.msra.mxu0 %v5832
          %v5834 = vand.u32 %v4522, 4294901760
          %v5835 = vsub.f32 %v4522, %v5834
          %v5836 = vand.u32 %v5835, 4294901760
          %v5837 = vsub.f32 %v5835, %v5836
          %v5838 = vand.u32 %v5837, 4294901760
          %5839 = vmatpush.xpose.msra.mxu0 %v5838
          %v5840 = vand.u32 %v4519, 4294901760
          %v5841 = vsub.f32 %v4519, %v5840
          %v5842 = vand.u32 %v5841, 4294901760
          %v5843 = vsub.f32 %v5841, %v5842
          %v5844 = vand.u32 %v5843, 4294901760
          %5845 = vmatpush.xpose.msra.mxu0 %v5844
          %v5846 = vand.u32 %v4516, 4294901760
          %v5847 = vsub.f32 %v4516, %v5846
          %v5848 = vand.u32 %v5847, 4294901760
          %v5849 = vsub.f32 %v5847, %v5848
          %v5850 = vand.u32 %v5849, 4294901760
          %5851 = vmatpush.xpose.msra.mxu0 %v5850
          %v5852 = vand.u32 %v4513, 4294901760
          %v5853 = vsub.f32 %v4513, %v5852
          %v5854 = vand.u32 %v5853, 4294901760
          %v5855 = vsub.f32 %v5853, %v5854
          %v5856 = vand.u32 %v5855, 4294901760
          %5857 = vmatpush.xpose.msra.mxu0 %v5856
          %v5858 = vand.u32 %v4510, 4294901760
          %v5859 = vsub.f32 %v4510, %v5858
          %v5860 = vand.u32 %v5859, 4294901760
          %v5861 = vsub.f32 %v5859, %v5860
          %v5862 = vand.u32 %v5861, 4294901760
          %5863 = vmatpush.xpose.msra.mxu0 %v5862
          %v5864 = vand.u32 %v4507, 4294901760
          %v5865 = vsub.f32 %v4507, %v5864
          %v5866 = vand.u32 %v5865, 4294901760
          %v5867 = vsub.f32 %v5865, %v5866
          %v5868 = vand.u32 %v5867, 4294901760
          %5869 = vmatpush.xpose.msra.mxu0 %v5868
          %v5870 = vand.u32 %v4504, 4294901760
          %v5871 = vsub.f32 %v4504, %v5870
          %v5872 = vand.u32 %v5871, 4294901760
          %v5873 = vsub.f32 %v5871, %v5872
          %v5874 = vand.u32 %v5873, 4294901760
          %5875 = vmatpush.xpose.msra.mxu0 %v5874
          %v5876 = vand.u32 %v4501, 4294901760
          %v5877 = vsub.f32 %v4501, %v5876
          %v5878 = vand.u32 %v5877, 4294901760
          %v5879 = vsub.f32 %v5877, %v5878
          %v5880 = vand.u32 %v5879, 4294901760
          %5881 = vmatpush.xpose.msra.mxu0 %v5880
          %v5882 = vand.u32 %v4498, 4294901760
          %v5883 = vsub.f32 %v4498, %v5882
          %v5884 = vand.u32 %v5883, 4294901760
          %v5885 = vsub.f32 %v5883, %v5884
          %v5886 = vand.u32 %v5885, 4294901760
          %5887 = vmatpush.xpose.msra.mxu0 %v5886
          %v5888 = vand.u32 %v4495, 4294901760
          %v5889 = vsub.f32 %v4495, %v5888
          %v5890 = vand.u32 %v5889, 4294901760
          %v5891 = vsub.f32 %v5889, %v5890
          %v5892 = vand.u32 %v5891, 4294901760
          %5893 = vmatpush.xpose.msra.mxu0 %v5892
          %v5894 = vand.u32 %v4348, 4294901760
          %5895 = vmatmul.f32.gmra.mxu0 %v5894
          %v5896 = vpop.f32.mrf.mxu0
          %v5897 = vadd.f32 %v5796, %v5896
          %5898 = vdwg.mxu0
          %v5899 = vand.u32 %v4540, 4294901760
          %v5900 = vsub.f32 %v4540, %v5899
          %5901 = vmatpush.xpose.msra.mxu0 %v5900
          %v5902 = vand.u32 %v4537, 4294901760
          %v5903 = vsub.f32 %v4537, %v5902
          %5904 = vmatpush.xpose.msra.mxu0 %v5903
          %v5905 = vand.u32 %v4534, 4294901760
          %v5906 = vsub.f32 %v4534, %v5905
          %5907 = vmatpush.xpose.msra.mxu0 %v5906
          %v5908 = vand.u32 %v4531, 4294901760
          %v5909 = vsub.f32 %v4531, %v5908
          %5910 = vmatpush.xpose.msra.mxu0 %v5909
          %v5911 = vand.u32 %v4528, 4294901760
          %v5912 = vsub.f32 %v4528, %v5911
          %5913 = vmatpush.xpose.msra.mxu0 %v5912
          %v5914 = vand.u32 %v4525, 4294901760
          %v5915 = vsub.f32 %v4525, %v5914
          %5916 = vmatpush.xpose.msra.mxu0 %v5915
          %v5917 = vand.u32 %v4522, 4294901760
          %v5918 = vsub.f32 %v4522, %v5917
          %5919 = vmatpush.xpose.msra.mxu0 %v5918
          %v5920 = vand.u32 %v4519, 4294901760
          %v5921 = vsub.f32 %v4519, %v5920
          %5922 = vmatpush.xpose.msra.mxu0 %v5921
          %v5923 = vand.u32 %v4516, 4294901760
          %v5924 = vsub.f32 %v4516, %v5923
          %5925 = vmatpush.xpose.msra.mxu0 %v5924
          %v5926 = vand.u32 %v4513, 4294901760
          %v5927 = vsub.f32 %v4513, %v5926
          %5928 = vmatpush.xpose.msra.mxu0 %v5927
          %v5929 = vand.u32 %v4510, 4294901760
          %v5930 = vsub.f32 %v4510, %v5929
          %5931 = vmatpush.xpose.msra.mxu0 %v5930
          %v5932 = vand.u32 %v4507, 4294901760
          %v5933 = vsub.f32 %v4507, %v5932
          %5934 = vmatpush.xpose.msra.mxu0 %v5933
          %v5935 = vand.u32 %v4504, 4294901760
          %v5936 = vsub.f32 %v4504, %v5935
          %5937 = vmatpush.xpose.msra.mxu0 %v5936
          %v5938 = vand.u32 %v4501, 4294901760
          %v5939 = vsub.f32 %v4501, %v5938
          %5940 = vmatpush.xpose.msra.mxu0 %v5939
          %v5941 = vand.u32 %v4498, 4294901760
          %v5942 = vsub.f32 %v4498, %v5941
          %5943 = vmatpush.xpose.msra.mxu0 %v5942
          %v5944 = vand.u32 %v4495, 4294901760
          %v5945 = vsub.f32 %v4495, %v5944
          %5946 = vmatpush.xpose.msra.mxu0 %v5945
          %v5947 = vand.u32 %v4348, 4294901760
          %v5948 = vsub.f32 %v4348, %v5947
          %5949 = vmatmul.f32.gmra.mxu0 %v5948
          %v5950 = vpop.f32.mrf.mxu0
          %v5951 = vadd.f32 %v5897, %v5950
          %5952 = vdwg.mxu0
          %v5953 = vand.u32 %v4540, 4294901760
          %5954 = vmatpush.xpose.msra.mxu0 %v5953
          %v5955 = vand.u32 %v4537, 4294901760
          %5956 = vmatpush.xpose.msra.mxu0 %v5955
          %v5957 = vand.u32 %v4534, 4294901760
          %5958 = vmatpush.xpose.msra.mxu0 %v5957
          %v5959 = vand.u32 %v4531, 4294901760
          %5960 = vmatpush.xpose.msra.mxu0 %v5959
          %v5961 = vand.u32 %v4528, 4294901760
          %5962 = vmatpush.xpose.msra.mxu0 %v5961
          %v5963 = vand.u32 %v4525, 4294901760
          %5964 = vmatpush.xpose.msra.mxu0 %v5963
          %v5965 = vand.u32 %v4522, 4294901760
          %5966 = vmatpush.xpose.msra.mxu0 %v5965
          %v5967 = vand.u32 %v4519, 4294901760
          %5968 = vmatpush.xpose.msra.mxu0 %v5967
          %v5969 = vand.u32 %v4516, 4294901760
          %5970 = vmatpush.xpose.msra.mxu0 %v5969
          %v5971 = vand.u32 %v4513, 4294901760
          %5972 = vmatpush.xpose.msra.mxu0 %v5971
          %v5973 = vand.u32 %v4510, 4294901760
          %5974 = vmatpush.xpose.msra.mxu0 %v5973
          %v5975 = vand.u32 %v4507, 4294901760
          %5976 = vmatpush.xpose.msra.mxu0 %v5975
          %v5977 = vand.u32 %v4504, 4294901760
          %5978 = vmatpush.xpose.msra.mxu0 %v5977
          %v5979 = vand.u32 %v4501, 4294901760
          %5980 = vmatpush.xpose.msra.mxu0 %v5979
          %v5981 = vand.u32 %v4498, 4294901760
          %5982 = vmatpush.xpose.msra.mxu0 %v5981
          %v5983 = vand.u32 %v4495, 4294901760
          %5984 = vmatpush.xpose.msra.mxu0 %v5983
          %v5985 = vand.u32 %v4348, 4294901760
          %v5986 = vsub.f32 %v4348, %v5985
          %v5987 = vand.u32 %v5986, 4294901760
          %5988 = vmatmul.f32.gmra.mxu0 %v5987
          %v5989 = vpop.f32.mrf.mxu0
          %v5990 = vadd.f32 %v5951, %v5989
          %5991 = vdwg.mxu0
          %v5992 = vand.u32 %v4540, 4294901760
          %v5993 = vsub.f32 %v4540, %v5992
          %v5994 = vand.u32 %v5993, 4294901760
          %5995 = vmatpush.xpose.msra.mxu0 %v5994
          %v5996 = vand.u32 %v4537, 4294901760
          %v5997 = vsub.f32 %v4537, %v5996
          %v5998 = vand.u32 %v5997, 4294901760
          %5999 = vmatpush.xpose.msra.mxu0 %v5998
          %v6000 = vand.u32 %v4534, 4294901760
          %v6001 = vsub.f32 %v4534, %v6000
          %v6002 = vand.u32 %v6001, 4294901760
          %6003 = vmatpush.xpose.msra.mxu0 %v6002
          %v6004 = vand.u32 %v4531, 4294901760
          %v6005 = vsub.f32 %v4531, %v6004
          %v6006 = vand.u32 %v6005, 4294901760
          %6007 = vmatpush.xpose.msra.mxu0 %v6006
          %v6008 = vand.u32 %v4528, 4294901760
          %v6009 = vsub.f32 %v4528, %v6008
          %v6010 = vand.u32 %v6009, 4294901760
          %6011 = vmatpush.xpose.msra.mxu0 %v6010
          %v6012 = vand.u32 %v4525, 4294901760
          %v6013 = vsub.f32 %v4525, %v6012
          %v6014 = vand.u32 %v6013, 4294901760
          %6015 = vmatpush.xpose.msra.mxu0 %v6014
          %v6016 = vand.u32 %v4522, 4294901760
          %v6017 = vsub.f32 %v4522, %v6016
          %v6018 = vand.u32 %v6017, 4294901760
          %6019 = vmatpush.xpose.msra.mxu0 %v6018
          %v6020 = vand.u32 %v4519, 4294901760
          %v6021 = vsub.f32 %v4519, %v6020
          %v6022 = vand.u32 %v6021, 4294901760
          %6023 = vmatpush.xpose.msra.mxu0 %v6022
          %v6024 = vand.u32 %v4516, 4294901760
          %v6025 = vsub.f32 %v4516, %v6024
          %v6026 = vand.u32 %v6025, 4294901760
          %6027 = vmatpush.xpose.msra.mxu0 %v6026
          %v6028 = vand.u32 %v4513, 4294901760
          %v6029 = vsub.f32 %v4513, %v6028
          %v6030 = vand.u32 %v6029, 4294901760
          %6031 = vmatpush.xpose.msra.mxu0 %v6030
          %v6032 = vand.u32 %v4510, 4294901760
          %v6033 = vsub.f32 %v4510, %v6032
          %v6034 = vand.u32 %v6033, 4294901760
          %6035 = vmatpush.xpose.msra.mxu0 %v6034
          %v6036 = vand.u32 %v4507, 4294901760
          %v6037 = vsub.f32 %v4507, %v6036
          %v6038 = vand.u32 %v6037, 4294901760
          %6039 = vmatpush.xpose.msra.mxu0 %v6038
          %v6040 = vand.u32 %v4504, 4294901760
          %v6041 = vsub.f32 %v4504, %v6040
          %v6042 = vand.u32 %v6041, 4294901760
          %6043 = vmatpush.xpose.msra.mxu0 %v6042
          %v6044 = vand.u32 %v4501, 4294901760
          %v6045 = vsub.f32 %v4501, %v6044
          %v6046 = vand.u32 %v6045, 4294901760
          %6047 = vmatpush.xpose.msra.mxu0 %v6046
          %v6048 = vand.u32 %v4498, 4294901760
          %v6049 = vsub.f32 %v4498, %v6048
          %v6050 = vand.u32 %v6049, 4294901760
          %6051 = vmatpush.xpose.msra.mxu0 %v6050
          %v6052 = vand.u32 %v4495, 4294901760
          %v6053 = vsub.f32 %v4495, %v6052
          %v6054 = vand.u32 %v6053, 4294901760
          %6055 = vmatpush.xpose.msra.mxu0 %v6054
          %v6056 = vand.u32 %v4348, 4294901760
          %6057 = vmatmul.f32.gmra.mxu0 %v6056
          %v6058 = vpop.f32.mrf.mxu0
          %v6059 = vadd.f32 %v5990, %v6058
          %6060 = vdwg.mxu0
          %v6061 = vand.u32 %v4540, 4294901760
          %6062 = vmatpush.xpose.msra.mxu0 %v6061
          %v6063 = vand.u32 %v4537, 4294901760
          %6064 = vmatpush.xpose.msra.mxu0 %v6063
          %v6065 = vand.u32 %v4534, 4294901760
          %6066 = vmatpush.xpose.msra.mxu0 %v6065
          %v6067 = vand.u32 %v4531, 4294901760
          %6068 = vmatpush.xpose.msra.mxu0 %v6067
          %v6069 = vand.u32 %v4528, 4294901760
          %6070 = vmatpush.xpose.msra.mxu0 %v6069
          %v6071 = vand.u32 %v4525, 4294901760
          %6072 = vmatpush.xpose.msra.mxu0 %v6071
          %v6073 = vand.u32 %v4522, 4294901760
          %6074 = vmatpush.xpose.msra.mxu0 %v6073
          %v6075 = vand.u32 %v4519, 4294901760
          %6076 = vmatpush.xpose.msra.mxu0 %v6075
          %v6077 = vand.u32 %v4516, 4294901760
          %6078 = vmatpush.xpose.msra.mxu0 %v6077
          %v6079 = vand.u32 %v4513, 4294901760
          %6080 = vmatpush.xpose.msra.mxu0 %v6079
          %v6081 = vand.u32 %v4510, 4294901760
          %6082 = vmatpush.xpose.msra.mxu0 %v6081
          %v6083 = vand.u32 %v4507, 4294901760
          %6084 = vmatpush.xpose.msra.mxu0 %v6083
          %v6085 = vand.u32 %v4504, 4294901760
          %6086 = vmatpush.xpose.msra.mxu0 %v6085
          %v6087 = vand.u32 %v4501, 4294901760
          %6088 = vmatpush.xpose.msra.mxu0 %v6087
          %v6089 = vand.u32 %v4498, 4294901760
          %6090 = vmatpush.xpose.msra.mxu0 %v6089
          %v6091 = vand.u32 %v4495, 4294901760
          %6092 = vmatpush.xpose.msra.mxu0 %v6091
          %v6093 = vand.u32 %v4348, 4294901760
          %6094 = vmatmul.f32.gmra.mxu0 %v6093
          %v6095 = vpop.f32.mrf.mxu0
          %v6096 = vadd.f32 %v6059, %v6095
          %6097 = vdwg.mxu0
          %v6098 = vand.u32 %v4588, 4294901760
          %6099 = vmatpush.xpose.msra.mxu0 %v6098
          %v6100 = vand.u32 %v4585, 4294901760
          %6101 = vmatpush.xpose.msra.mxu0 %v6100
          %v6102 = vand.u32 %v4582, 4294901760
          %6103 = vmatpush.xpose.msra.mxu0 %v6102
          %v6104 = vand.u32 %v4579, 4294901760
          %6105 = vmatpush.xpose.msra.mxu0 %v6104
          %v6106 = vand.u32 %v4576, 4294901760
          %6107 = vmatpush.xpose.msra.mxu0 %v6106
          %v6108 = vand.u32 %v4573, 4294901760
          %6109 = vmatpush.xpose.msra.mxu0 %v6108
          %v6110 = vand.u32 %v4570, 4294901760
          %6111 = vmatpush.xpose.msra.mxu0 %v6110
          %v6112 = vand.u32 %v4567, 4294901760
          %6113 = vmatpush.xpose.msra.mxu0 %v6112
          %v6114 = vand.u32 %v4564, 4294901760
          %6115 = vmatpush.xpose.msra.mxu0 %v6114
          %v6116 = vand.u32 %v4561, 4294901760
          %6117 = vmatpush.xpose.msra.mxu0 %v6116
          %v6118 = vand.u32 %v4558, 4294901760
          %6119 = vmatpush.xpose.msra.mxu0 %v6118
          %v6120 = vand.u32 %v4555, 4294901760
          %6121 = vmatpush.xpose.msra.mxu0 %v6120
          %v6122 = vand.u32 %v4552, 4294901760
          %6123 = vmatpush.xpose.msra.mxu0 %v6122
          %v6124 = vand.u32 %v4549, 4294901760
          %6125 = vmatpush.xpose.msra.mxu0 %v6124
          %v6126 = vand.u32 %v4546, 4294901760
          %6127 = vmatpush.xpose.msra.mxu0 %v6126
          %v6128 = vand.u32 %v4543, 4294901760
          %6129 = vmatpush.xpose.msra.mxu0 %v6128
          %v6130 = vand.u32 %v4348, 4294901760
          %v6131 = vsub.f32 %v4348, %v6130
          %v6132 = vand.u32 %v6131, 4294901760
          %v6133 = vsub.f32 %v6131, %v6132
          %v6134 = vand.u32 %v6133, 4294901760
          %6135 = vmatmul.f32.gmra.mxu0 %v6134
          %v6136 = vpop.f32.mrf.mxu0
          %v6137 = vadd.f32 0.0, %v6136
          %6138 = vdwg.mxu0
          %v6139 = vand.u32 %v4588, 4294901760
          %v6140 = vsub.f32 %v4588, %v6139
          %v6141 = vand.u32 %v6140, 4294901760
          %v6142 = vsub.f32 %v6140, %v6141
          %v6143 = vand.u32 %v6142, 4294901760
          %6144 = vmatpush.xpose.msra.mxu0 %v6143
          %v6145 = vand.u32 %v4585, 4294901760
          %v6146 = vsub.f32 %v4585, %v6145
          %v6147 = vand.u32 %v6146, 4294901760
          %v6148 = vsub.f32 %v6146, %v6147
          %v6149 = vand.u32 %v6148, 4294901760
          %6150 = vmatpush.xpose.msra.mxu0 %v6149
          %v6151 = vand.u32 %v4582, 4294901760
          %v6152 = vsub.f32 %v4582, %v6151
          %v6153 = vand.u32 %v6152, 4294901760
          %v6154 = vsub.f32 %v6152, %v6153
          %v6155 = vand.u32 %v6154, 4294901760
          %6156 = vmatpush.xpose.msra.mxu0 %v6155
          %v6157 = vand.u32 %v4579, 4294901760
          %v6158 = vsub.f32 %v4579, %v6157
          %v6159 = vand.u32 %v6158, 4294901760
          %v6160 = vsub.f32 %v6158, %v6159
          %v6161 = vand.u32 %v6160, 4294901760
          %6162 = vmatpush.xpose.msra.mxu0 %v6161
          %v6163 = vand.u32 %v4576, 4294901760
          %v6164 = vsub.f32 %v4576, %v6163
          %v6165 = vand.u32 %v6164, 4294901760
          %v6166 = vsub.f32 %v6164, %v6165
          %v6167 = vand.u32 %v6166, 4294901760
          %6168 = vmatpush.xpose.msra.mxu0 %v6167
          %v6169 = vand.u32 %v4573, 4294901760
          %v6170 = vsub.f32 %v4573, %v6169
          %v6171 = vand.u32 %v6170, 4294901760
          %v6172 = vsub.f32 %v6170, %v6171
          %v6173 = vand.u32 %v6172, 4294901760
          %6174 = vmatpush.xpose.msra.mxu0 %v6173
          %v6175 = vand.u32 %v4570, 4294901760
          %v6176 = vsub.f32 %v4570, %v6175
          %v6177 = vand.u32 %v6176, 4294901760
          %v6178 = vsub.f32 %v6176, %v6177
          %v6179 = vand.u32 %v6178, 4294901760
          %6180 = vmatpush.xpose.msra.mxu0 %v6179
          %v6181 = vand.u32 %v4567, 4294901760
          %v6182 = vsub.f32 %v4567, %v6181
          %v6183 = vand.u32 %v6182, 4294901760
          %v6184 = vsub.f32 %v6182, %v6183
          %v6185 = vand.u32 %v6184, 4294901760
          %6186 = vmatpush.xpose.msra.mxu0 %v6185
          %v6187 = vand.u32 %v4564, 4294901760
          %v6188 = vsub.f32 %v4564, %v6187
          %v6189 = vand.u32 %v6188, 4294901760
          %v6190 = vsub.f32 %v6188, %v6189
          %v6191 = vand.u32 %v6190, 4294901760
          %6192 = vmatpush.xpose.msra.mxu0 %v6191
          %v6193 = vand.u32 %v4561, 4294901760
          %v6194 = vsub.f32 %v4561, %v6193
          %v6195 = vand.u32 %v6194, 4294901760
          %v6196 = vsub.f32 %v6194, %v6195
          %v6197 = vand.u32 %v6196, 4294901760
          %6198 = vmatpush.xpose.msra.mxu0 %v6197
          %v6199 = vand.u32 %v4558, 4294901760
          %v6200 = vsub.f32 %v4558, %v6199
          %v6201 = vand.u32 %v6200, 4294901760
          %v6202 = vsub.f32 %v6200, %v6201
          %v6203 = vand.u32 %v6202, 4294901760
          %6204 = vmatpush.xpose.msra.mxu0 %v6203
          %v6205 = vand.u32 %v4555, 4294901760
          %v6206 = vsub.f32 %v4555, %v6205
          %v6207 = vand.u32 %v6206, 4294901760
          %v6208 = vsub.f32 %v6206, %v6207
          %v6209 = vand.u32 %v6208, 4294901760
          %6210 = vmatpush.xpose.msra.mxu0 %v6209
          %v6211 = vand.u32 %v4552, 4294901760
          %v6212 = vsub.f32 %v4552, %v6211
          %v6213 = vand.u32 %v6212, 4294901760
          %v6214 = vsub.f32 %v6212, %v6213
          %v6215 = vand.u32 %v6214, 4294901760
          %6216 = vmatpush.xpose.msra.mxu0 %v6215
          %v6217 = vand.u32 %v4549, 4294901760
          %v6218 = vsub.f32 %v4549, %v6217
          %v6219 = vand.u32 %v6218, 4294901760
          %v6220 = vsub.f32 %v6218, %v6219
          %v6221 = vand.u32 %v6220, 4294901760
          %6222 = vmatpush.xpose.msra.mxu0 %v6221
          %v6223 = vand.u32 %v4546, 4294901760
          %v6224 = vsub.f32 %v4546, %v6223
          %v6225 = vand.u32 %v6224, 4294901760
          %v6226 = vsub.f32 %v6224, %v6225
          %v6227 = vand.u32 %v6226, 4294901760
          %6228 = vmatpush.xpose.msra.mxu0 %v6227
          %v6229 = vand.u32 %v4543, 4294901760
          %v6230 = vsub.f32 %v4543, %v6229
          %v6231 = vand.u32 %v6230, 4294901760
          %v6232 = vsub.f32 %v6230, %v6231
          %v6233 = vand.u32 %v6232, 4294901760
          %6234 = vmatpush.xpose.msra.mxu0 %v6233
          %v6235 = vand.u32 %v4348, 4294901760
          %6236 = vmatmul.f32.gmra.mxu0 %v6235
          %v6237 = vpop.f32.mrf.mxu0
          %v6238 = vadd.f32 %v6137, %v6237
          %6239 = vdwg.mxu0
          %v6240 = vand.u32 %v4588, 4294901760
          %v6241 = vsub.f32 %v4588, %v6240
          %6242 = vmatpush.xpose.msra.mxu0 %v6241
          %v6243 = vand.u32 %v4585, 4294901760
          %v6244 = vsub.f32 %v4585, %v6243
          %6245 = vmatpush.xpose.msra.mxu0 %v6244
          %v6246 = vand.u32 %v4582, 4294901760
          %v6247 = vsub.f32 %v4582, %v6246
          %6248 = vmatpush.xpose.msra.mxu0 %v6247
          %v6249 = vand.u32 %v4579, 4294901760
          %v6250 = vsub.f32 %v4579, %v6249
          %6251 = vmatpush.xpose.msra.mxu0 %v6250
          %v6252 = vand.u32 %v4576, 4294901760
          %v6253 = vsub.f32 %v4576, %v6252
          %6254 = vmatpush.xpose.msra.mxu0 %v6253
          %v6255 = vand.u32 %v4573, 4294901760
          %v6256 = vsub.f32 %v4573, %v6255
          %6257 = vmatpush.xpose.msra.mxu0 %v6256
          %v6258 = vand.u32 %v4570, 4294901760
          %v6259 = vsub.f32 %v4570, %v6258
          %6260 = vmatpush.xpose.msra.mxu0 %v6259
          %v6261 = vand.u32 %v4567, 4294901760
          %v6262 = vsub.f32 %v4567, %v6261
          %6263 = vmatpush.xpose.msra.mxu0 %v6262
          %v6264 = vand.u32 %v4564, 4294901760
          %v6265 = vsub.f32 %v4564, %v6264
          %6266 = vmatpush.xpose.msra.mxu0 %v6265
          %v6267 = vand.u32 %v4561, 4294901760
          %v6268 = vsub.f32 %v4561, %v6267
          %6269 = vmatpush.xpose.msra.mxu0 %v6268
          %v6270 = vand.u32 %v4558, 4294901760
          %v6271 = vsub.f32 %v4558, %v6270
          %6272 = vmatpush.xpose.msra.mxu0 %v6271
          %v6273 = vand.u32 %v4555, 4294901760
          %v6274 = vsub.f32 %v4555, %v6273
          %6275 = vmatpush.xpose.msra.mxu0 %v6274
          %v6276 = vand.u32 %v4552, 4294901760
          %v6277 = vsub.f32 %v4552, %v6276
          %6278 = vmatpush.xpose.msra.mxu0 %v6277
          %v6279 = vand.u32 %v4549, 4294901760
          %v6280 = vsub.f32 %v4549, %v6279
          %6281 = vmatpush.xpose.msra.mxu0 %v6280
          %v6282 = vand.u32 %v4546, 4294901760
          %v6283 = vsub.f32 %v4546, %v6282
          %6284 = vmatpush.xpose.msra.mxu0 %v6283
          %v6285 = vand.u32 %v4543, 4294901760
          %v6286 = vsub.f32 %v4543, %v6285
          %6287 = vmatpush.xpose.msra.mxu0 %v6286
          %v6288 = vand.u32 %v4348, 4294901760
          %v6289 = vsub.f32 %v4348, %v6288
          %6290 = vmatmul.f32.gmra.mxu0 %v6289
          %v6291 = vpop.f32.mrf.mxu0
          %v6292 = vadd.f32 %v6238, %v6291
          %6293 = vdwg.mxu0
          %v6294 = vand.u32 %v4588, 4294901760
          %6295 = vmatpush.xpose.msra.mxu0 %v6294
          %v6296 = vand.u32 %v4585, 4294901760
          %6297 = vmatpush.xpose.msra.mxu0 %v6296
          %v6298 = vand.u32 %v4582, 4294901760
          %6299 = vmatpush.xpose.msra.mxu0 %v6298
          %v6300 = vand.u32 %v4579, 4294901760
          %6301 = vmatpush.xpose.msra.mxu0 %v6300
          %v6302 = vand.u32 %v4576, 4294901760
          %6303 = vmatpush.xpose.msra.mxu0 %v6302
          %v6304 = vand.u32 %v4573, 4294901760
          %6305 = vmatpush.xpose.msra.mxu0 %v6304
          %v6306 = vand.u32 %v4570, 4294901760
          %6307 = vmatpush.xpose.msra.mxu0 %v6306
          %v6308 = vand.u32 %v4567, 4294901760
          %6309 = vmatpush.xpose.msra.mxu0 %v6308
          %v6310 = vand.u32 %v4564, 4294901760
          %6311 = vmatpush.xpose.msra.mxu0 %v6310
          %v6312 = vand.u32 %v4561, 4294901760
          %6313 = vmatpush.xpose.msra.mxu0 %v6312
          %v6314 = vand.u32 %v4558, 4294901760
          %6315 = vmatpush.xpose.msra.mxu0 %v6314
          %v6316 = vand.u32 %v4555, 4294901760
          %6317 = vmatpush.xpose.msra.mxu0 %v6316
          %v6318 = vand.u32 %v4552, 4294901760
          %6319 = vmatpush.xpose.msra.mxu0 %v6318
          %v6320 = vand.u32 %v4549, 4294901760
          %6321 = vmatpush.xpose.msra.mxu0 %v6320
          %v6322 = vand.u32 %v4546, 4294901760
          %6323 = vmatpush.xpose.msra.mxu0 %v6322
          %v6324 = vand.u32 %v4543, 4294901760
          %6325 = vmatpush.xpose.msra.mxu0 %v6324
          %v6326 = vand.u32 %v4348, 4294901760
          %v6327 = vsub.f32 %v4348, %v6326
          %v6328 = vand.u32 %v6327, 4294901760
          %6329 = vmatmul.f32.gmra.mxu0 %v6328
          %v6330 = vpop.f32.mrf.mxu0
          %v6331 = vadd.f32 %v6292, %v6330
          %6332 = vdwg.mxu0
          %v6333 = vand.u32 %v4588, 4294901760
          %v6334 = vsub.f32 %v4588, %v6333
          %v6335 = vand.u32 %v6334, 4294901760
          %6336 = vmatpush.xpose.msra.mxu0 %v6335
          %v6337 = vand.u32 %v4585, 4294901760
          %v6338 = vsub.f32 %v4585, %v6337
          %v6339 = vand.u32 %v6338, 4294901760
          %6340 = vmatpush.xpose.msra.mxu0 %v6339
          %v6341 = vand.u32 %v4582, 4294901760
          %v6342 = vsub.f32 %v4582, %v6341
          %v6343 = vand.u32 %v6342, 4294901760
          %6344 = vmatpush.xpose.msra.mxu0 %v6343
          %v6345 = vand.u32 %v4579, 4294901760
          %v6346 = vsub.f32 %v4579, %v6345
          %v6347 = vand.u32 %v6346, 4294901760
          %6348 = vmatpush.xpose.msra.mxu0 %v6347
          %v6349 = vand.u32 %v4576, 4294901760
          %v6350 = vsub.f32 %v4576, %v6349
          %v6351 = vand.u32 %v6350, 4294901760
          %6352 = vmatpush.xpose.msra.mxu0 %v6351
          %v6353 = vand.u32 %v4573, 4294901760
          %v6354 = vsub.f32 %v4573, %v6353
          %v6355 = vand.u32 %v6354, 4294901760
          %6356 = vmatpush.xpose.msra.mxu0 %v6355
          %v6357 = vand.u32 %v4570, 4294901760
          %v6358 = vsub.f32 %v4570, %v6357
          %v6359 = vand.u32 %v6358, 4294901760
          %6360 = vmatpush.xpose.msra.mxu0 %v6359
          %v6361 = vand.u32 %v4567, 4294901760
          %v6362 = vsub.f32 %v4567, %v6361
          %v6363 = vand.u32 %v6362, 4294901760
          %6364 = vmatpush.xpose.msra.mxu0 %v6363
          %v6365 = vand.u32 %v4564, 4294901760
          %v6366 = vsub.f32 %v4564, %v6365
          %v6367 = vand.u32 %v6366, 4294901760
          %6368 = vmatpush.xpose.msra.mxu0 %v6367
          %v6369 = vand.u32 %v4561, 4294901760
          %v6370 = vsub.f32 %v4561, %v6369
          %v6371 = vand.u32 %v6370, 4294901760
          %6372 = vmatpush.xpose.msra.mxu0 %v6371
          %v6373 = vand.u32 %v4558, 4294901760
          %v6374 = vsub.f32 %v4558, %v6373
          %v6375 = vand.u32 %v6374, 4294901760
          %6376 = vmatpush.xpose.msra.mxu0 %v6375
          %v6377 = vand.u32 %v4555, 4294901760
          %v6378 = vsub.f32 %v4555, %v6377
          %v6379 = vand.u32 %v6378, 4294901760
          %6380 = vmatpush.xpose.msra.mxu0 %v6379
          %v6381 = vand.u32 %v4552, 4294901760
          %v6382 = vsub.f32 %v4552, %v6381
          %v6383 = vand.u32 %v6382, 4294901760
          %6384 = vmatpush.xpose.msra.mxu0 %v6383
          %v6385 = vand.u32 %v4549, 4294901760
          %v6386 = vsub.f32 %v4549, %v6385
          %v6387 = vand.u32 %v6386, 4294901760
          %6388 = vmatpush.xpose.msra.mxu0 %v6387
          %v6389 = vand.u32 %v4546, 4294901760
          %v6390 = vsub.f32 %v4546, %v6389
          %v6391 = vand.u32 %v6390, 4294901760
          %6392 = vmatpush.xpose.msra.mxu0 %v6391
          %v6393 = vand.u32 %v4543, 4294901760
          %v6394 = vsub.f32 %v4543, %v6393
          %v6395 = vand.u32 %v6394, 4294901760
          %6396 = vmatpush.xpose.msra.mxu0 %v6395
          %v6397 = vand.u32 %v4348, 4294901760
          %6398 = vmatmul.f32.gmra.mxu0 %v6397
          %v6399 = vpop.f32.mrf.mxu0
          %v6400 = vadd.f32 %v6331, %v6399
          %6401 = vdwg.mxu0
          %v6402 = vand.u32 %v4588, 4294901760
          %6403 = vmatpush.xpose.msra.mxu0 %v6402
          %v6404 = vand.u32 %v4585, 4294901760
          %6405 = vmatpush.xpose.msra.mxu0 %v6404
          %v6406 = vand.u32 %v4582, 4294901760
          %6407 = vmatpush.xpose.msra.mxu0 %v6406
          %v6408 = vand.u32 %v4579, 4294901760
          %6409 = vmatpush.xpose.msra.mxu0 %v6408
          %v6410 = vand.u32 %v4576, 4294901760
          %6411 = vmatpush.xpose.msra.mxu0 %v6410
          %v6412 = vand.u32 %v4573, 4294901760
          %6413 = vmatpush.xpose.msra.mxu0 %v6412
          %v6414 = vand.u32 %v4570, 4294901760
          %6415 = vmatpush.xpose.msra.mxu0 %v6414
          %v6416 = vand.u32 %v4567, 4294901760
          %6417 = vmatpush.xpose.msra.mxu0 %v6416
          %v6418 = vand.u32 %v4564, 4294901760
          %6419 = vmatpush.xpose.msra.mxu0 %v6418
          %v6420 = vand.u32 %v4561, 4294901760
          %6421 = vmatpush.xpose.msra.mxu0 %v6420
          %v6422 = vand.u32 %v4558, 4294901760
          %6423 = vmatpush.xpose.msra.mxu0 %v6422
          %v6424 = vand.u32 %v4555, 4294901760
          %6425 = vmatpush.xpose.msra.mxu0 %v6424
          %v6426 = vand.u32 %v4552, 4294901760
          %6427 = vmatpush.xpose.msra.mxu0 %v6426
          %v6428 = vand.u32 %v4549, 4294901760
          %6429 = vmatpush.xpose.msra.mxu0 %v6428
          %v6430 = vand.u32 %v4546, 4294901760
          %6431 = vmatpush.xpose.msra.mxu0 %v6430
          %v6432 = vand.u32 %v4543, 4294901760
          %6433 = vmatpush.xpose.msra.mxu0 %v6432
          %v6434 = vand.u32 %v4348, 4294901760
          %6435 = vmatmul.f32.gmra.mxu0 %v6434
          %v6436 = vpop.f32.mrf.mxu0
          %v6437 = vadd.f32 %v6400, %v6436
          %6438 = vdwg.mxu0
          %v6439 = vand.u32 %v4636, 4294901760
          %6440 = vmatpush.xpose.msra.mxu0 %v6439
          %v6441 = vand.u32 %v4633, 4294901760
          %6442 = vmatpush.xpose.msra.mxu0 %v6441
          %v6443 = vand.u32 %v4630, 4294901760
          %6444 = vmatpush.xpose.msra.mxu0 %v6443
          %v6445 = vand.u32 %v4627, 4294901760
          %6446 = vmatpush.xpose.msra.mxu0 %v6445
          %v6447 = vand.u32 %v4624, 4294901760
          %6448 = vmatpush.xpose.msra.mxu0 %v6447
          %v6449 = vand.u32 %v4621, 4294901760
          %6450 = vmatpush.xpose.msra.mxu0 %v6449
          %v6451 = vand.u32 %v4618, 4294901760
          %6452 = vmatpush.xpose.msra.mxu0 %v6451
          %v6453 = vand.u32 %v4615, 4294901760
          %6454 = vmatpush.xpose.msra.mxu0 %v6453
          %v6455 = vand.u32 %v4612, 4294901760
          %6456 = vmatpush.xpose.msra.mxu0 %v6455
          %v6457 = vand.u32 %v4609, 4294901760
          %6458 = vmatpush.xpose.msra.mxu0 %v6457
          %v6459 = vand.u32 %v4606, 4294901760
          %6460 = vmatpush.xpose.msra.mxu0 %v6459
          %v6461 = vand.u32 %v4603, 4294901760
          %6462 = vmatpush.xpose.msra.mxu0 %v6461
          %v6463 = vand.u32 %v4600, 4294901760
          %6464 = vmatpush.xpose.msra.mxu0 %v6463
          %v6465 = vand.u32 %v4597, 4294901760
          %6466 = vmatpush.xpose.msra.mxu0 %v6465
          %v6467 = vand.u32 %v4594, 4294901760
          %6468 = vmatpush.xpose.msra.mxu0 %v6467
          %v6469 = vand.u32 %v4591, 4294901760
          %6470 = vmatpush.xpose.msra.mxu0 %v6469
          %v6471 = vand.u32 %v4348, 4294901760
          %v6472 = vsub.f32 %v4348, %v6471
          %v6473 = vand.u32 %v6472, 4294901760
          %v6474 = vsub.f32 %v6472, %v6473
          %v6475 = vand.u32 %v6474, 4294901760
          %6476 = vmatmul.f32.gmra.mxu0 %v6475
          %v6477 = vpop.f32.mrf.mxu0
          %v6478 = vadd.f32 0.0, %v6477
          %6479 = vdwg.mxu0
          %v6480 = vand.u32 %v4636, 4294901760
          %v6481 = vsub.f32 %v4636, %v6480
          %v6482 = vand.u32 %v6481, 4294901760
          %v6483 = vsub.f32 %v6481, %v6482
          %v6484 = vand.u32 %v6483, 4294901760
          %6485 = vmatpush.xpose.msra.mxu0 %v6484
          %v6486 = vand.u32 %v4633, 4294901760
          %v6487 = vsub.f32 %v4633, %v6486
          %v6488 = vand.u32 %v6487, 4294901760
          %v6489 = vsub.f32 %v6487, %v6488
          %v6490 = vand.u32 %v6489, 4294901760
          %6491 = vmatpush.xpose.msra.mxu0 %v6490
          %v6492 = vand.u32 %v4630, 4294901760
          %v6493 = vsub.f32 %v4630, %v6492
          %v6494 = vand.u32 %v6493, 4294901760
          %v6495 = vsub.f32 %v6493, %v6494
          %v6496 = vand.u32 %v6495, 4294901760
          %6497 = vmatpush.xpose.msra.mxu0 %v6496
          %v6498 = vand.u32 %v4627, 4294901760
          %v6499 = vsub.f32 %v4627, %v6498
          %v6500 = vand.u32 %v6499, 4294901760
          %v6501 = vsub.f32 %v6499, %v6500
          %v6502 = vand.u32 %v6501, 4294901760
          %6503 = vmatpush.xpose.msra.mxu0 %v6502
          %v6504 = vand.u32 %v4624, 4294901760
          %v6505 = vsub.f32 %v4624, %v6504
          %v6506 = vand.u32 %v6505, 4294901760
          %v6507 = vsub.f32 %v6505, %v6506
          %v6508 = vand.u32 %v6507, 4294901760
          %6509 = vmatpush.xpose.msra.mxu0 %v6508
          %v6510 = vand.u32 %v4621, 4294901760
          %v6511 = vsub.f32 %v4621, %v6510
          %v6512 = vand.u32 %v6511, 4294901760
          %v6513 = vsub.f32 %v6511, %v6512
          %v6514 = vand.u32 %v6513, 4294901760
          %6515 = vmatpush.xpose.msra.mxu0 %v6514
          %v6516 = vand.u32 %v4618, 4294901760
          %v6517 = vsub.f32 %v4618, %v6516
          %v6518 = vand.u32 %v6517, 4294901760
          %v6519 = vsub.f32 %v6517, %v6518
          %v6520 = vand.u32 %v6519, 4294901760
          %6521 = vmatpush.xpose.msra.mxu0 %v6520
          %v6522 = vand.u32 %v4615, 4294901760
          %v6523 = vsub.f32 %v4615, %v6522
          %v6524 = vand.u32 %v6523, 4294901760
          %v6525 = vsub.f32 %v6523, %v6524
          %v6526 = vand.u32 %v6525, 4294901760
          %6527 = vmatpush.xpose.msra.mxu0 %v6526
          %v6528 = vand.u32 %v4612, 4294901760
          %v6529 = vsub.f32 %v4612, %v6528
          %v6530 = vand.u32 %v6529, 4294901760
          %v6531 = vsub.f32 %v6529, %v6530
          %v6532 = vand.u32 %v6531, 4294901760
          %6533 = vmatpush.xpose.msra.mxu0 %v6532
          %v6534 = vand.u32 %v4609, 4294901760
          %v6535 = vsub.f32 %v4609, %v6534
          %v6536 = vand.u32 %v6535, 4294901760
          %v6537 = vsub.f32 %v6535, %v6536
          %v6538 = vand.u32 %v6537, 4294901760
          %6539 = vmatpush.xpose.msra.mxu0 %v6538
          %v6540 = vand.u32 %v4606, 4294901760
          %v6541 = vsub.f32 %v4606, %v6540
          %v6542 = vand.u32 %v6541, 4294901760
          %v6543 = vsub.f32 %v6541, %v6542
          %v6544 = vand.u32 %v6543, 4294901760
          %6545 = vmatpush.xpose.msra.mxu0 %v6544
          %v6546 = vand.u32 %v4603, 4294901760
          %v6547 = vsub.f32 %v4603, %v6546
          %v6548 = vand.u32 %v6547, 4294901760
          %v6549 = vsub.f32 %v6547, %v6548
          %v6550 = vand.u32 %v6549, 4294901760
          %6551 = vmatpush.xpose.msra.mxu0 %v6550
          %v6552 = vand.u32 %v4600, 4294901760
          %v6553 = vsub.f32 %v4600, %v6552
          %v6554 = vand.u32 %v6553, 4294901760
          %v6555 = vsub.f32 %v6553, %v6554
          %v6556 = vand.u32 %v6555, 4294901760
          %6557 = vmatpush.xpose.msra.mxu0 %v6556
          %v6558 = vand.u32 %v4597, 4294901760
          %v6559 = vsub.f32 %v4597, %v6558
          %v6560 = vand.u32 %v6559, 4294901760
          %v6561 = vsub.f32 %v6559, %v6560
          %v6562 = vand.u32 %v6561, 4294901760
          %6563 = vmatpush.xpose.msra.mxu0 %v6562
          %v6564 = vand.u32 %v4594, 4294901760
          %v6565 = vsub.f32 %v4594, %v6564
          %v6566 = vand.u32 %v6565, 4294901760
          %v6567 = vsub.f32 %v6565, %v6566
          %v6568 = vand.u32 %v6567, 4294901760
          %6569 = vmatpush.xpose.msra.mxu0 %v6568
          %v6570 = vand.u32 %v4591, 4294901760
          %v6571 = vsub.f32 %v4591, %v6570
          %v6572 = vand.u32 %v6571, 4294901760
          %v6573 = vsub.f32 %v6571, %v6572
          %v6574 = vand.u32 %v6573, 4294901760
          %6575 = vmatpush.xpose.msra.mxu0 %v6574
          %v6576 = vand.u32 %v4348, 4294901760
          %6577 = vmatmul.f32.gmra.mxu0 %v6576
          %v6578 = vpop.f32.mrf.mxu0
          %v6579 = vadd.f32 %v6478, %v6578
          %6580 = vdwg.mxu0
          %v6581 = vand.u32 %v4636, 4294901760
          %v6582 = vsub.f32 %v4636, %v6581
          %6583 = vmatpush.xpose.msra.mxu0 %v6582
          %v6584 = vand.u32 %v4633, 4294901760
          %v6585 = vsub.f32 %v4633, %v6584
          %6586 = vmatpush.xpose.msra.mxu0 %v6585
          %v6587 = vand.u32 %v4630, 4294901760
          %v6588 = vsub.f32 %v4630, %v6587
          %6589 = vmatpush.xpose.msra.mxu0 %v6588
          %v6590 = vand.u32 %v4627, 4294901760
          %v6591 = vsub.f32 %v4627, %v6590
          %6592 = vmatpush.xpose.msra.mxu0 %v6591
          %v6593 = vand.u32 %v4624, 4294901760
          %v6594 = vsub.f32 %v4624, %v6593
          %6595 = vmatpush.xpose.msra.mxu0 %v6594
          %v6596 = vand.u32 %v4621, 4294901760
          %v6597 = vsub.f32 %v4621, %v6596
          %6598 = vmatpush.xpose.msra.mxu0 %v6597
          %v6599 = vand.u32 %v4618, 4294901760
          %v6600 = vsub.f32 %v4618, %v6599
          %6601 = vmatpush.xpose.msra.mxu0 %v6600
          %v6602 = vand.u32 %v4615, 4294901760
          %v6603 = vsub.f32 %v4615, %v6602
          %6604 = vmatpush.xpose.msra.mxu0 %v6603
          %v6605 = vand.u32 %v4612, 4294901760
          %v6606 = vsub.f32 %v4612, %v6605
          %6607 = vmatpush.xpose.msra.mxu0 %v6606
          %v6608 = vand.u32 %v4609, 4294901760
          %v6609 = vsub.f32 %v4609, %v6608
          %6610 = vmatpush.xpose.msra.mxu0 %v6609
          %v6611 = vand.u32 %v4606, 4294901760
          %v6612 = vsub.f32 %v4606, %v6611
          %6613 = vmatpush.xpose.msra.mxu0 %v6612
          %v6614 = vand.u32 %v4603, 4294901760
          %v6615 = vsub.f32 %v4603, %v6614
          %6616 = vmatpush.xpose.msra.mxu0 %v6615
          %v6617 = vand.u32 %v4600, 4294901760
          %v6618 = vsub.f32 %v4600, %v6617
          %6619 = vmatpush.xpose.msra.mxu0 %v6618
          %v6620 = vand.u32 %v4597, 4294901760
          %v6621 = vsub.f32 %v4597, %v6620
          %6622 = vmatpush.xpose.msra.mxu0 %v6621
          %v6623 = vand.u32 %v4594, 4294901760
          %v6624 = vsub.f32 %v4594, %v6623
          %6625 = vmatpush.xpose.msra.mxu0 %v6624
          %v6626 = vand.u32 %v4591, 4294901760
          %v6627 = vsub.f32 %v4591, %v6626
          %6628 = vmatpush.xpose.msra.mxu0 %v6627
          %v6629 = vand.u32 %v4348, 4294901760
          %v6630 = vsub.f32 %v4348, %v6629
          %6631 = vmatmul.f32.gmra.mxu0 %v6630
          %v6632 = vpop.f32.mrf.mxu0
          %v6633 = vadd.f32 %v6579, %v6632
          %6634 = vdwg.mxu0
          %v6635 = vand.u32 %v4636, 4294901760
          %6636 = vmatpush.xpose.msra.mxu0 %v6635
          %v6637 = vand.u32 %v4633, 4294901760
          %6638 = vmatpush.xpose.msra.mxu0 %v6637
          %v6639 = vand.u32 %v4630, 4294901760
          %6640 = vmatpush.xpose.msra.mxu0 %v6639
          %v6641 = vand.u32 %v4627, 4294901760
          %6642 = vmatpush.xpose.msra.mxu0 %v6641
          %v6643 = vand.u32 %v4624, 4294901760
          %6644 = vmatpush.xpose.msra.mxu0 %v6643
          %v6645 = vand.u32 %v4621, 4294901760
          %6646 = vmatpush.xpose.msra.mxu0 %v6645
          %v6647 = vand.u32 %v4618, 4294901760
          %6648 = vmatpush.xpose.msra.mxu0 %v6647
          %v6649 = vand.u32 %v4615, 4294901760
          %6650 = vmatpush.xpose.msra.mxu0 %v6649
          %v6651 = vand.u32 %v4612, 4294901760
          %6652 = vmatpush.xpose.msra.mxu0 %v6651
          %v6653 = vand.u32 %v4609, 4294901760
          %6654 = vmatpush.xpose.msra.mxu0 %v6653
          %v6655 = vand.u32 %v4606, 4294901760
          %6656 = vmatpush.xpose.msra.mxu0 %v6655
          %v6657 = vand.u32 %v4603, 4294901760
          %6658 = vmatpush.xpose.msra.mxu0 %v6657
          %v6659 = vand.u32 %v4600, 4294901760
          %6660 = vmatpush.xpose.msra.mxu0 %v6659
          %v6661 = vand.u32 %v4597, 4294901760
          %6662 = vmatpush.xpose.msra.mxu0 %v6661
          %v6663 = vand.u32 %v4594, 4294901760
          %6664 = vmatpush.xpose.msra.mxu0 %v6663
          %v6665 = vand.u32 %v4591, 4294901760
          %6666 = vmatpush.xpose.msra.mxu0 %v6665
          %v6667 = vand.u32 %v4348, 4294901760
          %v6668 = vsub.f32 %v4348, %v6667
          %v6669 = vand.u32 %v6668, 4294901760
          %6670 = vmatmul.f32.gmra.mxu0 %v6669
          %v6671 = vpop.f32.mrf.mxu0
          %v6672 = vadd.f32 %v6633, %v6671
          %6673 = vdwg.mxu0
          %v6674 = vand.u32 %v4636, 4294901760
          %v6675 = vsub.f32 %v4636, %v6674
          %v6676 = vand.u32 %v6675, 4294901760
          %6677 = vmatpush.xpose.msra.mxu0 %v6676
          %v6678 = vand.u32 %v4633, 4294901760
          %v6679 = vsub.f32 %v4633, %v6678
          %v6680 = vand.u32 %v6679, 4294901760
          %6681 = vmatpush.xpose.msra.mxu0 %v6680
          %v6682 = vand.u32 %v4630, 4294901760
          %v6683 = vsub.f32 %v4630, %v6682
          %v6684 = vand.u32 %v6683, 4294901760
          %6685 = vmatpush.xpose.msra.mxu0 %v6684
          %v6686 = vand.u32 %v4627, 4294901760
          %v6687 = vsub.f32 %v4627, %v6686
          %v6688 = vand.u32 %v6687, 4294901760
          %6689 = vmatpush.xpose.msra.mxu0 %v6688
          %v6690 = vand.u32 %v4624, 4294901760
          %v6691 = vsub.f32 %v4624, %v6690
          %v6692 = vand.u32 %v6691, 4294901760
          %6693 = vmatpush.xpose.msra.mxu0 %v6692
          %v6694 = vand.u32 %v4621, 4294901760
          %v6695 = vsub.f32 %v4621, %v6694
          %v6696 = vand.u32 %v6695, 4294901760
          %6697 = vmatpush.xpose.msra.mxu0 %v6696
          %v6698 = vand.u32 %v4618, 4294901760
          %v6699 = vsub.f32 %v4618, %v6698
          %v6700 = vand.u32 %v6699, 4294901760
          %6701 = vmatpush.xpose.msra.mxu0 %v6700
          %v6702 = vand.u32 %v4615, 4294901760
          %v6703 = vsub.f32 %v4615, %v6702
          %v6704 = vand.u32 %v6703, 4294901760
          %6705 = vmatpush.xpose.msra.mxu0 %v6704
          %v6706 = vand.u32 %v4612, 4294901760
          %v6707 = vsub.f32 %v4612, %v6706
          %v6708 = vand.u32 %v6707, 4294901760
          %6709 = vmatpush.xpose.msra.mxu0 %v6708
          %v6710 = vand.u32 %v4609, 4294901760
          %v6711 = vsub.f32 %v4609, %v6710
          %v6712 = vand.u32 %v6711, 4294901760
          %6713 = vmatpush.xpose.msra.mxu0 %v6712
          %v6714 = vand.u32 %v4606, 4294901760
          %v6715 = vsub.f32 %v4606, %v6714
          %v6716 = vand.u32 %v6715, 4294901760
          %6717 = vmatpush.xpose.msra.mxu0 %v6716
          %v6718 = vand.u32 %v4603, 4294901760
          %v6719 = vsub.f32 %v4603, %v6718
          %v6720 = vand.u32 %v6719, 4294901760
          %6721 = vmatpush.xpose.msra.mxu0 %v6720
          %v6722 = vand.u32 %v4600, 4294901760
          %v6723 = vsub.f32 %v4600, %v6722
          %v6724 = vand.u32 %v6723, 4294901760
          %6725 = vmatpush.xpose.msra.mxu0 %v6724
          %v6726 = vand.u32 %v4597, 4294901760
          %v6727 = vsub.f32 %v4597, %v6726
          %v6728 = vand.u32 %v6727, 4294901760
          %6729 = vmatpush.xpose.msra.mxu0 %v6728
          %v6730 = vand.u32 %v4594, 4294901760
          %v6731 = vsub.f32 %v4594, %v6730
          %v6732 = vand.u32 %v6731, 4294901760
          %6733 = vmatpush.xpose.msra.mxu0 %v6732
          %v6734 = vand.u32 %v4591, 4294901760
          %v6735 = vsub.f32 %v4591, %v6734
          %v6736 = vand.u32 %v6735, 4294901760
          %6737 = vmatpush.xpose.msra.mxu0 %v6736
          %v6738 = vand.u32 %v4348, 4294901760
          %6739 = vmatmul.f32.gmra.mxu0 %v6738
          %v6740 = vpop.f32.mrf.mxu0
          %v6741 = vadd.f32 %v6672, %v6740
          %6742 = vdwg.mxu0
          %v6743 = vand.u32 %v4636, 4294901760
          %6744 = vmatpush.xpose.msra.mxu0 %v6743
          %v6745 = vand.u32 %v4633, 4294901760
          %6746 = vmatpush.xpose.msra.mxu0 %v6745
          %v6747 = vand.u32 %v4630, 4294901760
          %6748 = vmatpush.xpose.msra.mxu0 %v6747
          %v6749 = vand.u32 %v4627, 4294901760
          %6750 = vmatpush.xpose.msra.mxu0 %v6749
          %v6751 = vand.u32 %v4624, 4294901760
          %6752 = vmatpush.xpose.msra.mxu0 %v6751
          %v6753 = vand.u32 %v4621, 4294901760
          %6754 = vmatpush.xpose.msra.mxu0 %v6753
          %v6755 = vand.u32 %v4618, 4294901760
          %6756 = vmatpush.xpose.msra.mxu0 %v6755
          %v6757 = vand.u32 %v4615, 4294901760
          %6758 = vmatpush.xpose.msra.mxu0 %v6757
          %v6759 = vand.u32 %v4612, 4294901760
          %6760 = vmatpush.xpose.msra.mxu0 %v6759
          %v6761 = vand.u32 %v4609, 4294901760
          %6762 = vmatpush.xpose.msra.mxu0 %v6761
          %v6763 = vand.u32 %v4606, 4294901760
          %6764 = vmatpush.xpose.msra.mxu0 %v6763
          %v6765 = vand.u32 %v4603, 4294901760
          %6766 = vmatpush.xpose.msra.mxu0 %v6765
          %v6767 = vand.u32 %v4600, 4294901760
          %6768 = vmatpush.xpose.msra.mxu0 %v6767
          %v6769 = vand.u32 %v4597, 4294901760
          %6770 = vmatpush.xpose.msra.mxu0 %v6769
          %v6771 = vand.u32 %v4594, 4294901760
          %6772 = vmatpush.xpose.msra.mxu0 %v6771
          %v6773 = vand.u32 %v4591, 4294901760
          %6774 = vmatpush.xpose.msra.mxu0 %v6773
          %v6775 = vand.u32 %v4348, 4294901760
          %6776 = vmatmul.f32.gmra.mxu0 %v6775
          %v6777 = vpop.f32.mrf.mxu0
          %v6778 = vadd.f32 %v6741, %v6777
          %6779 = vdwg.mxu0
          %v6780 = vand.u32 %v4684, 4294901760
          %6781 = vmatpush.xpose.msra.mxu0 %v6780
          %v6782 = vand.u32 %v4681, 4294901760
          %6783 = vmatpush.xpose.msra.mxu0 %v6782
          %v6784 = vand.u32 %v4678, 4294901760
          %6785 = vmatpush.xpose.msra.mxu0 %v6784
          %v6786 = vand.u32 %v4675, 4294901760
          %6787 = vmatpush.xpose.msra.mxu0 %v6786
          %v6788 = vand.u32 %v4672, 4294901760
          %6789 = vmatpush.xpose.msra.mxu0 %v6788
          %v6790 = vand.u32 %v4669, 4294901760
          %6791 = vmatpush.xpose.msra.mxu0 %v6790
          %v6792 = vand.u32 %v4666, 4294901760
          %6793 = vmatpush.xpose.msra.mxu0 %v6792
          %v6794 = vand.u32 %v4663, 4294901760
          %6795 = vmatpush.xpose.msra.mxu0 %v6794
          %v6796 = vand.u32 %v4660, 4294901760
          %6797 = vmatpush.xpose.msra.mxu0 %v6796
          %v6798 = vand.u32 %v4657, 4294901760
          %6799 = vmatpush.xpose.msra.mxu0 %v6798
          %v6800 = vand.u32 %v4654, 4294901760
          %6801 = vmatpush.xpose.msra.mxu0 %v6800
          %v6802 = vand.u32 %v4651, 4294901760
          %6803 = vmatpush.xpose.msra.mxu0 %v6802
          %v6804 = vand.u32 %v4648, 4294901760
          %6805 = vmatpush.xpose.msra.mxu0 %v6804
          %v6806 = vand.u32 %v4645, 4294901760
          %6807 = vmatpush.xpose.msra.mxu0 %v6806
          %v6808 = vand.u32 %v4642, 4294901760
          %6809 = vmatpush.xpose.msra.mxu0 %v6808
          %v6810 = vand.u32 %v4639, 4294901760
          %6811 = vmatpush.xpose.msra.mxu0 %v6810
          %v6812 = vand.u32 %v4348, 4294901760
          %v6813 = vsub.f32 %v4348, %v6812
          %v6814 = vand.u32 %v6813, 4294901760
          %v6815 = vsub.f32 %v6813, %v6814
          %v6816 = vand.u32 %v6815, 4294901760
          %6817 = vmatmul.f32.gmra.mxu0 %v6816
          %v6818 = vpop.f32.mrf.mxu0
          %v6819 = vadd.f32 0.0, %v6818
          %6820 = vdwg.mxu0
          %v6821 = vand.u32 %v4684, 4294901760
          %v6822 = vsub.f32 %v4684, %v6821
          %v6823 = vand.u32 %v6822, 4294901760
          %v6824 = vsub.f32 %v6822, %v6823
          %v6825 = vand.u32 %v6824, 4294901760
          %6826 = vmatpush.xpose.msra.mxu0 %v6825
          %v6827 = vand.u32 %v4681, 4294901760
          %v6828 = vsub.f32 %v4681, %v6827
          %v6829 = vand.u32 %v6828, 4294901760
          %v6830 = vsub.f32 %v6828, %v6829
          %v6831 = vand.u32 %v6830, 4294901760
          %6832 = vmatpush.xpose.msra.mxu0 %v6831
          %v6833 = vand.u32 %v4678, 4294901760
          %v6834 = vsub.f32 %v4678, %v6833
          %v6835 = vand.u32 %v6834, 4294901760
          %v6836 = vsub.f32 %v6834, %v6835
          %v6837 = vand.u32 %v6836, 4294901760
          %6838 = vmatpush.xpose.msra.mxu0 %v6837
          %v6839 = vand.u32 %v4675, 4294901760
          %v6840 = vsub.f32 %v4675, %v6839
          %v6841 = vand.u32 %v6840, 4294901760
          %v6842 = vsub.f32 %v6840, %v6841
          %v6843 = vand.u32 %v6842, 4294901760
          %6844 = vmatpush.xpose.msra.mxu0 %v6843
          %v6845 = vand.u32 %v4672, 4294901760
          %v6846 = vsub.f32 %v4672, %v6845
          %v6847 = vand.u32 %v6846, 4294901760
          %v6848 = vsub.f32 %v6846, %v6847
          %v6849 = vand.u32 %v6848, 4294901760
          %6850 = vmatpush.xpose.msra.mxu0 %v6849
          %v6851 = vand.u32 %v4669, 4294901760
          %v6852 = vsub.f32 %v4669, %v6851
          %v6853 = vand.u32 %v6852, 4294901760
          %v6854 = vsub.f32 %v6852, %v6853
          %v6855 = vand.u32 %v6854, 4294901760
          %6856 = vmatpush.xpose.msra.mxu0 %v6855
          %v6857 = vand.u32 %v4666, 4294901760
          %v6858 = vsub.f32 %v4666, %v6857
          %v6859 = vand.u32 %v6858, 4294901760
          %v6860 = vsub.f32 %v6858, %v6859
          %v6861 = vand.u32 %v6860, 4294901760
          %6862 = vmatpush.xpose.msra.mxu0 %v6861
          %v6863 = vand.u32 %v4663, 4294901760
          %v6864 = vsub.f32 %v4663, %v6863
          %v6865 = vand.u32 %v6864, 4294901760
          %v6866 = vsub.f32 %v6864, %v6865
          %v6867 = vand.u32 %v6866, 4294901760
          %6868 = vmatpush.xpose.msra.mxu0 %v6867
          %v6869 = vand.u32 %v4660, 4294901760
          %v6870 = vsub.f32 %v4660, %v6869
          %v6871 = vand.u32 %v6870, 4294901760
          %v6872 = vsub.f32 %v6870, %v6871
          %v6873 = vand.u32 %v6872, 4294901760
          %6874 = vmatpush.xpose.msra.mxu0 %v6873
          %v6875 = vand.u32 %v4657, 4294901760
          %v6876 = vsub.f32 %v4657, %v6875
          %v6877 = vand.u32 %v6876, 4294901760
          %v6878 = vsub.f32 %v6876, %v6877
          %v6879 = vand.u32 %v6878, 4294901760
          %6880 = vmatpush.xpose.msra.mxu0 %v6879
          %v6881 = vand.u32 %v4654, 4294901760
          %v6882 = vsub.f32 %v4654, %v6881
          %v6883 = vand.u32 %v6882, 4294901760
          %v6884 = vsub.f32 %v6882, %v6883
          %v6885 = vand.u32 %v6884, 4294901760
          %6886 = vmatpush.xpose.msra.mxu0 %v6885
          %v6887 = vand.u32 %v4651, 4294901760
          %v6888 = vsub.f32 %v4651, %v6887
          %v6889 = vand.u32 %v6888, 4294901760
          %v6890 = vsub.f32 %v6888, %v6889
          %v6891 = vand.u32 %v6890, 4294901760
          %6892 = vmatpush.xpose.msra.mxu0 %v6891
          %v6893 = vand.u32 %v4648, 4294901760
          %v6894 = vsub.f32 %v4648, %v6893
          %v6895 = vand.u32 %v6894, 4294901760
          %v6896 = vsub.f32 %v6894, %v6895
          %v6897 = vand.u32 %v6896, 4294901760
          %6898 = vmatpush.xpose.msra.mxu0 %v6897
          %v6899 = vand.u32 %v4645, 4294901760
          %v6900 = vsub.f32 %v4645, %v6899
          %v6901 = vand.u32 %v6900, 4294901760
          %v6902 = vsub.f32 %v6900, %v6901
          %v6903 = vand.u32 %v6902, 4294901760
          %6904 = vmatpush.xpose.msra.mxu0 %v6903
          %v6905 = vand.u32 %v4642, 4294901760
          %v6906 = vsub.f32 %v4642, %v6905
          %v6907 = vand.u32 %v6906, 4294901760
          %v6908 = vsub.f32 %v6906, %v6907
          %v6909 = vand.u32 %v6908, 4294901760
          %6910 = vmatpush.xpose.msra.mxu0 %v6909
          %v6911 = vand.u32 %v4639, 4294901760
          %v6912 = vsub.f32 %v4639, %v6911
          %v6913 = vand.u32 %v6912, 4294901760
          %v6914 = vsub.f32 %v6912, %v6913
          %v6915 = vand.u32 %v6914, 4294901760
          %6916 = vmatpush.xpose.msra.mxu0 %v6915
          %v6917 = vand.u32 %v4348, 4294901760
          %6918 = vmatmul.f32.gmra.mxu0 %v6917
          %v6919 = vpop.f32.mrf.mxu0
          %v6920 = vadd.f32 %v6819, %v6919
          %6921 = vdwg.mxu0
          %v6922 = vand.u32 %v4684, 4294901760
          %v6923 = vsub.f32 %v4684, %v6922
          %6924 = vmatpush.xpose.msra.mxu0 %v6923
          %v6925 = vand.u32 %v4681, 4294901760
          %v6926 = vsub.f32 %v4681, %v6925
          %6927 = vmatpush.xpose.msra.mxu0 %v6926
          %v6928 = vand.u32 %v4678, 4294901760
          %v6929 = vsub.f32 %v4678, %v6928
          %6930 = vmatpush.xpose.msra.mxu0 %v6929
          %v6931 = vand.u32 %v4675, 4294901760
          %v6932 = vsub.f32 %v4675, %v6931
          %6933 = vmatpush.xpose.msra.mxu0 %v6932
          %v6934 = vand.u32 %v4672, 4294901760
          %v6935 = vsub.f32 %v4672, %v6934
          %6936 = vmatpush.xpose.msra.mxu0 %v6935
          %v6937 = vand.u32 %v4669, 4294901760
          %v6938 = vsub.f32 %v4669, %v6937
          %6939 = vmatpush.xpose.msra.mxu0 %v6938
          %v6940 = vand.u32 %v4666, 4294901760
          %v6941 = vsub.f32 %v4666, %v6940
          %6942 = vmatpush.xpose.msra.mxu0 %v6941
          %v6943 = vand.u32 %v4663, 4294901760
          %v6944 = vsub.f32 %v4663, %v6943
          %6945 = vmatpush.xpose.msra.mxu0 %v6944
          %v6946 = vand.u32 %v4660, 4294901760
          %v6947 = vsub.f32 %v4660, %v6946
          %6948 = vmatpush.xpose.msra.mxu0 %v6947
          %v6949 = vand.u32 %v4657, 4294901760
          %v6950 = vsub.f32 %v4657, %v6949
          %6951 = vmatpush.xpose.msra.mxu0 %v6950
          %v6952 = vand.u32 %v4654, 4294901760
          %v6953 = vsub.f32 %v4654, %v6952
          %6954 = vmatpush.xpose.msra.mxu0 %v6953
          %v6955 = vand.u32 %v4651, 4294901760
          %v6956 = vsub.f32 %v4651, %v6955
          %6957 = vmatpush.xpose.msra.mxu0 %v6956
          %v6958 = vand.u32 %v4648, 4294901760
          %v6959 = vsub.f32 %v4648, %v6958
          %6960 = vmatpush.xpose.msra.mxu0 %v6959
          %v6961 = vand.u32 %v4645, 4294901760
          %v6962 = vsub.f32 %v4645, %v6961
          %6963 = vmatpush.xpose.msra.mxu0 %v6962
          %v6964 = vand.u32 %v4642, 4294901760
          %v6965 = vsub.f32 %v4642, %v6964
          %6966 = vmatpush.xpose.msra.mxu0 %v6965
          %v6967 = vand.u32 %v4639, 4294901760
          %v6968 = vsub.f32 %v4639, %v6967
          %6969 = vmatpush.xpose.msra.mxu0 %v6968
          %v6970 = vand.u32 %v4348, 4294901760
          %v6971 = vsub.f32 %v4348, %v6970
          %6972 = vmatmul.f32.gmra.mxu0 %v6971
          %v6973 = vpop.f32.mrf.mxu0
          %v6974 = vadd.f32 %v6920, %v6973
          %6975 = vdwg.mxu0
          %v6976 = vand.u32 %v4684, 4294901760
          %6977 = vmatpush.xpose.msra.mxu0 %v6976
          %v6978 = vand.u32 %v4681, 4294901760
          %6979 = vmatpush.xpose.msra.mxu0 %v6978
          %v6980 = vand.u32 %v4678, 4294901760
          %6981 = vmatpush.xpose.msra.mxu0 %v6980
          %v6982 = vand.u32 %v4675, 4294901760
          %6983 = vmatpush.xpose.msra.mxu0 %v6982
          %v6984 = vand.u32 %v4672, 4294901760
          %6985 = vmatpush.xpose.msra.mxu0 %v6984
          %v6986 = vand.u32 %v4669, 4294901760
          %6987 = vmatpush.xpose.msra.mxu0 %v6986
          %v6988 = vand.u32 %v4666, 4294901760
          %6989 = vmatpush.xpose.msra.mxu0 %v6988
          %v6990 = vand.u32 %v4663, 4294901760
          %6991 = vmatpush.xpose.msra.mxu0 %v6990
          %v6992 = vand.u32 %v4660, 4294901760
          %6993 = vmatpush.xpose.msra.mxu0 %v6992
          %v6994 = vand.u32 %v4657, 4294901760
          %6995 = vmatpush.xpose.msra.mxu0 %v6994
          %v6996 = vand.u32 %v4654, 4294901760
          %6997 = vmatpush.xpose.msra.mxu0 %v6996
          %v6998 = vand.u32 %v4651, 4294901760
          %6999 = vmatpush.xpose.msra.mxu0 %v6998
          %v7000 = vand.u32 %v4648, 4294901760
          %7001 = vmatpush.xpose.msra.mxu0 %v7000
          %v7002 = vand.u32 %v4645, 4294901760
          %7003 = vmatpush.xpose.msra.mxu0 %v7002
          %v7004 = vand.u32 %v4642, 4294901760
          %7005 = vmatpush.xpose.msra.mxu0 %v7004
          %v7006 = vand.u32 %v4639, 4294901760
          %7007 = vmatpush.xpose.msra.mxu0 %v7006
          %v7008 = vand.u32 %v4348, 4294901760
          %v7009 = vsub.f32 %v4348, %v7008
          %v7010 = vand.u32 %v7009, 4294901760
          %7011 = vmatmul.f32.gmra.mxu0 %v7010
          %v7012 = vpop.f32.mrf.mxu0
          %v7013 = vadd.f32 %v6974, %v7012
          %7014 = vdwg.mxu0
          %v7015 = vand.u32 %v4684, 4294901760
          %v7016 = vsub.f32 %v4684, %v7015
          %v7017 = vand.u32 %v7016, 4294901760
          %7018 = vmatpush.xpose.msra.mxu0 %v7017
          %v7019 = vand.u32 %v4681, 4294901760
          %v7020 = vsub.f32 %v4681, %v7019
          %v7021 = vand.u32 %v7020, 4294901760
          %7022 = vmatpush.xpose.msra.mxu0 %v7021
          %v7023 = vand.u32 %v4678, 4294901760
          %v7024 = vsub.f32 %v4678, %v7023
          %v7025 = vand.u32 %v7024, 4294901760
          %7026 = vmatpush.xpose.msra.mxu0 %v7025
          %v7027 = vand.u32 %v4675, 4294901760
          %v7028 = vsub.f32 %v4675, %v7027
          %v7029 = vand.u32 %v7028, 4294901760
          %7030 = vmatpush.xpose.msra.mxu0 %v7029
          %v7031 = vand.u32 %v4672, 4294901760
          %v7032 = vsub.f32 %v4672, %v7031
          %v7033 = vand.u32 %v7032, 4294901760
          %7034 = vmatpush.xpose.msra.mxu0 %v7033
          %v7035 = vand.u32 %v4669, 4294901760
          %v7036 = vsub.f32 %v4669, %v7035
          %v7037 = vand.u32 %v7036, 4294901760
          %7038 = vmatpush.xpose.msra.mxu0 %v7037
          %v7039 = vand.u32 %v4666, 4294901760
          %v7040 = vsub.f32 %v4666, %v7039
          %v7041 = vand.u32 %v7040, 4294901760
          %7042 = vmatpush.xpose.msra.mxu0 %v7041
          %v7043 = vand.u32 %v4663, 4294901760
          %v7044 = vsub.f32 %v4663, %v7043
          %v7045 = vand.u32 %v7044, 4294901760
          %7046 = vmatpush.xpose.msra.mxu0 %v7045
          %v7047 = vand.u32 %v4660, 4294901760
          %v7048 = vsub.f32 %v4660, %v7047
          %v7049 = vand.u32 %v7048, 4294901760
          %7050 = vmatpush.xpose.msra.mxu0 %v7049
          %v7051 = vand.u32 %v4657, 4294901760
          %v7052 = vsub.f32 %v4657, %v7051
          %v7053 = vand.u32 %v7052, 4294901760
          %7054 = vmatpush.xpose.msra.mxu0 %v7053
          %v7055 = vand.u32 %v4654, 4294901760
          %v7056 = vsub.f32 %v4654, %v7055
          %v7057 = vand.u32 %v7056, 4294901760
          %7058 = vmatpush.xpose.msra.mxu0 %v7057
          %v7059 = vand.u32 %v4651, 4294901760
          %v7060 = vsub.f32 %v4651, %v7059
          %v7061 = vand.u32 %v7060, 4294901760
          %7062 = vmatpush.xpose.msra.mxu0 %v7061
          %v7063 = vand.u32 %v4648, 4294901760
          %v7064 = vsub.f32 %v4648, %v7063
          %v7065 = vand.u32 %v7064, 4294901760
          %7066 = vmatpush.xpose.msra.mxu0 %v7065
          %v7067 = vand.u32 %v4645, 4294901760
          %v7068 = vsub.f32 %v4645, %v7067
          %v7069 = vand.u32 %v7068, 4294901760
          %7070 = vmatpush.xpose.msra.mxu0 %v7069
          %v7071 = vand.u32 %v4642, 4294901760
          %v7072 = vsub.f32 %v4642, %v7071
          %v7073 = vand.u32 %v7072, 4294901760
          %7074 = vmatpush.xpose.msra.mxu0 %v7073
          %v7075 = vand.u32 %v4639, 4294901760
          %v7076 = vsub.f32 %v4639, %v7075
          %v7077 = vand.u32 %v7076, 4294901760
          %7078 = vmatpush.xpose.msra.mxu0 %v7077
          %v7079 = vand.u32 %v4348, 4294901760
          %7080 = vmatmul.f32.gmra.mxu0 %v7079
          %v7081 = vpop.f32.mrf.mxu0
          %v7082 = vadd.f32 %v7013, %v7081
          %7083 = vdwg.mxu0
          %v7084 = vand.u32 %v4684, 4294901760
          %7085 = vmatpush.xpose.msra.mxu0 %v7084
          %v7086 = vand.u32 %v4681, 4294901760
          %7087 = vmatpush.xpose.msra.mxu0 %v7086
          %v7088 = vand.u32 %v4678, 4294901760
          %7089 = vmatpush.xpose.msra.mxu0 %v7088
          %v7090 = vand.u32 %v4675, 4294901760
          %7091 = vmatpush.xpose.msra.mxu0 %v7090
          %v7092 = vand.u32 %v4672, 4294901760
          %7093 = vmatpush.xpose.msra.mxu0 %v7092
          %v7094 = vand.u32 %v4669, 4294901760
          %7095 = vmatpush.xpose.msra.mxu0 %v7094
          %v7096 = vand.u32 %v4666, 4294901760
          %7097 = vmatpush.xpose.msra.mxu0 %v7096
          %v7098 = vand.u32 %v4663, 4294901760
          %7099 = vmatpush.xpose.msra.mxu0 %v7098
          %v7100 = vand.u32 %v4660, 4294901760
          %7101 = vmatpush.xpose.msra.mxu0 %v7100
          %v7102 = vand.u32 %v4657, 4294901760
          %7103 = vmatpush.xpose.msra.mxu0 %v7102
          %v7104 = vand.u32 %v4654, 4294901760
          %7105 = vmatpush.xpose.msra.mxu0 %v7104
          %v7106 = vand.u32 %v4651, 4294901760
          %7107 = vmatpush.xpose.msra.mxu0 %v7106
          %v7108 = vand.u32 %v4648, 4294901760
          %7109 = vmatpush.xpose.msra.mxu0 %v7108
          %v7110 = vand.u32 %v4645, 4294901760
          %7111 = vmatpush.xpose.msra.mxu0 %v7110
          %v7112 = vand.u32 %v4642, 4294901760
          %7113 = vmatpush.xpose.msra.mxu0 %v7112
          %v7114 = vand.u32 %v4639, 4294901760
          %7115 = vmatpush.xpose.msra.mxu0 %v7114
          %v7116 = vand.u32 %v4348, 4294901760
          %7117 = vmatmul.f32.gmra.mxu0 %v7116
          %v7118 = vpop.f32.mrf.mxu0
          %v7119 = vadd.f32 %v7082, %v7118
          %7120 = vdwg.mxu0
          %v7121 = vand.u32 %v4732, 4294901760
          %7122 = vmatpush.xpose.msra.mxu0 %v7121
          %v7123 = vand.u32 %v4729, 4294901760
          %7124 = vmatpush.xpose.msra.mxu0 %v7123
          %v7125 = vand.u32 %v4726, 4294901760
          %7126 = vmatpush.xpose.msra.mxu0 %v7125
          %v7127 = vand.u32 %v4723, 4294901760
          %7128 = vmatpush.xpose.msra.mxu0 %v7127
          %v7129 = vand.u32 %v4720, 4294901760
          %7130 = vmatpush.xpose.msra.mxu0 %v7129
          %v7131 = vand.u32 %v4717, 4294901760
          %7132 = vmatpush.xpose.msra.mxu0 %v7131
          %v7133 = vand.u32 %v4714, 4294901760
          %7134 = vmatpush.xpose.msra.mxu0 %v7133
          %v7135 = vand.u32 %v4711, 4294901760
          %7136 = vmatpush.xpose.msra.mxu0 %v7135
          %v7137 = vand.u32 %v4708, 4294901760
          %7138 = vmatpush.xpose.msra.mxu0 %v7137
          %v7139 = vand.u32 %v4705, 4294901760
          %7140 = vmatpush.xpose.msra.mxu0 %v7139
          %v7141 = vand.u32 %v4702, 4294901760
          %7142 = vmatpush.xpose.msra.mxu0 %v7141
          %v7143 = vand.u32 %v4699, 4294901760
          %7144 = vmatpush.xpose.msra.mxu0 %v7143
          %v7145 = vand.u32 %v4696, 4294901760
          %7146 = vmatpush.xpose.msra.mxu0 %v7145
          %v7147 = vand.u32 %v4693, 4294901760
          %7148 = vmatpush.xpose.msra.mxu0 %v7147
          %v7149 = vand.u32 %v4690, 4294901760
          %7150 = vmatpush.xpose.msra.mxu0 %v7149
          %v7151 = vand.u32 %v4687, 4294901760
          %7152 = vmatpush.xpose.msra.mxu0 %v7151
          %v7153 = vand.u32 %v4348, 4294901760
          %v7154 = vsub.f32 %v4348, %v7153
          %v7155 = vand.u32 %v7154, 4294901760
          %v7156 = vsub.f32 %v7154, %v7155
          %v7157 = vand.u32 %v7156, 4294901760
          %7158 = vmatmul.f32.gmra.mxu0 %v7157
          %v7159 = vpop.f32.mrf.mxu0
          %v7160 = vadd.f32 0.0, %v7159
          %7161 = vdwg.mxu0
          %v7162 = vand.u32 %v4732, 4294901760
          %v7163 = vsub.f32 %v4732, %v7162
          %v7164 = vand.u32 %v7163, 4294901760
          %v7165 = vsub.f32 %v7163, %v7164
          %v7166 = vand.u32 %v7165, 4294901760
          %7167 = vmatpush.xpose.msra.mxu0 %v7166
          %v7168 = vand.u32 %v4729, 4294901760
          %v7169 = vsub.f32 %v4729, %v7168
          %v7170 = vand.u32 %v7169, 4294901760
          %v7171 = vsub.f32 %v7169, %v7170
          %v7172 = vand.u32 %v7171, 4294901760
          %7173 = vmatpush.xpose.msra.mxu0 %v7172
          %v7174 = vand.u32 %v4726, 4294901760
          %v7175 = vsub.f32 %v4726, %v7174
          %v7176 = vand.u32 %v7175, 4294901760
          %v7177 = vsub.f32 %v7175, %v7176
          %v7178 = vand.u32 %v7177, 4294901760
          %7179 = vmatpush.xpose.msra.mxu0 %v7178
          %v7180 = vand.u32 %v4723, 4294901760
          %v7181 = vsub.f32 %v4723, %v7180
          %v7182 = vand.u32 %v7181, 4294901760
          %v7183 = vsub.f32 %v7181, %v7182
          %v7184 = vand.u32 %v7183, 4294901760
          %7185 = vmatpush.xpose.msra.mxu0 %v7184
          %v7186 = vand.u32 %v4720, 4294901760
          %v7187 = vsub.f32 %v4720, %v7186
          %v7188 = vand.u32 %v7187, 4294901760
          %v7189 = vsub.f32 %v7187, %v7188
          %v7190 = vand.u32 %v7189, 4294901760
          %7191 = vmatpush.xpose.msra.mxu0 %v7190
          %v7192 = vand.u32 %v4717, 4294901760
          %v7193 = vsub.f32 %v4717, %v7192
          %v7194 = vand.u32 %v7193, 4294901760
          %v7195 = vsub.f32 %v7193, %v7194
          %v7196 = vand.u32 %v7195, 4294901760
          %7197 = vmatpush.xpose.msra.mxu0 %v7196
          %v7198 = vand.u32 %v4714, 4294901760
          %v7199 = vsub.f32 %v4714, %v7198
          %v7200 = vand.u32 %v7199, 4294901760
          %v7201 = vsub.f32 %v7199, %v7200
          %v7202 = vand.u32 %v7201, 4294901760
          %7203 = vmatpush.xpose.msra.mxu0 %v7202
          %v7204 = vand.u32 %v4711, 4294901760
          %v7205 = vsub.f32 %v4711, %v7204
          %v7206 = vand.u32 %v7205, 4294901760
          %v7207 = vsub.f32 %v7205, %v7206
          %v7208 = vand.u32 %v7207, 4294901760
          %7209 = vmatpush.xpose.msra.mxu0 %v7208
          %v7210 = vand.u32 %v4708, 4294901760
          %v7211 = vsub.f32 %v4708, %v7210
          %v7212 = vand.u32 %v7211, 4294901760
          %v7213 = vsub.f32 %v7211, %v7212
          %v7214 = vand.u32 %v7213, 4294901760
          %7215 = vmatpush.xpose.msra.mxu0 %v7214
          %v7216 = vand.u32 %v4705, 4294901760
          %v7217 = vsub.f32 %v4705, %v7216
          %v7218 = vand.u32 %v7217, 4294901760
          %v7219 = vsub.f32 %v7217, %v7218
          %v7220 = vand.u32 %v7219, 4294901760
          %7221 = vmatpush.xpose.msra.mxu0 %v7220
          %v7222 = vand.u32 %v4702, 4294901760
          %v7223 = vsub.f32 %v4702, %v7222
          %v7224 = vand.u32 %v7223, 4294901760
          %v7225 = vsub.f32 %v7223, %v7224
          %v7226 = vand.u32 %v7225, 4294901760
          %7227 = vmatpush.xpose.msra.mxu0 %v7226
          %v7228 = vand.u32 %v4699, 4294901760
          %v7229 = vsub.f32 %v4699, %v7228
          %v7230 = vand.u32 %v7229, 4294901760
          %v7231 = vsub.f32 %v7229, %v7230
          %v7232 = vand.u32 %v7231, 4294901760
          %7233 = vmatpush.xpose.msra.mxu0 %v7232
          %v7234 = vand.u32 %v4696, 4294901760
          %v7235 = vsub.f32 %v4696, %v7234
          %v7236 = vand.u32 %v7235, 4294901760
          %v7237 = vsub.f32 %v7235, %v7236
          %v7238 = vand.u32 %v7237, 4294901760
          %7239 = vmatpush.xpose.msra.mxu0 %v7238
          %v7240 = vand.u32 %v4693, 4294901760
          %v7241 = vsub.f32 %v4693, %v7240
          %v7242 = vand.u32 %v7241, 4294901760
          %v7243 = vsub.f32 %v7241, %v7242
          %v7244 = vand.u32 %v7243, 4294901760
          %7245 = vmatpush.xpose.msra.mxu0 %v7244
          %v7246 = vand.u32 %v4690, 4294901760
          %v7247 = vsub.f32 %v4690, %v7246
          %v7248 = vand.u32 %v7247, 4294901760
          %v7249 = vsub.f32 %v7247, %v7248
          %v7250 = vand.u32 %v7249, 4294901760
          %7251 = vmatpush.xpose.msra.mxu0 %v7250
          %v7252 = vand.u32 %v4687, 4294901760
          %v7253 = vsub.f32 %v4687, %v7252
          %v7254 = vand.u32 %v7253, 4294901760
          %v7255 = vsub.f32 %v7253, %v7254
          %v7256 = vand.u32 %v7255, 4294901760
          %7257 = vmatpush.xpose.msra.mxu0 %v7256
          %v7258 = vand.u32 %v4348, 4294901760
          %7259 = vmatmul.f32.gmra.mxu0 %v7258
          %v7260 = vpop.f32.mrf.mxu0
          %v7261 = vadd.f32 %v7160, %v7260
          %7262 = vdwg.mxu0
          %v7263 = vand.u32 %v4732, 4294901760
          %v7264 = vsub.f32 %v4732, %v7263
          %7265 = vmatpush.xpose.msra.mxu0 %v7264
          %v7266 = vand.u32 %v4729, 4294901760
          %v7267 = vsub.f32 %v4729, %v7266
          %7268 = vmatpush.xpose.msra.mxu0 %v7267
          %v7269 = vand.u32 %v4726, 4294901760
          %v7270 = vsub.f32 %v4726, %v7269
          %7271 = vmatpush.xpose.msra.mxu0 %v7270
          %v7272 = vand.u32 %v4723, 4294901760
          %v7273 = vsub.f32 %v4723, %v7272
          %7274 = vmatpush.xpose.msra.mxu0 %v7273
          %v7275 = vand.u32 %v4720, 4294901760
          %v7276 = vsub.f32 %v4720, %v7275
          %7277 = vmatpush.xpose.msra.mxu0 %v7276
          %v7278 = vand.u32 %v4717, 4294901760
          %v7279 = vsub.f32 %v4717, %v7278
          %7280 = vmatpush.xpose.msra.mxu0 %v7279
          %v7281 = vand.u32 %v4714, 4294901760
          %v7282 = vsub.f32 %v4714, %v7281
          %7283 = vmatpush.xpose.msra.mxu0 %v7282
          %v7284 = vand.u32 %v4711, 4294901760
          %v7285 = vsub.f32 %v4711, %v7284
          %7286 = vmatpush.xpose.msra.mxu0 %v7285
          %v7287 = vand.u32 %v4708, 4294901760
          %v7288 = vsub.f32 %v4708, %v7287
          %7289 = vmatpush.xpose.msra.mxu0 %v7288
          %v7290 = vand.u32 %v4705, 4294901760
          %v7291 = vsub.f32 %v4705, %v7290
          %7292 = vmatpush.xpose.msra.mxu0 %v7291
          %v7293 = vand.u32 %v4702, 4294901760
          %v7294 = vsub.f32 %v4702, %v7293
          %7295 = vmatpush.xpose.msra.mxu0 %v7294
          %v7296 = vand.u32 %v4699, 4294901760
          %v7297 = vsub.f32 %v4699, %v7296
          %7298 = vmatpush.xpose.msra.mxu0 %v7297
          %v7299 = vand.u32 %v4696, 4294901760
          %v7300 = vsub.f32 %v4696, %v7299
          %7301 = vmatpush.xpose.msra.mxu0 %v7300
          %v7302 = vand.u32 %v4693, 4294901760
          %v7303 = vsub.f32 %v4693, %v7302
          %7304 = vmatpush.xpose.msra.mxu0 %v7303
          %v7305 = vand.u32 %v4690, 4294901760
          %v7306 = vsub.f32 %v4690, %v7305
          %7307 = vmatpush.xpose.msra.mxu0 %v7306
          %v7308 = vand.u32 %v4687, 4294901760
          %v7309 = vsub.f32 %v4687, %v7308
          %7310 = vmatpush.xpose.msra.mxu0 %v7309
          %v7311 = vand.u32 %v4348, 4294901760
          %v7312 = vsub.f32 %v4348, %v7311
          %7313 = vmatmul.f32.gmra.mxu0 %v7312
          %v7314 = vpop.f32.mrf.mxu0
          %v7315 = vadd.f32 %v7261, %v7314
          %7316 = vdwg.mxu0
          %v7317 = vand.u32 %v4732, 4294901760
          %7318 = vmatpush.xpose.msra.mxu0 %v7317
          %v7319 = vand.u32 %v4729, 4294901760
          %7320 = vmatpush.xpose.msra.mxu0 %v7319
          %v7321 = vand.u32 %v4726, 4294901760
          %7322 = vmatpush.xpose.msra.mxu0 %v7321
          %v7323 = vand.u32 %v4723, 4294901760
          %7324 = vmatpush.xpose.msra.mxu0 %v7323
          %v7325 = vand.u32 %v4720, 4294901760
          %7326 = vmatpush.xpose.msra.mxu0 %v7325
          %v7327 = vand.u32 %v4717, 4294901760
          %7328 = vmatpush.xpose.msra.mxu0 %v7327
          %v7329 = vand.u32 %v4714, 4294901760
          %7330 = vmatpush.xpose.msra.mxu0 %v7329
          %v7331 = vand.u32 %v4711, 4294901760
          %7332 = vmatpush.xpose.msra.mxu0 %v7331
          %v7333 = vand.u32 %v4708, 4294901760
          %7334 = vmatpush.xpose.msra.mxu0 %v7333
          %v7335 = vand.u32 %v4705, 4294901760
          %7336 = vmatpush.xpose.msra.mxu0 %v7335
          %v7337 = vand.u32 %v4702, 4294901760
          %7338 = vmatpush.xpose.msra.mxu0 %v7337
          %v7339 = vand.u32 %v4699, 4294901760
          %7340 = vmatpush.xpose.msra.mxu0 %v7339
          %v7341 = vand.u32 %v4696, 4294901760
          %7342 = vmatpush.xpose.msra.mxu0 %v7341
          %v7343 = vand.u32 %v4693, 4294901760
          %7344 = vmatpush.xpose.msra.mxu0 %v7343
          %v7345 = vand.u32 %v4690, 4294901760
          %7346 = vmatpush.xpose.msra.mxu0 %v7345
          %v7347 = vand.u32 %v4687, 4294901760
          %7348 = vmatpush.xpose.msra.mxu0 %v7347
          %v7349 = vand.u32 %v4348, 4294901760
          %v7350 = vsub.f32 %v4348, %v7349
          %v7351 = vand.u32 %v7350, 4294901760
          %7352 = vmatmul.f32.gmra.mxu0 %v7351
          %v7353 = vpop.f32.mrf.mxu0
          %v7354 = vadd.f32 %v7315, %v7353
          %7355 = vdwg.mxu0
          %v7356 = vand.u32 %v4732, 4294901760
          %v7357 = vsub.f32 %v4732, %v7356
          %v7358 = vand.u32 %v7357, 4294901760
          %7359 = vmatpush.xpose.msra.mxu0 %v7358
          %v7360 = vand.u32 %v4729, 4294901760
          %v7361 = vsub.f32 %v4729, %v7360
          %v7362 = vand.u32 %v7361, 4294901760
          %7363 = vmatpush.xpose.msra.mxu0 %v7362
          %v7364 = vand.u32 %v4726, 4294901760
          %v7365 = vsub.f32 %v4726, %v7364
          %v7366 = vand.u32 %v7365, 4294901760
          %7367 = vmatpush.xpose.msra.mxu0 %v7366
          %v7368 = vand.u32 %v4723, 4294901760
          %v7369 = vsub.f32 %v4723, %v7368
          %v7370 = vand.u32 %v7369, 4294901760
          %7371 = vmatpush.xpose.msra.mxu0 %v7370
          %v7372 = vand.u32 %v4720, 4294901760
          %v7373 = vsub.f32 %v4720, %v7372
          %v7374 = vand.u32 %v7373, 4294901760
          %7375 = vmatpush.xpose.msra.mxu0 %v7374
          %v7376 = vand.u32 %v4717, 4294901760
          %v7377 = vsub.f32 %v4717, %v7376
          %v7378 = vand.u32 %v7377, 4294901760
          %7379 = vmatpush.xpose.msra.mxu0 %v7378
          %v7380 = vand.u32 %v4714, 4294901760
          %v7381 = vsub.f32 %v4714, %v7380
          %v7382 = vand.u32 %v7381, 4294901760
          %7383 = vmatpush.xpose.msra.mxu0 %v7382
          %v7384 = vand.u32 %v4711, 4294901760
          %v7385 = vsub.f32 %v4711, %v7384
          %v7386 = vand.u32 %v7385, 4294901760
          %7387 = vmatpush.xpose.msra.mxu0 %v7386
          %v7388 = vand.u32 %v4708, 4294901760
          %v7389 = vsub.f32 %v4708, %v7388
          %v7390 = vand.u32 %v7389, 4294901760
          %7391 = vmatpush.xpose.msra.mxu0 %v7390
          %v7392 = vand.u32 %v4705, 4294901760
          %v7393 = vsub.f32 %v4705, %v7392
          %v7394 = vand.u32 %v7393, 4294901760
          %7395 = vmatpush.xpose.msra.mxu0 %v7394
          %v7396 = vand.u32 %v4702, 4294901760
          %v7397 = vsub.f32 %v4702, %v7396
          %v7398 = vand.u32 %v7397, 4294901760
          %7399 = vmatpush.xpose.msra.mxu0 %v7398
          %v7400 = vand.u32 %v4699, 4294901760
          %v7401 = vsub.f32 %v4699, %v7400
          %v7402 = vand.u32 %v7401, 4294901760
          %7403 = vmatpush.xpose.msra.mxu0 %v7402
          %v7404 = vand.u32 %v4696, 4294901760
          %v7405 = vsub.f32 %v4696, %v7404
          %v7406 = vand.u32 %v7405, 4294901760
          %7407 = vmatpush.xpose.msra.mxu0 %v7406
          %v7408 = vand.u32 %v4693, 4294901760
          %v7409 = vsub.f32 %v4693, %v7408
          %v7410 = vand.u32 %v7409, 4294901760
          %7411 = vmatpush.xpose.msra.mxu0 %v7410
          %v7412 = vand.u32 %v4690, 4294901760
          %v7413 = vsub.f32 %v4690, %v7412
          %v7414 = vand.u32 %v7413, 4294901760
          %7415 = vmatpush.xpose.msra.mxu0 %v7414
          %v7416 = vand.u32 %v4687, 4294901760
          %v7417 = vsub.f32 %v4687, %v7416
          %v7418 = vand.u32 %v7417, 4294901760
          %7419 = vmatpush.xpose.msra.mxu0 %v7418
          %v7420 = vand.u32 %v4348, 4294901760
          %7421 = vmatmul.f32.gmra.mxu0 %v7420
          %v7422 = vpop.f32.mrf.mxu0
          %v7423 = vadd.f32 %v7354, %v7422
          %7424 = vdwg.mxu0
          %v7425 = vand.u32 %v4732, 4294901760
          %7426 = vmatpush.xpose.msra.mxu0 %v7425
          %v7427 = vand.u32 %v4729, 4294901760
          %7428 = vmatpush.xpose.msra.mxu0 %v7427
          %v7429 = vand.u32 %v4726, 4294901760
          %7430 = vmatpush.xpose.msra.mxu0 %v7429
          %v7431 = vand.u32 %v4723, 4294901760
          %7432 = vmatpush.xpose.msra.mxu0 %v7431
          %v7433 = vand.u32 %v4720, 4294901760
          %7434 = vmatpush.xpose.msra.mxu0 %v7433
          %v7435 = vand.u32 %v4717, 4294901760
          %7436 = vmatpush.xpose.msra.mxu0 %v7435
          %v7437 = vand.u32 %v4714, 4294901760
          %7438 = vmatpush.xpose.msra.mxu0 %v7437
          %v7439 = vand.u32 %v4711, 4294901760
          %7440 = vmatpush.xpose.msra.mxu0 %v7439
          %v7441 = vand.u32 %v4708, 4294901760
          %7442 = vmatpush.xpose.msra.mxu0 %v7441
          %v7443 = vand.u32 %v4705, 4294901760
          %7444 = vmatpush.xpose.msra.mxu0 %v7443
          %v7445 = vand.u32 %v4702, 4294901760
          %7446 = vmatpush.xpose.msra.mxu0 %v7445
          %v7447 = vand.u32 %v4699, 4294901760
          %7448 = vmatpush.xpose.msra.mxu0 %v7447
          %v7449 = vand.u32 %v4696, 4294901760
          %7450 = vmatpush.xpose.msra.mxu0 %v7449
          %v7451 = vand.u32 %v4693, 4294901760
          %7452 = vmatpush.xpose.msra.mxu0 %v7451
          %v7453 = vand.u32 %v4690, 4294901760
          %7454 = vmatpush.xpose.msra.mxu0 %v7453
          %v7455 = vand.u32 %v4687, 4294901760
          %7456 = vmatpush.xpose.msra.mxu0 %v7455
          %v7457 = vand.u32 %v4348, 4294901760
          %7458 = vmatmul.f32.gmra.mxu0 %v7457
          %v7459 = vpop.f32.mrf.mxu0
          %v7460 = vadd.f32 %v7423, %v7459
          %7461 = vdwg.mxu0
          %v7462 = vrot.slane %v2481, 4
          %vm7463 = vcmask 1047556
          %v7464 = vsel %vm7463, %v7462, %v1737
          %v7465 = vrot.slane %v1737, 4
          %v7466 = vsel %vm7463, %v2481, %v7465
          %v7468 = vunpack.c.l.s4 1983009808
          %v7469 = vunpack.c.0.s8 %v7468
          %v7470 = vperm.slane %v7464, %v7469
          %v7472 = vunpack.c.l.s4 1983009808
          %v7473 = vunpack.c.0.s8 %v7472
          %v7474 = vperm.slane %v7466, %v7473
          %v7475 = vrot.slane %v2853, 4
          %v7476 = vsel %vm7463, %v7475, %v2109
          %v7477 = vrot.slane %v2109, 4
          %v7478 = vsel %vm7463, %v2853, %v7477
          %v7480 = vunpack.c.l.s4 1983009808
          %v7481 = vunpack.c.0.s8 %v7480
          %v7482 = vperm.slane %v7476, %v7481
          %v7484 = vunpack.c.l.s4 1983009808
          %v7485 = vunpack.c.0.s8 %v7484
          %v7486 = vperm.slane %v7478, %v7485
          %v7487 = vrot.slane %v3969, 4
          %v7488 = vsel %vm7463, %v7487, %v3225
          %v7489 = vrot.slane %v3225, 4
          %v7490 = vsel %vm7463, %v3969, %v7489
          %v7492 = vunpack.c.l.s4 1983009808
          %v7493 = vunpack.c.0.s8 %v7492
          %v7494 = vperm.slane %v7488, %v7493
          %v7496 = vunpack.c.l.s4 1983009808
          %v7497 = vunpack.c.0.s8 %v7496
          %v7498 = vperm.slane %v7490, %v7497
          %v7499 = vrot.slane %v4341, 4
          %v7500 = vsel %vm7463, %v7499, %v3597
          %v7501 = vrot.slane %v3597, 4
          %v7502 = vsel %vm7463, %v4341, %v7501
          %v7504 = vunpack.c.l.s4 1983009808
          %v7505 = vunpack.c.0.s8 %v7504
          %v7506 = vperm.slane %v7500, %v7505
          %v7508 = vunpack.c.l.s4 1983009808
          %v7509 = vunpack.c.0.s8 %v7508
          %v7510 = vperm.slane %v7502, %v7509
          %v7511 = vrot.slane %v7482, 4
          %v7512 = vsel %vm7463, %v7511, %v7470
          %v7513 = vrot.slane %v7470, 4
          %v7514 = vsel %vm7463, %v7482, %v7513
          %v7516 = vunpack.c.l.s4 1934713408
          %v7517 = vunpack.c.0.s8 %v7516
          %v7518 = vperm.slane %v7512, %v7517
          %v7520 = vunpack.c.l.s4 1934713408
          %v7521 = vunpack.c.0.s8 %v7520
          %v7522 = vperm.slane %v7514, %v7521
          %v7523 = vrot.slane %v7486, 4
          %v7524 = vsel %vm7463, %v7523, %v7474
          %v7525 = vrot.slane %v7474, 4
          %v7526 = vsel %vm7463, %v7486, %v7525
          %v7528 = vunpack.c.l.s4 1934713408
          %v7529 = vunpack.c.0.s8 %v7528
          %v7530 = vperm.slane %v7524, %v7529
          %v7532 = vunpack.c.l.s4 1934713408
          %v7533 = vunpack.c.0.s8 %v7532
          %v7534 = vperm.slane %v7526, %v7533
          %v7535 = vrot.slane %v7506, 4
          %v7536 = vsel %vm7463, %v7535, %v7494
          %v7537 = vrot.slane %v7494, 4
          %v7538 = vsel %vm7463, %v7506, %v7537
          %v7540 = vunpack.c.l.s4 1934713408
          %v7541 = vunpack.c.0.s8 %v7540
          %v7542 = vperm.slane %v7536, %v7541
          %v7544 = vunpack.c.l.s4 1934713408
          %v7545 = vunpack.c.0.s8 %v7544
          %v7546 = vperm.slane %v7538, %v7545
          %v7547 = vrot.slane %v7510, 4
          %v7548 = vsel %vm7463, %v7547, %v7498
          %v7549 = vrot.slane %v7498, 4
          %v7550 = vsel %vm7463, %v7510, %v7549
          %v7552 = vunpack.c.l.s4 1934713408
          %v7553 = vunpack.c.0.s8 %v7552
          %v7554 = vperm.slane %v7548, %v7553
          %v7556 = vunpack.c.l.s4 1934713408
          %v7557 = vunpack.c.0.s8 %v7556
          %v7558 = vperm.slane %v7550, %v7557
          %v7559 = vrot.slane %v7542, 4
          %v7560 = vsel %vm7463, %v7559, %v7518
          %v7561 = vrot.slane %v7518, 4
          %v7562 = vsel %vm7463, %v7542, %v7561
          %v7563 = vrot.slane %v7546, 4
          %v7564 = vsel %vm7463, %v7563, %v7522
          %v7565 = vrot.slane %v7522, 4
          %v7566 = vsel %vm7463, %v7546, %v7565
          %v7567 = vrot.slane %v7554, 4
          %v7568 = vsel %vm7463, %v7567, %v7530
          %v7569 = vrot.slane %v7530, 4
          %v7570 = vsel %vm7463, %v7554, %v7569
          %v7571 = vrot.slane %v7558, 4
          %v7572 = vsel %vm7463, %v7571, %v7534
          %v7573 = vrot.slane %v7534, 4
          %v7574 = vsel %vm7463, %v7558, %v7573
          %v7575 = vrot.slane %v2485, 4
          %v7576 = vsel %vm7463, %v7575, %v1741
          %v7577 = vrot.slane %v1741, 4
          %v7578 = vsel %vm7463, %v2485, %v7577
          %v7580 = vunpack.c.l.s4 1983009808
          %v7581 = vunpack.c.0.s8 %v7580
          %v7582 = vperm.slane %v7576, %v7581
          %v7584 = vunpack.c.l.s4 1983009808
          %v7585 = vunpack.c.0.s8 %v7584
          %v7586 = vperm.slane %v7578, %v7585
          %v7587 = vrot.slane %v2857, 4
          %v7588 = vsel %vm7463, %v7587, %v2113
          %v7589 = vrot.slane %v2113, 4
          %v7590 = vsel %vm7463, %v2857, %v7589
          %v7592 = vunpack.c.l.s4 1983009808
          %v7593 = vunpack.c.0.s8 %v7592
          %v7594 = vperm.slane %v7588, %v7593
          %v7596 = vunpack.c.l.s4 1983009808
          %v7597 = vunpack.c.0.s8 %v7596
          %v7598 = vperm.slane %v7590, %v7597
          %v7599 = vrot.slane %v3973, 4
          %v7600 = vsel %vm7463, %v7599, %v3229
          %v7601 = vrot.slane %v3229, 4
          %v7602 = vsel %vm7463, %v3973, %v7601
          %v7604 = vunpack.c.l.s4 1983009808
          %v7605 = vunpack.c.0.s8 %v7604
          %v7606 = vperm.slane %v7600, %v7605
          %v7608 = vunpack.c.l.s4 1983009808
          %v7609 = vunpack.c.0.s8 %v7608
          %v7610 = vperm.slane %v7602, %v7609
          %v7611 = vrot.slane %v4345, 4
          %v7612 = vsel %vm7463, %v7611, %v3601
          %v7613 = vrot.slane %v3601, 4
          %v7614 = vsel %vm7463, %v4345, %v7613
          %v7616 = vunpack.c.l.s4 1983009808
          %v7617 = vunpack.c.0.s8 %v7616
          %v7618 = vperm.slane %v7612, %v7617
          %v7620 = vunpack.c.l.s4 1983009808
          %v7621 = vunpack.c.0.s8 %v7620
          %v7622 = vperm.slane %v7614, %v7621
          %v7623 = vrot.slane %v7594, 4
          %v7624 = vsel %vm7463, %v7623, %v7582
          %v7625 = vrot.slane %v7582, 4
          %v7626 = vsel %vm7463, %v7594, %v7625
          %v7628 = vunpack.c.l.s4 1934713408
          %v7629 = vunpack.c.0.s8 %v7628
          %v7630 = vperm.slane %v7624, %v7629
          %v7632 = vunpack.c.l.s4 1934713408
          %v7633 = vunpack.c.0.s8 %v7632
          %v7634 = vperm.slane %v7626, %v7633
          %v7635 = vrot.slane %v7598, 4
          %v7636 = vsel %vm7463, %v7635, %v7586
          %v7638 = vunpack.c.l.s4 1934713408
          %v7639 = vunpack.c.0.s8 %v7638
          %v7640 = vperm.slane %v7636, %v7639
          %v7641 = vrot.slane %v7618, 4
          %v7642 = vsel %vm7463, %v7641, %v7606
          %v7643 = vrot.slane %v7606, 4
          %v7644 = vsel %vm7463, %v7618, %v7643
          %v7646 = vunpack.c.l.s4 1934713408
          %v7647 = vunpack.c.0.s8 %v7646
          %v7648 = vperm.slane %v7642, %v7647
          %v7650 = vunpack.c.l.s4 1934713408
          %v7651 = vunpack.c.0.s8 %v7650
          %v7652 = vperm.slane %v7644, %v7651
          %v7653 = vrot.slane %v7622, 4
          %v7654 = vsel %vm7463, %v7653, %v7610
          %v7656 = vunpack.c.l.s4 1934713408
          %v7657 = vunpack.c.0.s8 %v7656
          %v7658 = vperm.slane %v7654, %v7657
          %v7659 = vrot.slane %v7648, 4
          %v7660 = vsel %vm7463, %v7659, %v7630
          %v7661 = vrot.slane %v7630, 4
          %v7662 = vsel %vm7463, %v7648, %v7661
          %v7663 = vrot.slane %v7652, 4
          %v7664 = vsel %vm7463, %v7663, %v7634
          %v7665 = vrot.slane %v7634, 4
          %v7666 = vsel %vm7463, %v7652, %v7665
          %v7667 = vrot.slane %v7658, 4
          %v7668 = vsel %vm7463, %v7667, %v7640
          %v7669 = vrot.slane %v7640, 4
          %v7670 = vsel %vm7463, %v7658, %v7669
          %v7671 = vrot.slane %v5755, 4
          %v7672 = vsel %vm7463, %v7671, %v5073
          %v7674 = vunpack.c.l.s4 1983009808
          %v7675 = vunpack.c.0.s8 %v7674
          %v7676 = vperm.slane %v7672, %v7675
          %v7677 = vrot.slane %v6096, 4
          %v7678 = vsel %vm7463, %v7677, %v5414
          %v7680 = vunpack.c.l.s4 1983009808
          %v7681 = vunpack.c.0.s8 %v7680
          %v7682 = vperm.slane %v7678, %v7681
          %v7683 = vrot.slane %v7119, 4
          %v7684 = vsel %vm7463, %v7683, %v6437
          %v7686 = vunpack.c.l.s4 1983009808
          %v7687 = vunpack.c.0.s8 %v7686
          %v7688 = vperm.slane %v7684, %v7687
          %v7689 = vrot.slane %v7460, 4
          %v7690 = vsel %vm7463, %v7689, %v6778
          %v7692 = vunpack.c.l.s4 1983009808
          %v7693 = vunpack.c.0.s8 %v7692
          %v7694 = vperm.slane %v7690, %v7693
          %v7695 = vrot.slane %v7682, 4
          %v7696 = vsel %vm7463, %v7695, %v7676
          %v7697 = vrot.slane %v7676, 4
          %v7698 = vsel %vm7463, %v7682, %v7697
          %v7700 = vunpack.c.l.s4 1934713408
          %v7701 = vunpack.c.0.s8 %v7700
          %v7702 = vperm.slane %v7696, %v7701
          %v7704 = vunpack.c.l.s4 1934713408
          %v7705 = vunpack.c.0.s8 %v7704
          %v7706 = vperm.slane %v7698, %v7705
          %v7707 = vrot.slane %v7694, 4
          %v7708 = vsel %vm7463, %v7707, %v7688
          %v7709 = vrot.slane %v7688, 4
          %v7710 = vsel %vm7463, %v7694, %v7709
          %v7712 = vunpack.c.l.s4 1934713408
          %v7713 = vunpack.c.0.s8 %v7712
          %v7714 = vperm.slane %v7708, %v7713
          %v7716 = vunpack.c.l.s4 1934713408
          %v7717 = vunpack.c.0.s8 %v7716
          %v7718 = vperm.slane %v7710, %v7717
          %v7719 = vrot.slane %v7714, 4
          %v7720 = vsel %vm7463, %v7719, %v7702
          %v7721 = vrot.slane %v7702, 4
          %v7722 = vsel %vm7463, %v7714, %v7721
          %v7723 = vrot.slane %v7718, 4
          %v7724 = vsel %vm7463, %v7723, %v7706
          %v7725 = vrot.slane %v7706, 4
          %v7726 = vsel %vm7463, %v7718, %v7725
          %v7727 = vstv %s200
          %v7728 = vadd.f32 %v7560, %v7727
          %v7729 = vadd.f32 %v7568, %v7727
          %v7730 = vadd.f32 %v7574, %v7727
          %v7731 = vadd.f32 %v7662, %v7727
          %v7732 = vsub.f32 %v7720, %v7664
          %v7733 = vsub.f32 %v7722, %v7666
          %v7734 = vsub.f32 %v7724, %v7668
          %v7735 = vsub.f32 %v7726, %v7670
          %v7736 = vrcp.pop %v7728
          %v7737 = vmul.f32 %v7728, %v7736
          %v7738 = vsub.f32 1.0, %v7737
          %v7739 = vmul.f32 %v7736, %v7738
          %v7740 = vadd.f32 %v7736, %v7739
          %vm7741 = vweird.f32 %v7728
          %vm7742 = vweird.f32 %v7736
          %vm7743 = vmor %vm7741, %vm7742
          %v7744 = vsel %vm7743, %v7736, %v7740
          %v7745 = vand.u32 2147483647, %v7728
          %vm7746 = vcmp.eq.f32.partialorder %v7745, 8.507059e+37
          %v7747 = vand.u32 %v7728, 2147483648
          %v7748 = vor.u32 1.1754944e-38, %v7747
          %v7749 = vsel %vm7746, %v7748, %v7744
          %v7750 = vmul.f32 1.0, %v7749
          %v7751 = vmul.f32 %v7562, %v7750
          %v7752 = vmul.f32 %v7564, %v7750
          %v7753 = vmul.f32 %v7566, %v7750
          %v7754 = vmul.f32 %v7562, %v7751
          %v7755 = vsub.f32 %v7729, %v7754
          %v7756 = vmul.f32 %v7562, %v7752
          %v7757 = vsub.f32 %v7570, %v7756
          %v7758 = vmul.f32 %v7562, %v7753
          %v7759 = vsub.f32 %v7572, %v7758
          %v7760 = vsub.f32 0.0, %v7751
          %v7761 = vmul.f32 %v7564, %v7751
          %v7762 = vsub.f32 %v7570, %v7761
          %v7763 = vmul.f32 %v7564, %v7752
          %v7764 = vsub.f32 %v7730, %v7763
          %v7765 = vmul.f32 %v7564, %v7753
          %v7766 = vsub.f32 %v7660, %v7765
          %v7767 = vsub.f32 0.0, %v7752
          %v7768 = vmul.f32 %v7566, %v7751
          %v7769 = vsub.f32 %v7572, %v7768
          %v7770 = vmul.f32 %v7566, %v7752
          %v7771 = vsub.f32 %v7660, %v7770
          %v7772 = vmul.f32 %v7566, %v7753
          %v7773 = vsub.f32 %v7731, %v7772
          %v7774 = vsub.f32 0.0, %v7753
          %v7775 = vrcp.pop %v7755
          %v7776 = vmul.f32 %v7755, %v7775
          %v7777 = vsub.f32 1.0, %v7776
          %v7778 = vmul.f32 %v7775, %v7777
          %v7779 = vadd.f32 %v7775, %v7778
          %vm7780 = vweird.f32 %v7755
          %vm7781 = vweird.f32 %v7775
          %vm7782 = vmor %vm7780, %vm7781
          %v7783 = vsel %vm7782, %v7775, %v7779
          %v7784 = vand.u32 2147483647, %v7755
          %vm7785 = vcmp.eq.f32.partialorder %v7784, 8.507059e+37
          %v7786 = vand.u32 %v7755, 2147483648
          %v7787 = vor.u32 1.1754944e-38, %v7786
          %v7788 = vsel %vm7785, %v7787, %v7783
          %v7789 = vmul.f32 1.0, %v7788
          %v7790 = vmul.f32 %v7757, %v7789
          %v7791 = vmul.f32 %v7759, %v7789
          %v7792 = vmul.f32 %v7760, %v7789
          %v7793 = vmul.f32 %v7751, %v7790
          %v7794 = vsub.f32 %v7752, %v7793
          %v7795 = vmul.f32 %v7751, %v7791
          %v7796 = vsub.f32 %v7753, %v7795
          %v7797 = vmul.f32 %v7751, %v7792
          %v7798 = vsub.f32 %v7750, %v7797
          %v7799 = vmul.f32 %v7751, %v7789
          %v7800 = vsub.f32 0.0, %v7799
          %v7801 = vmul.f32 %v7762, %v7790
          %v7802 = vsub.f32 %v7764, %v7801
          %v7803 = vmul.f32 %v7762, %v7791
          %v7804 = vsub.f32 %v7766, %v7803
          %v7805 = vmul.f32 %v7762, %v7792
          %v7806 = vsub.f32 %v7767, %v7805
          %v7807 = vmul.f32 %v7762, %v7789
          %v7808 = vsub.f32 0.0, %v7807
          %v7809 = vmul.f32 %v7769, %v7790
          %v7810 = vsub.f32 %v7771, %v7809
          %v7811 = vmul.f32 %v7769, %v7791
          %v7812 = vsub.f32 %v7773, %v7811
          %v7813 = vmul.f32 %v7769, %v7792
          %v7814 = vsub.f32 %v7774, %v7813
          %v7815 = vmul.f32 %v7769, %v7789
          %v7816 = vsub.f32 0.0, %v7815
          %v7817 = vrcp.pop %v7802
          %v7818 = vmul.f32 %v7802, %v7817
          %v7819 = vsub.f32 1.0, %v7818
          %v7820 = vmul.f32 %v7817, %v7819
          %v7821 = vadd.f32 %v7817, %v7820
          %vm7822 = vweird.f32 %v7802
          %vm7823 = vweird.f32 %v7817
          %vm7824 = vmor %vm7822, %vm7823
          %v7825 = vsel %vm7824, %v7817, %v7821
          %v7826 = vand.u32 2147483647, %v7802
          %vm7827 = vcmp.eq.f32.partialorder %v7826, 8.507059e+37
          %v7828 = vand.u32 %v7802, 2147483648
          %v7829 = vor.u32 1.1754944e-38, %v7828
          %v7830 = vsel %vm7827, %v7829, %v7825
          %v7831 = vmul.f32 1.0, %v7830
          %v7832 = vmul.f32 %v7804, %v7831
          %v7833 = vmul.f32 %v7806, %v7831
          %v7834 = vmul.f32 %v7808, %v7831
          %v7835 = vmul.f32 %v7794, %v7832
          %v7836 = vsub.f32 %v7796, %v7835
          %v7837 = vmul.f32 %v7794, %v7833
          %v7838 = vsub.f32 %v7798, %v7837
          %v7839 = vmul.f32 %v7794, %v7834
          %v7840 = vsub.f32 %v7800, %v7839
          %v7841 = vmul.f32 %v7794, %v7831
          %v7842 = vsub.f32 0.0, %v7841
          %v7843 = vmul.f32 %v7790, %v7832
          %v7844 = vsub.f32 %v7791, %v7843
          %v7845 = vmul.f32 %v7790, %v7833
          %v7846 = vsub.f32 %v7792, %v7845
          %v7847 = vmul.f32 %v7790, %v7834
          %v7848 = vsub.f32 %v7789, %v7847
          %v7849 = vmul.f32 %v7790, %v7831
          %v7850 = vsub.f32 0.0, %v7849
          %v7851 = vmul.f32 %v7810, %v7832
          %v7852 = vsub.f32 %v7812, %v7851
          %v7853 = vmul.f32 %v7810, %v7833
          %v7854 = vsub.f32 %v7814, %v7853
          %v7855 = vmul.f32 %v7810, %v7834
          %v7856 = vsub.f32 %v7816, %v7855
          %v7857 = vmul.f32 %v7810, %v7831
          %v7858 = vsub.f32 0.0, %v7857
          %v7859 = vrcp.pop %v7852
          %v7860 = vmul.f32 %v7852, %v7859
          %v7861 = vsub.f32 1.0, %v7860
          %v7862 = vmul.f32 %v7859, %v7861
          %v7863 = vadd.f32 %v7859, %v7862
          %vm7864 = vweird.f32 %v7852
          %vm7865 = vweird.f32 %v7859
          %vm7866 = vmor %vm7864, %vm7865
          %v7867 = vsel %vm7866, %v7859, %v7863
          %v7868 = vand.u32 2147483647, %v7852
          %vm7869 = vcmp.eq.f32.partialorder %v7868, 8.507059e+37
          %v7870 = vand.u32 %v7852, 2147483648
          %v7871 = vor.u32 1.1754944e-38, %v7870
          %v7872 = vsel %vm7869, %v7871, %v7867
          %v7873 = vmul.f32 1.0, %v7872
          %v7874 = vmul.f32 %v7854, %v7873
          %v7875 = vmul.f32 %v7856, %v7873
          %v7876 = vmul.f32 %v7858, %v7873
          %v7877 = vmul.f32 %v7836, %v7874
          %v7878 = vsub.f32 %v7838, %v7877
          %v7879 = vmul.f32 %v7836, %v7875
          %v7880 = vsub.f32 %v7840, %v7879
          %v7881 = vmul.f32 %v7836, %v7876
          %v7882 = vsub.f32 %v7842, %v7881
          %v7883 = vmul.f32 %v7836, %v7873
          %v7884 = vsub.f32 0.0, %v7883
          %v7885 = vmul.f32 %v7844, %v7874
          %v7886 = vsub.f32 %v7846, %v7885
          %v7887 = vmul.f32 %v7844, %v7875
          %v7888 = vsub.f32 %v7848, %v7887
          %v7889 = vmul.f32 %v7844, %v7876
          %v7890 = vsub.f32 %v7850, %v7889
          %v7891 = vmul.f32 %v7844, %v7873
          %v7892 = vsub.f32 0.0, %v7891
          %v7893 = vmul.f32 %v7832, %v7874
          %v7894 = vsub.f32 %v7833, %v7893
          %v7895 = vmul.f32 %v7832, %v7875
          %v7896 = vsub.f32 %v7834, %v7895
          %v7897 = vmul.f32 %v7832, %v7876
          %v7898 = vsub.f32 %v7831, %v7897
          %v7899 = vmul.f32 %v7832, %v7873
          %v7900 = vsub.f32 0.0, %v7899
          %v7901 = vmul.f32 %v7727, %v7878
          %v7902 = vmul.f32 %v7727, %v7880
          %v7903 = vmul.f32 %v7727, %v7882
          %v7904 = vmul.f32 %v7727, %v7884
          %v7905 = vmul.f32 %v7727, %v7888
          %v7906 = vmul.f32 %v7727, %v7890
          %v7907 = vmul.f32 %v7727, %v7892
          %v7908 = vmul.f32 %v7727, %v7898
          %v7909 = vmul.f32 %v7727, %v7900
          %v7910 = vmul.f32 %v7727, %v7873
          %v7911 = vmul.f32 %v7878, %v7732
          %v7912 = vmul.f32 %v7880, %v7733
          %v7913 = vadd.f32 %v7911, %v7912
          %v7914 = vmul.f32 %v7882, %v7734
          %v7915 = vadd.f32 %v7913, %v7914
          %v7916 = vmul.f32 %v7884, %v7735
          %v7917 = vadd.f32 %v7915, %v7916
          %v7918 = vmul.f32 %v7886, %v7732
          %v7919 = vmul.f32 %v7888, %v7733
          %v7920 = vadd.f32 %v7918, %v7919
          %v7921 = vmul.f32 %v7890, %v7734
          %v7922 = vadd.f32 %v7920, %v7921
          %v7923 = vmul.f32 %v7892, %v7735
          %v7924 = vadd.f32 %v7922, %v7923
          %v7925 = vmul.f32 %v7894, %v7732
          %v7926 = vmul.f32 %v7896, %v7733
          %v7927 = vadd.f32 %v7925, %v7926
          %v7928 = vmul.f32 %v7898, %v7734
          %v7929 = vadd.f32 %v7927, %v7928
          %v7930 = vmul.f32 %v7900, %v7735
          %v7931 = vadd.f32 %v7929, %v7930
          %v7932 = vmul.f32 %v7874, %v7732
          %v7933 = vmul.f32 %v7875, %v7733
          %v7934 = vadd.f32 %v7932, %v7933
          %v7935 = vmul.f32 %v7876, %v7734
          %v7936 = vadd.f32 %v7934, %v7935
          %v7937 = vmul.f32 %v7873, %v7735
          %v7938 = vadd.f32 %v7936, %v7937
          %s7939 = smul.u32 %s205, 112
          %s7940 = scalar_lea.vmem %s192, %s7939 [#allocation3]
          %7941 = vst [vmem:[%s7940] sm:$0xff] %v7901
          %7942 = vst [vmem:[%s7940 + $0x8] sm:$0xff] %v7902
          %7943 = vst [vmem:[%s7940 + $0x10] sm:$0xff] %v7903
          %7944 = vst [vmem:[%s7940 + $0x18] sm:$0xff] %v7904
          %7945 = vst [vmem:[%s7940 + $0x20] sm:$0xff] %v7905
          %7946 = vst [vmem:[%s7940 + $0x28] sm:$0xff] %v7906
          %7947 = vst [vmem:[%s7940 + $0x30] sm:$0xff] %v7907
          %7948 = vst [vmem:[%s7940 + $0x38] sm:$0xff] %v7908
          %7949 = vst [vmem:[%s7940 + $0x40] sm:$0xff] %v7909
          %7950 = vst [vmem:[%s7940 + $0x48] sm:$0xff] %v7910
          %7951 = vst [vmem:[%s7940 + $0x50] sm:$0xff] %v7917
          %7952 = vst [vmem:[%s7940 + $0x58] sm:$0xff] %v7924
          %7953 = vst [vmem:[%s7940 + $0x60] sm:$0xff] %v7931
          %7954 = vst [vmem:[%s7940 + $0x68] sm:$0xff] %v7938
        $region41: #{tpu_custom_call.1} parent=35 // loop_footer
          %s209 = sadd.s32 1, %s205
        $region42: #{tpu_custom_call.1} parent=35 // loop_footer_branch
          %204 = sbr.rel target = $region38
        $region43: #{tpu_custom_call.1} parent=35 // loop_exit
          _
        %s7955 = sand.u32 %s116, 1
        %s7956 = scalar_lea.sflag [#allocation4], %s7955
        %s7957 = sand.u32 %s116, 1
        %s7958 = smul.addr %s7957, 224
        %s7959 = scalar_lea.vmem [#allocation3], %s7958
        // Predicated region
        $region44: #{tpu_custom_call.1} parent=35 // pred_check
          %p7960 = pneg %p126
        $region45: #{tpu_custom_call.1} parent=35 // pred_check_branch
          %7962 = sbr.rel (%p7960) target = $region47
        $region46: #{tpu_custom_call.1} parent=35 // pred_region
          %s7963 = smul.u32 2, %s19
          %7965 = vsyncadd %s7956, 0
          %s7966 = smul.addr %s7963, 14
          %s7967 = smul.addr %s7966, 8
          %s7968 = scalar_lea.hbm %s4, %s7967
          %s7969 = sshll.u32 %s7959, 4
          %s7970 = int_to_ptr.vmem [resolvable:$true] %s7969
          %s7971 = sshll.u32 %s7968, 4
          %s7972 = int_to_ptr.hbm [resolvable:$true] %s7971
          %7977 = dma.vmem_to_hbm [thread:$0]  %s7970, 3584, %s7972, %s7956, 128, 128, 8
        $region47: #{tpu_custom_call.1} parent=35 // pred_fallthru
          _
      $region36: #{tpu_custom_call.1} parent=5 // pred_fallthru
        _
      %p7978 = scmp.le.s32.totalorder 2, %s14
      // Predicated region
      $region48: #{tpu_custom_call.1} parent=5 // pred_check
        %p7979 = pneg %p7978
      $region49: #{tpu_custom_call.1} parent=5 // pred_check_branch
        %7981 = sbr.rel (%p7979) target = $region51
      $region50: #{tpu_custom_call.1} parent=5 // pred_region
        %s7982 = ssub.s32 %s14, 2
        // Predicated region
        $region52: #{tpu_custom_call.1} parent=50 // pred_check
          %p7983 = pneg %p132
        $region53: #{tpu_custom_call.1} parent=50 // pred_check_branch
          %7985 = sbr.rel (%p7983) target = $region55
        $region54: #{tpu_custom_call.1} parent=50 // pred_region
          %s7986 = sand.u32 %s117, 1
          %s7987 = scalar_lea.sflag [#allocation4], %s7986
          %s7988 = sand.u32 %s117, 1
          %s7989 = smul.addr %s7988, 224
          %s7990 = scalar_lea.vmem [#allocation3], %s7989
          %7992 = dma.done %s7987, 3584
        $region55: #{tpu_custom_call.1} parent=50 // pred_fallthru
          _
      $region51: #{tpu_custom_call.1} parent=5 // pred_fallthru
        _
    $region6: #{tpu_custom_call.1} parent=1 // loop_footer
      %s18 = sadd.s32 1, %s14
    $region7: #{tpu_custom_call.1} parent=1 // loop_footer_branch
      %13 = sbr.rel target = $region3
    $region8: #{tpu_custom_call.1} parent=1 // loop_exit
      _
    %7993 = vsyncpa [#allocation4], 1
    %s7994 = scalar_lea.sflag [#allocation4], 1
    %7995 = vsyncpa %s7994, 1

</llo_original>
